<compile_context>
chip_gen: v5e
topology: v5e:2x2
jax: 0.10.0
libtpu: 0.0.40
codegen_flags: <defaults>
</compile_context>

<pallas_src>
import jax
import jax.numpy as jnp
from jax.experimental import pallas as pl
from jax.experimental.pallas import tpu as pltpu

LANE = 128  # pad channel-like dims to full lane width


def _round_up(x, m):
    return ((x + m - 1) // m) * m


# ----------------------------- fused Pallas kernel ---------------------------

def _make_kernel(rout, wp, front, read_base):
    """rout: #rows of the (H+2)x(W+2) padded grid, flattened.
    wp: padded width (row stride of the flattened padded grid).
    front: leading zero rows of the extended buffer (interior starts here).
    read_base: extended-row offset of tap (dh=0, dw=0) for output row 0."""

    def kernel(x_ref, mask_ref, w1_ref, b1_ref, w2_ref, b2_ref, w3_ref, b3_ref,
               fcw_ref, fcb_ref, o_ref, hbuf, h1buf):
        mask = mask_ref[...]                                    # (rout, Cp) f32

        def conv3x3(src_ref, w_ref):
            # 3x3 conv as 9 shifted matmuls over the extended row layout.
            acc = None
            for dh in range(3):
                for dw in range(3):
                    off = read_base + dh * wp + dw              # static offset
                    xs = src_ref[pl.ds(off, rout), :].astype(jnp.bfloat16)
                    p = jnp.dot(xs, w_ref[dh * 3 + dw],
                                preferred_element_type=jnp.float32)
                    acc = p if acc is None else acc + p
            return acc                                          # (rout, Cp) f32

        # Zero the extended activation buffers: their pad rows must stay zero
        # so the next layer's shifted reads see proper zero padding.
        hbuf[...] = jnp.zeros(hbuf.shape, hbuf.dtype)
        h1buf[...] = jnp.zeros(h1buf.shape, h1buf.dtype)

        # stem: conv + ReLU (mask kills garbage border rows = zero padding)
        h = jnp.maximum(conv3x3(x_ref, w1_ref) + b1_ref[...], 0.0) * mask
        hbuf[pl.ds(front, rout), :] = h

        # residual block, first conv + ReLU
        h1 = jnp.maximum(conv3x3(hbuf, w2_ref) + b2_ref[...], 0.0) * mask
        h1buf[pl.ds(front, rout), :] = h1

        # second conv + skip (re-read from VMEM) + ReLU
        skip = hbuf[pl.ds(front, rout), :]
        h2 = jnp.maximum(conv3x3(h1buf, w3_ref) + b3_ref[...] + skip, 0.0) * mask

        # fused head: global average pool (1/HW already folded into fc_w) + fc
        pooled = jnp.sum(h2, axis=0, keepdims=True)             # (1, Cp) f32
        o_ref[...] = (jnp.dot(pooled, fcw_ref[...],
                              preferred_element_type=jnp.float32)
                      + fcb_ref[...])

    return kernel


# ------------------------------ forward builder -------------------------------

def build_regnet_forward(H, W, in_channels, width, num_objects):
    assert in_channels <= LANE and width <= LANE and num_objects <= LANE
    cp = LANE
    pp = _round_up(num_objects, LANE)
    hp, wp = H + 2, W + 2
    rout = hp * wp                                   # flattened padded grid
    front = _round_up(wp + 1, 8)                     # aligned interior store
    r_ext = _round_up(front + rout + wp + 1, 8)      # extended buffer rows
    read_base = front - wp - 1                       # >= 0 by construction

    kernel = _make_kernel(rout, wp, front, read_base)

    def full_spec(shape):
        return pl.BlockSpec(shape, lambda b, _n=len(shape): (0,) * _n)

    def fwd(kparams, x):
        if isinstance(x, (list, tuple)):             # mirror PyTorch forward
            x = x[0]
        x = jnp.transpose(x, (0, 2, 3, 1)).astype(jnp.float32)   # NCHW -> NHWC
        N = x.shape[0]

        # pad channels to lane width, pad spatial by 1, flatten, extend rows
        xp = jnp.pad(x, ((0, 0), (1, 1), (1, 1), (0, cp - in_channels)))
        xp = xp.reshape(N, rout, cp)
        xp = jnp.pad(xp, ((0, 0), (front, r_ext - front - rout), (0, 0)))

        # interior mask of the padded grid (1 = real pixel, 0 = pad/border)
        mask = jnp.pad(jnp.ones((H, W), jnp.float32), ((1, 1), (1, 1)))
        mask = jnp.broadcast_to(mask.reshape(rout, 1), (rout, cp))

        out = pl.pallas_call(
            kernel,
            grid=(N,),
            in_specs=[
                pl.BlockSpec((None, r_ext, cp), lambda b: (b, 0, 0)),
                full_spec((rout, cp)),
                full_spec((9, cp, cp)), full_spec((1, cp)),
                full_spec((9, cp, cp)), full_spec((1, cp)),
                full_spec((9, cp, cp)), full_spec((1, cp)),
                full_spec((cp, pp)), full_spec((1, pp)),
            ],
            out_specs=pl.BlockSpec((None, 1, pp), lambda b: (b, 0, 0)),
            out_shape=jax.ShapeDtypeStruct((N, 1, pp), jnp.float32),
            scratch_shapes=[pltpu.VMEM((r_ext, cp), jnp.float32),
                            pltpu.VMEM((r_ext, cp), jnp.float32)],
            compiler_params=pltpu.CompilerParams(
                dimension_semantics=("parallel",),
                vmem_limit_bytes=32 * 1024 * 1024),
        )(xp, mask,
          kparams["w1"], kparams["b1"],
          kparams["w2"], kparams["b2"],
          kparams["w3"], kparams["b3"],
          kparams["fc_w"], kparams["fc_b"])

        return out[:, 0, :num_objects]

    return jax.jit(fwd)


# --------------------------------- params -------------------------------------

def init_params(key, in_channels=4, width=16, num_objects=8, pool_hw=256):
    """Deterministic stand-in backbone params, padded to kernel layout."""
    cp = LANE
    pp = _round_up(num_objects, LANE)
    ks = jax.random.split(key, 8)

    def conv(k, cin, cout):
        w = (jax.random.normal(k, (3, 3, cin, cout), jnp.float32)
             / jnp.sqrt(9.0 * cin))
        full = jnp.zeros((9, cp, cp), jnp.float32)
        full = full.at[:, :cin, :cout].set(w.reshape(9, cin, cout))
        return full.astype(jnp.bfloat16)             # bf16 feeds the MXU

    def bias(k, cout):
        b = jax.random.normal(k, (cout,), jnp.float32) * 0.01
        return jnp.zeros((1, cp), jnp.float32).at[0, :cout].set(b)

    fc_w = (jax.random.normal(ks[6], (width, num_objects), jnp.float32)
            / jnp.sqrt(float(width)))
    fc_w_full = jnp.zeros((cp, pp), jnp.float32).at[:width, :num_objects].set(fc_w)
    fc_w_full = fc_w_full * (1.0 / float(pool_hw))   # fold avg-pool scale
    fc_b = jax.random.normal(ks[7], (num_objects,), jnp.float32) * 0.01
    fc_b_full = jnp.zeros((1, pp), jnp.float32).at[0, :num_objects].set(fc_b)

    return {
        "w1": conv(ks[0], in_channels, width), "b1": bias(ks[1], width),
        "w2": conv(ks[2], width, width),       "b2": bias(ks[3], width),
        "w3": conv(ks[4], width, width),       "b3": bias(ks[5], width),
        "fc_w": fc_w_full, "fc_b": fc_b_full,
    }


# ---------------------------------- main ---------------------------------------

if __name__ == "__main__":
    key = jax.random.PRNGKey(0)
    k_param, k_x = jax.random.split(key)

    batch, channels, spatial, width, num_objects = 2, 4, 16, 16, 8

    params = init_params(k_param, in_channels=channels, width=width,
                         num_objects=num_objects, pool_hw=spatial * spatial)
    regnet_forward = build_regnet_forward(spatial, spatial, channels, width,
                                          num_objects)

    x = jax.random.normal(k_x, (batch, channels, spatial, spatial), jnp.float32)

    out = jax.block_until_ready(regnet_forward(params, x))
    assert out.shape == (batch, num_objects), out.shape
    assert bool(jnp.all(jnp.isfinite(out)))
    print("KERNEL_OK")
</pallas_src>

<mosaic_0001>
module attributes {stable_mosaic.version = 11 : i64} {
  func.func @kernel(%arg0: i32, %arg1: memref<1x368x128xf32, #tpu.memory_space<vmem>>, %arg2: memref<324x128xf32, #tpu.memory_space<vmem>>, %arg3: memref<9x128x128xbf16, #tpu.memory_space<vmem>>, %arg4: memref<1x128xf32, #tpu.memory_space<vmem>>, %arg5: memref<9x128x128xbf16, #tpu.memory_space<vmem>>, %arg6: memref<1x128xf32, #tpu.memory_space<vmem>>, %arg7: memref<9x128x128xbf16, #tpu.memory_space<vmem>>, %arg8: memref<1x128xf32, #tpu.memory_space<vmem>>, %arg9: memref<128x128xf32, #tpu.memory_space<vmem>>, %arg10: memref<1x128xf32, #tpu.memory_space<vmem>>, %arg11: memref<1x1x128xf32, #tpu.memory_space<vmem>>, %arg12: memref<368x128xf32, #tpu.memory_space<vmem>>, %arg13: memref<368x128xf32, #tpu.memory_space<vmem>>) attributes {dimension_semantics = [#tpu.dimension_semantics<parallel>], iteration_bounds = array<i64: 2>, scalar_prefetch = 0 : i64, scratch_operands = 2 : i64, tpu.core_type = #tpu.core_type<tc>, window_params = [{transform_indices = @transform_0, window_bounds = array<i64: 1, 368, 128>}, {pipeline_mode = #tpu.pipeline_mode<synchronous>, transform_indices = @transform_1, window_bounds = array<i64: 324, 128>}, {pipeline_mode = #tpu.pipeline_mode<synchronous>, transform_indices = @transform_2, window_bounds = array<i64: 9, 128, 128>}, {pipeline_mode = #tpu.pipeline_mode<synchronous>, transform_indices = @transform_3, window_bounds = array<i64: 1, 128>}, {pipeline_mode = #tpu.pipeline_mode<synchronous>, transform_indices = @transform_4, window_bounds = array<i64: 9, 128, 128>}, {pipeline_mode = #tpu.pipeline_mode<synchronous>, transform_indices = @transform_5, window_bounds = array<i64: 1, 128>}, {pipeline_mode = #tpu.pipeline_mode<synchronous>, transform_indices = @transform_6, window_bounds = array<i64: 9, 128, 128>}, {pipeline_mode = #tpu.pipeline_mode<synchronous>, transform_indices = @transform_7, window_bounds = array<i64: 1, 128>}, {pipeline_mode = #tpu.pipeline_mode<synchronous>, transform_indices = @transform_8, window_bounds = array<i64: 128, 128>}, {pipeline_mode = #tpu.pipeline_mode<synchronous>, transform_indices = @transform_9, window_bounds = array<i64: 1, 128>}, {transform_indices = @transform_10, window_bounds = array<i64: 1, 1, 128>}]} {
    %c0 = arith.constant 0 : index
    %c0_0 = arith.constant 0 : index
    %0 = vector.load %arg2[%c0, %c0_0] : memref<324x128xf32, #tpu.memory_space<vmem>>, vector<324x128xf32>
    %cst = arith.constant 0.000000e+00 : f32
    %1 = vector.broadcast %cst : f32 to vector<368x128xf32>
    %c0_1 = arith.constant 0 : index
    %c0_2 = arith.constant 0 : index
    %2 = vector.load %arg12[%c0_1, %c0_2] : memref<368x128xf32, #tpu.memory_space<vmem>>, vector<368x128xf32>
    tpu.vector_store %arg12[%c0_1, %c0_2], %1 {strides = array<i32>} : memref<368x128xf32, #tpu.memory_space<vmem>>, vector<368x128xf32>,
    %cst_3 = arith.constant 0.000000e+00 : f32
    %3 = vector.broadcast %cst_3 : f32 to vector<368x128xf32>
    %c0_4 = arith.constant 0 : index
    %c0_5 = arith.constant 0 : index
    %4 = vector.load %arg13[%c0_4, %c0_5] : memref<368x128xf32, #tpu.memory_space<vmem>>, vector<368x128xf32>
    tpu.vector_store %arg13[%c0_4, %c0_5], %3 {strides = array<i32>} : memref<368x128xf32, #tpu.memory_space<vmem>>, vector<368x128xf32>,
    %c0_6 = arith.constant 0 : index
    %c5 = arith.constant 5 : index
    %c0_7 = arith.constant 0 : index
    %5 = vector.load %arg1[%c0_6, %c5, %c0_7] : memref<1x368x128xf32, #tpu.memory_space<vmem>>, vector<1x324x128xf32>
    %6 = vector.shape_cast %5 : vector<1x324x128xf32> to vector<324x128xf32>
    %7 = arith.truncf %6 : vector<324x128xf32> to vector<324x128xbf16>
    %c0_8 = arith.constant 0 : index
    %c0_9 = arith.constant 0 : index
    %c0_10 = arith.constant 0 : index
    %8 = vector.load %arg3[%c0_8, %c0_9, %c0_10] : memref<9x128x128xbf16, #tpu.memory_space<vmem>>, vector<1x128x128xbf16>
    %9 = vector.shape_cast %8 : vector<1x128x128xbf16> to vector<128x128xbf16>
    %cst_11 = arith.constant dense<0.000000e+00> : vector<324x128xf32>
    %10 = tpu.matmul %7, %9, %cst_11 {dimension_numbers = #tpu.dot_dimension_numbers<[1], [0], [0], [1], [0, 0, 1, 1], [], []>} : vector<324x128xbf16>, vector<128x128xbf16>, vector<324x128xf32> -> vector<324x128xf32>
    %c0_12 = arith.constant 0 : index
    %c6 = arith.constant 6 : index
    %c0_13 = arith.constant 0 : index
    %11 = vector.load %arg1[%c0_12, %c6, %c0_13] : memref<1x368x128xf32, #tpu.memory_space<vmem>>, vector<1x324x128xf32>
    %12 = vector.shape_cast %11 : vector<1x324x128xf32> to vector<324x128xf32>
    %13 = arith.truncf %12 : vector<324x128xf32> to vector<324x128xbf16>
    %c1 = arith.constant 1 : index
    %c0_14 = arith.constant 0 : index
    %c0_15 = arith.constant 0 : index
    %14 = vector.load %arg3[%c1, %c0_14, %c0_15] : memref<9x128x128xbf16, #tpu.memory_space<vmem>>, vector<1x128x128xbf16>
    %15 = vector.shape_cast %14 : vector<1x128x128xbf16> to vector<128x128xbf16>
    %cst_16 = arith.constant dense<0.000000e+00> : vector<324x128xf32>
    %16 = tpu.matmul %13, %15, %cst_16 {dimension_numbers = #tpu.dot_dimension_numbers<[1], [0], [0], [1], [0, 0, 1, 1], [], []>} : vector<324x128xbf16>, vector<128x128xbf16>, vector<324x128xf32> -> vector<324x128xf32>
    %17 = arith.addf %10, %16 : vector<324x128xf32>
    %c0_17 = arith.constant 0 : index
    %c7 = arith.constant 7 : index
    %c0_18 = arith.constant 0 : index
    %18 = vector.load %arg1[%c0_17, %c7, %c0_18] : memref<1x368x128xf32, #tpu.memory_space<vmem>>, vector<1x324x128xf32>
    %19 = vector.shape_cast %18 : vector<1x324x128xf32> to vector<324x128xf32>
    %20 = arith.truncf %19 : vector<324x128xf32> to vector<324x128xbf16>
    %c2 = arith.constant 2 : index
    %c0_19 = arith.constant 0 : index
    %c0_20 = arith.constant 0 : index
    %21 = vector.load %arg3[%c2, %c0_19, %c0_20] : memref<9x128x128xbf16, #tpu.memory_space<vmem>>, vector<1x128x128xbf16>
    %22 = vector.shape_cast %21 : vector<1x128x128xbf16> to vector<128x128xbf16>
    %cst_21 = arith.constant dense<0.000000e+00> : vector<324x128xf32>
    %23 = tpu.matmul %20, %22, %cst_21 {dimension_numbers = #tpu.dot_dimension_numbers<[1], [0], [0], [1], [0, 0, 1, 1], [], []>} : vector<324x128xbf16>, vector<128x128xbf16>, vector<324x128xf32> -> vector<324x128xf32>
    %24 = arith.addf %17, %23 : vector<324x128xf32>
    %c0_22 = arith.constant 0 : index
    %c23 = arith.constant 23 : index
    %c0_23 = arith.constant 0 : index
    %25 = vector.load %arg1[%c0_22, %c23, %c0_23] : memref<1x368x128xf32, #tpu.memory_space<vmem>>, vector<1x324x128xf32>
    %26 = vector.shape_cast %25 : vector<1x324x128xf32> to vector<324x128xf32>
    %27 = arith.truncf %26 : vector<324x128xf32> to vector<324x128xbf16>
    %c3 = arith.constant 3 : index
    %c0_24 = arith.constant 0 : index
    %c0_25 = arith.constant 0 : index
    %28 = vector.load %arg3[%c3, %c0_24, %c0_25] : memref<9x128x128xbf16, #tpu.memory_space<vmem>>, vector<1x128x128xbf16>
    %29 = vector.shape_cast %28 : vector<1x128x128xbf16> to vector<128x128xbf16>
    %cst_26 = arith.constant dense<0.000000e+00> : vector<324x128xf32>
    %30 = tpu.matmul %27, %29, %cst_26 {dimension_numbers = #tpu.dot_dimension_numbers<[1], [0], [0], [1], [0, 0, 1, 1], [], []>} : vector<324x128xbf16>, vector<128x128xbf16>, vector<324x128xf32> -> vector<324x128xf32>
    %31 = arith.addf %24, %30 : vector<324x128xf32>
    %c0_27 = arith.constant 0 : index
    %c24 = arith.constant 24 : index
    %c0_28 = arith.constant 0 : index
    %32 = vector.load %arg1[%c0_27, %c24, %c0_28] : memref<1x368x128xf32, #tpu.memory_space<vmem>>, vector<1x324x128xf32>
    %33 = vector.shape_cast %32 : vector<1x324x128xf32> to vector<324x128xf32>
    %34 = arith.truncf %33 : vector<324x128xf32> to vector<324x128xbf16>
    %c4 = arith.constant 4 : index
    %c0_29 = arith.constant 0 : index
    %c0_30 = arith.constant 0 : index
    %35 = vector.load %arg3[%c4, %c0_29, %c0_30] : memref<9x128x128xbf16, #tpu.memory_space<vmem>>, vector<1x128x128xbf16>
    %36 = vector.shape_cast %35 : vector<1x128x128xbf16> to vector<128x128xbf16>
    %cst_31 = arith.constant dense<0.000000e+00> : vector<324x128xf32>
    %37 = tpu.matmul %34, %36, %cst_31 {dimension_numbers = #tpu.dot_dimension_numbers<[1], [0], [0], [1], [0, 0, 1, 1], [], []>} : vector<324x128xbf16>, vector<128x128xbf16>, vector<324x128xf32> -> vector<324x128xf32>
    %38 = arith.addf %31, %37 : vector<324x128xf32>
    %c0_32 = arith.constant 0 : index
    %c25 = arith.constant 25 : index
    %c0_33 = arith.constant 0 : index
    %39 = vector.load %arg1[%c0_32, %c25, %c0_33] : memref<1x368x128xf32, #tpu.memory_space<vmem>>, vector<1x324x128xf32>
    %40 = vector.shape_cast %39 : vector<1x324x128xf32> to vector<324x128xf32>
    %41 = arith.truncf %40 : vector<324x128xf32> to vector<324x128xbf16>
    %c5_34 = arith.constant 5 : index
    %c0_35 = arith.constant 0 : index
    %c0_36 = arith.constant 0 : index
    %42 = vector.load %arg3[%c5_34, %c0_35, %c0_36] : memref<9x128x128xbf16, #tpu.memory_space<vmem>>, vector<1x128x128xbf16>
    %43 = vector.shape_cast %42 : vector<1x128x128xbf16> to vector<128x128xbf16>
    %cst_37 = arith.constant dense<0.000000e+00> : vector<324x128xf32>
    %44 = tpu.matmul %41, %43, %cst_37 {dimension_numbers = #tpu.dot_dimension_numbers<[1], [0], [0], [1], [0, 0, 1, 1], [], []>} : vector<324x128xbf16>, vector<128x128xbf16>, vector<324x128xf32> -> vector<324x128xf32>
    %45 = arith.addf %38, %44 : vector<324x128xf32>
    %c0_38 = arith.constant 0 : index
    %c41 = arith.constant 41 : index
    %c0_39 = arith.constant 0 : index
    %46 = vector.load %arg1[%c0_38, %c41, %c0_39] : memref<1x368x128xf32, #tpu.memory_space<vmem>>, vector<1x324x128xf32>
    %47 = vector.shape_cast %46 : vector<1x324x128xf32> to vector<324x128xf32>
    %48 = arith.truncf %47 : vector<324x128xf32> to vector<324x128xbf16>
    %c6_40 = arith.constant 6 : index
    %c0_41 = arith.constant 0 : index
    %c0_42 = arith.constant 0 : index
    %49 = vector.load %arg3[%c6_40, %c0_41, %c0_42] : memref<9x128x128xbf16, #tpu.memory_space<vmem>>, vector<1x128x128xbf16>
    %50 = vector.shape_cast %49 : vector<1x128x128xbf16> to vector<128x128xbf16>
    %cst_43 = arith.constant dense<0.000000e+00> : vector<324x128xf32>
    %51 = tpu.matmul %48, %50, %cst_43 {dimension_numbers = #tpu.dot_dimension_numbers<[1], [0], [0], [1], [0, 0, 1, 1], [], []>} : vector<324x128xbf16>, vector<128x128xbf16>, vector<324x128xf32> -> vector<324x128xf32>
    %52 = arith.addf %45, %51 : vector<324x128xf32>
    %c0_44 = arith.constant 0 : index
    %c42 = arith.constant 42 : index
    %c0_45 = arith.constant 0 : index
    %53 = vector.load %arg1[%c0_44, %c42, %c0_45] : memref<1x368x128xf32, #tpu.memory_space<vmem>>, vector<1x324x128xf32>
    %54 = vector.shape_cast %53 : vector<1x324x128xf32> to vector<324x128xf32>
    %55 = arith.truncf %54 : vector<324x128xf32> to vector<324x128xbf16>
    %c7_46 = arith.constant 7 : index
    %c0_47 = arith.constant 0 : index
    %c0_48 = arith.constant 0 : index
    %56 = vector.load %arg3[%c7_46, %c0_47, %c0_48] : memref<9x128x128xbf16, #tpu.memory_space<vmem>>, vector<1x128x128xbf16>
    %57 = vector.shape_cast %56 : vector<1x128x128xbf16> to vector<128x128xbf16>
    %cst_49 = arith.constant dense<0.000000e+00> : vector<324x128xf32>
    %58 = tpu.matmul %55, %57, %cst_49 {dimension_numbers = #tpu.dot_dimension_numbers<[1], [0], [0], [1], [0, 0, 1, 1], [], []>} : vector<324x128xbf16>, vector<128x128xbf16>, vector<324x128xf32> -> vector<324x128xf32>
    %59 = arith.addf %52, %58 : vector<324x128xf32>
    %c0_50 = arith.constant 0 : index
    %c43 = arith.constant 43 : index
    %c0_51 = arith.constant 0 : index
    %60 = vector.load %arg1[%c0_50, %c43, %c0_51] : memref<1x368x128xf32, #tpu.memory_space<vmem>>, vector<1x324x128xf32>
    %61 = vector.shape_cast %60 : vector<1x324x128xf32> to vector<324x128xf32>
    %62 = arith.truncf %61 : vector<324x128xf32> to vector<324x128xbf16>
    %c8 = arith.constant 8 : index
    %c0_52 = arith.constant 0 : index
    %c0_53 = arith.constant 0 : index
    %63 = vector.load %arg3[%c8, %c0_52, %c0_53] : memref<9x128x128xbf16, #tpu.memory_space<vmem>>, vector<1x128x128xbf16>
    %64 = vector.shape_cast %63 : vector<1x128x128xbf16> to vector<128x128xbf16>
    %cst_54 = arith.constant dense<0.000000e+00> : vector<324x128xf32>
    %65 = tpu.matmul %62, %64, %cst_54 {dimension_numbers = #tpu.dot_dimension_numbers<[1], [0], [0], [1], [0, 0, 1, 1], [], []>} : vector<324x128xbf16>, vector<128x128xbf16>, vector<324x128xf32> -> vector<324x128xf32>
    %66 = arith.addf %59, %65 : vector<324x128xf32>
    %c0_55 = arith.constant 0 : index
    %c0_56 = arith.constant 0 : index
    %67 = vector.load %arg4[%c0_55, %c0_56] : memref<1x128xf32, #tpu.memory_space<vmem>>, vector<1x128xf32>
    %68 = vector.broadcast %67 : vector<1x128xf32> to vector<324x128xf32>
    %69 = arith.addf %66, %68 : vector<324x128xf32>
    %cst_57 = arith.constant 0.000000e+00 : f32
    %70 = vector.broadcast %cst_57 : f32 to vector<324x128xf32>
    %71 = arith.maximumf %69, %70 : vector<324x128xf32>
    %72 = arith.mulf %71, %0 : vector<324x128xf32>
    %c24_58 = arith.constant 24 : index
    %c0_59 = arith.constant 0 : index
    %73 = vector.load %arg12[%c24_58, %c0_59] : memref<368x128xf32, #tpu.memory_space<vmem>>, vector<324x128xf32>
    tpu.vector_store %arg12[%c24_58, %c0_59], %72 {strides = array<i32>} : memref<368x128xf32, #tpu.memory_space<vmem>>, vector<324x128xf32>,
    %c5_60 = arith.constant 5 : index
    %c0_61 = arith.constant 0 : index
    %74 = vector.load %arg12[%c5_60, %c0_61] : memref<368x128xf32, #tpu.memory_space<vmem>>, vector<324x128xf32>
    %75 = arith.truncf %74 : vector<324x128xf32> to vector<324x128xbf16>
    %c0_62 = arith.constant 0 : index
    %c0_63 = arith.constant 0 : index
    %c0_64 = arith.constant 0 : index
    %76 = vector.load %arg5[%c0_62, %c0_63, %c0_64] : memref<9x128x128xbf16, #tpu.memory_space<vmem>>, vector<1x128x128xbf16>
    %77 = vector.shape_cast %76 : vector<1x128x128xbf16> to vector<128x128xbf16>
    %cst_65 = arith.constant dense<0.000000e+00> : vector<324x128xf32>
    %78 = tpu.matmul %75, %77, %cst_65 {dimension_numbers = #tpu.dot_dimension_numbers<[1], [0], [0], [1], [0, 0, 1, 1], [], []>} : vector<324x128xbf16>, vector<128x128xbf16>, vector<324x128xf32> -> vector<324x128xf32>
    %c6_66 = arith.constant 6 : index
    %c0_67 = arith.constant 0 : index
    %79 = vector.load %arg12[%c6_66, %c0_67] : memref<368x128xf32, #tpu.memory_space<vmem>>, vector<324x128xf32>
    %80 = arith.truncf %79 : vector<324x128xf32> to vector<324x128xbf16>
    %c1_68 = arith.constant 1 : index
    %c0_69 = arith.constant 0 : index
    %c0_70 = arith.constant 0 : index
    %81 = vector.load %arg5[%c1_68, %c0_69, %c0_70] : memref<9x128x128xbf16, #tpu.memory_space<vmem>>, vector<1x128x128xbf16>
    %82 = vector.shape_cast %81 : vector<1x128x128xbf16> to vector<128x128xbf16>
    %cst_71 = arith.constant dense<0.000000e+00> : vector<324x128xf32>
    %83 = tpu.matmul %80, %82, %cst_71 {dimension_numbers = #tpu.dot_dimension_numbers<[1], [0], [0], [1], [0, 0, 1, 1], [], []>} : vector<324x128xbf16>, vector<128x128xbf16>, vector<324x128xf32> -> vector<324x128xf32>
    %84 = arith.addf %78, %83 : vector<324x128xf32>
    %c7_72 = arith.constant 7 : index
    %c0_73 = arith.constant 0 : index
    %85 = vector.load %arg12[%c7_72, %c0_73] : memref<368x128xf32, #tpu.memory_space<vmem>>, vector<324x128xf32>
    %86 = arith.truncf %85 : vector<324x128xf32> to vector<324x128xbf16>
    %c2_74 = arith.constant 2 : index
    %c0_75 = arith.constant 0 : index
    %c0_76 = arith.constant 0 : index
    %87 = vector.load %arg5[%c2_74, %c0_75, %c0_76] : memref<9x128x128xbf16, #tpu.memory_space<vmem>>, vector<1x128x128xbf16>
    %88 = vector.shape_cast %87 : vector<1x128x128xbf16> to vector<128x128xbf16>
    %cst_77 = arith.constant dense<0.000000e+00> : vector<324x128xf32>
    %89 = tpu.matmul %86, %88, %cst_77 {dimension_numbers = #tpu.dot_dimension_numbers<[1], [0], [0], [1], [0, 0, 1, 1], [], []>} : vector<324x128xbf16>, vector<128x128xbf16>, vector<324x128xf32> -> vector<324x128xf32>
    %90 = arith.addf %84, %89 : vector<324x128xf32>
    %c23_78 = arith.constant 23 : index
    %c0_79 = arith.constant 0 : index
    %91 = vector.load %arg12[%c23_78, %c0_79] : memref<368x128xf32, #tpu.memory_space<vmem>>, vector<324x128xf32>
    %92 = arith.truncf %91 : vector<324x128xf32> to vector<324x128xbf16>
    %c3_80 = arith.constant 3 : index
    %c0_81 = arith.constant 0 : index
    %c0_82 = arith.constant 0 : index
    %93 = vector.load %arg5[%c3_80, %c0_81, %c0_82] : memref<9x128x128xbf16, #tpu.memory_space<vmem>>, vector<1x128x128xbf16>
    %94 = vector.shape_cast %93 : vector<1x128x128xbf16> to vector<128x128xbf16>
    %cst_83 = arith.constant dense<0.000000e+00> : vector<324x128xf32>
    %95 = tpu.matmul %92, %94, %cst_83 {dimension_numbers = #tpu.dot_dimension_numbers<[1], [0], [0], [1], [0, 0, 1, 1], [], []>} : vector<324x128xbf16>, vector<128x128xbf16>, vector<324x128xf32> -> vector<324x128xf32>
    %96 = arith.addf %90, %95 : vector<324x128xf32>
    %c24_84 = arith.constant 24 : index
    %c0_85 = arith.constant 0 : index
    %97 = vector.load %arg12[%c24_84, %c0_85] : memref<368x128xf32, #tpu.memory_space<vmem>>, vector<324x128xf32>
    %98 = arith.truncf %97 : vector<324x128xf32> to vector<324x128xbf16>
    %c4_86 = arith.constant 4 : index
    %c0_87 = arith.constant 0 : index
    %c0_88 = arith.constant 0 : index
    %99 = vector.load %arg5[%c4_86, %c0_87, %c0_88] : memref<9x128x128xbf16, #tpu.memory_space<vmem>>, vector<1x128x128xbf16>
    %100 = vector.shape_cast %99 : vector<1x128x128xbf16> to vector<128x128xbf16>
    %cst_89 = arith.constant dense<0.000000e+00> : vector<324x128xf32>
    %101 = tpu.matmul %98, %100, %cst_89 {dimension_numbers = #tpu.dot_dimension_numbers<[1], [0], [0], [1], [0, 0, 1, 1], [], []>} : vector<324x128xbf16>, vector<128x128xbf16>, vector<324x128xf32> -> vector<324x128xf32>
    %102 = arith.addf %96, %101 : vector<324x128xf32>
    %c25_90 = arith.constant 25 : index
    %c0_91 = arith.constant 0 : index
    %103 = vector.load %arg12[%c25_90, %c0_91] : memref<368x128xf32, #tpu.memory_space<vmem>>, vector<324x128xf32>
    %104 = arith.truncf %103 : vector<324x128xf32> to vector<324x128xbf16>
    %c5_92 = arith.constant 5 : index
    %c0_93 = arith.constant 0 : index
    %c0_94 = arith.constant 0 : index
    %105 = vector.load %arg5[%c5_92, %c0_93, %c0_94] : memref<9x128x128xbf16, #tpu.memory_space<vmem>>, vector<1x128x128xbf16>
    %106 = vector.shape_cast %105 : vector<1x128x128xbf16> to vector<128x128xbf16>
    %cst_95 = arith.constant dense<0.000000e+00> : vector<324x128xf32>
    %107 = tpu.matmul %104, %106, %cst_95 {dimension_numbers = #tpu.dot_dimension_numbers<[1], [0], [0], [1], [0, 0, 1, 1], [], []>} : vector<324x128xbf16>, vector<128x128xbf16>, vector<324x128xf32> -> vector<324x128xf32>
    %108 = arith.addf %102, %107 : vector<324x128xf32>
    %c41_96 = arith.constant 41 : index
    %c0_97 = arith.constant 0 : index
    %109 = vector.load %arg12[%c41_96, %c0_97] : memref<368x128xf32, #tpu.memory_space<vmem>>, vector<324x128xf32>
    %110 = arith.truncf %109 : vector<324x128xf32> to vector<324x128xbf16>
    %c6_98 = arith.constant 6 : index
    %c0_99 = arith.constant 0 : index
    %c0_100 = arith.constant 0 : index
    %111 = vector.load %arg5[%c6_98, %c0_99, %c0_100] : memref<9x128x128xbf16, #tpu.memory_space<vmem>>, vector<1x128x128xbf16>
    %112 = vector.shape_cast %111 : vector<1x128x128xbf16> to vector<128x128xbf16>
    %cst_101 = arith.constant dense<0.000000e+00> : vector<324x128xf32>
    %113 = tpu.matmul %110, %112, %cst_101 {dimension_numbers = #tpu.dot_dimension_numbers<[1], [0], [0], [1], [0, 0, 1, 1], [], []>} : vector<324x128xbf16>, vector<128x128xbf16>, vector<324x128xf32> -> vector<324x128xf32>
    %114 = arith.addf %108, %113 : vector<324x128xf32>
    %c42_102 = arith.constant 42 : index
    %c0_103 = arith.constant 0 : index
    %115 = vector.load %arg12[%c42_102, %c0_103] : memref<368x128xf32, #tpu.memory_space<vmem>>, vector<324x128xf32>
    %116 = arith.truncf %115 : vector<324x128xf32> to vector<324x128xbf16>
    %c7_104 = arith.constant 7 : index
    %c0_105 = arith.constant 0 : index
    %c0_106 = arith.constant 0 : index
    %117 = vector.load %arg5[%c7_104, %c0_105, %c0_106] : memref<9x128x128xbf16, #tpu.memory_space<vmem>>, vector<1x128x128xbf16>
    %118 = vector.shape_cast %117 : vector<1x128x128xbf16> to vector<128x128xbf16>
    %cst_107 = arith.constant dense<0.000000e+00> : vector<324x128xf32>
    %119 = tpu.matmul %116, %118, %cst_107 {dimension_numbers = #tpu.dot_dimension_numbers<[1], [0], [0], [1], [0, 0, 1, 1], [], []>} : vector<324x128xbf16>, vector<128x128xbf16>, vector<324x128xf32> -> vector<324x128xf32>
    %120 = arith.addf %114, %119 : vector<324x128xf32>
    %c43_108 = arith.constant 43 : index
    %c0_109 = arith.constant 0 : index
    %121 = vector.load %arg12[%c43_108, %c0_109] : memref<368x128xf32, #tpu.memory_space<vmem>>, vector<324x128xf32>
    %122 = arith.truncf %121 : vector<324x128xf32> to vector<324x128xbf16>
    %c8_110 = arith.constant 8 : index
    %c0_111 = arith.constant 0 : index
    %c0_112 = arith.constant 0 : index
    %123 = vector.load %arg5[%c8_110, %c0_111, %c0_112] : memref<9x128x128xbf16, #tpu.memory_space<vmem>>, vector<1x128x128xbf16>
    %124 = vector.shape_cast %123 : vector<1x128x128xbf16> to vector<128x128xbf16>
    %cst_113 = arith.constant dense<0.000000e+00> : vector<324x128xf32>
    %125 = tpu.matmul %122, %124, %cst_113 {dimension_numbers = #tpu.dot_dimension_numbers<[1], [0], [0], [1], [0, 0, 1, 1], [], []>} : vector<324x128xbf16>, vector<128x128xbf16>, vector<324x128xf32> -> vector<324x128xf32>
    %126 = arith.addf %120, %125 : vector<324x128xf32>
    %c0_114 = arith.constant 0 : index
    %c0_115 = arith.constant 0 : index
    %127 = vector.load %arg6[%c0_114, %c0_115] : memref<1x128xf32, #tpu.memory_space<vmem>>, vector<1x128xf32>
    %128 = vector.broadcast %127 : vector<1x128xf32> to vector<324x128xf32>
    %129 = arith.addf %126, %128 : vector<324x128xf32>
    %cst_116 = arith.constant 0.000000e+00 : f32
    %130 = vector.broadcast %cst_116 : f32 to vector<324x128xf32>
    %131 = arith.maximumf %129, %130 : vector<324x128xf32>
    %132 = arith.mulf %131, %0 : vector<324x128xf32>
    %c24_117 = arith.constant 24 : index
    %c0_118 = arith.constant 0 : index
    %133 = vector.load %arg13[%c24_117, %c0_118] : memref<368x128xf32, #tpu.memory_space<vmem>>, vector<324x128xf32>
    tpu.vector_store %arg13[%c24_117, %c0_118], %132 {strides = array<i32>} : memref<368x128xf32, #tpu.memory_space<vmem>>, vector<324x128xf32>,
    %c24_119 = arith.constant 24 : index
    %c0_120 = arith.constant 0 : index
    %134 = vector.load %arg12[%c24_119, %c0_120] : memref<368x128xf32, #tpu.memory_space<vmem>>, vector<324x128xf32>
    %c5_121 = arith.constant 5 : index
    %c0_122 = arith.constant 0 : index
    %135 = vector.load %arg13[%c5_121, %c0_122] : memref<368x128xf32, #tpu.memory_space<vmem>>, vector<324x128xf32>
    %136 = arith.truncf %135 : vector<324x128xf32> to vector<324x128xbf16>
    %c0_123 = arith.constant 0 : index
    %c0_124 = arith.constant 0 : index
    %c0_125 = arith.constant 0 : index
    %137 = vector.load %arg7[%c0_123, %c0_124, %c0_125] : memref<9x128x128xbf16, #tpu.memory_space<vmem>>, vector<1x128x128xbf16>
    %138 = vector.shape_cast %137 : vector<1x128x128xbf16> to vector<128x128xbf16>
    %cst_126 = arith.constant dense<0.000000e+00> : vector<324x128xf32>
    %139 = tpu.matmul %136, %138, %cst_126 {dimension_numbers = #tpu.dot_dimension_numbers<[1], [0], [0], [1], [0, 0, 1, 1], [], []>} : vector<324x128xbf16>, vector<128x128xbf16>, vector<324x128xf32> -> vector<324x128xf32>
    %c6_127 = arith.constant 6 : index
    %c0_128 = arith.constant 0 : index
    %140 = vector.load %arg13[%c6_127, %c0_128] : memref<368x128xf32, #tpu.memory_space<vmem>>, vector<324x128xf32>
    %141 = arith.truncf %140 : vector<324x128xf32> to vector<324x128xbf16>
    %c1_129 = arith.constant 1 : index
    %c0_130 = arith.constant 0 : index
    %c0_131 = arith.constant 0 : index
    %142 = vector.load %arg7[%c1_129, %c0_130, %c0_131] : memref<9x128x128xbf16, #tpu.memory_space<vmem>>, vector<1x128x128xbf16>
    %143 = vector.shape_cast %142 : vector<1x128x128xbf16> to vector<128x128xbf16>
    %cst_132 = arith.constant dense<0.000000e+00> : vector<324x128xf32>
    %144 = tpu.matmul %141, %143, %cst_132 {dimension_numbers = #tpu.dot_dimension_numbers<[1], [0], [0], [1], [0, 0, 1, 1], [], []>} : vector<324x128xbf16>, vector<128x128xbf16>, vector<324x128xf32> -> vector<324x128xf32>
    %145 = arith.addf %139, %144 : vector<324x128xf32>
    %c7_133 = arith.constant 7 : index
    %c0_134 = arith.constant 0 : index
    %146 = vector.load %arg13[%c7_133, %c0_134] : memref<368x128xf32, #tpu.memory_space<vmem>>, vector<324x128xf32>
    %147 = arith.truncf %146 : vector<324x128xf32> to vector<324x128xbf16>
    %c2_135 = arith.constant 2 : index
    %c0_136 = arith.constant 0 : index
    %c0_137 = arith.constant 0 : index
    %148 = vector.load %arg7[%c2_135, %c0_136, %c0_137] : memref<9x128x128xbf16, #tpu.memory_space<vmem>>, vector<1x128x128xbf16>
    %149 = vector.shape_cast %148 : vector<1x128x128xbf16> to vector<128x128xbf16>
    %cst_138 = arith.constant dense<0.000000e+00> : vector<324x128xf32>
    %150 = tpu.matmul %147, %149, %cst_138 {dimension_numbers = #tpu.dot_dimension_numbers<[1], [0], [0], [1], [0, 0, 1, 1], [], []>} : vector<324x128xbf16>, vector<128x128xbf16>, vector<324x128xf32> -> vector<324x128xf32>
    %151 = arith.addf %145, %150 : vector<324x128xf32>
    %c23_139 = arith.constant 23 : index
    %c0_140 = arith.constant 0 : index
    %152 = vector.load %arg13[%c23_139, %c0_140] : memref<368x128xf32, #tpu.memory_space<vmem>>, vector<324x128xf32>
    %153 = arith.truncf %152 : vector<324x128xf32> to vector<324x128xbf16>
    %c3_141 = arith.constant 3 : index
    %c0_142 = arith.constant 0 : index
    %c0_143 = arith.constant 0 : index
    %154 = vector.load %arg7[%c3_141, %c0_142, %c0_143] : memref<9x128x128xbf16, #tpu.memory_space<vmem>>, vector<1x128x128xbf16>
    %155 = vector.shape_cast %154 : vector<1x128x128xbf16> to vector<128x128xbf16>
    %cst_144 = arith.constant dense<0.000000e+00> : vector<324x128xf32>
    %156 = tpu.matmul %153, %155, %cst_144 {dimension_numbers = #tpu.dot_dimension_numbers<[1], [0], [0], [1], [0, 0, 1, 1], [], []>} : vector<324x128xbf16>, vector<128x128xbf16>, vector<324x128xf32> -> vector<324x128xf32>
    %157 = arith.addf %151, %156 : vector<324x128xf32>
    %c24_145 = arith.constant 24 : index
    %c0_146 = arith.constant 0 : index
    %158 = vector.load %arg13[%c24_145, %c0_146] : memref<368x128xf32, #tpu.memory_space<vmem>>, vector<324x128xf32>
    %159 = arith.truncf %158 : vector<324x128xf32> to vector<324x128xbf16>
    %c4_147 = arith.constant 4 : index
    %c0_148 = arith.constant 0 : index
    %c0_149 = arith.constant 0 : index
    %160 = vector.load %arg7[%c4_147, %c0_148, %c0_149] : memref<9x128x128xbf16, #tpu.memory_space<vmem>>, vector<1x128x128xbf16>
    %161 = vector.shape_cast %160 : vector<1x128x128xbf16> to vector<128x128xbf16>
    %cst_150 = arith.constant dense<0.000000e+00> : vector<324x128xf32>
    %162 = tpu.matmul %159, %161, %cst_150 {dimension_numbers = #tpu.dot_dimension_numbers<[1], [0], [0], [1], [0, 0, 1, 1], [], []>} : vector<324x128xbf16>, vector<128x128xbf16>, vector<324x128xf32> -> vector<324x128xf32>
    %163 = arith.addf %157, %162 : vector<324x128xf32>
    %c25_151 = arith.constant 25 : index
    %c0_152 = arith.constant 0 : index
    %164 = vector.load %arg13[%c25_151, %c0_152] : memref<368x128xf32, #tpu.memory_space<vmem>>, vector<324x128xf32>
    %165 = arith.truncf %164 : vector<324x128xf32> to vector<324x128xbf16>
    %c5_153 = arith.constant 5 : index
    %c0_154 = arith.constant 0 : index
    %c0_155 = arith.constant 0 : index
    %166 = vector.load %arg7[%c5_153, %c0_154, %c0_155] : memref<9x128x128xbf16, #tpu.memory_space<vmem>>, vector<1x128x128xbf16>
    %167 = vector.shape_cast %166 : vector<1x128x128xbf16> to vector<128x128xbf16>
    %cst_156 = arith.constant dense<0.000000e+00> : vector<324x128xf32>
    %168 = tpu.matmul %165, %167, %cst_156 {dimension_numbers = #tpu.dot_dimension_numbers<[1], [0], [0], [1], [0, 0, 1, 1], [], []>} : vector<324x128xbf16>, vector<128x128xbf16>, vector<324x128xf32> -> vector<324x128xf32>
    %169 = arith.addf %163, %168 : vector<324x128xf32>
    %c41_157 = arith.constant 41 : index
    %c0_158 = arith.constant 0 : index
    %170 = vector.load %arg13[%c41_157, %c0_158] : memref<368x128xf32, #tpu.memory_space<vmem>>, vector<324x128xf32>
    %171 = arith.truncf %170 : vector<324x128xf32> to vector<324x128xbf16>
    %c6_159 = arith.constant 6 : index
    %c0_160 = arith.constant 0 : index
    %c0_161 = arith.constant 0 : index
    %172 = vector.load %arg7[%c6_159, %c0_160, %c0_161] : memref<9x128x128xbf16, #tpu.memory_space<vmem>>, vector<1x128x128xbf16>
    %173 = vector.shape_cast %172 : vector<1x128x128xbf16> to vector<128x128xbf16>
    %cst_162 = arith.constant dense<0.000000e+00> : vector<324x128xf32>
    %174 = tpu.matmul %171, %173, %cst_162 {dimension_numbers = #tpu.dot_dimension_numbers<[1], [0], [0], [1], [0, 0, 1, 1], [], []>} : vector<324x128xbf16>, vector<128x128xbf16>, vector<324x128xf32> -> vector<324x128xf32>
    %175 = arith.addf %169, %174 : vector<324x128xf32>
    %c42_163 = arith.constant 42 : index
    %c0_164 = arith.constant 0 : index
    %176 = vector.load %arg13[%c42_163, %c0_164] : memref<368x128xf32, #tpu.memory_space<vmem>>, vector<324x128xf32>
    %177 = arith.truncf %176 : vector<324x128xf32> to vector<324x128xbf16>
    %c7_165 = arith.constant 7 : index
    %c0_166 = arith.constant 0 : index
    %c0_167 = arith.constant 0 : index
    %178 = vector.load %arg7[%c7_165, %c0_166, %c0_167] : memref<9x128x128xbf16, #tpu.memory_space<vmem>>, vector<1x128x128xbf16>
    %179 = vector.shape_cast %178 : vector<1x128x128xbf16> to vector<128x128xbf16>
    %cst_168 = arith.constant dense<0.000000e+00> : vector<324x128xf32>
    %180 = tpu.matmul %177, %179, %cst_168 {dimension_numbers = #tpu.dot_dimension_numbers<[1], [0], [0], [1], [0, 0, 1, 1], [], []>} : vector<324x128xbf16>, vector<128x128xbf16>, vector<324x128xf32> -> vector<324x128xf32>
    %181 = arith.addf %175, %180 : vector<324x128xf32>
    %c43_169 = arith.constant 43 : index
    %c0_170 = arith.constant 0 : index
    %182 = vector.load %arg13[%c43_169, %c0_170] : memref<368x128xf32, #tpu.memory_space<vmem>>, vector<324x128xf32>
    %183 = arith.truncf %182 : vector<324x128xf32> to vector<324x128xbf16>
    %c8_171 = arith.constant 8 : index
    %c0_172 = arith.constant 0 : index
    %c0_173 = arith.constant 0 : index
    %184 = vector.load %arg7[%c8_171, %c0_172, %c0_173] : memref<9x128x128xbf16, #tpu.memory_space<vmem>>, vector<1x128x128xbf16>
    %185 = vector.shape_cast %184 : vector<1x128x128xbf16> to vector<128x128xbf16>
    %cst_174 = arith.constant dense<0.000000e+00> : vector<324x128xf32>
    %186 = tpu.matmul %183, %185, %cst_174 {dimension_numbers = #tpu.dot_dimension_numbers<[1], [0], [0], [1], [0, 0, 1, 1], [], []>} : vector<324x128xbf16>, vector<128x128xbf16>, vector<324x128xf32> -> vector<324x128xf32>
    %187 = arith.addf %181, %186 : vector<324x128xf32>
    %c0_175 = arith.constant 0 : index
    %c0_176 = arith.constant 0 : index
    %188 = vector.load %arg8[%c0_175, %c0_176] : memref<1x128xf32, #tpu.memory_space<vmem>>, vector<1x128xf32>
    %189 = vector.broadcast %188 : vector<1x128xf32> to vector<324x128xf32>
    %190 = arith.addf %187, %189 : vector<324x128xf32>
    %191 = arith.addf %190, %134 : vector<324x128xf32>
    %cst_177 = arith.constant 0.000000e+00 : f32
    %192 = vector.broadcast %cst_177 : f32 to vector<324x128xf32>
    %193 = arith.maximumf %191, %192 : vector<324x128xf32>
    %194 = arith.mulf %193, %0 : vector<324x128xf32>
    %cst_178 = arith.constant dense<0.000000e+00> : vector<128xf32>
    %195 = vector.multi_reduction <add>, %194, %cst_178 [0] : vector<324x128xf32> to vector<128xf32>
    %196 = vector.shape_cast %195 : vector<128xf32> to vector<1x128xf32>
    %c0_179 = arith.constant 0 : index
    %c0_180 = arith.constant 0 : index
    %197 = vector.load %arg9[%c0_179, %c0_180] : memref<128x128xf32, #tpu.memory_space<vmem>>, vector<128x128xf32>
    %cst_181 = arith.constant dense<0.000000e+00> : vector<1x128xf32>
    %198 = tpu.matmul %196, %197, %cst_181 {dimension_numbers = #tpu.dot_dimension_numbers<[1], [0], [0], [1], [0, 0, 1, 1], [], []>} : vector<1x128xf32>, vector<128x128xf32>, vector<1x128xf32> -> vector<1x128xf32>
    %c0_182 = arith.constant 0 : index
    %c0_183 = arith.constant 0 : index
    %199 = vector.load %arg10[%c0_182, %c0_183] : memref<1x128xf32, #tpu.memory_space<vmem>>, vector<1x128xf32>
    %200 = arith.addf %198, %199 : vector<1x128xf32>
    %c0_184 = arith.constant 0 : index
    %c0_185 = arith.constant 0 : index
    %c0_186 = arith.constant 0 : index
    %201 = vector.load %arg11[%c0_184, %c0_185, %c0_186] : memref<1x1x128xf32, #tpu.memory_space<vmem>>, vector<1x1x128xf32>
    %202 = vector.shape_cast %201 : vector<1x1x128xf32> to vector<1x128xf32>
    %203 = vector.shape_cast %200 : vector<1x128xf32> to vector<1x1x128xf32>
    tpu.vector_store %arg11[%c0_184, %c0_185, %c0_186], %203 {strides = array<i32>} : memref<1x1x128xf32, #tpu.memory_space<vmem>>, vector<1x1x128xf32>,
    return
  }
  func.func @transform_0(%arg0: i32) -> (i32, i32, i32) {
    %c0_i32 = arith.constant 0 : i32
    %c0_i32_0 = arith.constant 0 : i32
    %c0_i32_1 = arith.constant 0 : i32
    return %arg0, %c0_i32, %c0_i32_0 : i32, i32, i32
  }
  func.func @transform_1(%arg0: i32) -> (i32, i32) {
    %c0_i32 = arith.constant 0 : i32
    %c0_i32_0 = arith.constant 0 : i32
    %c0_i32_1 = arith.constant 0 : i32
    return %c0_i32, %c0_i32_0 : i32, i32
  }
  func.func @transform_2(%arg0: i32) -> (i32, i32, i32) {
    %c0_i32 = arith.constant 0 : i32
    %c0_i32_0 = arith.constant 0 : i32
    %c0_i32_1 = arith.constant 0 : i32
    %c0_i32_2 = arith.constant 0 : i32
    return %c0_i32, %c0_i32_0, %c0_i32_1 : i32, i32, i32
  }
  func.func @transform_3(%arg0: i32) -> (i32, i32) {
    %c0_i32 = arith.constant 0 : i32
    %c0_i32_0 = arith.constant 0 : i32
    %c0_i32_1 = arith.constant 0 : i32
    return %c0_i32, %c0_i32_0 : i32, i32
  }
  func.func @transform_4(%arg0: i32) -> (i32, i32, i32) {
    %c0_i32 = arith.constant 0 : i32
    %c0_i32_0 = arith.constant 0 : i32
    %c0_i32_1 = arith.constant 0 : i32
    %c0_i32_2 = arith.constant 0 : i32
    return %c0_i32, %c0_i32_0, %c0_i32_1 : i32, i32, i32
  }
  func.func @transform_5(%arg0: i32) -> (i32, i32) {
    %c0_i32 = arith.constant 0 : i32
    %c0_i32_0 = arith.constant 0 : i32
    %c0_i32_1 = arith.constant 0 : i32
    return %c0_i32, %c0_i32_0 : i32, i32
  }
  func.func @transform_6(%arg0: i32) -> (i32, i32, i32) {
    %c0_i32 = arith.constant 0 : i32
    %c0_i32_0 = arith.constant 0 : i32
    %c0_i32_1 = arith.constant 0 : i32
    %c0_i32_2 = arith.constant 0 : i32
    return %c0_i32, %c0_i32_0, %c0_i32_1 : i32, i32, i32
  }
  func.func @transform_7(%arg0: i32) -> (i32, i32) {
    %c0_i32 = arith.constant 0 : i32
    %c0_i32_0 = arith.constant 0 : i32
    %c0_i32_1 = arith.constant 0 : i32
    return %c0_i32, %c0_i32_0 : i32, i32
  }
  func.func @transform_8(%arg0: i32) -> (i32, i32) {
    %c0_i32 = arith.constant 0 : i32
    %c0_i32_0 = arith.constant 0 : i32
    %c0_i32_1 = arith.constant 0 : i32
    return %c0_i32, %c0_i32_0 : i32, i32
  }
  func.func @transform_9(%arg0: i32) -> (i32, i32) {
    %c0_i32 = arith.constant 0 : i32
    %c0_i32_0 = arith.constant 0 : i32
    %c0_i32_1 = arith.constant 0 : i32
    return %c0_i32, %c0_i32_0 : i32, i32
  }
  func.func @transform_10(%arg0: i32) -> (i32, i32, i32) {
    %c0_i32 = arith.constant 0 : i32
    %c0_i32_0 = arith.constant 0 : i32
    %c0_i32_1 = arith.constant 0 : i32
    return %arg0, %c0_i32, %c0_i32_0 : i32, i32, i32
  }
}

</mosaic_0001>

<llo_original>
// kernel: fwd.1
$region0: #{fwd.1}
  #allocation0 [shape = 'u32[]', space=smem, size = 0x4, offset = 0x4, fixed_abs, tag = 'smem constant byte address 0x4 - core index']
  #allocation1 [shape = 'u32[72,128]{1,0:T(1,128)}', space=vmem, size = 0x9000, scoped, tag = 'internal scratch']
  #allocation2 [shape = 'f32[368,128]{1,0:T(8,128)}', space=vmem, size = 0x2e000, scoped, tag = 'scratch operand']
  #allocation3 [shape = 'f32[368,128]{1,0:T(8,128)}', space=vmem, size = 0x2e000, scoped, tag = 'scratch operand']
  %s0 = inlined_call_operand.vmem [shape: f32[2,368,128], index: 0, kind: input, shape index: {}]
  %s1 = inlined_call_operand.vmem [shape: f32[324,128], index: 1, kind: input, shape index: {}]
  %s2 = inlined_call_operand.vmem [shape: bf16[9,128,128], index: 2, kind: input, shape index: {}]
  %s3 = inlined_call_operand.vmem [shape: f32[1,128], index: 3, kind: input, shape index: {}]
  %s4 = inlined_call_operand.vmem [shape: bf16[9,128,128], index: 4, kind: input, shape index: {}]
  %s5 = inlined_call_operand.vmem [shape: f32[1,128], index: 5, kind: input, shape index: {}]
  %s6 = inlined_call_operand.vmem [shape: bf16[9,128,128], index: 6, kind: input, shape index: {}]
  %s7 = inlined_call_operand.vmem [shape: f32[1,128], index: 7, kind: input, shape index: {}]
  %s8 = inlined_call_operand.vmem [shape: f32[128,128], index: 8, kind: input, shape index: {}]
  %s9 = inlined_call_operand.vmem [shape: f32[1,128], index: 9, kind: input, shape index: {}]
  %s10 = inlined_call_operand.hbm [shape: f32[2,1,128], index: 10, kind: output, shape index: {}]
  %s11 = sld [smem:[#allocation0]]
  $region73: #{fwd.1} parent=0
    _
  %s13 = ssub.s32 1, %s11
  %s14 = scalar_select 0, %s13, %s11
  $region1: #{fwd.1} parent=0
    #allocation4 [shape = 'u8[1024]{0}', space=vmem, size = 0x400, scoped, tag = 'output window, operand 0']
    #allocation5 [shape = 's32[2]{0}', space=sflag, size = 0x8, scoped, tag = 'scoped memory for fwd.1']
    %15 = vsyncpa [#allocation5], 0
    %s16 = scalar_lea.sflag [#allocation5], 1
    %17 = vsyncpa %s16, 0
    loop: start=0, step=1, limit=4
    $region2: #{fwd.1} parent=1 // loop_pre_header
      _
    $region3: #{fwd.1} parent=1 // loop_header
      %s19 = sphi 0, %s23
      %p20 = scmp.ge.s32.totalorder %s19, 4
      %s29 = sphi 0, %s31
      %s32 = sphi 0, %s29
      %s33 = sphi 0, %s32
      %s49 = sphi 0, %s33
      %s53 = sphi 0, %s53
      %s55 = sphi 0, %s53
      %s56 = sphi 0, %s55
      %s70 = sphi 0, %s56
      %s74 = sphi 0, %s74
      %s76 = sphi 0, %s74
      %s77 = sphi 0, %s76
      %s91 = sphi 0, %s77
      %s95 = sphi 0, %s95
      %s97 = sphi 0, %s95
      %s98 = sphi 0, %s97
      %s112 = sphi 0, %s98
      %s116 = sphi 0, %s116
      %s118 = sphi 0, %s116
      %s119 = sphi 0, %s118
      %s133 = sphi 0, %s119
      %s137 = sphi 0, %s137
      %s139 = sphi 0, %s137
      %s140 = sphi 0, %s139
      %s154 = sphi 0, %s140
      %s158 = sphi 0, %s158
      %s160 = sphi 0, %s158
      %s161 = sphi 0, %s160
      %s175 = sphi 0, %s161
      %s179 = sphi 0, %s179
      %s181 = sphi 0, %s179
      %s182 = sphi 0, %s181
      %s196 = sphi 0, %s182
      %s200 = sphi 0, %s200
      %s202 = sphi 0, %s200
      %s203 = sphi 0, %s202
      %s217 = sphi 0, %s203
      %s221 = sphi 0, %s221
      %s223 = sphi 0, %s221
      %s224 = sphi 0, %s223
      %s238 = sphi 0, %s224
      %s244 = sphi 0, %s246
      %s247 = sphi 0, %s244
      %s248 = sphi 0, %s247
      %s264 = sphi 0, %s248
    $region4: #{fwd.1} parent=1 // loop_header_branch
      %22 = sbr.rel (%p20) target = $region8
    $region5: #{fwd.1} parent=1 // loop_body
      %s24 = ssub.s32 %s19, 1
      %s25 = ssub.s32 %s19, 2
      %s26 = sadd.s32 %s19, 1
      %s27 = ssub.s32 %s19, %s26
      %p28 = scmp.eq.s32.totalorder %s27, 0
      %s30 = sadd.s32 %s29, 1
      %s31 = scalar_select %p28, %s29, %s30
      %p34 = pneg %p28
      %p35 = scmp.eq.s32.totalorder %s19, 1
      %p36 = por %p34, %p35
      %p37 = scmp.ne.s32.totalorder %s29, %s32
      %p38 = scmp.eq.s32.totalorder %s19, 0
      %p39 = por %p37, %p38
      %p40 = scmp.ne.s32.totalorder %s29, %s32
      %p41 = scmp.eq.s32.totalorder %s24, 1
      %p42 = por %p40, %p41
      %p43 = scmp.ne.s32.totalorder %s32, %s33
      %p44 = scmp.eq.s32.totalorder %s24, 0
      %p45 = por %p43, %p44
      %p46 = scmp.ne.s32.totalorder %s32, %s33
      %p47 = scmp.eq.s32.totalorder %s25, 1
      %p48 = por %p46, %p47
      %p50 = scmp.ne.s32.totalorder %s33, %s49
      %p51 = scmp.eq.s32.totalorder %s25, 0
      %p52 = por %p50, %p51
      %s54 = sadd.s32 %s53, 1
      %p57 = scmp.eq.s32.totalorder %s19, 1
      %p58 = scmp.ne.s32.totalorder %s53, %s55
      %p59 = scmp.eq.s32.totalorder %s19, 0
      %p60 = por %p58, %p59
      %p61 = scmp.ne.s32.totalorder %s53, %s55
      %p62 = scmp.eq.s32.totalorder %s24, 1
      %p63 = por %p61, %p62
      %p64 = scmp.ne.s32.totalorder %s55, %s56
      %p65 = scmp.eq.s32.totalorder %s24, 0
      %p66 = por %p64, %p65
      %p67 = scmp.ne.s32.totalorder %s55, %s56
      %p68 = scmp.eq.s32.totalorder %s25, 1
      %p69 = por %p67, %p68
      %p71 = scmp.ne.s32.totalorder %s56, %s70
      %p72 = scmp.eq.s32.totalorder %s25, 0
      %p73 = por %p71, %p72
      %s75 = sadd.s32 %s74, 1
      %p78 = scmp.eq.s32.totalorder %s19, 1
      %p79 = scmp.ne.s32.totalorder %s74, %s76
      %p80 = scmp.eq.s32.totalorder %s19, 0
      %p81 = por %p79, %p80
      %p82 = scmp.ne.s32.totalorder %s74, %s76
      %p83 = scmp.eq.s32.totalorder %s24, 1
      %p84 = por %p82, %p83
      %p85 = scmp.ne.s32.totalorder %s76, %s77
      %p86 = scmp.eq.s32.totalorder %s24, 0
      %p87 = por %p85, %p86
      %p88 = scmp.ne.s32.totalorder %s76, %s77
      %p89 = scmp.eq.s32.totalorder %s25, 1
      %p90 = por %p88, %p89
      %p92 = scmp.ne.s32.totalorder %s77, %s91
      %p93 = scmp.eq.s32.totalorder %s25, 0
      %p94 = por %p92, %p93
      %s96 = sadd.s32 %s95, 1
      %p99 = scmp.eq.s32.totalorder %s19, 1
      %p100 = scmp.ne.s32.totalorder %s95, %s97
      %p101 = scmp.eq.s32.totalorder %s19, 0
      %p102 = por %p100, %p101
      %p103 = scmp.ne.s32.totalorder %s95, %s97
      %p104 = scmp.eq.s32.totalorder %s24, 1
      %p105 = por %p103, %p104
      %p106 = scmp.ne.s32.totalorder %s97, %s98
      %p107 = scmp.eq.s32.totalorder %s24, 0
      %p108 = por %p106, %p107
      %p109 = scmp.ne.s32.totalorder %s97, %s98
      %p110 = scmp.eq.s32.totalorder %s25, 1
      %p111 = por %p109, %p110
      %p113 = scmp.ne.s32.totalorder %s98, %s112
      %p114 = scmp.eq.s32.totalorder %s25, 0
      %p115 = por %p113, %p114
      %s117 = sadd.s32 %s116, 1
      %p120 = scmp.eq.s32.totalorder %s19, 1
      %p121 = scmp.ne.s32.totalorder %s116, %s118
      %p122 = scmp.eq.s32.totalorder %s19, 0
      %p123 = por %p121, %p122
      %p124 = scmp.ne.s32.totalorder %s116, %s118
      %p125 = scmp.eq.s32.totalorder %s24, 1
      %p126 = por %p124, %p125
      %p127 = scmp.ne.s32.totalorder %s118, %s119
      %p128 = scmp.eq.s32.totalorder %s24, 0
      %p129 = por %p127, %p128
      %p130 = scmp.ne.s32.totalorder %s118, %s119
      %p131 = scmp.eq.s32.totalorder %s25, 1
      %p132 = por %p130, %p131
      %p134 = scmp.ne.s32.totalorder %s119, %s133
      %p135 = scmp.eq.s32.totalorder %s25, 0
      %p136 = por %p134, %p135
      %s138 = sadd.s32 %s137, 1
      %p141 = scmp.eq.s32.totalorder %s19, 1
      %p142 = scmp.ne.s32.totalorder %s137, %s139
      %p143 = scmp.eq.s32.totalorder %s19, 0
      %p144 = por %p142, %p143
      %p145 = scmp.ne.s32.totalorder %s137, %s139
      %p146 = scmp.eq.s32.totalorder %s24, 1
      %p147 = por %p145, %p146
      %p148 = scmp.ne.s32.totalorder %s139, %s140
      %p149 = scmp.eq.s32.totalorder %s24, 0
      %p150 = por %p148, %p149
      %p151 = scmp.ne.s32.totalorder %s139, %s140
      %p152 = scmp.eq.s32.totalorder %s25, 1
      %p153 = por %p151, %p152
      %p155 = scmp.ne.s32.totalorder %s140, %s154
      %p156 = scmp.eq.s32.totalorder %s25, 0
      %p157 = por %p155, %p156
      %s159 = sadd.s32 %s158, 1
      %p162 = scmp.eq.s32.totalorder %s19, 1
      %p163 = scmp.ne.s32.totalorder %s158, %s160
      %p164 = scmp.eq.s32.totalorder %s19, 0
      %p165 = por %p163, %p164
      %p166 = scmp.ne.s32.totalorder %s158, %s160
      %p167 = scmp.eq.s32.totalorder %s24, 1
      %p168 = por %p166, %p167
      %p169 = scmp.ne.s32.totalorder %s160, %s161
      %p170 = scmp.eq.s32.totalorder %s24, 0
      %p171 = por %p169, %p170
      %p172 = scmp.ne.s32.totalorder %s160, %s161
      %p173 = scmp.eq.s32.totalorder %s25, 1
      %p174 = por %p172, %p173
      %p176 = scmp.ne.s32.totalorder %s161, %s175
      %p177 = scmp.eq.s32.totalorder %s25, 0
      %p178 = por %p176, %p177
      %s180 = sadd.s32 %s179, 1
      %p183 = scmp.eq.s32.totalorder %s19, 1
      %p184 = scmp.ne.s32.totalorder %s179, %s181
      %p185 = scmp.eq.s32.totalorder %s19, 0
      %p186 = por %p184, %p185
      %p187 = scmp.ne.s32.totalorder %s179, %s181
      %p188 = scmp.eq.s32.totalorder %s24, 1
      %p189 = por %p187, %p188
      %p190 = scmp.ne.s32.totalorder %s181, %s182
      %p191 = scmp.eq.s32.totalorder %s24, 0
      %p192 = por %p190, %p191
      %p193 = scmp.ne.s32.totalorder %s181, %s182
      %p194 = scmp.eq.s32.totalorder %s25, 1
      %p195 = por %p193, %p194
      %p197 = scmp.ne.s32.totalorder %s182, %s196
      %p198 = scmp.eq.s32.totalorder %s25, 0
      %p199 = por %p197, %p198
      %s201 = sadd.s32 %s200, 1
      %p204 = scmp.eq.s32.totalorder %s19, 1
      %p205 = scmp.ne.s32.totalorder %s200, %s202
      %p206 = scmp.eq.s32.totalorder %s19, 0
      %p207 = por %p205, %p206
      %p208 = scmp.ne.s32.totalorder %s200, %s202
      %p209 = scmp.eq.s32.totalorder %s24, 1
      %p210 = por %p208, %p209
      %p211 = scmp.ne.s32.totalorder %s202, %s203
      %p212 = scmp.eq.s32.totalorder %s24, 0
      %p213 = por %p211, %p212
      %p214 = scmp.ne.s32.totalorder %s202, %s203
      %p215 = scmp.eq.s32.totalorder %s25, 1
      %p216 = por %p214, %p215
      %p218 = scmp.ne.s32.totalorder %s203, %s217
      %p219 = scmp.eq.s32.totalorder %s25, 0
      %p220 = por %p218, %p219
      %s222 = sadd.s32 %s221, 1
      %p225 = scmp.eq.s32.totalorder %s19, 1
      %p226 = scmp.ne.s32.totalorder %s221, %s223
      %p227 = scmp.eq.s32.totalorder %s19, 0
      %p228 = por %p226, %p227
      %p229 = scmp.ne.s32.totalorder %s221, %s223
      %p230 = scmp.eq.s32.totalorder %s24, 1
      %p231 = por %p229, %p230
      %p232 = scmp.ne.s32.totalorder %s223, %s224
      %p233 = scmp.eq.s32.totalorder %s24, 0
      %p234 = por %p232, %p233
      %p235 = scmp.ne.s32.totalorder %s223, %s224
      %p236 = scmp.eq.s32.totalorder %s25, 1
      %p237 = por %p235, %p236
      %p239 = scmp.ne.s32.totalorder %s224, %s238
      %p240 = scmp.eq.s32.totalorder %s25, 0
      %p241 = por %p239, %p240
      %s242 = ssub.s32 %s19, %s26
      %p243 = scmp.eq.s32.totalorder %s242, 0
      %s245 = sadd.s32 %s244, 1
      %s246 = scalar_select %p243, %s244, %s245
      %p249 = pneg %p243
      %p250 = scmp.eq.s32.totalorder %s19, 1
      %p251 = por %p249, %p250
      %p252 = scmp.ne.s32.totalorder %s244, %s247
      %p253 = scmp.eq.s32.totalorder %s19, 0
      %p254 = por %p252, %p253
      %p255 = scmp.ne.s32.totalorder %s244, %s247
      %p256 = scmp.eq.s32.totalorder %s24, 1
      %p257 = por %p255, %p256
      %p258 = scmp.ne.s32.totalorder %s247, %s248
      %p259 = scmp.eq.s32.totalorder %s24, 0
      %p260 = por %p258, %p259
      %p261 = scmp.ne.s32.totalorder %s247, %s248
      %p262 = scmp.eq.s32.totalorder %s25, 1
      %p263 = por %p261, %p262
      %p265 = scmp.ne.s32.totalorder %s248, %s264
      %p266 = scmp.eq.s32.totalorder %s25, 0
      %p267 = por %p265, %p266
      %p268 = scmp.le.s32.totalorder 1, %s19
      %p269 = scmp.lt.s32.totalorder %s19, 3
      %p270 = pnand %p268, %p269
      %p271 = pneg %p270
      // Predicated region
      $region9: #{fwd.1} parent=5 // pred_check
        _
      $region10: #{fwd.1} parent=5 // pred_check_branch
        %273 = sbr.rel (%p270) target = $region12
      $region11: #{fwd.1} parent=5 // pred_region
        %s274 = ssub.s32 %s19, 1
        // Predicated region
        $region13: #{fwd.1} parent=11 // pred_check
          %p275 = pneg %p66
        $region14: #{fwd.1} parent=11 // pred_check_branch
          %277 = sbr.rel (%p275) target = $region16
        $region15: #{fwd.1} parent=11 // pred_region
          _
        $region16: #{fwd.1} parent=11 // pred_fallthru
          _
        // Predicated region
        $region17: #{fwd.1} parent=11 // pred_check
          %p278 = pneg %p87
        $region18: #{fwd.1} parent=11 // pred_check_branch
          %280 = sbr.rel (%p278) target = $region20
        $region19: #{fwd.1} parent=11 // pred_region
          _
        $region20: #{fwd.1} parent=11 // pred_fallthru
          _
        // Predicated region
        $region21: #{fwd.1} parent=11 // pred_check
          %p281 = pneg %p108
        $region22: #{fwd.1} parent=11 // pred_check_branch
          %283 = sbr.rel (%p281) target = $region24
        $region23: #{fwd.1} parent=11 // pred_region
          _
        $region24: #{fwd.1} parent=11 // pred_fallthru
          _
        // Predicated region
        $region25: #{fwd.1} parent=11 // pred_check
          %p284 = pneg %p129
        $region26: #{fwd.1} parent=11 // pred_check_branch
          %286 = sbr.rel (%p284) target = $region28
        $region27: #{fwd.1} parent=11 // pred_region
          _
        $region28: #{fwd.1} parent=11 // pred_fallthru
          _
        // Predicated region
        $region29: #{fwd.1} parent=11 // pred_check
          %p287 = pneg %p150
        $region30: #{fwd.1} parent=11 // pred_check_branch
          %289 = sbr.rel (%p287) target = $region32
        $region31: #{fwd.1} parent=11 // pred_region
          _
        $region32: #{fwd.1} parent=11 // pred_fallthru
          _
        // Predicated region
        $region33: #{fwd.1} parent=11 // pred_check
          %p290 = pneg %p171
        $region34: #{fwd.1} parent=11 // pred_check_branch
          %292 = sbr.rel (%p290) target = $region36
        $region35: #{fwd.1} parent=11 // pred_region
          _
        $region36: #{fwd.1} parent=11 // pred_fallthru
          _
        // Predicated region
        $region37: #{fwd.1} parent=11 // pred_check
          %p293 = pneg %p192
        $region38: #{fwd.1} parent=11 // pred_check_branch
          %295 = sbr.rel (%p293) target = $region40
        $region39: #{fwd.1} parent=11 // pred_region
          _
        $region40: #{fwd.1} parent=11 // pred_fallthru
          _
        // Predicated region
        $region41: #{fwd.1} parent=11 // pred_check
          %p296 = pneg %p213
        $region42: #{fwd.1} parent=11 // pred_check_branch
          %298 = sbr.rel (%p296) target = $region44
        $region43: #{fwd.1} parent=11 // pred_region
          _
        $region44: #{fwd.1} parent=11 // pred_fallthru
          _
        // Predicated region
        $region45: #{fwd.1} parent=11 // pred_check
          %p299 = pneg %p234
        $region46: #{fwd.1} parent=11 // pred_check_branch
          %301 = sbr.rel (%p299) target = $region48
        $region47: #{fwd.1} parent=11 // pred_region
          _
        $region48: #{fwd.1} parent=11 // pred_fallthru
          _
      $region12: #{fwd.1} parent=5 // pred_fallthru
        _
      %p302 = scmp.lt.s32.totalorder %s19, 2
      // Predicated region
      $region49: #{fwd.1} parent=5 // pred_check
        %p303 = pneg %p302
      $region50: #{fwd.1} parent=5 // pred_check_branch
        %305 = sbr.rel (%p303) target = $region52
      $region51: #{fwd.1} parent=5 // pred_region
        // Predicated region
        $region53: #{fwd.1} parent=51 // pred_check
          %p306 = pneg %p39
        $region54: #{fwd.1} parent=51 // pred_check_branch
          %308 = sbr.rel (%p306) target = $region56
        $region55: #{fwd.1} parent=51 // pred_region
          %p309 = scmp.lt.s32.totalorder %s19, 1
          %s310 = scalar_select %p309, %s19, 1
          %s311 = smul.addr %s310, 46
          %s312 = smul.addr %s311, 8
          %s313 = scalar_lea.vmem %s0, %s312
        $region56: #{fwd.1} parent=51 // pred_fallthru
          _
      $region52: #{fwd.1} parent=5 // pred_fallthru
        _
      %p314 = scmp.le.s32.totalorder 1, %s19
      %p315 = scmp.lt.s32.totalorder %s19, 3
      %p316 = pnand %p314, %p315
      %p317 = pneg %p316
      // Predicated region
      $region57: #{fwd.1} parent=5 // pred_check
        _
      $region58: #{fwd.1} parent=5 // pred_check_branch
        %319 = sbr.rel (%p316) target = $region60
      $region59: #{fwd.1} parent=5 // pred_region
        %s320 = ssub.s32 %s19, 1
        %p321 = scmp.lt.s32.totalorder %s24, 1
        %s322 = scalar_select %p321, %s24, 1
        %s323 = smul.addr %s322, 46
        %s324 = smul.addr %s323, 8
        %s325 = scalar_lea.vmem %s0, %s324
        %p326 = pneg %p45
        %p327 = pneg %p42
        %p328 = pneg %p66
        %p329 = pneg %p63
        %p330 = pneg %p87
        %p331 = pneg %p84
        %p332 = pneg %p108
        %p333 = pneg %p105
        %p334 = pneg %p129
        %p335 = pneg %p126
        %p336 = pneg %p150
        %p337 = pneg %p147
        %p338 = pneg %p171
        %p339 = pneg %p168
        %p340 = pneg %p192
        %p341 = pneg %p189
        %p342 = pneg %p213
        %p343 = pneg %p210
        %p344 = pneg %p234
        %p345 = pneg %p231
        %p346 = pneg %p260
        %p347 = pneg %p257
        %s348 = sand.u32 %s247, 1
        %s349 = scalar_lea.sflag [#allocation5], %s348
        %s350 = sand.u32 %s247, 1
        %s351 = scalar_lea.vmem [#allocation4], %s350
        %p352 = scmp.lt.s32.totalorder %s24, 1
        %s353 = scalar_select %p352, %s24, 1
        %s354 = smul.addr %s353, 46
        %s355 = smul.addr %s354, 8
        %s356 = scalar_lea.vmem %s0, %s355
        %v357 = vld [vmem:[%s1] sm:$0xff]
        %v358 = vld [vmem:[%s1 + $0x8] sm:$0xff]
        %v359 = vld [vmem:[%s1 + $0x10] sm:$0xff]
        %v360 = vld [vmem:[%s1 + $0x18] sm:$0xff]
        %v361 = vld [vmem:[%s1 + $0x20] sm:$0xff]
        %v362 = vld [vmem:[%s1 + $0x28] sm:$0xff]
        %v363 = vld [vmem:[%s1 + $0x30] sm:$0xff]
        %v364 = vld [vmem:[%s1 + $0x38] sm:$0xff]
        %v365 = vld [vmem:[%s1 + $0x40] sm:$0xff]
        %v366 = vld [vmem:[%s1 + $0x48] sm:$0xff]
        %v367 = vld [vmem:[%s1 + $0x50] sm:$0xff]
        %v368 = vld [vmem:[%s1 + $0x58] sm:$0xff]
        %v369 = vld [vmem:[%s1 + $0x60] sm:$0xff]
        %v370 = vld [vmem:[%s1 + $0x68] sm:$0xff]
        %v371 = vld [vmem:[%s1 + $0x70] sm:$0xff]
        %v372 = vld [vmem:[%s1 + $0x78] sm:$0xff]
        %v373 = vld [vmem:[%s1 + $0x80] sm:$0xff]
        %v374 = vld [vmem:[%s1 + $0x88] sm:$0xff]
        %v375 = vld [vmem:[%s1 + $0x90] sm:$0xff]
        %v376 = vld [vmem:[%s1 + $0x98] sm:$0xff]
        %v377 = vld [vmem:[%s1 + $0xa0] sm:$0xff]
        %v378 = vld [vmem:[%s1 + $0xa8] sm:$0xff]
        %v379 = vld [vmem:[%s1 + $0xb0] sm:$0xff]
        %v380 = vld [vmem:[%s1 + $0xb8] sm:$0xff]
        %v381 = vld [vmem:[%s1 + $0xc0] sm:$0xff]
        %v382 = vld [vmem:[%s1 + $0xc8] sm:$0xff]
        %v383 = vld [vmem:[%s1 + $0xd0] sm:$0xff]
        %v384 = vld [vmem:[%s1 + $0xd8] sm:$0xff]
        %v385 = vld [vmem:[%s1 + $0xe0] sm:$0xff]
        %v386 = vld [vmem:[%s1 + $0xe8] sm:$0xff]
        %v387 = vld [vmem:[%s1 + $0xf0] sm:$0xff]
        %v388 = vld [vmem:[%s1 + $0xf8] sm:$0xff]
        %v389 = vld [vmem:[%s1 + $0x100] sm:$0xff]
        %v390 = vld [vmem:[%s1 + $0x108] sm:$0xff]
        %v391 = vld [vmem:[%s1 + $0x110] sm:$0xff]
        %v392 = vld [vmem:[%s1 + $0x118] sm:$0xff]
        %v393 = vld [vmem:[%s1 + $0x120] sm:$0xff]
        %v394 = vld [vmem:[%s1 + $0x128] sm:$0xff]
        %v395 = vld [vmem:[%s1 + $0x130] sm:$0xff]
        %v396 = vld [vmem:[%s1 + $0x138] sm:$0xff]
        %v397 = vld [vmem:[%s1 + $0x140] sm:$0xf]
        %398 = vst [vmem:[#allocation2] sm:$0xff] 0.0
        %399 = vst [vmem:[#allocation2 + $0x8] sm:$0xff] 0.0
        %400 = vst [vmem:[#allocation2 + $0x10] sm:$0xff] 0.0
        %401 = vst [vmem:[#allocation2 + $0x18] sm:$0xff] 0.0
        %402 = vst [vmem:[#allocation2 + $0x20] sm:$0xff] 0.0
        %403 = vst [vmem:[#allocation2 + $0x28] sm:$0xff] 0.0
        %404 = vst [vmem:[#allocation2 + $0x30] sm:$0xff] 0.0
        %405 = vst [vmem:[#allocation2 + $0x38] sm:$0xff] 0.0
        %406 = vst [vmem:[#allocation2 + $0x40] sm:$0xff] 0.0
        %407 = vst [vmem:[#allocation2 + $0x48] sm:$0xff] 0.0
        %408 = vst [vmem:[#allocation2 + $0x50] sm:$0xff] 0.0
        %409 = vst [vmem:[#allocation2 + $0x58] sm:$0xff] 0.0
        %410 = vst [vmem:[#allocation2 + $0x60] sm:$0xff] 0.0
        %411 = vst [vmem:[#allocation2 + $0x68] sm:$0xff] 0.0
        %412 = vst [vmem:[#allocation2 + $0x70] sm:$0xff] 0.0
        %413 = vst [vmem:[#allocation2 + $0x78] sm:$0xff] 0.0
        %414 = vst [vmem:[#allocation2 + $0x80] sm:$0xff] 0.0
        %415 = vst [vmem:[#allocation2 + $0x88] sm:$0xff] 0.0
        %416 = vst [vmem:[#allocation2 + $0x90] sm:$0xff] 0.0
        %417 = vst [vmem:[#allocation2 + $0x98] sm:$0xff] 0.0
        %418 = vst [vmem:[#allocation2 + $0xa0] sm:$0xff] 0.0
        %419 = vst [vmem:[#allocation2 + $0xa8] sm:$0xff] 0.0
        %420 = vst [vmem:[#allocation2 + $0xb0] sm:$0xff] 0.0
        %421 = vst [vmem:[#allocation2 + $0xb8] sm:$0xff] 0.0
        %422 = vst [vmem:[#allocation2 + $0xc0] sm:$0xff] 0.0
        %423 = vst [vmem:[#allocation2 + $0xc8] sm:$0xff] 0.0
        %424 = vst [vmem:[#allocation2 + $0xd0] sm:$0xff] 0.0
        %425 = vst [vmem:[#allocation2 + $0xd8] sm:$0xff] 0.0
        %426 = vst [vmem:[#allocation2 + $0xe0] sm:$0xff] 0.0
        %427 = vst [vmem:[#allocation2 + $0xe8] sm:$0xff] 0.0
        %428 = vst [vmem:[#allocation2 + $0xf0] sm:$0xff] 0.0
        %429 = vst [vmem:[#allocation2 + $0xf8] sm:$0xff] 0.0
        %430 = vst [vmem:[#allocation2 + $0x100] sm:$0xff] 0.0
        %431 = vst [vmem:[#allocation2 + $0x108] sm:$0xff] 0.0
        %432 = vst [vmem:[#allocation2 + $0x110] sm:$0xff] 0.0
        %433 = vst [vmem:[#allocation2 + $0x118] sm:$0xff] 0.0
        %434 = vst [vmem:[#allocation2 + $0x120] sm:$0xff] 0.0
        %435 = vst [vmem:[#allocation2 + $0x128] sm:$0xff] 0.0
        %436 = vst [vmem:[#allocation2 + $0x130] sm:$0xff] 0.0
        %437 = vst [vmem:[#allocation2 + $0x138] sm:$0xff] 0.0
        %438 = vst [vmem:[#allocation2 + $0x140] sm:$0xff] 0.0
        %439 = vst [vmem:[#allocation2 + $0x148] sm:$0xff] 0.0
        %440 = vst [vmem:[#allocation2 + $0x150] sm:$0xff] 0.0
        %441 = vst [vmem:[#allocation2 + $0x158] sm:$0xff] 0.0
        %442 = vst [vmem:[#allocation2 + $0x160] sm:$0xff] 0.0
        %443 = vst [vmem:[#allocation2 + $0x168] sm:$0xff] 0.0
        %444 = vst [vmem:[#allocation3] sm:$0xff] 0.0
        %445 = vst [vmem:[#allocation3 + $0x8] sm:$0xff] 0.0
        %446 = vst [vmem:[#allocation3 + $0x10] sm:$0xff] 0.0
        %447 = vst [vmem:[#allocation3 + $0x18] sm:$0xff] 0.0
        %448 = vst [vmem:[#allocation3 + $0x20] sm:$0xff] 0.0
        %449 = vst [vmem:[#allocation3 + $0x28] sm:$0xff] 0.0
        %450 = vst [vmem:[#allocation3 + $0x30] sm:$0xff] 0.0
        %451 = vst [vmem:[#allocation3 + $0x38] sm:$0xff] 0.0
        %452 = vst [vmem:[#allocation3 + $0x40] sm:$0xff] 0.0
        %453 = vst [vmem:[#allocation3 + $0x48] sm:$0xff] 0.0
        %454 = vst [vmem:[#allocation3 + $0x50] sm:$0xff] 0.0
        %455 = vst [vmem:[#allocation3 + $0x58] sm:$0xff] 0.0
        %456 = vst [vmem:[#allocation3 + $0x60] sm:$0xff] 0.0
        %457 = vst [vmem:[#allocation3 + $0x68] sm:$0xff] 0.0
        %458 = vst [vmem:[#allocation3 + $0x70] sm:$0xff] 0.0
        %459 = vst [vmem:[#allocation3 + $0x78] sm:$0xff] 0.0
        %460 = vst [vmem:[#allocation3 + $0x80] sm:$0xff] 0.0
        %461 = vst [vmem:[#allocation3 + $0x88] sm:$0xff] 0.0
        %462 = vst [vmem:[#allocation3 + $0x90] sm:$0xff] 0.0
        %463 = vst [vmem:[#allocation3 + $0x98] sm:$0xff] 0.0
        %464 = vst [vmem:[#allocation3 + $0xa0] sm:$0xff] 0.0
        %465 = vst [vmem:[#allocation3 + $0xa8] sm:$0xff] 0.0
        %466 = vst [vmem:[#allocation3 + $0xb0] sm:$0xff] 0.0
        %467 = vst [vmem:[#allocation3 + $0xb8] sm:$0xff] 0.0
        %468 = vst [vmem:[#allocation3 + $0xc0] sm:$0xff] 0.0
        %469 = vst [vmem:[#allocation3 + $0xc8] sm:$0xff] 0.0
        %470 = vst [vmem:[#allocation3 + $0xd0] sm:$0xff] 0.0
        %471 = vst [vmem:[#allocation3 + $0xd8] sm:$0xff] 0.0
        %472 = vst [vmem:[#allocation3 + $0xe0] sm:$0xff] 0.0
        %473 = vst [vmem:[#allocation3 + $0xe8] sm:$0xff] 0.0
        %474 = vst [vmem:[#allocation3 + $0xf0] sm:$0xff] 0.0
        %475 = vst [vmem:[#allocation3 + $0xf8] sm:$0xff] 0.0
        %476 = vst [vmem:[#allocation3 + $0x100] sm:$0xff] 0.0
        %477 = vst [vmem:[#allocation3 + $0x108] sm:$0xff] 0.0
        %478 = vst [vmem:[#allocation3 + $0x110] sm:$0xff] 0.0
        %479 = vst [vmem:[#allocation3 + $0x118] sm:$0xff] 0.0
        %480 = vst [vmem:[#allocation3 + $0x120] sm:$0xff] 0.0
        %481 = vst [vmem:[#allocation3 + $0x128] sm:$0xff] 0.0
        %482 = vst [vmem:[#allocation3 + $0x130] sm:$0xff] 0.0
        %483 = vst [vmem:[#allocation3 + $0x138] sm:$0xff] 0.0
        %484 = vst [vmem:[#allocation3 + $0x140] sm:$0xff] 0.0
        %485 = vst [vmem:[#allocation3 + $0x148] sm:$0xff] 0.0
        %486 = vst [vmem:[#allocation3 + $0x150] sm:$0xff] 0.0
        %487 = vst [vmem:[#allocation3 + $0x158] sm:$0xff] 0.0
        %488 = vst [vmem:[#allocation3 + $0x160] sm:$0xff] 0.0
        %489 = vst [vmem:[#allocation3 + $0x168] sm:$0xff] 0.0
        %v490 = vld [vmem:[%s356 + $0x5] sm:$0xff]
        %v491 = vld [vmem:[%s356 + $0xd] sm:$0xff]
        %v492 = vld [vmem:[%s356 + $0x15] sm:$0xff]
        %v493 = vld [vmem:[%s356 + $0x1d] sm:$0xff]
        %v494 = vld [vmem:[%s356 + $0x25] sm:$0xff]
        %v495 = vld [vmem:[%s356 + $0x2d] sm:$0xff]
        %v496 = vld [vmem:[%s356 + $0x35] sm:$0xff]
        %v497 = vld [vmem:[%s356 + $0x3d] sm:$0xff]
        %v498 = vld [vmem:[%s356 + $0x45] sm:$0xff]
        %v499 = vld [vmem:[%s356 + $0x4d] sm:$0xff]
        %v500 = vld [vmem:[%s356 + $0x55] sm:$0xff]
        %v501 = vld [vmem:[%s356 + $0x5d] sm:$0xff]
        %v502 = vld [vmem:[%s356 + $0x65] sm:$0xff]
        %v503 = vld [vmem:[%s356 + $0x6d] sm:$0xff]
        %v504 = vld [vmem:[%s356 + $0x75] sm:$0xff]
        %v505 = vld [vmem:[%s356 + $0x7d] sm:$0xff]
        %v506 = vld [vmem:[%s356 + $0x85] sm:$0xff]
        %v507 = vld [vmem:[%s356 + $0x8d] sm:$0xff]
        %v508 = vld [vmem:[%s356 + $0x95] sm:$0xff]
        %v509 = vld [vmem:[%s356 + $0x9d] sm:$0xff]
        %v510 = vld [vmem:[%s356 + $0xa5] sm:$0xff]
        %v511 = vld [vmem:[%s356 + $0xad] sm:$0xff]
        %v512 = vld [vmem:[%s356 + $0xb5] sm:$0xff]
        %v513 = vld [vmem:[%s356 + $0xbd] sm:$0xff]
        %v514 = vld [vmem:[%s356 + $0xc5] sm:$0xff]
        %v515 = vld [vmem:[%s356 + $0xcd] sm:$0xff]
        %v516 = vld [vmem:[%s356 + $0xd5] sm:$0xff]
        %v517 = vld [vmem:[%s356 + $0xdd] sm:$0xff]
        %v518 = vld [vmem:[%s356 + $0xe5] sm:$0xff]
        %v519 = vld [vmem:[%s356 + $0xed] sm:$0xff]
        %v520 = vld [vmem:[%s356 + $0xf5] sm:$0xff]
        %v521 = vld [vmem:[%s356 + $0xfd] sm:$0xff]
        %v522 = vld [vmem:[%s356 + $0x105] sm:$0xff]
        %v523 = vld [vmem:[%s356 + $0x10d] sm:$0xff]
        %v524 = vld [vmem:[%s356 + $0x115] sm:$0xff]
        %v525 = vld [vmem:[%s356 + $0x11d] sm:$0xff]
        %v526 = vld [vmem:[%s356 + $0x125] sm:$0xff]
        %v527 = vld [vmem:[%s356 + $0x12d] sm:$0xff]
        %v528 = vld [vmem:[%s356 + $0x135] sm:$0xff]
        %v529 = vld [vmem:[%s356 + $0x13d] sm:$0xff]
        %v530 = vld [vmem:[%s356 + $0x145] sm:$0xf]
        %v531 = vpack.c.bf16 %v491, %v490
        %v532 = vpack.c.bf16 %v493, %v492
        %v533 = vpack.c.bf16 %v495, %v494
        %v534 = vpack.c.bf16 %v497, %v496
        %v535 = vpack.c.bf16 %v499, %v498
        %v536 = vpack.c.bf16 %v501, %v500
        %v537 = vpack.c.bf16 %v503, %v502
        %v538 = vpack.c.bf16 %v505, %v504
        %v539 = vpack.c.bf16 %v507, %v506
        %v540 = vpack.c.bf16 %v509, %v508
        %v541 = vpack.c.bf16 %v511, %v510
        %v542 = vpack.c.bf16 %v513, %v512
        %v543 = vpack.c.bf16 %v515, %v514
        %v544 = vpack.c.bf16 %v517, %v516
        %v545 = vpack.c.bf16 %v519, %v518
        %v546 = vpack.c.bf16 %v521, %v520
        %v547 = vpack.c.bf16 %v523, %v522
        %v548 = vpack.c.bf16 %v525, %v524
        %v549 = vpack.c.bf16 %v527, %v526
        %v550 = vpack.c.bf16 %v529, %v528
        %v551 = vpack.c.bf16 %v530, %v530
        %v552 = vld [vmem:[%s2] sm:$0xf]
        %v553 = vld [vmem:[%s2 + $0x4] sm:$0xf]
        %v554 = vld [vmem:[%s2 + $0x8] sm:$0xf]
        %v555 = vld [vmem:[%s2 + $0xc] sm:$0xf]
        %v556 = vld [vmem:[%s2 + $0x10] sm:$0xf]
        %v557 = vld [vmem:[%s2 + $0x14] sm:$0xf]
        %v558 = vld [vmem:[%s2 + $0x18] sm:$0xf]
        %v559 = vld [vmem:[%s2 + $0x1c] sm:$0xf]
        %v560 = vld [vmem:[%s2 + $0x20] sm:$0xf]
        %v561 = vld [vmem:[%s2 + $0x24] sm:$0xf]
        %v562 = vld [vmem:[%s2 + $0x28] sm:$0xf]
        %v563 = vld [vmem:[%s2 + $0x2c] sm:$0xf]
        %v564 = vld [vmem:[%s2 + $0x30] sm:$0xf]
        %v565 = vld [vmem:[%s2 + $0x34] sm:$0xf]
        %v566 = vld [vmem:[%s2 + $0x38] sm:$0xf]
        %v567 = vld [vmem:[%s2 + $0x3c] sm:$0xf]
        %v568 = vld [vmem:[%s356 + $0x6] sm:$0xff]
        %v569 = vld [vmem:[%s356 + $0xe] sm:$0xff]
        %v570 = vld [vmem:[%s356 + $0x16] sm:$0xff]
        %v571 = vld [vmem:[%s356 + $0x1e] sm:$0xff]
        %v572 = vld [vmem:[%s356 + $0x26] sm:$0xff]
        %v573 = vld [vmem:[%s356 + $0x2e] sm:$0xff]
        %v574 = vld [vmem:[%s356 + $0x36] sm:$0xff]
        %v575 = vld [vmem:[%s356 + $0x3e] sm:$0xff]
        %v576 = vld [vmem:[%s356 + $0x46] sm:$0xff]
        %v577 = vld [vmem:[%s356 + $0x4e] sm:$0xff]
        %v578 = vld [vmem:[%s356 + $0x56] sm:$0xff]
        %v579 = vld [vmem:[%s356 + $0x5e] sm:$0xff]
        %v580 = vld [vmem:[%s356 + $0x66] sm:$0xff]
        %v581 = vld [vmem:[%s356 + $0x6e] sm:$0xff]
        %v582 = vld [vmem:[%s356 + $0x76] sm:$0xff]
        %v583 = vld [vmem:[%s356 + $0x7e] sm:$0xff]
        %v584 = vld [vmem:[%s356 + $0x86] sm:$0xff]
        %v585 = vld [vmem:[%s356 + $0x8e] sm:$0xff]
        %v586 = vld [vmem:[%s356 + $0x96] sm:$0xff]
        %v587 = vld [vmem:[%s356 + $0x9e] sm:$0xff]
        %v588 = vld [vmem:[%s356 + $0xa6] sm:$0xff]
        %v589 = vld [vmem:[%s356 + $0xae] sm:$0xff]
        %v590 = vld [vmem:[%s356 + $0xb6] sm:$0xff]
        %v591 = vld [vmem:[%s356 + $0xbe] sm:$0xff]
        %v592 = vld [vmem:[%s356 + $0xc6] sm:$0xff]
        %v593 = vld [vmem:[%s356 + $0xce] sm:$0xff]
        %v594 = vld [vmem:[%s356 + $0xd6] sm:$0xff]
        %v595 = vld [vmem:[%s356 + $0xde] sm:$0xff]
        %v596 = vld [vmem:[%s356 + $0xe6] sm:$0xff]
        %v597 = vld [vmem:[%s356 + $0xee] sm:$0xff]
        %v598 = vld [vmem:[%s356 + $0xf6] sm:$0xff]
        %v599 = vld [vmem:[%s356 + $0xfe] sm:$0xff]
        %v600 = vld [vmem:[%s356 + $0x106] sm:$0xff]
        %v601 = vld [vmem:[%s356 + $0x10e] sm:$0xff]
        %v602 = vld [vmem:[%s356 + $0x116] sm:$0xff]
        %v603 = vld [vmem:[%s356 + $0x11e] sm:$0xff]
        %v604 = vld [vmem:[%s356 + $0x126] sm:$0xff]
        %v605 = vld [vmem:[%s356 + $0x12e] sm:$0xff]
        %v606 = vld [vmem:[%s356 + $0x136] sm:$0xff]
        %v607 = vld [vmem:[%s356 + $0x13e] sm:$0xff]
        %v608 = vld [vmem:[%s356 + $0x146] sm:$0xf]
        %v609 = vpack.c.bf16 %v569, %v568
        %v610 = vpack.c.bf16 %v571, %v570
        %v611 = vpack.c.bf16 %v573, %v572
        %v612 = vpack.c.bf16 %v575, %v574
        %v613 = vpack.c.bf16 %v577, %v576
        %v614 = vpack.c.bf16 %v579, %v578
        %v615 = vpack.c.bf16 %v581, %v580
        %v616 = vpack.c.bf16 %v583, %v582
        %v617 = vpack.c.bf16 %v585, %v584
        %v618 = vpack.c.bf16 %v587, %v586
        %v619 = vpack.c.bf16 %v589, %v588
        %v620 = vpack.c.bf16 %v591, %v590
        %v621 = vpack.c.bf16 %v593, %v592
        %v622 = vpack.c.bf16 %v595, %v594
        %v623 = vpack.c.bf16 %v597, %v596
        %v624 = vpack.c.bf16 %v599, %v598
        %v625 = vpack.c.bf16 %v601, %v600
        %v626 = vpack.c.bf16 %v603, %v602
        %v627 = vpack.c.bf16 %v605, %v604
        %v628 = vpack.c.bf16 %v607, %v606
        %v629 = vpack.c.bf16 %v608, %v608
        %s630 = scalar_lea.vmem %s2, 64
        %v631 = vld [vmem:[%s630] sm:$0xf]
        %v632 = vld [vmem:[%s630 + $0x4] sm:$0xf]
        %v633 = vld [vmem:[%s630 + $0x8] sm:$0xf]
        %v634 = vld [vmem:[%s630 + $0xc] sm:$0xf]
        %v635 = vld [vmem:[%s630 + $0x10] sm:$0xf]
        %v636 = vld [vmem:[%s630 + $0x14] sm:$0xf]
        %v637 = vld [vmem:[%s630 + $0x18] sm:$0xf]
        %v638 = vld [vmem:[%s630 + $0x1c] sm:$0xf]
        %v639 = vld [vmem:[%s630 + $0x20] sm:$0xf]
        %v640 = vld [vmem:[%s630 + $0x24] sm:$0xf]
        %v641 = vld [vmem:[%s630 + $0x28] sm:$0xf]
        %v642 = vld [vmem:[%s630 + $0x2c] sm:$0xf]
        %v643 = vld [vmem:[%s630 + $0x30] sm:$0xf]
        %v644 = vld [vmem:[%s630 + $0x34] sm:$0xf]
        %v645 = vld [vmem:[%s630 + $0x38] sm:$0xf]
        %v646 = vld [vmem:[%s630 + $0x3c] sm:$0xf]
        %v663 = vunpack.c.l.b16 %v631
        %v664 = vunpack.c.l.b16 %v632
        %v665 = vunpack.c.l.b16 %v633
        %v666 = vunpack.c.l.b16 %v634
        %v667 = vunpack.c.l.b16 %v635
        %v668 = vunpack.c.l.b16 %v636
        %v669 = vunpack.c.l.b16 %v637
        %v670 = vunpack.c.l.b16 %v638
        %v671 = vunpack.c.l.b16 %v639
        %v672 = vunpack.c.l.b16 %v640
        %v673 = vunpack.c.l.b16 %v641
        %v674 = vunpack.c.l.b16 %v642
        %v675 = vunpack.c.l.b16 %v643
        %v676 = vunpack.c.l.b16 %v644
        %v677 = vunpack.c.l.b16 %v645
        %v678 = vunpack.c.l.b16 %v646
        %v679 = vpack.c.b16 %v664, %v663
        %v680 = vpack.c.b16 %v666, %v665
        %v681 = vpack.c.b16 %v668, %v667
        %v682 = vpack.c.b16 %v670, %v669
        %v683 = vpack.c.b16 %v672, %v671
        %v684 = vpack.c.b16 %v674, %v673
        %v685 = vpack.c.b16 %v676, %v675
        %v686 = vpack.c.b16 %v678, %v677
        %695 = vmatpush.bf16.msra.mxu0 %v686
        %696 = vmatpush.bf16.msra.mxu0 %v685
        %697 = vmatpush.bf16.msra.mxu0 %v684
        %698 = vmatpush.bf16.msra.mxu0 %v683
        %699 = vmatpush.bf16.msra.mxu0 %v682
        %700 = vmatpush.bf16.msra.mxu0 %v681
        %701 = vmatpush.bf16.msra.mxu0 %v680
        %702 = vmatpush.bf16.msra.mxu0 %v679
        %703 = vmatmul.bf16.gmra.mxu0 %v609
        %v704 = vpop.f32.mrf.mxu0
        %v705 = vadd.f32 0.0, %v704
        %v706 = vpop.f32.mrf.mxu0
        %v707 = vadd.f32 0.0, %v706
        %708 = vmatmul.bf16.gmra.mxu0 %v610
        %v709 = vpop.f32.mrf.mxu0
        %v710 = vadd.f32 0.0, %v709
        %v711 = vpop.f32.mrf.mxu0
        %v712 = vadd.f32 0.0, %v711
        %713 = vmatmul.bf16.gmra.mxu0 %v611
        %v714 = vpop.f32.mrf.mxu0
        %v715 = vadd.f32 0.0, %v714
        %v716 = vpop.f32.mrf.mxu0
        %v717 = vadd.f32 0.0, %v716
        %718 = vmatmul.bf16.gmra.mxu0 %v612
        %v719 = vpop.f32.mrf.mxu0
        %v720 = vadd.f32 0.0, %v719
        %v721 = vpop.f32.mrf.mxu0
        %v722 = vadd.f32 0.0, %v721
        %723 = vmatmul.bf16.gmra.mxu0 %v613
        %v724 = vpop.f32.mrf.mxu0
        %v725 = vadd.f32 0.0, %v724
        %v726 = vpop.f32.mrf.mxu0
        %v727 = vadd.f32 0.0, %v726
        %728 = vmatmul.bf16.gmra.mxu0 %v614
        %v729 = vpop.f32.mrf.mxu0
        %v730 = vadd.f32 0.0, %v729
        %v731 = vpop.f32.mrf.mxu0
        %v732 = vadd.f32 0.0, %v731
        %733 = vmatmul.bf16.gmra.mxu0 %v615
        %v734 = vpop.f32.mrf.mxu0
        %v735 = vadd.f32 0.0, %v734
        %v736 = vpop.f32.mrf.mxu0
        %v737 = vadd.f32 0.0, %v736
        %738 = vmatmul.bf16.gmra.mxu0 %v616
        %v739 = vpop.f32.mrf.mxu0
        %v740 = vadd.f32 0.0, %v739
        %v741 = vpop.f32.mrf.mxu0
        %v742 = vadd.f32 0.0, %v741
        %743 = vmatmul.bf16.gmra.mxu0 %v617
        %v744 = vpop.f32.mrf.mxu0
        %v745 = vadd.f32 0.0, %v744
        %v746 = vpop.f32.mrf.mxu0
        %v747 = vadd.f32 0.0, %v746
        %748 = vmatmul.bf16.gmra.mxu0 %v618
        %v749 = vpop.f32.mrf.mxu0
        %v750 = vadd.f32 0.0, %v749
        %v751 = vpop.f32.mrf.mxu0
        %v752 = vadd.f32 0.0, %v751
        %753 = vmatmul.bf16.gmra.mxu0 %v619
        %v754 = vpop.f32.mrf.mxu0
        %v755 = vadd.f32 0.0, %v754
        %v756 = vpop.f32.mrf.mxu0
        %v757 = vadd.f32 0.0, %v756
        %758 = vmatmul.bf16.gmra.mxu0 %v620
        %v759 = vpop.f32.mrf.mxu0
        %v760 = vadd.f32 0.0, %v759
        %v761 = vpop.f32.mrf.mxu0
        %v762 = vadd.f32 0.0, %v761
        %763 = vmatmul.bf16.gmra.mxu0 %v621
        %v764 = vpop.f32.mrf.mxu0
        %v765 = vadd.f32 0.0, %v764
        %v766 = vpop.f32.mrf.mxu0
        %v767 = vadd.f32 0.0, %v766
        %768 = vmatmul.bf16.gmra.mxu0 %v622
        %v769 = vpop.f32.mrf.mxu0
        %v770 = vadd.f32 0.0, %v769
        %v771 = vpop.f32.mrf.mxu0
        %v772 = vadd.f32 0.0, %v771
        %773 = vmatmul.bf16.gmra.mxu0 %v623
        %v774 = vpop.f32.mrf.mxu0
        %v775 = vadd.f32 0.0, %v774
        %v776 = vpop.f32.mrf.mxu0
        %v777 = vadd.f32 0.0, %v776
        %778 = vmatmul.bf16.gmra.mxu0 %v624
        %v779 = vpop.f32.mrf.mxu0
        %v780 = vadd.f32 0.0, %v779
        %v781 = vpop.f32.mrf.mxu0
        %v782 = vadd.f32 0.0, %v781
        %783 = vmatmul.bf16.gmra.mxu0 %v625
        %v784 = vpop.f32.mrf.mxu0
        %v785 = vadd.f32 0.0, %v784
        %v786 = vpop.f32.mrf.mxu0
        %v787 = vadd.f32 0.0, %v786
        %788 = vmatmul.bf16.gmra.mxu0 %v626
        %v789 = vpop.f32.mrf.mxu0
        %v790 = vadd.f32 0.0, %v789
        %v791 = vpop.f32.mrf.mxu0
        %v792 = vadd.f32 0.0, %v791
        %793 = vmatmul.bf16.gmra.mxu0 %v627
        %v794 = vpop.f32.mrf.mxu0
        %v795 = vadd.f32 0.0, %v794
        %v796 = vpop.f32.mrf.mxu0
        %v797 = vadd.f32 0.0, %v796
        %798 = vmatmul.bf16.gmra.mxu0 %v628
        %v799 = vpop.f32.mrf.mxu0
        %v800 = vadd.f32 0.0, %v799
        %v801 = vpop.f32.mrf.mxu0
        %v802 = vadd.f32 0.0, %v801
        %803 = vmatmul.bf16.gmra.mxu0 %v629
        %v804 = vpop.f32.mrf.mxu0
        %v805 = vadd.f32 0.0, %v804
        %v806 = vpop.f32.mrf.mxu0
        %807 = vdwg.mxu0
        %v824 = vunpack.c.l.b16 %v552
        %v825 = vunpack.c.l.b16 %v553
        %v826 = vunpack.c.l.b16 %v554
        %v827 = vunpack.c.l.b16 %v555
        %v828 = vunpack.c.l.b16 %v556
        %v829 = vunpack.c.l.b16 %v557
        %v830 = vunpack.c.l.b16 %v558
        %v831 = vunpack.c.l.b16 %v559
        %v832 = vunpack.c.l.b16 %v560
        %v833 = vunpack.c.l.b16 %v561
        %v834 = vunpack.c.l.b16 %v562
        %v835 = vunpack.c.l.b16 %v563
        %v836 = vunpack.c.l.b16 %v564
        %v837 = vunpack.c.l.b16 %v565
        %v838 = vunpack.c.l.b16 %v566
        %v839 = vunpack.c.l.b16 %v567
        %v840 = vpack.c.b16 %v825, %v824
        %v841 = vpack.c.b16 %v827, %v826
        %v842 = vpack.c.b16 %v829, %v828
        %v843 = vpack.c.b16 %v831, %v830
        %v844 = vpack.c.b16 %v833, %v832
        %v845 = vpack.c.b16 %v835, %v834
        %v846 = vpack.c.b16 %v837, %v836
        %v847 = vpack.c.b16 %v839, %v838
        %856 = vmatpush.bf16.msra.mxu0 %v847
        %857 = vmatpush.bf16.msra.mxu0 %v846
        %858 = vmatpush.bf16.msra.mxu0 %v845
        %859 = vmatpush.bf16.msra.mxu0 %v844
        %860 = vmatpush.bf16.msra.mxu0 %v843
        %861 = vmatpush.bf16.msra.mxu0 %v842
        %862 = vmatpush.bf16.msra.mxu0 %v841
        %863 = vmatpush.bf16.msra.mxu0 %v840
        %864 = vmatmul.bf16.gmra.mxu0 %v531
        %v865 = vpop.f32.mrf.mxu0
        %v866 = vadd.f32 %v705, %v865
        %v867 = vpop.f32.mrf.mxu0
        %v868 = vadd.f32 %v707, %v867
        %869 = vmatmul.bf16.gmra.mxu0 %v532
        %v870 = vpop.f32.mrf.mxu0
        %v871 = vadd.f32 %v710, %v870
        %v872 = vpop.f32.mrf.mxu0
        %v873 = vadd.f32 %v712, %v872
        %874 = vmatmul.bf16.gmra.mxu0 %v533
        %v875 = vpop.f32.mrf.mxu0
        %v876 = vadd.f32 %v715, %v875
        %v877 = vpop.f32.mrf.mxu0
        %v878 = vadd.f32 %v717, %v877
        %879 = vmatmul.bf16.gmra.mxu0 %v534
        %v880 = vpop.f32.mrf.mxu0
        %v881 = vadd.f32 %v720, %v880
        %v882 = vpop.f32.mrf.mxu0
        %v883 = vadd.f32 %v722, %v882
        %884 = vmatmul.bf16.gmra.mxu0 %v535
        %v885 = vpop.f32.mrf.mxu0
        %v886 = vadd.f32 %v725, %v885
        %v887 = vpop.f32.mrf.mxu0
        %v888 = vadd.f32 %v727, %v887
        %889 = vmatmul.bf16.gmra.mxu0 %v536
        %v890 = vpop.f32.mrf.mxu0
        %v891 = vadd.f32 %v730, %v890
        %v892 = vpop.f32.mrf.mxu0
        %v893 = vadd.f32 %v732, %v892
        %894 = vmatmul.bf16.gmra.mxu0 %v537
        %v895 = vpop.f32.mrf.mxu0
        %v896 = vadd.f32 %v735, %v895
        %v897 = vpop.f32.mrf.mxu0
        %v898 = vadd.f32 %v737, %v897
        %899 = vmatmul.bf16.gmra.mxu0 %v538
        %v900 = vpop.f32.mrf.mxu0
        %v901 = vadd.f32 %v740, %v900
        %v902 = vpop.f32.mrf.mxu0
        %v903 = vadd.f32 %v742, %v902
        %904 = vmatmul.bf16.gmra.mxu0 %v539
        %v905 = vpop.f32.mrf.mxu0
        %v906 = vadd.f32 %v745, %v905
        %v907 = vpop.f32.mrf.mxu0
        %v908 = vadd.f32 %v747, %v907
        %909 = vmatmul.bf16.gmra.mxu0 %v540
        %v910 = vpop.f32.mrf.mxu0
        %v911 = vadd.f32 %v750, %v910
        %v912 = vpop.f32.mrf.mxu0
        %v913 = vadd.f32 %v752, %v912
        %914 = vmatmul.bf16.gmra.mxu0 %v541
        %v915 = vpop.f32.mrf.mxu0
        %v916 = vadd.f32 %v755, %v915
        %v917 = vpop.f32.mrf.mxu0
        %v918 = vadd.f32 %v757, %v917
        %919 = vmatmul.bf16.gmra.mxu0 %v542
        %v920 = vpop.f32.mrf.mxu0
        %v921 = vadd.f32 %v760, %v920
        %v922 = vpop.f32.mrf.mxu0
        %v923 = vadd.f32 %v762, %v922
        %924 = vmatmul.bf16.gmra.mxu0 %v543
        %v925 = vpop.f32.mrf.mxu0
        %v926 = vadd.f32 %v765, %v925
        %v927 = vpop.f32.mrf.mxu0
        %v928 = vadd.f32 %v767, %v927
        %929 = vmatmul.bf16.gmra.mxu0 %v544
        %v930 = vpop.f32.mrf.mxu0
        %v931 = vadd.f32 %v770, %v930
        %v932 = vpop.f32.mrf.mxu0
        %v933 = vadd.f32 %v772, %v932
        %934 = vmatmul.bf16.gmra.mxu0 %v545
        %v935 = vpop.f32.mrf.mxu0
        %v936 = vadd.f32 %v775, %v935
        %v937 = vpop.f32.mrf.mxu0
        %v938 = vadd.f32 %v777, %v937
        %939 = vmatmul.bf16.gmra.mxu0 %v546
        %v940 = vpop.f32.mrf.mxu0
        %v941 = vadd.f32 %v780, %v940
        %v942 = vpop.f32.mrf.mxu0
        %v943 = vadd.f32 %v782, %v942
        %944 = vmatmul.bf16.gmra.mxu0 %v547
        %v945 = vpop.f32.mrf.mxu0
        %v946 = vadd.f32 %v785, %v945
        %v947 = vpop.f32.mrf.mxu0
        %v948 = vadd.f32 %v787, %v947
        %949 = vmatmul.bf16.gmra.mxu0 %v548
        %v950 = vpop.f32.mrf.mxu0
        %v951 = vadd.f32 %v790, %v950
        %v952 = vpop.f32.mrf.mxu0
        %v953 = vadd.f32 %v792, %v952
        %954 = vmatmul.bf16.gmra.mxu0 %v549
        %v955 = vpop.f32.mrf.mxu0
        %v956 = vadd.f32 %v795, %v955
        %v957 = vpop.f32.mrf.mxu0
        %v958 = vadd.f32 %v797, %v957
        %959 = vmatmul.bf16.gmra.mxu0 %v550
        %v960 = vpop.f32.mrf.mxu0
        %v961 = vadd.f32 %v800, %v960
        %v962 = vpop.f32.mrf.mxu0
        %v963 = vadd.f32 %v802, %v962
        %964 = vmatmul.bf16.gmra.mxu0 %v551
        %v965 = vpop.f32.mrf.mxu0
        %v966 = vadd.f32 %v805, %v965
        %v967 = vpop.f32.mrf.mxu0
        %968 = vdwg.mxu0
        %v969 = vld [vmem:[%s356 + $0x7] sm:$0xff]
        %v970 = vld [vmem:[%s356 + $0xf] sm:$0xff]
        %v971 = vld [vmem:[%s356 + $0x17] sm:$0xff]
        %v972 = vld [vmem:[%s356 + $0x1f] sm:$0xff]
        %v973 = vld [vmem:[%s356 + $0x27] sm:$0xff]
        %v974 = vld [vmem:[%s356 + $0x2f] sm:$0xff]
        %v975 = vld [vmem:[%s356 + $0x37] sm:$0xff]
        %v976 = vld [vmem:[%s356 + $0x3f] sm:$0xff]
        %v977 = vld [vmem:[%s356 + $0x47] sm:$0xff]
        %v978 = vld [vmem:[%s356 + $0x4f] sm:$0xff]
        %v979 = vld [vmem:[%s356 + $0x57] sm:$0xff]
        %v980 = vld [vmem:[%s356 + $0x5f] sm:$0xff]
        %v981 = vld [vmem:[%s356 + $0x67] sm:$0xff]
        %v982 = vld [vmem:[%s356 + $0x6f] sm:$0xff]
        %v983 = vld [vmem:[%s356 + $0x77] sm:$0xff]
        %v984 = vld [vmem:[%s356 + $0x7f] sm:$0xff]
        %v985 = vld [vmem:[%s356 + $0x87] sm:$0xff]
        %v986 = vld [vmem:[%s356 + $0x8f] sm:$0xff]
        %v987 = vld [vmem:[%s356 + $0x97] sm:$0xff]
        %v988 = vld [vmem:[%s356 + $0x9f] sm:$0xff]
        %v989 = vld [vmem:[%s356 + $0xa7] sm:$0xff]
        %v990 = vld [vmem:[%s356 + $0xaf] sm:$0xff]
        %v991 = vld [vmem:[%s356 + $0xb7] sm:$0xff]
        %v992 = vld [vmem:[%s356 + $0xbf] sm:$0xff]
        %v993 = vld [vmem:[%s356 + $0xc7] sm:$0xff]
        %v994 = vld [vmem:[%s356 + $0xcf] sm:$0xff]
        %v995 = vld [vmem:[%s356 + $0xd7] sm:$0xff]
        %v996 = vld [vmem:[%s356 + $0xdf] sm:$0xff]
        %v997 = vld [vmem:[%s356 + $0xe7] sm:$0xff]
        %v998 = vld [vmem:[%s356 + $0xef] sm:$0xff]
        %v999 = vld [vmem:[%s356 + $0xf7] sm:$0xff]
        %v1000 = vld [vmem:[%s356 + $0xff] sm:$0xff]
        %v1001 = vld [vmem:[%s356 + $0x107] sm:$0xff]
        %v1002 = vld [vmem:[%s356 + $0x10f] sm:$0xff]
        %v1003 = vld [vmem:[%s356 + $0x117] sm:$0xff]
        %v1004 = vld [vmem:[%s356 + $0x11f] sm:$0xff]
        %v1005 = vld [vmem:[%s356 + $0x127] sm:$0xff]
        %v1006 = vld [vmem:[%s356 + $0x12f] sm:$0xff]
        %v1007 = vld [vmem:[%s356 + $0x137] sm:$0xff]
        %v1008 = vld [vmem:[%s356 + $0x13f] sm:$0xff]
        %v1009 = vld [vmem:[%s356 + $0x147] sm:$0xf]
        %v1010 = vpack.c.bf16 %v970, %v969
        %v1011 = vpack.c.bf16 %v972, %v971
        %v1012 = vpack.c.bf16 %v974, %v973
        %v1013 = vpack.c.bf16 %v976, %v975
        %v1014 = vpack.c.bf16 %v978, %v977
        %v1015 = vpack.c.bf16 %v980, %v979
        %v1016 = vpack.c.bf16 %v982, %v981
        %v1017 = vpack.c.bf16 %v984, %v983
        %v1018 = vpack.c.bf16 %v986, %v985
        %v1019 = vpack.c.bf16 %v988, %v987
        %v1020 = vpack.c.bf16 %v990, %v989
        %v1021 = vpack.c.bf16 %v992, %v991
        %v1022 = vpack.c.bf16 %v994, %v993
        %v1023 = vpack.c.bf16 %v996, %v995
        %v1024 = vpack.c.bf16 %v998, %v997
        %v1025 = vpack.c.bf16 %v1000, %v999
        %v1026 = vpack.c.bf16 %v1002, %v1001
        %v1027 = vpack.c.bf16 %v1004, %v1003
        %v1028 = vpack.c.bf16 %v1006, %v1005
        %v1029 = vpack.c.bf16 %v1008, %v1007
        %v1030 = vpack.c.bf16 %v1009, %v1009
        %s1031 = scalar_lea.vmem %s2, 128
        %v1032 = vld [vmem:[%s1031] sm:$0xf]
        %v1033 = vld [vmem:[%s1031 + $0x4] sm:$0xf]
        %v1034 = vld [vmem:[%s1031 + $0x8] sm:$0xf]
        %v1035 = vld [vmem:[%s1031 + $0xc] sm:$0xf]
        %v1036 = vld [vmem:[%s1031 + $0x10] sm:$0xf]
        %v1037 = vld [vmem:[%s1031 + $0x14] sm:$0xf]
        %v1038 = vld [vmem:[%s1031 + $0x18] sm:$0xf]
        %v1039 = vld [vmem:[%s1031 + $0x1c] sm:$0xf]
        %v1040 = vld [vmem:[%s1031 + $0x20] sm:$0xf]
        %v1041 = vld [vmem:[%s1031 + $0x24] sm:$0xf]
        %v1042 = vld [vmem:[%s1031 + $0x28] sm:$0xf]
        %v1043 = vld [vmem:[%s1031 + $0x2c] sm:$0xf]
        %v1044 = vld [vmem:[%s1031 + $0x30] sm:$0xf]
        %v1045 = vld [vmem:[%s1031 + $0x34] sm:$0xf]
        %v1046 = vld [vmem:[%s1031 + $0x38] sm:$0xf]
        %v1047 = vld [vmem:[%s1031 + $0x3c] sm:$0xf]
        %v1064 = vunpack.c.l.b16 %v1032
        %v1065 = vunpack.c.l.b16 %v1033
        %v1066 = vunpack.c.l.b16 %v1034
        %v1067 = vunpack.c.l.b16 %v1035
        %v1068 = vunpack.c.l.b16 %v1036
        %v1069 = vunpack.c.l.b16 %v1037
        %v1070 = vunpack.c.l.b16 %v1038
        %v1071 = vunpack.c.l.b16 %v1039
        %v1072 = vunpack.c.l.b16 %v1040
        %v1073 = vunpack.c.l.b16 %v1041
        %v1074 = vunpack.c.l.b16 %v1042
        %v1075 = vunpack.c.l.b16 %v1043
        %v1076 = vunpack.c.l.b16 %v1044
        %v1077 = vunpack.c.l.b16 %v1045
        %v1078 = vunpack.c.l.b16 %v1046
        %v1079 = vunpack.c.l.b16 %v1047
        %v1080 = vpack.c.b16 %v1065, %v1064
        %v1081 = vpack.c.b16 %v1067, %v1066
        %v1082 = vpack.c.b16 %v1069, %v1068
        %v1083 = vpack.c.b16 %v1071, %v1070
        %v1084 = vpack.c.b16 %v1073, %v1072
        %v1085 = vpack.c.b16 %v1075, %v1074
        %v1086 = vpack.c.b16 %v1077, %v1076
        %v1087 = vpack.c.b16 %v1079, %v1078
        %1096 = vmatpush.bf16.msra.mxu0 %v1087
        %1097 = vmatpush.bf16.msra.mxu0 %v1086
        %1098 = vmatpush.bf16.msra.mxu0 %v1085
        %1099 = vmatpush.bf16.msra.mxu0 %v1084
        %1100 = vmatpush.bf16.msra.mxu0 %v1083
        %1101 = vmatpush.bf16.msra.mxu0 %v1082
        %1102 = vmatpush.bf16.msra.mxu0 %v1081
        %1103 = vmatpush.bf16.msra.mxu0 %v1080
        %1104 = vmatmul.bf16.gmra.mxu0 %v1010
        %v1105 = vpop.f32.mrf.mxu0
        %v1106 = vadd.f32 0.0, %v1105
        %v1107 = vpop.f32.mrf.mxu0
        %v1108 = vadd.f32 0.0, %v1107
        %1109 = vmatmul.bf16.gmra.mxu0 %v1011
        %v1110 = vpop.f32.mrf.mxu0
        %v1111 = vadd.f32 0.0, %v1110
        %v1112 = vpop.f32.mrf.mxu0
        %v1113 = vadd.f32 0.0, %v1112
        %1114 = vmatmul.bf16.gmra.mxu0 %v1012
        %v1115 = vpop.f32.mrf.mxu0
        %v1116 = vadd.f32 0.0, %v1115
        %v1117 = vpop.f32.mrf.mxu0
        %v1118 = vadd.f32 0.0, %v1117
        %1119 = vmatmul.bf16.gmra.mxu0 %v1013
        %v1120 = vpop.f32.mrf.mxu0
        %v1121 = vadd.f32 0.0, %v1120
        %v1122 = vpop.f32.mrf.mxu0
        %v1123 = vadd.f32 0.0, %v1122
        %1124 = vmatmul.bf16.gmra.mxu0 %v1014
        %v1125 = vpop.f32.mrf.mxu0
        %v1126 = vadd.f32 0.0, %v1125
        %v1127 = vpop.f32.mrf.mxu0
        %v1128 = vadd.f32 0.0, %v1127
        %1129 = vmatmul.bf16.gmra.mxu0 %v1015
        %v1130 = vpop.f32.mrf.mxu0
        %v1131 = vadd.f32 0.0, %v1130
        %v1132 = vpop.f32.mrf.mxu0
        %v1133 = vadd.f32 0.0, %v1132
        %1134 = vmatmul.bf16.gmra.mxu0 %v1016
        %v1135 = vpop.f32.mrf.mxu0
        %v1136 = vadd.f32 0.0, %v1135
        %v1137 = vpop.f32.mrf.mxu0
        %v1138 = vadd.f32 0.0, %v1137
        %1139 = vmatmul.bf16.gmra.mxu0 %v1017
        %v1140 = vpop.f32.mrf.mxu0
        %v1141 = vadd.f32 0.0, %v1140
        %v1142 = vpop.f32.mrf.mxu0
        %v1143 = vadd.f32 0.0, %v1142
        %1144 = vmatmul.bf16.gmra.mxu0 %v1018
        %v1145 = vpop.f32.mrf.mxu0
        %v1146 = vadd.f32 0.0, %v1145
        %v1147 = vpop.f32.mrf.mxu0
        %v1148 = vadd.f32 0.0, %v1147
        %1149 = vmatmul.bf16.gmra.mxu0 %v1019
        %v1150 = vpop.f32.mrf.mxu0
        %v1151 = vadd.f32 0.0, %v1150
        %v1152 = vpop.f32.mrf.mxu0
        %v1153 = vadd.f32 0.0, %v1152
        %1154 = vmatmul.bf16.gmra.mxu0 %v1020
        %v1155 = vpop.f32.mrf.mxu0
        %v1156 = vadd.f32 0.0, %v1155
        %v1157 = vpop.f32.mrf.mxu0
        %v1158 = vadd.f32 0.0, %v1157
        %1159 = vmatmul.bf16.gmra.mxu0 %v1021
        %v1160 = vpop.f32.mrf.mxu0
        %v1161 = vadd.f32 0.0, %v1160
        %v1162 = vpop.f32.mrf.mxu0
        %v1163 = vadd.f32 0.0, %v1162
        %1164 = vmatmul.bf16.gmra.mxu0 %v1022
        %v1165 = vpop.f32.mrf.mxu0
        %v1166 = vadd.f32 0.0, %v1165
        %v1167 = vpop.f32.mrf.mxu0
        %v1168 = vadd.f32 0.0, %v1167
        %1169 = vmatmul.bf16.gmra.mxu0 %v1023
        %v1170 = vpop.f32.mrf.mxu0
        %v1171 = vadd.f32 0.0, %v1170
        %v1172 = vpop.f32.mrf.mxu0
        %v1173 = vadd.f32 0.0, %v1172
        %1174 = vmatmul.bf16.gmra.mxu0 %v1024
        %v1175 = vpop.f32.mrf.mxu0
        %v1176 = vadd.f32 0.0, %v1175
        %v1177 = vpop.f32.mrf.mxu0
        %v1178 = vadd.f32 0.0, %v1177
        %1179 = vmatmul.bf16.gmra.mxu0 %v1025
        %v1180 = vpop.f32.mrf.mxu0
        %v1181 = vadd.f32 0.0, %v1180
        %v1182 = vpop.f32.mrf.mxu0
        %v1183 = vadd.f32 0.0, %v1182
        %1184 = vmatmul.bf16.gmra.mxu0 %v1026
        %v1185 = vpop.f32.mrf.mxu0
        %v1186 = vadd.f32 0.0, %v1185
        %v1187 = vpop.f32.mrf.mxu0
        %v1188 = vadd.f32 0.0, %v1187
        %1189 = vmatmul.bf16.gmra.mxu0 %v1027
        %v1190 = vpop.f32.mrf.mxu0
        %v1191 = vadd.f32 0.0, %v1190
        %v1192 = vpop.f32.mrf.mxu0
        %v1193 = vadd.f32 0.0, %v1192
        %1194 = vmatmul.bf16.gmra.mxu0 %v1028
        %v1195 = vpop.f32.mrf.mxu0
        %v1196 = vadd.f32 0.0, %v1195
        %v1197 = vpop.f32.mrf.mxu0
        %v1198 = vadd.f32 0.0, %v1197
        %1199 = vmatmul.bf16.gmra.mxu0 %v1029
        %v1200 = vpop.f32.mrf.mxu0
        %v1201 = vadd.f32 0.0, %v1200
        %v1202 = vpop.f32.mrf.mxu0
        %v1203 = vadd.f32 0.0, %v1202
        %1204 = vmatmul.bf16.gmra.mxu0 %v1030
        %v1205 = vpop.f32.mrf.mxu0
        %v1206 = vadd.f32 0.0, %v1205
        %v1207 = vpop.f32.mrf.mxu0
        %1208 = vdwg.mxu0
        %v1209 = vadd.f32 %v866, %v1106
        %v1210 = vadd.f32 %v868, %v1108
        %v1211 = vadd.f32 %v871, %v1111
        %v1212 = vadd.f32 %v873, %v1113
        %v1213 = vadd.f32 %v876, %v1116
        %v1214 = vadd.f32 %v878, %v1118
        %v1215 = vadd.f32 %v881, %v1121
        %v1216 = vadd.f32 %v883, %v1123
        %v1217 = vadd.f32 %v886, %v1126
        %v1218 = vadd.f32 %v888, %v1128
        %v1219 = vadd.f32 %v891, %v1131
        %v1220 = vadd.f32 %v893, %v1133
        %v1221 = vadd.f32 %v896, %v1136
        %v1222 = vadd.f32 %v898, %v1138
        %v1223 = vadd.f32 %v901, %v1141
        %v1224 = vadd.f32 %v903, %v1143
        %v1225 = vadd.f32 %v906, %v1146
        %v1226 = vadd.f32 %v908, %v1148
        %v1227 = vadd.f32 %v911, %v1151
        %v1228 = vadd.f32 %v913, %v1153
        %v1229 = vadd.f32 %v916, %v1156
        %v1230 = vadd.f32 %v918, %v1158
        %v1231 = vadd.f32 %v921, %v1161
        %v1232 = vadd.f32 %v923, %v1163
        %v1233 = vadd.f32 %v926, %v1166
        %v1234 = vadd.f32 %v928, %v1168
        %v1235 = vadd.f32 %v931, %v1171
        %v1236 = vadd.f32 %v933, %v1173
        %v1237 = vadd.f32 %v936, %v1176
        %v1238 = vadd.f32 %v938, %v1178
        %v1239 = vadd.f32 %v941, %v1181
        %v1240 = vadd.f32 %v943, %v1183
        %v1241 = vadd.f32 %v946, %v1186
        %v1242 = vadd.f32 %v948, %v1188
        %v1243 = vadd.f32 %v951, %v1191
        %v1244 = vadd.f32 %v953, %v1193
        %v1245 = vadd.f32 %v956, %v1196
        %v1246 = vadd.f32 %v958, %v1198
        %v1247 = vadd.f32 %v961, %v1201
        %v1248 = vadd.f32 %v963, %v1203
        %v1249 = vadd.f32 %v966, %v1206
        %v1250 = vld [vmem:[%s356 + $0x17] sm:$0xff]
        %v1251 = vld [vmem:[%s356 + $0x1f] sm:$0xff]
        %v1252 = vld [vmem:[%s356 + $0x27] sm:$0xff]
        %v1253 = vld [vmem:[%s356 + $0x2f] sm:$0xff]
        %v1254 = vld [vmem:[%s356 + $0x37] sm:$0xff]
        %v1255 = vld [vmem:[%s356 + $0x3f] sm:$0xff]
        %v1256 = vld [vmem:[%s356 + $0x47] sm:$0xff]
        %v1257 = vld [vmem:[%s356 + $0x4f] sm:$0xff]
        %v1258 = vld [vmem:[%s356 + $0x57] sm:$0xff]
        %v1259 = vld [vmem:[%s356 + $0x5f] sm:$0xff]
        %v1260 = vld [vmem:[%s356 + $0x67] sm:$0xff]
        %v1261 = vld [vmem:[%s356 + $0x6f] sm:$0xff]
        %v1262 = vld [vmem:[%s356 + $0x77] sm:$0xff]
        %v1263 = vld [vmem:[%s356 + $0x7f] sm:$0xff]
        %v1264 = vld [vmem:[%s356 + $0x87] sm:$0xff]
        %v1265 = vld [vmem:[%s356 + $0x8f] sm:$0xff]
        %v1266 = vld [vmem:[%s356 + $0x97] sm:$0xff]
        %v1267 = vld [vmem:[%s356 + $0x9f] sm:$0xff]
        %v1268 = vld [vmem:[%s356 + $0xa7] sm:$0xff]
        %v1269 = vld [vmem:[%s356 + $0xaf] sm:$0xff]
        %v1270 = vld [vmem:[%s356 + $0xb7] sm:$0xff]
        %v1271 = vld [vmem:[%s356 + $0xbf] sm:$0xff]
        %v1272 = vld [vmem:[%s356 + $0xc7] sm:$0xff]
        %v1273 = vld [vmem:[%s356 + $0xcf] sm:$0xff]
        %v1274 = vld [vmem:[%s356 + $0xd7] sm:$0xff]
        %v1275 = vld [vmem:[%s356 + $0xdf] sm:$0xff]
        %v1276 = vld [vmem:[%s356 + $0xe7] sm:$0xff]
        %v1277 = vld [vmem:[%s356 + $0xef] sm:$0xff]
        %v1278 = vld [vmem:[%s356 + $0xf7] sm:$0xff]
        %v1279 = vld [vmem:[%s356 + $0xff] sm:$0xff]
        %v1280 = vld [vmem:[%s356 + $0x107] sm:$0xff]
        %v1281 = vld [vmem:[%s356 + $0x10f] sm:$0xff]
        %v1282 = vld [vmem:[%s356 + $0x117] sm:$0xff]
        %v1283 = vld [vmem:[%s356 + $0x11f] sm:$0xff]
        %v1284 = vld [vmem:[%s356 + $0x127] sm:$0xff]
        %v1285 = vld [vmem:[%s356 + $0x12f] sm:$0xff]
        %v1286 = vld [vmem:[%s356 + $0x137] sm:$0xff]
        %v1287 = vld [vmem:[%s356 + $0x13f] sm:$0xff]
        %v1288 = vld [vmem:[%s356 + $0x147] sm:$0xff]
        %v1289 = vld [vmem:[%s356 + $0x14f] sm:$0xff]
        %v1290 = vld [vmem:[%s356 + $0x157] sm:$0xf]
        %v1291 = vpack.c.bf16 %v1251, %v1250
        %v1292 = vpack.c.bf16 %v1253, %v1252
        %v1293 = vpack.c.bf16 %v1255, %v1254
        %v1294 = vpack.c.bf16 %v1257, %v1256
        %v1295 = vpack.c.bf16 %v1259, %v1258
        %v1296 = vpack.c.bf16 %v1261, %v1260
        %v1297 = vpack.c.bf16 %v1263, %v1262
        %v1298 = vpack.c.bf16 %v1265, %v1264
        %v1299 = vpack.c.bf16 %v1267, %v1266
        %v1300 = vpack.c.bf16 %v1269, %v1268
        %v1301 = vpack.c.bf16 %v1271, %v1270
        %v1302 = vpack.c.bf16 %v1273, %v1272
        %v1303 = vpack.c.bf16 %v1275, %v1274
        %v1304 = vpack.c.bf16 %v1277, %v1276
        %v1305 = vpack.c.bf16 %v1279, %v1278
        %v1306 = vpack.c.bf16 %v1281, %v1280
        %v1307 = vpack.c.bf16 %v1283, %v1282
        %v1308 = vpack.c.bf16 %v1285, %v1284
        %v1309 = vpack.c.bf16 %v1287, %v1286
        %v1310 = vpack.c.bf16 %v1289, %v1288
        %v1311 = vpack.c.bf16 %v1290, %v1290
        %s1312 = scalar_lea.vmem %s2, 192
        %v1313 = vld [vmem:[%s1312] sm:$0xf]
        %v1314 = vld [vmem:[%s1312 + $0x4] sm:$0xf]
        %v1315 = vld [vmem:[%s1312 + $0x8] sm:$0xf]
        %v1316 = vld [vmem:[%s1312 + $0xc] sm:$0xf]
        %v1317 = vld [vmem:[%s1312 + $0x10] sm:$0xf]
        %v1318 = vld [vmem:[%s1312 + $0x14] sm:$0xf]
        %v1319 = vld [vmem:[%s1312 + $0x18] sm:$0xf]
        %v1320 = vld [vmem:[%s1312 + $0x1c] sm:$0xf]
        %v1321 = vld [vmem:[%s1312 + $0x20] sm:$0xf]
        %v1322 = vld [vmem:[%s1312 + $0x24] sm:$0xf]
        %v1323 = vld [vmem:[%s1312 + $0x28] sm:$0xf]
        %v1324 = vld [vmem:[%s1312 + $0x2c] sm:$0xf]
        %v1325 = vld [vmem:[%s1312 + $0x30] sm:$0xf]
        %v1326 = vld [vmem:[%s1312 + $0x34] sm:$0xf]
        %v1327 = vld [vmem:[%s1312 + $0x38] sm:$0xf]
        %v1328 = vld [vmem:[%s1312 + $0x3c] sm:$0xf]
        %v1345 = vunpack.c.l.b16 %v1313
        %v1346 = vunpack.c.l.b16 %v1314
        %v1347 = vunpack.c.l.b16 %v1315
        %v1348 = vunpack.c.l.b16 %v1316
        %v1349 = vunpack.c.l.b16 %v1317
        %v1350 = vunpack.c.l.b16 %v1318
        %v1351 = vunpack.c.l.b16 %v1319
        %v1352 = vunpack.c.l.b16 %v1320
        %v1353 = vunpack.c.l.b16 %v1321
        %v1354 = vunpack.c.l.b16 %v1322
        %v1355 = vunpack.c.l.b16 %v1323
        %v1356 = vunpack.c.l.b16 %v1324
        %v1357 = vunpack.c.l.b16 %v1325
        %v1358 = vunpack.c.l.b16 %v1326
        %v1359 = vunpack.c.l.b16 %v1327
        %v1360 = vunpack.c.l.b16 %v1328
        %v1361 = vpack.c.b16 %v1346, %v1345
        %v1362 = vpack.c.b16 %v1348, %v1347
        %v1363 = vpack.c.b16 %v1350, %v1349
        %v1364 = vpack.c.b16 %v1352, %v1351
        %v1365 = vpack.c.b16 %v1354, %v1353
        %v1366 = vpack.c.b16 %v1356, %v1355
        %v1367 = vpack.c.b16 %v1358, %v1357
        %v1368 = vpack.c.b16 %v1360, %v1359
        %1377 = vmatpush.bf16.msra.mxu0 %v1368
        %1378 = vmatpush.bf16.msra.mxu0 %v1367
        %1379 = vmatpush.bf16.msra.mxu0 %v1366
        %1380 = vmatpush.bf16.msra.mxu0 %v1365
        %1381 = vmatpush.bf16.msra.mxu0 %v1364
        %1382 = vmatpush.bf16.msra.mxu0 %v1363
        %1383 = vmatpush.bf16.msra.mxu0 %v1362
        %1384 = vmatpush.bf16.msra.mxu0 %v1361
        %1385 = vmatmul.bf16.gmra.mxu0 %v1291
        %v1386 = vpop.f32.mrf.mxu0
        %v1387 = vadd.f32 0.0, %v1386
        %v1388 = vpop.f32.mrf.mxu0
        %v1389 = vadd.f32 0.0, %v1388
        %1390 = vmatmul.bf16.gmra.mxu0 %v1292
        %v1391 = vpop.f32.mrf.mxu0
        %v1392 = vadd.f32 0.0, %v1391
        %v1393 = vpop.f32.mrf.mxu0
        %v1394 = vadd.f32 0.0, %v1393
        %1395 = vmatmul.bf16.gmra.mxu0 %v1293
        %v1396 = vpop.f32.mrf.mxu0
        %v1397 = vadd.f32 0.0, %v1396
        %v1398 = vpop.f32.mrf.mxu0
        %v1399 = vadd.f32 0.0, %v1398
        %1400 = vmatmul.bf16.gmra.mxu0 %v1294
        %v1401 = vpop.f32.mrf.mxu0
        %v1402 = vadd.f32 0.0, %v1401
        %v1403 = vpop.f32.mrf.mxu0
        %v1404 = vadd.f32 0.0, %v1403
        %1405 = vmatmul.bf16.gmra.mxu0 %v1295
        %v1406 = vpop.f32.mrf.mxu0
        %v1407 = vadd.f32 0.0, %v1406
        %v1408 = vpop.f32.mrf.mxu0
        %v1409 = vadd.f32 0.0, %v1408
        %1410 = vmatmul.bf16.gmra.mxu0 %v1296
        %v1411 = vpop.f32.mrf.mxu0
        %v1412 = vadd.f32 0.0, %v1411
        %v1413 = vpop.f32.mrf.mxu0
        %v1414 = vadd.f32 0.0, %v1413
        %1415 = vmatmul.bf16.gmra.mxu0 %v1297
        %v1416 = vpop.f32.mrf.mxu0
        %v1417 = vadd.f32 0.0, %v1416
        %v1418 = vpop.f32.mrf.mxu0
        %v1419 = vadd.f32 0.0, %v1418
        %1420 = vmatmul.bf16.gmra.mxu0 %v1298
        %v1421 = vpop.f32.mrf.mxu0
        %v1422 = vadd.f32 0.0, %v1421
        %v1423 = vpop.f32.mrf.mxu0
        %v1424 = vadd.f32 0.0, %v1423
        %1425 = vmatmul.bf16.gmra.mxu0 %v1299
        %v1426 = vpop.f32.mrf.mxu0
        %v1427 = vadd.f32 0.0, %v1426
        %v1428 = vpop.f32.mrf.mxu0
        %v1429 = vadd.f32 0.0, %v1428
        %1430 = vmatmul.bf16.gmra.mxu0 %v1300
        %v1431 = vpop.f32.mrf.mxu0
        %v1432 = vadd.f32 0.0, %v1431
        %v1433 = vpop.f32.mrf.mxu0
        %v1434 = vadd.f32 0.0, %v1433
        %1435 = vmatmul.bf16.gmra.mxu0 %v1301
        %v1436 = vpop.f32.mrf.mxu0
        %v1437 = vadd.f32 0.0, %v1436
        %v1438 = vpop.f32.mrf.mxu0
        %v1439 = vadd.f32 0.0, %v1438
        %1440 = vmatmul.bf16.gmra.mxu0 %v1302
        %v1441 = vpop.f32.mrf.mxu0
        %v1442 = vadd.f32 0.0, %v1441
        %v1443 = vpop.f32.mrf.mxu0
        %v1444 = vadd.f32 0.0, %v1443
        %1445 = vmatmul.bf16.gmra.mxu0 %v1303
        %v1446 = vpop.f32.mrf.mxu0
        %v1447 = vadd.f32 0.0, %v1446
        %v1448 = vpop.f32.mrf.mxu0
        %v1449 = vadd.f32 0.0, %v1448
        %1450 = vmatmul.bf16.gmra.mxu0 %v1304
        %v1451 = vpop.f32.mrf.mxu0
        %v1452 = vadd.f32 0.0, %v1451
        %v1453 = vpop.f32.mrf.mxu0
        %v1454 = vadd.f32 0.0, %v1453
        %1455 = vmatmul.bf16.gmra.mxu0 %v1305
        %v1456 = vpop.f32.mrf.mxu0
        %v1457 = vadd.f32 0.0, %v1456
        %v1458 = vpop.f32.mrf.mxu0
        %v1459 = vadd.f32 0.0, %v1458
        %1460 = vmatmul.bf16.gmra.mxu0 %v1306
        %v1461 = vpop.f32.mrf.mxu0
        %v1462 = vadd.f32 0.0, %v1461
        %v1463 = vpop.f32.mrf.mxu0
        %v1464 = vadd.f32 0.0, %v1463
        %1465 = vmatmul.bf16.gmra.mxu0 %v1307
        %v1466 = vpop.f32.mrf.mxu0
        %v1467 = vadd.f32 0.0, %v1466
        %v1468 = vpop.f32.mrf.mxu0
        %v1469 = vadd.f32 0.0, %v1468
        %1470 = vmatmul.bf16.gmra.mxu0 %v1308
        %v1471 = vpop.f32.mrf.mxu0
        %v1472 = vadd.f32 0.0, %v1471
        %v1473 = vpop.f32.mrf.mxu0
        %v1474 = vadd.f32 0.0, %v1473
        %1475 = vmatmul.bf16.gmra.mxu0 %v1309
        %v1476 = vpop.f32.mrf.mxu0
        %v1477 = vadd.f32 0.0, %v1476
        %v1478 = vpop.f32.mrf.mxu0
        %v1479 = vadd.f32 0.0, %v1478
        %1480 = vmatmul.bf16.gmra.mxu0 %v1310
        %v1481 = vpop.f32.mrf.mxu0
        %v1482 = vadd.f32 0.0, %v1481
        %v1483 = vpop.f32.mrf.mxu0
        %v1484 = vadd.f32 0.0, %v1483
        %1485 = vmatmul.bf16.gmra.mxu0 %v1311
        %v1486 = vpop.f32.mrf.mxu0
        %v1487 = vadd.f32 0.0, %v1486
        %v1488 = vpop.f32.mrf.mxu0
        %1489 = vdwg.mxu0
        %v1490 = vadd.f32 %v1209, %v1387
        %v1491 = vadd.f32 %v1210, %v1389
        %v1492 = vadd.f32 %v1211, %v1392
        %v1493 = vadd.f32 %v1212, %v1394
        %v1494 = vadd.f32 %v1213, %v1397
        %v1495 = vadd.f32 %v1214, %v1399
        %v1496 = vadd.f32 %v1215, %v1402
        %v1497 = vadd.f32 %v1216, %v1404
        %v1498 = vadd.f32 %v1217, %v1407
        %v1499 = vadd.f32 %v1218, %v1409
        %v1500 = vadd.f32 %v1219, %v1412
        %v1501 = vadd.f32 %v1220, %v1414
        %v1502 = vadd.f32 %v1221, %v1417
        %v1503 = vadd.f32 %v1222, %v1419
        %v1504 = vadd.f32 %v1223, %v1422
        %v1505 = vadd.f32 %v1224, %v1424
        %v1506 = vadd.f32 %v1225, %v1427
        %v1507 = vadd.f32 %v1226, %v1429
        %v1508 = vadd.f32 %v1227, %v1432
        %v1509 = vadd.f32 %v1228, %v1434
        %v1510 = vadd.f32 %v1229, %v1437
        %v1511 = vadd.f32 %v1230, %v1439
        %v1512 = vadd.f32 %v1231, %v1442
        %v1513 = vadd.f32 %v1232, %v1444
        %v1514 = vadd.f32 %v1233, %v1447
        %v1515 = vadd.f32 %v1234, %v1449
        %v1516 = vadd.f32 %v1235, %v1452
        %v1517 = vadd.f32 %v1236, %v1454
        %v1518 = vadd.f32 %v1237, %v1457
        %v1519 = vadd.f32 %v1238, %v1459
        %v1520 = vadd.f32 %v1239, %v1462
        %v1521 = vadd.f32 %v1240, %v1464
        %v1522 = vadd.f32 %v1241, %v1467
        %v1523 = vadd.f32 %v1242, %v1469
        %v1524 = vadd.f32 %v1243, %v1472
        %v1525 = vadd.f32 %v1244, %v1474
        %v1526 = vadd.f32 %v1245, %v1477
        %v1527 = vadd.f32 %v1246, %v1479
        %v1528 = vadd.f32 %v1247, %v1482
        %v1529 = vadd.f32 %v1248, %v1484
        %v1530 = vadd.f32 %v1249, %v1487
        %v1531 = vld [vmem:[%s356 + $0x18] sm:$0xff]
        %v1532 = vld [vmem:[%s356 + $0x20] sm:$0xff]
        %v1533 = vld [vmem:[%s356 + $0x28] sm:$0xff]
        %v1534 = vld [vmem:[%s356 + $0x30] sm:$0xff]
        %v1535 = vld [vmem:[%s356 + $0x38] sm:$0xff]
        %v1536 = vld [vmem:[%s356 + $0x40] sm:$0xff]
        %v1537 = vld [vmem:[%s356 + $0x48] sm:$0xff]
        %v1538 = vld [vmem:[%s356 + $0x50] sm:$0xff]
        %v1539 = vld [vmem:[%s356 + $0x58] sm:$0xff]
        %v1540 = vld [vmem:[%s356 + $0x60] sm:$0xff]
        %v1541 = vld [vmem:[%s356 + $0x68] sm:$0xff]
        %v1542 = vld [vmem:[%s356 + $0x70] sm:$0xff]
        %v1543 = vld [vmem:[%s356 + $0x78] sm:$0xff]
        %v1544 = vld [vmem:[%s356 + $0x80] sm:$0xff]
        %v1545 = vld [vmem:[%s356 + $0x88] sm:$0xff]
        %v1546 = vld [vmem:[%s356 + $0x90] sm:$0xff]
        %v1547 = vld [vmem:[%s356 + $0x98] sm:$0xff]
        %v1548 = vld [vmem:[%s356 + $0xa0] sm:$0xff]
        %v1549 = vld [vmem:[%s356 + $0xa8] sm:$0xff]
        %v1550 = vld [vmem:[%s356 + $0xb0] sm:$0xff]
        %v1551 = vld [vmem:[%s356 + $0xb8] sm:$0xff]
        %v1552 = vld [vmem:[%s356 + $0xc0] sm:$0xff]
        %v1553 = vld [vmem:[%s356 + $0xc8] sm:$0xff]
        %v1554 = vld [vmem:[%s356 + $0xd0] sm:$0xff]
        %v1555 = vld [vmem:[%s356 + $0xd8] sm:$0xff]
        %v1556 = vld [vmem:[%s356 + $0xe0] sm:$0xff]
        %v1557 = vld [vmem:[%s356 + $0xe8] sm:$0xff]
        %v1558 = vld [vmem:[%s356 + $0xf0] sm:$0xff]
        %v1559 = vld [vmem:[%s356 + $0xf8] sm:$0xff]
        %v1560 = vld [vmem:[%s356 + $0x100] sm:$0xff]
        %v1561 = vld [vmem:[%s356 + $0x108] sm:$0xff]
        %v1562 = vld [vmem:[%s356 + $0x110] sm:$0xff]
        %v1563 = vld [vmem:[%s356 + $0x118] sm:$0xff]
        %v1564 = vld [vmem:[%s356 + $0x120] sm:$0xff]
        %v1565 = vld [vmem:[%s356 + $0x128] sm:$0xff]
        %v1566 = vld [vmem:[%s356 + $0x130] sm:$0xff]
        %v1567 = vld [vmem:[%s356 + $0x138] sm:$0xff]
        %v1568 = vld [vmem:[%s356 + $0x140] sm:$0xff]
        %v1569 = vld [vmem:[%s356 + $0x148] sm:$0xff]
        %v1570 = vld [vmem:[%s356 + $0x150] sm:$0xff]
        %v1571 = vld [vmem:[%s356 + $0x158] sm:$0xf]
        %v1572 = vpack.c.bf16 %v1532, %v1531
        %v1573 = vpack.c.bf16 %v1534, %v1533
        %v1574 = vpack.c.bf16 %v1536, %v1535
        %v1575 = vpack.c.bf16 %v1538, %v1537
        %v1576 = vpack.c.bf16 %v1540, %v1539
        %v1577 = vpack.c.bf16 %v1542, %v1541
        %v1578 = vpack.c.bf16 %v1544, %v1543
        %v1579 = vpack.c.bf16 %v1546, %v1545
        %v1580 = vpack.c.bf16 %v1548, %v1547
        %v1581 = vpack.c.bf16 %v1550, %v1549
        %v1582 = vpack.c.bf16 %v1552, %v1551
        %v1583 = vpack.c.bf16 %v1554, %v1553
        %v1584 = vpack.c.bf16 %v1556, %v1555
        %v1585 = vpack.c.bf16 %v1558, %v1557
        %v1586 = vpack.c.bf16 %v1560, %v1559
        %v1587 = vpack.c.bf16 %v1562, %v1561
        %v1588 = vpack.c.bf16 %v1564, %v1563
        %v1589 = vpack.c.bf16 %v1566, %v1565
        %v1590 = vpack.c.bf16 %v1568, %v1567
        %v1591 = vpack.c.bf16 %v1570, %v1569
        %v1592 = vpack.c.bf16 %v1571, %v1571
        %s1593 = scalar_lea.vmem %s2, 256
        %v1594 = vld [vmem:[%s1593] sm:$0xf]
        %v1595 = vld [vmem:[%s1593 + $0x4] sm:$0xf]
        %v1596 = vld [vmem:[%s1593 + $0x8] sm:$0xf]
        %v1597 = vld [vmem:[%s1593 + $0xc] sm:$0xf]
        %v1598 = vld [vmem:[%s1593 + $0x10] sm:$0xf]
        %v1599 = vld [vmem:[%s1593 + $0x14] sm:$0xf]
        %v1600 = vld [vmem:[%s1593 + $0x18] sm:$0xf]
        %v1601 = vld [vmem:[%s1593 + $0x1c] sm:$0xf]
        %v1602 = vld [vmem:[%s1593 + $0x20] sm:$0xf]
        %v1603 = vld [vmem:[%s1593 + $0x24] sm:$0xf]
        %v1604 = vld [vmem:[%s1593 + $0x28] sm:$0xf]
        %v1605 = vld [vmem:[%s1593 + $0x2c] sm:$0xf]
        %v1606 = vld [vmem:[%s1593 + $0x30] sm:$0xf]
        %v1607 = vld [vmem:[%s1593 + $0x34] sm:$0xf]
        %v1608 = vld [vmem:[%s1593 + $0x38] sm:$0xf]
        %v1609 = vld [vmem:[%s1593 + $0x3c] sm:$0xf]
        %v1626 = vunpack.c.l.b16 %v1594
        %v1627 = vunpack.c.l.b16 %v1595
        %v1628 = vunpack.c.l.b16 %v1596
        %v1629 = vunpack.c.l.b16 %v1597
        %v1630 = vunpack.c.l.b16 %v1598
        %v1631 = vunpack.c.l.b16 %v1599
        %v1632 = vunpack.c.l.b16 %v1600
        %v1633 = vunpack.c.l.b16 %v1601
        %v1634 = vunpack.c.l.b16 %v1602
        %v1635 = vunpack.c.l.b16 %v1603
        %v1636 = vunpack.c.l.b16 %v1604
        %v1637 = vunpack.c.l.b16 %v1605
        %v1638 = vunpack.c.l.b16 %v1606
        %v1639 = vunpack.c.l.b16 %v1607
        %v1640 = vunpack.c.l.b16 %v1608
        %v1641 = vunpack.c.l.b16 %v1609
        %v1642 = vpack.c.b16 %v1627, %v1626
        %v1643 = vpack.c.b16 %v1629, %v1628
        %v1644 = vpack.c.b16 %v1631, %v1630
        %v1645 = vpack.c.b16 %v1633, %v1632
        %v1646 = vpack.c.b16 %v1635, %v1634
        %v1647 = vpack.c.b16 %v1637, %v1636
        %v1648 = vpack.c.b16 %v1639, %v1638
        %v1649 = vpack.c.b16 %v1641, %v1640
        %1658 = vmatpush.bf16.msra.mxu0 %v1649
        %1659 = vmatpush.bf16.msra.mxu0 %v1648
        %1660 = vmatpush.bf16.msra.mxu0 %v1647
        %1661 = vmatpush.bf16.msra.mxu0 %v1646
        %1662 = vmatpush.bf16.msra.mxu0 %v1645
        %1663 = vmatpush.bf16.msra.mxu0 %v1644
        %1664 = vmatpush.bf16.msra.mxu0 %v1643
        %1665 = vmatpush.bf16.msra.mxu0 %v1642
        %1666 = vmatmul.bf16.gmra.mxu0 %v1572
        %v1667 = vpop.f32.mrf.mxu0
        %v1668 = vadd.f32 0.0, %v1667
        %v1669 = vpop.f32.mrf.mxu0
        %v1670 = vadd.f32 0.0, %v1669
        %1671 = vmatmul.bf16.gmra.mxu0 %v1573
        %v1672 = vpop.f32.mrf.mxu0
        %v1673 = vadd.f32 0.0, %v1672
        %v1674 = vpop.f32.mrf.mxu0
        %v1675 = vadd.f32 0.0, %v1674
        %1676 = vmatmul.bf16.gmra.mxu0 %v1574
        %v1677 = vpop.f32.mrf.mxu0
        %v1678 = vadd.f32 0.0, %v1677
        %v1679 = vpop.f32.mrf.mxu0
        %v1680 = vadd.f32 0.0, %v1679
        %1681 = vmatmul.bf16.gmra.mxu0 %v1575
        %v1682 = vpop.f32.mrf.mxu0
        %v1683 = vadd.f32 0.0, %v1682
        %v1684 = vpop.f32.mrf.mxu0
        %v1685 = vadd.f32 0.0, %v1684
        %1686 = vmatmul.bf16.gmra.mxu0 %v1576
        %v1687 = vpop.f32.mrf.mxu0
        %v1688 = vadd.f32 0.0, %v1687
        %v1689 = vpop.f32.mrf.mxu0
        %v1690 = vadd.f32 0.0, %v1689
        %1691 = vmatmul.bf16.gmra.mxu0 %v1577
        %v1692 = vpop.f32.mrf.mxu0
        %v1693 = vadd.f32 0.0, %v1692
        %v1694 = vpop.f32.mrf.mxu0
        %v1695 = vadd.f32 0.0, %v1694
        %1696 = vmatmul.bf16.gmra.mxu0 %v1578
        %v1697 = vpop.f32.mrf.mxu0
        %v1698 = vadd.f32 0.0, %v1697
        %v1699 = vpop.f32.mrf.mxu0
        %v1700 = vadd.f32 0.0, %v1699
        %1701 = vmatmul.bf16.gmra.mxu0 %v1579
        %v1702 = vpop.f32.mrf.mxu0
        %v1703 = vadd.f32 0.0, %v1702
        %v1704 = vpop.f32.mrf.mxu0
        %v1705 = vadd.f32 0.0, %v1704
        %1706 = vmatmul.bf16.gmra.mxu0 %v1580
        %v1707 = vpop.f32.mrf.mxu0
        %v1708 = vadd.f32 0.0, %v1707
        %v1709 = vpop.f32.mrf.mxu0
        %v1710 = vadd.f32 0.0, %v1709
        %1711 = vmatmul.bf16.gmra.mxu0 %v1581
        %v1712 = vpop.f32.mrf.mxu0
        %v1713 = vadd.f32 0.0, %v1712
        %v1714 = vpop.f32.mrf.mxu0
        %v1715 = vadd.f32 0.0, %v1714
        %1716 = vmatmul.bf16.gmra.mxu0 %v1582
        %v1717 = vpop.f32.mrf.mxu0
        %v1718 = vadd.f32 0.0, %v1717
        %v1719 = vpop.f32.mrf.mxu0
        %v1720 = vadd.f32 0.0, %v1719
        %1721 = vmatmul.bf16.gmra.mxu0 %v1583
        %v1722 = vpop.f32.mrf.mxu0
        %v1723 = vadd.f32 0.0, %v1722
        %v1724 = vpop.f32.mrf.mxu0
        %v1725 = vadd.f32 0.0, %v1724
        %1726 = vmatmul.bf16.gmra.mxu0 %v1584
        %v1727 = vpop.f32.mrf.mxu0
        %v1728 = vadd.f32 0.0, %v1727
        %v1729 = vpop.f32.mrf.mxu0
        %v1730 = vadd.f32 0.0, %v1729
        %1731 = vmatmul.bf16.gmra.mxu0 %v1585
        %v1732 = vpop.f32.mrf.mxu0
        %v1733 = vadd.f32 0.0, %v1732
        %v1734 = vpop.f32.mrf.mxu0
        %v1735 = vadd.f32 0.0, %v1734
        %1736 = vmatmul.bf16.gmra.mxu0 %v1586
        %v1737 = vpop.f32.mrf.mxu0
        %v1738 = vadd.f32 0.0, %v1737
        %v1739 = vpop.f32.mrf.mxu0
        %v1740 = vadd.f32 0.0, %v1739
        %1741 = vmatmul.bf16.gmra.mxu0 %v1587
        %v1742 = vpop.f32.mrf.mxu0
        %v1743 = vadd.f32 0.0, %v1742
        %v1744 = vpop.f32.mrf.mxu0
        %v1745 = vadd.f32 0.0, %v1744
        %1746 = vmatmul.bf16.gmra.mxu0 %v1588
        %v1747 = vpop.f32.mrf.mxu0
        %v1748 = vadd.f32 0.0, %v1747
        %v1749 = vpop.f32.mrf.mxu0
        %v1750 = vadd.f32 0.0, %v1749
        %1751 = vmatmul.bf16.gmra.mxu0 %v1589
        %v1752 = vpop.f32.mrf.mxu0
        %v1753 = vadd.f32 0.0, %v1752
        %v1754 = vpop.f32.mrf.mxu0
        %v1755 = vadd.f32 0.0, %v1754
        %1756 = vmatmul.bf16.gmra.mxu0 %v1590
        %v1757 = vpop.f32.mrf.mxu0
        %v1758 = vadd.f32 0.0, %v1757
        %v1759 = vpop.f32.mrf.mxu0
        %v1760 = vadd.f32 0.0, %v1759
        %1761 = vmatmul.bf16.gmra.mxu0 %v1591
        %v1762 = vpop.f32.mrf.mxu0
        %v1763 = vadd.f32 0.0, %v1762
        %v1764 = vpop.f32.mrf.mxu0
        %v1765 = vadd.f32 0.0, %v1764
        %1766 = vmatmul.bf16.gmra.mxu0 %v1592
        %v1767 = vpop.f32.mrf.mxu0
        %v1768 = vadd.f32 0.0, %v1767
        %v1769 = vpop.f32.mrf.mxu0
        %1770 = vdwg.mxu0
        %v1771 = vadd.f32 %v1490, %v1668
        %v1772 = vadd.f32 %v1491, %v1670
        %v1773 = vadd.f32 %v1492, %v1673
        %v1774 = vadd.f32 %v1493, %v1675
        %v1775 = vadd.f32 %v1494, %v1678
        %v1776 = vadd.f32 %v1495, %v1680
        %v1777 = vadd.f32 %v1496, %v1683
        %v1778 = vadd.f32 %v1497, %v1685
        %v1779 = vadd.f32 %v1498, %v1688
        %v1780 = vadd.f32 %v1499, %v1690
        %v1781 = vadd.f32 %v1500, %v1693
        %v1782 = vadd.f32 %v1501, %v1695
        %v1783 = vadd.f32 %v1502, %v1698
        %v1784 = vadd.f32 %v1503, %v1700
        %v1785 = vadd.f32 %v1504, %v1703
        %v1786 = vadd.f32 %v1505, %v1705
        %v1787 = vadd.f32 %v1506, %v1708
        %v1788 = vadd.f32 %v1507, %v1710
        %v1789 = vadd.f32 %v1508, %v1713
        %v1790 = vadd.f32 %v1509, %v1715
        %v1791 = vadd.f32 %v1510, %v1718
        %v1792 = vadd.f32 %v1511, %v1720
        %v1793 = vadd.f32 %v1512, %v1723
        %v1794 = vadd.f32 %v1513, %v1725
        %v1795 = vadd.f32 %v1514, %v1728
        %v1796 = vadd.f32 %v1515, %v1730
        %v1797 = vadd.f32 %v1516, %v1733
        %v1798 = vadd.f32 %v1517, %v1735
        %v1799 = vadd.f32 %v1518, %v1738
        %v1800 = vadd.f32 %v1519, %v1740
        %v1801 = vadd.f32 %v1520, %v1743
        %v1802 = vadd.f32 %v1521, %v1745
        %v1803 = vadd.f32 %v1522, %v1748
        %v1804 = vadd.f32 %v1523, %v1750
        %v1805 = vadd.f32 %v1524, %v1753
        %v1806 = vadd.f32 %v1525, %v1755
        %v1807 = vadd.f32 %v1526, %v1758
        %v1808 = vadd.f32 %v1527, %v1760
        %v1809 = vadd.f32 %v1528, %v1763
        %v1810 = vadd.f32 %v1529, %v1765
        %v1811 = vadd.f32 %v1530, %v1768
        %v1812 = vld [vmem:[%s356 + $0x19] sm:$0xff]
        %v1813 = vld [vmem:[%s356 + $0x21] sm:$0xff]
        %v1814 = vld [vmem:[%s356 + $0x29] sm:$0xff]
        %v1815 = vld [vmem:[%s356 + $0x31] sm:$0xff]
        %v1816 = vld [vmem:[%s356 + $0x39] sm:$0xff]
        %v1817 = vld [vmem:[%s356 + $0x41] sm:$0xff]
        %v1818 = vld [vmem:[%s356 + $0x49] sm:$0xff]
        %v1819 = vld [vmem:[%s356 + $0x51] sm:$0xff]
        %v1820 = vld [vmem:[%s356 + $0x59] sm:$0xff]
        %v1821 = vld [vmem:[%s356 + $0x61] sm:$0xff]
        %v1822 = vld [vmem:[%s356 + $0x69] sm:$0xff]
        %v1823 = vld [vmem:[%s356 + $0x71] sm:$0xff]
        %v1824 = vld [vmem:[%s356 + $0x79] sm:$0xff]
        %v1825 = vld [vmem:[%s356 + $0x81] sm:$0xff]
        %v1826 = vld [vmem:[%s356 + $0x89] sm:$0xff]
        %v1827 = vld [vmem:[%s356 + $0x91] sm:$0xff]
        %v1828 = vld [vmem:[%s356 + $0x99] sm:$0xff]
        %v1829 = vld [vmem:[%s356 + $0xa1] sm:$0xff]
        %v1830 = vld [vmem:[%s356 + $0xa9] sm:$0xff]
        %v1831 = vld [vmem:[%s356 + $0xb1] sm:$0xff]
        %v1832 = vld [vmem:[%s356 + $0xb9] sm:$0xff]
        %v1833 = vld [vmem:[%s356 + $0xc1] sm:$0xff]
        %v1834 = vld [vmem:[%s356 + $0xc9] sm:$0xff]
        %v1835 = vld [vmem:[%s356 + $0xd1] sm:$0xff]
        %v1836 = vld [vmem:[%s356 + $0xd9] sm:$0xff]
        %v1837 = vld [vmem:[%s356 + $0xe1] sm:$0xff]
        %v1838 = vld [vmem:[%s356 + $0xe9] sm:$0xff]
        %v1839 = vld [vmem:[%s356 + $0xf1] sm:$0xff]
        %v1840 = vld [vmem:[%s356 + $0xf9] sm:$0xff]
        %v1841 = vld [vmem:[%s356 + $0x101] sm:$0xff]
        %v1842 = vld [vmem:[%s356 + $0x109] sm:$0xff]
        %v1843 = vld [vmem:[%s356 + $0x111] sm:$0xff]
        %v1844 = vld [vmem:[%s356 + $0x119] sm:$0xff]
        %v1845 = vld [vmem:[%s356 + $0x121] sm:$0xff]
        %v1846 = vld [vmem:[%s356 + $0x129] sm:$0xff]
        %v1847 = vld [vmem:[%s356 + $0x131] sm:$0xff]
        %v1848 = vld [vmem:[%s356 + $0x139] sm:$0xff]
        %v1849 = vld [vmem:[%s356 + $0x141] sm:$0xff]
        %v1850 = vld [vmem:[%s356 + $0x149] sm:$0xff]
        %v1851 = vld [vmem:[%s356 + $0x151] sm:$0xff]
        %v1852 = vld [vmem:[%s356 + $0x159] sm:$0xf]
        %v1853 = vpack.c.bf16 %v1813, %v1812
        %v1854 = vpack.c.bf16 %v1815, %v1814
        %v1855 = vpack.c.bf16 %v1817, %v1816
        %v1856 = vpack.c.bf16 %v1819, %v1818
        %v1857 = vpack.c.bf16 %v1821, %v1820
        %v1858 = vpack.c.bf16 %v1823, %v1822
        %v1859 = vpack.c.bf16 %v1825, %v1824
        %v1860 = vpack.c.bf16 %v1827, %v1826
        %v1861 = vpack.c.bf16 %v1829, %v1828
        %v1862 = vpack.c.bf16 %v1831, %v1830
        %v1863 = vpack.c.bf16 %v1833, %v1832
        %v1864 = vpack.c.bf16 %v1835, %v1834
        %v1865 = vpack.c.bf16 %v1837, %v1836
        %v1866 = vpack.c.bf16 %v1839, %v1838
        %v1867 = vpack.c.bf16 %v1841, %v1840
        %v1868 = vpack.c.bf16 %v1843, %v1842
        %v1869 = vpack.c.bf16 %v1845, %v1844
        %v1870 = vpack.c.bf16 %v1847, %v1846
        %v1871 = vpack.c.bf16 %v1849, %v1848
        %v1872 = vpack.c.bf16 %v1851, %v1850
        %v1873 = vpack.c.bf16 %v1852, %v1852
        %s1874 = scalar_lea.vmem %s2, 320
        %v1875 = vld [vmem:[%s1874] sm:$0xf]
        %v1876 = vld [vmem:[%s1874 + $0x4] sm:$0xf]
        %v1877 = vld [vmem:[%s1874 + $0x8] sm:$0xf]
        %v1878 = vld [vmem:[%s1874 + $0xc] sm:$0xf]
        %v1879 = vld [vmem:[%s1874 + $0x10] sm:$0xf]
        %v1880 = vld [vmem:[%s1874 + $0x14] sm:$0xf]
        %v1881 = vld [vmem:[%s1874 + $0x18] sm:$0xf]
        %v1882 = vld [vmem:[%s1874 + $0x1c] sm:$0xf]
        %v1883 = vld [vmem:[%s1874 + $0x20] sm:$0xf]
        %v1884 = vld [vmem:[%s1874 + $0x24] sm:$0xf]
        %v1885 = vld [vmem:[%s1874 + $0x28] sm:$0xf]
        %v1886 = vld [vmem:[%s1874 + $0x2c] sm:$0xf]
        %v1887 = vld [vmem:[%s1874 + $0x30] sm:$0xf]
        %v1888 = vld [vmem:[%s1874 + $0x34] sm:$0xf]
        %v1889 = vld [vmem:[%s1874 + $0x38] sm:$0xf]
        %v1890 = vld [vmem:[%s1874 + $0x3c] sm:$0xf]
        %v1907 = vunpack.c.l.b16 %v1875
        %v1908 = vunpack.c.l.b16 %v1876
        %v1909 = vunpack.c.l.b16 %v1877
        %v1910 = vunpack.c.l.b16 %v1878
        %v1911 = vunpack.c.l.b16 %v1879
        %v1912 = vunpack.c.l.b16 %v1880
        %v1913 = vunpack.c.l.b16 %v1881
        %v1914 = vunpack.c.l.b16 %v1882
        %v1915 = vunpack.c.l.b16 %v1883
        %v1916 = vunpack.c.l.b16 %v1884
        %v1917 = vunpack.c.l.b16 %v1885
        %v1918 = vunpack.c.l.b16 %v1886
        %v1919 = vunpack.c.l.b16 %v1887
        %v1920 = vunpack.c.l.b16 %v1888
        %v1921 = vunpack.c.l.b16 %v1889
        %v1922 = vunpack.c.l.b16 %v1890
        %v1923 = vpack.c.b16 %v1908, %v1907
        %v1924 = vpack.c.b16 %v1910, %v1909
        %v1925 = vpack.c.b16 %v1912, %v1911
        %v1926 = vpack.c.b16 %v1914, %v1913
        %v1927 = vpack.c.b16 %v1916, %v1915
        %v1928 = vpack.c.b16 %v1918, %v1917
        %v1929 = vpack.c.b16 %v1920, %v1919
        %v1930 = vpack.c.b16 %v1922, %v1921
        %1939 = vmatpush.bf16.msra.mxu0 %v1930
        %1940 = vmatpush.bf16.msra.mxu0 %v1929
        %1941 = vmatpush.bf16.msra.mxu0 %v1928
        %1942 = vmatpush.bf16.msra.mxu0 %v1927
        %1943 = vmatpush.bf16.msra.mxu0 %v1926
        %1944 = vmatpush.bf16.msra.mxu0 %v1925
        %1945 = vmatpush.bf16.msra.mxu0 %v1924
        %1946 = vmatpush.bf16.msra.mxu0 %v1923
        %1947 = vmatmul.bf16.gmra.mxu0 %v1853
        %v1948 = vpop.f32.mrf.mxu0
        %v1949 = vadd.f32 0.0, %v1948
        %v1950 = vpop.f32.mrf.mxu0
        %v1951 = vadd.f32 0.0, %v1950
        %1952 = vmatmul.bf16.gmra.mxu0 %v1854
        %v1953 = vpop.f32.mrf.mxu0
        %v1954 = vadd.f32 0.0, %v1953
        %v1955 = vpop.f32.mrf.mxu0
        %v1956 = vadd.f32 0.0, %v1955
        %1957 = vmatmul.bf16.gmra.mxu0 %v1855
        %v1958 = vpop.f32.mrf.mxu0
        %v1959 = vadd.f32 0.0, %v1958
        %v1960 = vpop.f32.mrf.mxu0
        %v1961 = vadd.f32 0.0, %v1960
        %1962 = vmatmul.bf16.gmra.mxu0 %v1856
        %v1963 = vpop.f32.mrf.mxu0
        %v1964 = vadd.f32 0.0, %v1963
        %v1965 = vpop.f32.mrf.mxu0
        %v1966 = vadd.f32 0.0, %v1965
        %1967 = vmatmul.bf16.gmra.mxu0 %v1857
        %v1968 = vpop.f32.mrf.mxu0
        %v1969 = vadd.f32 0.0, %v1968
        %v1970 = vpop.f32.mrf.mxu0
        %v1971 = vadd.f32 0.0, %v1970
        %1972 = vmatmul.bf16.gmra.mxu0 %v1858
        %v1973 = vpop.f32.mrf.mxu0
        %v1974 = vadd.f32 0.0, %v1973
        %v1975 = vpop.f32.mrf.mxu0
        %v1976 = vadd.f32 0.0, %v1975
        %1977 = vmatmul.bf16.gmra.mxu0 %v1859
        %v1978 = vpop.f32.mrf.mxu0
        %v1979 = vadd.f32 0.0, %v1978
        %v1980 = vpop.f32.mrf.mxu0
        %v1981 = vadd.f32 0.0, %v1980
        %1982 = vmatmul.bf16.gmra.mxu0 %v1860
        %v1983 = vpop.f32.mrf.mxu0
        %v1984 = vadd.f32 0.0, %v1983
        %v1985 = vpop.f32.mrf.mxu0
        %v1986 = vadd.f32 0.0, %v1985
        %1987 = vmatmul.bf16.gmra.mxu0 %v1861
        %v1988 = vpop.f32.mrf.mxu0
        %v1989 = vadd.f32 0.0, %v1988
        %v1990 = vpop.f32.mrf.mxu0
        %v1991 = vadd.f32 0.0, %v1990
        %1992 = vmatmul.bf16.gmra.mxu0 %v1862
        %v1993 = vpop.f32.mrf.mxu0
        %v1994 = vadd.f32 0.0, %v1993
        %v1995 = vpop.f32.mrf.mxu0
        %v1996 = vadd.f32 0.0, %v1995
        %1997 = vmatmul.bf16.gmra.mxu0 %v1863
        %v1998 = vpop.f32.mrf.mxu0
        %v1999 = vadd.f32 0.0, %v1998
        %v2000 = vpop.f32.mrf.mxu0
        %v2001 = vadd.f32 0.0, %v2000
        %2002 = vmatmul.bf16.gmra.mxu0 %v1864
        %v2003 = vpop.f32.mrf.mxu0
        %v2004 = vadd.f32 0.0, %v2003
        %v2005 = vpop.f32.mrf.mxu0
        %v2006 = vadd.f32 0.0, %v2005
        %2007 = vmatmul.bf16.gmra.mxu0 %v1865
        %v2008 = vpop.f32.mrf.mxu0
        %v2009 = vadd.f32 0.0, %v2008
        %v2010 = vpop.f32.mrf.mxu0
        %v2011 = vadd.f32 0.0, %v2010
        %2012 = vmatmul.bf16.gmra.mxu0 %v1866
        %v2013 = vpop.f32.mrf.mxu0
        %v2014 = vadd.f32 0.0, %v2013
        %v2015 = vpop.f32.mrf.mxu0
        %v2016 = vadd.f32 0.0, %v2015
        %2017 = vmatmul.bf16.gmra.mxu0 %v1867
        %v2018 = vpop.f32.mrf.mxu0
        %v2019 = vadd.f32 0.0, %v2018
        %v2020 = vpop.f32.mrf.mxu0
        %v2021 = vadd.f32 0.0, %v2020
        %2022 = vmatmul.bf16.gmra.mxu0 %v1868
        %v2023 = vpop.f32.mrf.mxu0
        %v2024 = vadd.f32 0.0, %v2023
        %v2025 = vpop.f32.mrf.mxu0
        %v2026 = vadd.f32 0.0, %v2025
        %2027 = vmatmul.bf16.gmra.mxu0 %v1869
        %v2028 = vpop.f32.mrf.mxu0
        %v2029 = vadd.f32 0.0, %v2028
        %v2030 = vpop.f32.mrf.mxu0
        %v2031 = vadd.f32 0.0, %v2030
        %2032 = vmatmul.bf16.gmra.mxu0 %v1870
        %v2033 = vpop.f32.mrf.mxu0
        %v2034 = vadd.f32 0.0, %v2033
        %v2035 = vpop.f32.mrf.mxu0
        %v2036 = vadd.f32 0.0, %v2035
        %2037 = vmatmul.bf16.gmra.mxu0 %v1871
        %v2038 = vpop.f32.mrf.mxu0
        %v2039 = vadd.f32 0.0, %v2038
        %v2040 = vpop.f32.mrf.mxu0
        %v2041 = vadd.f32 0.0, %v2040
        %2042 = vmatmul.bf16.gmra.mxu0 %v1872
        %v2043 = vpop.f32.mrf.mxu0
        %v2044 = vadd.f32 0.0, %v2043
        %v2045 = vpop.f32.mrf.mxu0
        %v2046 = vadd.f32 0.0, %v2045
        %2047 = vmatmul.bf16.gmra.mxu0 %v1873
        %v2048 = vpop.f32.mrf.mxu0
        %v2049 = vadd.f32 0.0, %v2048
        %v2050 = vpop.f32.mrf.mxu0
        %2051 = vdwg.mxu0
        %v2052 = vadd.f32 %v1771, %v1949
        %v2053 = vadd.f32 %v1772, %v1951
        %v2054 = vadd.f32 %v1773, %v1954
        %v2055 = vadd.f32 %v1774, %v1956
        %v2056 = vadd.f32 %v1775, %v1959
        %v2057 = vadd.f32 %v1776, %v1961
        %v2058 = vadd.f32 %v1777, %v1964
        %v2059 = vadd.f32 %v1778, %v1966
        %v2060 = vadd.f32 %v1779, %v1969
        %v2061 = vadd.f32 %v1780, %v1971
        %v2062 = vadd.f32 %v1781, %v1974
        %v2063 = vadd.f32 %v1782, %v1976
        %v2064 = vadd.f32 %v1783, %v1979
        %v2065 = vadd.f32 %v1784, %v1981
        %v2066 = vadd.f32 %v1785, %v1984
        %v2067 = vadd.f32 %v1786, %v1986
        %v2068 = vadd.f32 %v1787, %v1989
        %v2069 = vadd.f32 %v1788, %v1991
        %v2070 = vadd.f32 %v1789, %v1994
        %v2071 = vadd.f32 %v1790, %v1996
        %v2072 = vadd.f32 %v1791, %v1999
        %v2073 = vadd.f32 %v1792, %v2001
        %v2074 = vadd.f32 %v1793, %v2004
        %v2075 = vadd.f32 %v1794, %v2006
        %v2076 = vadd.f32 %v1795, %v2009
        %v2077 = vadd.f32 %v1796, %v2011
        %v2078 = vadd.f32 %v1797, %v2014
        %v2079 = vadd.f32 %v1798, %v2016
        %v2080 = vadd.f32 %v1799, %v2019
        %v2081 = vadd.f32 %v1800, %v2021
        %v2082 = vadd.f32 %v1801, %v2024
        %v2083 = vadd.f32 %v1802, %v2026
        %v2084 = vadd.f32 %v1803, %v2029
        %v2085 = vadd.f32 %v1804, %v2031
        %v2086 = vadd.f32 %v1805, %v2034
        %v2087 = vadd.f32 %v1806, %v2036
        %v2088 = vadd.f32 %v1807, %v2039
        %v2089 = vadd.f32 %v1808, %v2041
        %v2090 = vadd.f32 %v1809, %v2044
        %v2091 = vadd.f32 %v1810, %v2046
        %v2092 = vadd.f32 %v1811, %v2049
        %v2093 = vld [vmem:[%s356 + $0x29] sm:$0xff]
        %v2094 = vld [vmem:[%s356 + $0x31] sm:$0xff]
        %v2095 = vld [vmem:[%s356 + $0x39] sm:$0xff]
        %v2096 = vld [vmem:[%s356 + $0x41] sm:$0xff]
        %v2097 = vld [vmem:[%s356 + $0x49] sm:$0xff]
        %v2098 = vld [vmem:[%s356 + $0x51] sm:$0xff]
        %v2099 = vld [vmem:[%s356 + $0x59] sm:$0xff]
        %v2100 = vld [vmem:[%s356 + $0x61] sm:$0xff]
        %v2101 = vld [vmem:[%s356 + $0x69] sm:$0xff]
        %v2102 = vld [vmem:[%s356 + $0x71] sm:$0xff]
        %v2103 = vld [vmem:[%s356 + $0x79] sm:$0xff]
        %v2104 = vld [vmem:[%s356 + $0x81] sm:$0xff]
        %v2105 = vld [vmem:[%s356 + $0x89] sm:$0xff]
        %v2106 = vld [vmem:[%s356 + $0x91] sm:$0xff]
        %v2107 = vld [vmem:[%s356 + $0x99] sm:$0xff]
        %v2108 = vld [vmem:[%s356 + $0xa1] sm:$0xff]
        %v2109 = vld [vmem:[%s356 + $0xa9] sm:$0xff]
        %v2110 = vld [vmem:[%s356 + $0xb1] sm:$0xff]
        %v2111 = vld [vmem:[%s356 + $0xb9] sm:$0xff]
        %v2112 = vld [vmem:[%s356 + $0xc1] sm:$0xff]
        %v2113 = vld [vmem:[%s356 + $0xc9] sm:$0xff]
        %v2114 = vld [vmem:[%s356 + $0xd1] sm:$0xff]
        %v2115 = vld [vmem:[%s356 + $0xd9] sm:$0xff]
        %v2116 = vld [vmem:[%s356 + $0xe1] sm:$0xff]
        %v2117 = vld [vmem:[%s356 + $0xe9] sm:$0xff]
        %v2118 = vld [vmem:[%s356 + $0xf1] sm:$0xff]
        %v2119 = vld [vmem:[%s356 + $0xf9] sm:$0xff]
        %v2120 = vld [vmem:[%s356 + $0x101] sm:$0xff]
        %v2121 = vld [vmem:[%s356 + $0x109] sm:$0xff]
        %v2122 = vld [vmem:[%s356 + $0x111] sm:$0xff]
        %v2123 = vld [vmem:[%s356 + $0x119] sm:$0xff]
        %v2124 = vld [vmem:[%s356 + $0x121] sm:$0xff]
        %v2125 = vld [vmem:[%s356 + $0x129] sm:$0xff]
        %v2126 = vld [vmem:[%s356 + $0x131] sm:$0xff]
        %v2127 = vld [vmem:[%s356 + $0x139] sm:$0xff]
        %v2128 = vld [vmem:[%s356 + $0x141] sm:$0xff]
        %v2129 = vld [vmem:[%s356 + $0x149] sm:$0xff]
        %v2130 = vld [vmem:[%s356 + $0x151] sm:$0xff]
        %v2131 = vld [vmem:[%s356 + $0x159] sm:$0xff]
        %v2132 = vld [vmem:[%s356 + $0x161] sm:$0xff]
        %v2133 = vld [vmem:[%s356 + $0x169] sm:$0xf]
        %v2134 = vpack.c.bf16 %v2094, %v2093
        %v2135 = vpack.c.bf16 %v2096, %v2095
        %v2136 = vpack.c.bf16 %v2098, %v2097
        %v2137 = vpack.c.bf16 %v2100, %v2099
        %v2138 = vpack.c.bf16 %v2102, %v2101
        %v2139 = vpack.c.bf16 %v2104, %v2103
        %v2140 = vpack.c.bf16 %v2106, %v2105
        %v2141 = vpack.c.bf16 %v2108, %v2107
        %v2142 = vpack.c.bf16 %v2110, %v2109
        %v2143 = vpack.c.bf16 %v2112, %v2111
        %v2144 = vpack.c.bf16 %v2114, %v2113
        %v2145 = vpack.c.bf16 %v2116, %v2115
        %v2146 = vpack.c.bf16 %v2118, %v2117
        %v2147 = vpack.c.bf16 %v2120, %v2119
        %v2148 = vpack.c.bf16 %v2122, %v2121
        %v2149 = vpack.c.bf16 %v2124, %v2123
        %v2150 = vpack.c.bf16 %v2126, %v2125
        %v2151 = vpack.c.bf16 %v2128, %v2127
        %v2152 = vpack.c.bf16 %v2130, %v2129
        %v2153 = vpack.c.bf16 %v2132, %v2131
        %v2154 = vpack.c.bf16 %v2133, %v2133
        %s2155 = scalar_lea.vmem %s2, 384
        %v2156 = vld [vmem:[%s2155] sm:$0xf]
        %v2157 = vld [vmem:[%s2155 + $0x4] sm:$0xf]
        %v2158 = vld [vmem:[%s2155 + $0x8] sm:$0xf]
        %v2159 = vld [vmem:[%s2155 + $0xc] sm:$0xf]
        %v2160 = vld [vmem:[%s2155 + $0x10] sm:$0xf]
        %v2161 = vld [vmem:[%s2155 + $0x14] sm:$0xf]
        %v2162 = vld [vmem:[%s2155 + $0x18] sm:$0xf]
        %v2163 = vld [vmem:[%s2155 + $0x1c] sm:$0xf]
        %v2164 = vld [vmem:[%s2155 + $0x20] sm:$0xf]
        %v2165 = vld [vmem:[%s2155 + $0x24] sm:$0xf]
        %v2166 = vld [vmem:[%s2155 + $0x28] sm:$0xf]
        %v2167 = vld [vmem:[%s2155 + $0x2c] sm:$0xf]
        %v2168 = vld [vmem:[%s2155 + $0x30] sm:$0xf]
        %v2169 = vld [vmem:[%s2155 + $0x34] sm:$0xf]
        %v2170 = vld [vmem:[%s2155 + $0x38] sm:$0xf]
        %v2171 = vld [vmem:[%s2155 + $0x3c] sm:$0xf]
        %v2188 = vunpack.c.l.b16 %v2156
        %v2189 = vunpack.c.l.b16 %v2157
        %v2190 = vunpack.c.l.b16 %v2158
        %v2191 = vunpack.c.l.b16 %v2159
        %v2192 = vunpack.c.l.b16 %v2160
        %v2193 = vunpack.c.l.b16 %v2161
        %v2194 = vunpack.c.l.b16 %v2162
        %v2195 = vunpack.c.l.b16 %v2163
        %v2196 = vunpack.c.l.b16 %v2164
        %v2197 = vunpack.c.l.b16 %v2165
        %v2198 = vunpack.c.l.b16 %v2166
        %v2199 = vunpack.c.l.b16 %v2167
        %v2200 = vunpack.c.l.b16 %v2168
        %v2201 = vunpack.c.l.b16 %v2169
        %v2202 = vunpack.c.l.b16 %v2170
        %v2203 = vunpack.c.l.b16 %v2171
        %v2204 = vpack.c.b16 %v2189, %v2188
        %v2205 = vpack.c.b16 %v2191, %v2190
        %v2206 = vpack.c.b16 %v2193, %v2192
        %v2207 = vpack.c.b16 %v2195, %v2194
        %v2208 = vpack.c.b16 %v2197, %v2196
        %v2209 = vpack.c.b16 %v2199, %v2198
        %v2210 = vpack.c.b16 %v2201, %v2200
        %v2211 = vpack.c.b16 %v2203, %v2202
        %2220 = vmatpush.bf16.msra.mxu0 %v2211
        %2221 = vmatpush.bf16.msra.mxu0 %v2210
        %2222 = vmatpush.bf16.msra.mxu0 %v2209
        %2223 = vmatpush.bf16.msra.mxu0 %v2208
        %2224 = vmatpush.bf16.msra.mxu0 %v2207
        %2225 = vmatpush.bf16.msra.mxu0 %v2206
        %2226 = vmatpush.bf16.msra.mxu0 %v2205
        %2227 = vmatpush.bf16.msra.mxu0 %v2204
        %2228 = vmatmul.bf16.gmra.mxu0 %v2134
        %v2229 = vpop.f32.mrf.mxu0
        %v2230 = vadd.f32 0.0, %v2229
        %v2231 = vpop.f32.mrf.mxu0
        %v2232 = vadd.f32 0.0, %v2231
        %2233 = vmatmul.bf16.gmra.mxu0 %v2135
        %v2234 = vpop.f32.mrf.mxu0
        %v2235 = vadd.f32 0.0, %v2234
        %v2236 = vpop.f32.mrf.mxu0
        %v2237 = vadd.f32 0.0, %v2236
        %2238 = vmatmul.bf16.gmra.mxu0 %v2136
        %v2239 = vpop.f32.mrf.mxu0
        %v2240 = vadd.f32 0.0, %v2239
        %v2241 = vpop.f32.mrf.mxu0
        %v2242 = vadd.f32 0.0, %v2241
        %2243 = vmatmul.bf16.gmra.mxu0 %v2137
        %v2244 = vpop.f32.mrf.mxu0
        %v2245 = vadd.f32 0.0, %v2244
        %v2246 = vpop.f32.mrf.mxu0
        %v2247 = vadd.f32 0.0, %v2246
        %2248 = vmatmul.bf16.gmra.mxu0 %v2138
        %v2249 = vpop.f32.mrf.mxu0
        %v2250 = vadd.f32 0.0, %v2249
        %v2251 = vpop.f32.mrf.mxu0
        %v2252 = vadd.f32 0.0, %v2251
        %2253 = vmatmul.bf16.gmra.mxu0 %v2139
        %v2254 = vpop.f32.mrf.mxu0
        %v2255 = vadd.f32 0.0, %v2254
        %v2256 = vpop.f32.mrf.mxu0
        %v2257 = vadd.f32 0.0, %v2256
        %2258 = vmatmul.bf16.gmra.mxu0 %v2140
        %v2259 = vpop.f32.mrf.mxu0
        %v2260 = vadd.f32 0.0, %v2259
        %v2261 = vpop.f32.mrf.mxu0
        %v2262 = vadd.f32 0.0, %v2261
        %2263 = vmatmul.bf16.gmra.mxu0 %v2141
        %v2264 = vpop.f32.mrf.mxu0
        %v2265 = vadd.f32 0.0, %v2264
        %v2266 = vpop.f32.mrf.mxu0
        %v2267 = vadd.f32 0.0, %v2266
        %2268 = vmatmul.bf16.gmra.mxu0 %v2142
        %v2269 = vpop.f32.mrf.mxu0
        %v2270 = vadd.f32 0.0, %v2269
        %v2271 = vpop.f32.mrf.mxu0
        %v2272 = vadd.f32 0.0, %v2271
        %2273 = vmatmul.bf16.gmra.mxu0 %v2143
        %v2274 = vpop.f32.mrf.mxu0
        %v2275 = vadd.f32 0.0, %v2274
        %v2276 = vpop.f32.mrf.mxu0
        %v2277 = vadd.f32 0.0, %v2276
        %2278 = vmatmul.bf16.gmra.mxu0 %v2144
        %v2279 = vpop.f32.mrf.mxu0
        %v2280 = vadd.f32 0.0, %v2279
        %v2281 = vpop.f32.mrf.mxu0
        %v2282 = vadd.f32 0.0, %v2281
        %2283 = vmatmul.bf16.gmra.mxu0 %v2145
        %v2284 = vpop.f32.mrf.mxu0
        %v2285 = vadd.f32 0.0, %v2284
        %v2286 = vpop.f32.mrf.mxu0
        %v2287 = vadd.f32 0.0, %v2286
        %2288 = vmatmul.bf16.gmra.mxu0 %v2146
        %v2289 = vpop.f32.mrf.mxu0
        %v2290 = vadd.f32 0.0, %v2289
        %v2291 = vpop.f32.mrf.mxu0
        %v2292 = vadd.f32 0.0, %v2291
        %2293 = vmatmul.bf16.gmra.mxu0 %v2147
        %v2294 = vpop.f32.mrf.mxu0
        %v2295 = vadd.f32 0.0, %v2294
        %v2296 = vpop.f32.mrf.mxu0
        %v2297 = vadd.f32 0.0, %v2296
        %2298 = vmatmul.bf16.gmra.mxu0 %v2148
        %v2299 = vpop.f32.mrf.mxu0
        %v2300 = vadd.f32 0.0, %v2299
        %v2301 = vpop.f32.mrf.mxu0
        %v2302 = vadd.f32 0.0, %v2301
        %2303 = vmatmul.bf16.gmra.mxu0 %v2149
        %v2304 = vpop.f32.mrf.mxu0
        %v2305 = vadd.f32 0.0, %v2304
        %v2306 = vpop.f32.mrf.mxu0
        %v2307 = vadd.f32 0.0, %v2306
        %2308 = vmatmul.bf16.gmra.mxu0 %v2150
        %v2309 = vpop.f32.mrf.mxu0
        %v2310 = vadd.f32 0.0, %v2309
        %v2311 = vpop.f32.mrf.mxu0
        %v2312 = vadd.f32 0.0, %v2311
        %2313 = vmatmul.bf16.gmra.mxu0 %v2151
        %v2314 = vpop.f32.mrf.mxu0
        %v2315 = vadd.f32 0.0, %v2314
        %v2316 = vpop.f32.mrf.mxu0
        %v2317 = vadd.f32 0.0, %v2316
        %2318 = vmatmul.bf16.gmra.mxu0 %v2152
        %v2319 = vpop.f32.mrf.mxu0
        %v2320 = vadd.f32 0.0, %v2319
        %v2321 = vpop.f32.mrf.mxu0
        %v2322 = vadd.f32 0.0, %v2321
        %2323 = vmatmul.bf16.gmra.mxu0 %v2153
        %v2324 = vpop.f32.mrf.mxu0
        %v2325 = vadd.f32 0.0, %v2324
        %v2326 = vpop.f32.mrf.mxu0
        %v2327 = vadd.f32 0.0, %v2326
        %2328 = vmatmul.bf16.gmra.mxu0 %v2154
        %v2329 = vpop.f32.mrf.mxu0
        %v2330 = vadd.f32 0.0, %v2329
        %v2331 = vpop.f32.mrf.mxu0
        %2332 = vdwg.mxu0
        %v2333 = vadd.f32 %v2052, %v2230
        %v2334 = vadd.f32 %v2053, %v2232
        %v2335 = vadd.f32 %v2054, %v2235
        %v2336 = vadd.f32 %v2055, %v2237
        %v2337 = vadd.f32 %v2056, %v2240
        %v2338 = vadd.f32 %v2057, %v2242
        %v2339 = vadd.f32 %v2058, %v2245
        %v2340 = vadd.f32 %v2059, %v2247
        %v2341 = vadd.f32 %v2060, %v2250
        %v2342 = vadd.f32 %v2061, %v2252
        %v2343 = vadd.f32 %v2062, %v2255
        %v2344 = vadd.f32 %v2063, %v2257
        %v2345 = vadd.f32 %v2064, %v2260
        %v2346 = vadd.f32 %v2065, %v2262
        %v2347 = vadd.f32 %v2066, %v2265
        %v2348 = vadd.f32 %v2067, %v2267
        %v2349 = vadd.f32 %v2068, %v2270
        %v2350 = vadd.f32 %v2069, %v2272
        %v2351 = vadd.f32 %v2070, %v2275
        %v2352 = vadd.f32 %v2071, %v2277
        %v2353 = vadd.f32 %v2072, %v2280
        %v2354 = vadd.f32 %v2073, %v2282
        %v2355 = vadd.f32 %v2074, %v2285
        %v2356 = vadd.f32 %v2075, %v2287
        %v2357 = vadd.f32 %v2076, %v2290
        %v2358 = vadd.f32 %v2077, %v2292
        %v2359 = vadd.f32 %v2078, %v2295
        %v2360 = vadd.f32 %v2079, %v2297
        %v2361 = vadd.f32 %v2080, %v2300
        %v2362 = vadd.f32 %v2081, %v2302
        %v2363 = vadd.f32 %v2082, %v2305
        %v2364 = vadd.f32 %v2083, %v2307
        %v2365 = vadd.f32 %v2084, %v2310
        %v2366 = vadd.f32 %v2085, %v2312
        %v2367 = vadd.f32 %v2086, %v2315
        %v2368 = vadd.f32 %v2087, %v2317
        %v2369 = vadd.f32 %v2088, %v2320
        %v2370 = vadd.f32 %v2089, %v2322
        %v2371 = vadd.f32 %v2090, %v2325
        %v2372 = vadd.f32 %v2091, %v2327
        %v2373 = vadd.f32 %v2092, %v2330
        %v2374 = vld [vmem:[%s356 + $0x2a] sm:$0xff]
        %v2375 = vld [vmem:[%s356 + $0x32] sm:$0xff]
        %v2376 = vld [vmem:[%s356 + $0x3a] sm:$0xff]
        %v2377 = vld [vmem:[%s356 + $0x42] sm:$0xff]
        %v2378 = vld [vmem:[%s356 + $0x4a] sm:$0xff]
        %v2379 = vld [vmem:[%s356 + $0x52] sm:$0xff]
        %v2380 = vld [vmem:[%s356 + $0x5a] sm:$0xff]
        %v2381 = vld [vmem:[%s356 + $0x62] sm:$0xff]
        %v2382 = vld [vmem:[%s356 + $0x6a] sm:$0xff]
        %v2383 = vld [vmem:[%s356 + $0x72] sm:$0xff]
        %v2384 = vld [vmem:[%s356 + $0x7a] sm:$0xff]
        %v2385 = vld [vmem:[%s356 + $0x82] sm:$0xff]
        %v2386 = vld [vmem:[%s356 + $0x8a] sm:$0xff]
        %v2387 = vld [vmem:[%s356 + $0x92] sm:$0xff]
        %v2388 = vld [vmem:[%s356 + $0x9a] sm:$0xff]
        %v2389 = vld [vmem:[%s356 + $0xa2] sm:$0xff]
        %v2390 = vld [vmem:[%s356 + $0xaa] sm:$0xff]
        %v2391 = vld [vmem:[%s356 + $0xb2] sm:$0xff]
        %v2392 = vld [vmem:[%s356 + $0xba] sm:$0xff]
        %v2393 = vld [vmem:[%s356 + $0xc2] sm:$0xff]
        %v2394 = vld [vmem:[%s356 + $0xca] sm:$0xff]
        %v2395 = vld [vmem:[%s356 + $0xd2] sm:$0xff]
        %v2396 = vld [vmem:[%s356 + $0xda] sm:$0xff]
        %v2397 = vld [vmem:[%s356 + $0xe2] sm:$0xff]
        %v2398 = vld [vmem:[%s356 + $0xea] sm:$0xff]
        %v2399 = vld [vmem:[%s356 + $0xf2] sm:$0xff]
        %v2400 = vld [vmem:[%s356 + $0xfa] sm:$0xff]
        %v2401 = vld [vmem:[%s356 + $0x102] sm:$0xff]
        %v2402 = vld [vmem:[%s356 + $0x10a] sm:$0xff]
        %v2403 = vld [vmem:[%s356 + $0x112] sm:$0xff]
        %v2404 = vld [vmem:[%s356 + $0x11a] sm:$0xff]
        %v2405 = vld [vmem:[%s356 + $0x122] sm:$0xff]
        %v2406 = vld [vmem:[%s356 + $0x12a] sm:$0xff]
        %v2407 = vld [vmem:[%s356 + $0x132] sm:$0xff]
        %v2408 = vld [vmem:[%s356 + $0x13a] sm:$0xff]
        %v2409 = vld [vmem:[%s356 + $0x142] sm:$0xff]
        %v2410 = vld [vmem:[%s356 + $0x14a] sm:$0xff]
        %v2411 = vld [vmem:[%s356 + $0x152] sm:$0xff]
        %v2412 = vld [vmem:[%s356 + $0x15a] sm:$0xff]
        %v2413 = vld [vmem:[%s356 + $0x162] sm:$0xff]
        %v2414 = vld [vmem:[%s356 + $0x16a] sm:$0xf]
        %v2415 = vpack.c.bf16 %v2375, %v2374
        %v2416 = vpack.c.bf16 %v2377, %v2376
        %v2417 = vpack.c.bf16 %v2379, %v2378
        %v2418 = vpack.c.bf16 %v2381, %v2380
        %v2419 = vpack.c.bf16 %v2383, %v2382
        %v2420 = vpack.c.bf16 %v2385, %v2384
        %v2421 = vpack.c.bf16 %v2387, %v2386
        %v2422 = vpack.c.bf16 %v2389, %v2388
        %v2423 = vpack.c.bf16 %v2391, %v2390
        %v2424 = vpack.c.bf16 %v2393, %v2392
        %v2425 = vpack.c.bf16 %v2395, %v2394
        %v2426 = vpack.c.bf16 %v2397, %v2396
        %v2427 = vpack.c.bf16 %v2399, %v2398
        %v2428 = vpack.c.bf16 %v2401, %v2400
        %v2429 = vpack.c.bf16 %v2403, %v2402
        %v2430 = vpack.c.bf16 %v2405, %v2404
        %v2431 = vpack.c.bf16 %v2407, %v2406
        %v2432 = vpack.c.bf16 %v2409, %v2408
        %v2433 = vpack.c.bf16 %v2411, %v2410
        %v2434 = vpack.c.bf16 %v2413, %v2412
        %v2435 = vpack.c.bf16 %v2414, %v2414
        %s2436 = scalar_lea.vmem %s2, 448
        %v2437 = vld [vmem:[%s2436] sm:$0xf]
        %v2438 = vld [vmem:[%s2436 + $0x4] sm:$0xf]
        %v2439 = vld [vmem:[%s2436 + $0x8] sm:$0xf]
        %v2440 = vld [vmem:[%s2436 + $0xc] sm:$0xf]
        %v2441 = vld [vmem:[%s2436 + $0x10] sm:$0xf]
        %v2442 = vld [vmem:[%s2436 + $0x14] sm:$0xf]
        %v2443 = vld [vmem:[%s2436 + $0x18] sm:$0xf]
        %v2444 = vld [vmem:[%s2436 + $0x1c] sm:$0xf]
        %v2445 = vld [vmem:[%s2436 + $0x20] sm:$0xf]
        %v2446 = vld [vmem:[%s2436 + $0x24] sm:$0xf]
        %v2447 = vld [vmem:[%s2436 + $0x28] sm:$0xf]
        %v2448 = vld [vmem:[%s2436 + $0x2c] sm:$0xf]
        %v2449 = vld [vmem:[%s2436 + $0x30] sm:$0xf]
        %v2450 = vld [vmem:[%s2436 + $0x34] sm:$0xf]
        %v2451 = vld [vmem:[%s2436 + $0x38] sm:$0xf]
        %v2452 = vld [vmem:[%s2436 + $0x3c] sm:$0xf]
        %v2469 = vunpack.c.l.b16 %v2437
        %v2470 = vunpack.c.l.b16 %v2438
        %v2471 = vunpack.c.l.b16 %v2439
        %v2472 = vunpack.c.l.b16 %v2440
        %v2473 = vunpack.c.l.b16 %v2441
        %v2474 = vunpack.c.l.b16 %v2442
        %v2475 = vunpack.c.l.b16 %v2443
        %v2476 = vunpack.c.l.b16 %v2444
        %v2477 = vunpack.c.l.b16 %v2445
        %v2478 = vunpack.c.l.b16 %v2446
        %v2479 = vunpack.c.l.b16 %v2447
        %v2480 = vunpack.c.l.b16 %v2448
        %v2481 = vunpack.c.l.b16 %v2449
        %v2482 = vunpack.c.l.b16 %v2450
        %v2483 = vunpack.c.l.b16 %v2451
        %v2484 = vunpack.c.l.b16 %v2452
        %v2485 = vpack.c.b16 %v2470, %v2469
        %v2486 = vpack.c.b16 %v2472, %v2471
        %v2487 = vpack.c.b16 %v2474, %v2473
        %v2488 = vpack.c.b16 %v2476, %v2475
        %v2489 = vpack.c.b16 %v2478, %v2477
        %v2490 = vpack.c.b16 %v2480, %v2479
        %v2491 = vpack.c.b16 %v2482, %v2481
        %v2492 = vpack.c.b16 %v2484, %v2483
        %2501 = vmatpush.bf16.msra.mxu0 %v2492
        %2502 = vmatpush.bf16.msra.mxu0 %v2491
        %2503 = vmatpush.bf16.msra.mxu0 %v2490
        %2504 = vmatpush.bf16.msra.mxu0 %v2489
        %2505 = vmatpush.bf16.msra.mxu0 %v2488
        %2506 = vmatpush.bf16.msra.mxu0 %v2487
        %2507 = vmatpush.bf16.msra.mxu0 %v2486
        %2508 = vmatpush.bf16.msra.mxu0 %v2485
        %2509 = vmatmul.bf16.gmra.mxu0 %v2415
        %v2510 = vpop.f32.mrf.mxu0
        %v2511 = vadd.f32 0.0, %v2510
        %v2512 = vpop.f32.mrf.mxu0
        %v2513 = vadd.f32 0.0, %v2512
        %2514 = vmatmul.bf16.gmra.mxu0 %v2416
        %v2515 = vpop.f32.mrf.mxu0
        %v2516 = vadd.f32 0.0, %v2515
        %v2517 = vpop.f32.mrf.mxu0
        %v2518 = vadd.f32 0.0, %v2517
        %2519 = vmatmul.bf16.gmra.mxu0 %v2417
        %v2520 = vpop.f32.mrf.mxu0
        %v2521 = vadd.f32 0.0, %v2520
        %v2522 = vpop.f32.mrf.mxu0
        %v2523 = vadd.f32 0.0, %v2522
        %2524 = vmatmul.bf16.gmra.mxu0 %v2418
        %v2525 = vpop.f32.mrf.mxu0
        %v2526 = vadd.f32 0.0, %v2525
        %v2527 = vpop.f32.mrf.mxu0
        %v2528 = vadd.f32 0.0, %v2527
        %2529 = vmatmul.bf16.gmra.mxu0 %v2419
        %v2530 = vpop.f32.mrf.mxu0
        %v2531 = vadd.f32 0.0, %v2530
        %v2532 = vpop.f32.mrf.mxu0
        %v2533 = vadd.f32 0.0, %v2532
        %2534 = vmatmul.bf16.gmra.mxu0 %v2420
        %v2535 = vpop.f32.mrf.mxu0
        %v2536 = vadd.f32 0.0, %v2535
        %v2537 = vpop.f32.mrf.mxu0
        %v2538 = vadd.f32 0.0, %v2537
        %2539 = vmatmul.bf16.gmra.mxu0 %v2421
        %v2540 = vpop.f32.mrf.mxu0
        %v2541 = vadd.f32 0.0, %v2540
        %v2542 = vpop.f32.mrf.mxu0
        %v2543 = vadd.f32 0.0, %v2542
        %2544 = vmatmul.bf16.gmra.mxu0 %v2422
        %v2545 = vpop.f32.mrf.mxu0
        %v2546 = vadd.f32 0.0, %v2545
        %v2547 = vpop.f32.mrf.mxu0
        %v2548 = vadd.f32 0.0, %v2547
        %2549 = vmatmul.bf16.gmra.mxu0 %v2423
        %v2550 = vpop.f32.mrf.mxu0
        %v2551 = vadd.f32 0.0, %v2550
        %v2552 = vpop.f32.mrf.mxu0
        %v2553 = vadd.f32 0.0, %v2552
        %2554 = vmatmul.bf16.gmra.mxu0 %v2424
        %v2555 = vpop.f32.mrf.mxu0
        %v2556 = vadd.f32 0.0, %v2555
        %v2557 = vpop.f32.mrf.mxu0
        %v2558 = vadd.f32 0.0, %v2557
        %2559 = vmatmul.bf16.gmra.mxu0 %v2425
        %v2560 = vpop.f32.mrf.mxu0
        %v2561 = vadd.f32 0.0, %v2560
        %v2562 = vpop.f32.mrf.mxu0
        %v2563 = vadd.f32 0.0, %v2562
        %2564 = vmatmul.bf16.gmra.mxu0 %v2426
        %v2565 = vpop.f32.mrf.mxu0
        %v2566 = vadd.f32 0.0, %v2565
        %v2567 = vpop.f32.mrf.mxu0
        %v2568 = vadd.f32 0.0, %v2567
        %2569 = vmatmul.bf16.gmra.mxu0 %v2427
        %v2570 = vpop.f32.mrf.mxu0
        %v2571 = vadd.f32 0.0, %v2570
        %v2572 = vpop.f32.mrf.mxu0
        %v2573 = vadd.f32 0.0, %v2572
        %2574 = vmatmul.bf16.gmra.mxu0 %v2428
        %v2575 = vpop.f32.mrf.mxu0
        %v2576 = vadd.f32 0.0, %v2575
        %v2577 = vpop.f32.mrf.mxu0
        %v2578 = vadd.f32 0.0, %v2577
        %2579 = vmatmul.bf16.gmra.mxu0 %v2429
        %v2580 = vpop.f32.mrf.mxu0
        %v2581 = vadd.f32 0.0, %v2580
        %v2582 = vpop.f32.mrf.mxu0
        %v2583 = vadd.f32 0.0, %v2582
        %2584 = vmatmul.bf16.gmra.mxu0 %v2430
        %v2585 = vpop.f32.mrf.mxu0
        %v2586 = vadd.f32 0.0, %v2585
        %v2587 = vpop.f32.mrf.mxu0
        %v2588 = vadd.f32 0.0, %v2587
        %2589 = vmatmul.bf16.gmra.mxu0 %v2431
        %v2590 = vpop.f32.mrf.mxu0
        %v2591 = vadd.f32 0.0, %v2590
        %v2592 = vpop.f32.mrf.mxu0
        %v2593 = vadd.f32 0.0, %v2592
        %2594 = vmatmul.bf16.gmra.mxu0 %v2432
        %v2595 = vpop.f32.mrf.mxu0
        %v2596 = vadd.f32 0.0, %v2595
        %v2597 = vpop.f32.mrf.mxu0
        %v2598 = vadd.f32 0.0, %v2597
        %2599 = vmatmul.bf16.gmra.mxu0 %v2433
        %v2600 = vpop.f32.mrf.mxu0
        %v2601 = vadd.f32 0.0, %v2600
        %v2602 = vpop.f32.mrf.mxu0
        %v2603 = vadd.f32 0.0, %v2602
        %2604 = vmatmul.bf16.gmra.mxu0 %v2434
        %v2605 = vpop.f32.mrf.mxu0
        %v2606 = vadd.f32 0.0, %v2605
        %v2607 = vpop.f32.mrf.mxu0
        %v2608 = vadd.f32 0.0, %v2607
        %2609 = vmatmul.bf16.gmra.mxu0 %v2435
        %v2610 = vpop.f32.mrf.mxu0
        %v2611 = vadd.f32 0.0, %v2610
        %v2612 = vpop.f32.mrf.mxu0
        %2613 = vdwg.mxu0
        %v2614 = vadd.f32 %v2333, %v2511
        %v2615 = vadd.f32 %v2334, %v2513
        %v2616 = vadd.f32 %v2335, %v2516
        %v2617 = vadd.f32 %v2336, %v2518
        %v2618 = vadd.f32 %v2337, %v2521
        %v2619 = vadd.f32 %v2338, %v2523
        %v2620 = vadd.f32 %v2339, %v2526
        %v2621 = vadd.f32 %v2340, %v2528
        %v2622 = vadd.f32 %v2341, %v2531
        %v2623 = vadd.f32 %v2342, %v2533
        %v2624 = vadd.f32 %v2343, %v2536
        %v2625 = vadd.f32 %v2344, %v2538
        %v2626 = vadd.f32 %v2345, %v2541
        %v2627 = vadd.f32 %v2346, %v2543
        %v2628 = vadd.f32 %v2347, %v2546
        %v2629 = vadd.f32 %v2348, %v2548
        %v2630 = vadd.f32 %v2349, %v2551
        %v2631 = vadd.f32 %v2350, %v2553
        %v2632 = vadd.f32 %v2351, %v2556
        %v2633 = vadd.f32 %v2352, %v2558
        %v2634 = vadd.f32 %v2353, %v2561
        %v2635 = vadd.f32 %v2354, %v2563
        %v2636 = vadd.f32 %v2355, %v2566
        %v2637 = vadd.f32 %v2356, %v2568
        %v2638 = vadd.f32 %v2357, %v2571
        %v2639 = vadd.f32 %v2358, %v2573
        %v2640 = vadd.f32 %v2359, %v2576
        %v2641 = vadd.f32 %v2360, %v2578
        %v2642 = vadd.f32 %v2361, %v2581
        %v2643 = vadd.f32 %v2362, %v2583
        %v2644 = vadd.f32 %v2363, %v2586
        %v2645 = vadd.f32 %v2364, %v2588
        %v2646 = vadd.f32 %v2365, %v2591
        %v2647 = vadd.f32 %v2366, %v2593
        %v2648 = vadd.f32 %v2367, %v2596
        %v2649 = vadd.f32 %v2368, %v2598
        %v2650 = vadd.f32 %v2369, %v2601
        %v2651 = vadd.f32 %v2370, %v2603
        %v2652 = vadd.f32 %v2371, %v2606
        %v2653 = vadd.f32 %v2372, %v2608
        %v2654 = vadd.f32 %v2373, %v2611
        %v2655 = vld [vmem:[%s356 + $0x2b] sm:$0xff]
        %v2656 = vld [vmem:[%s356 + $0x33] sm:$0xff]
        %v2657 = vld [vmem:[%s356 + $0x3b] sm:$0xff]
        %v2658 = vld [vmem:[%s356 + $0x43] sm:$0xff]
        %v2659 = vld [vmem:[%s356 + $0x4b] sm:$0xff]
        %v2660 = vld [vmem:[%s356 + $0x53] sm:$0xff]
        %v2661 = vld [vmem:[%s356 + $0x5b] sm:$0xff]
        %v2662 = vld [vmem:[%s356 + $0x63] sm:$0xff]
        %v2663 = vld [vmem:[%s356 + $0x6b] sm:$0xff]
        %v2664 = vld [vmem:[%s356 + $0x73] sm:$0xff]
        %v2665 = vld [vmem:[%s356 + $0x7b] sm:$0xff]
        %v2666 = vld [vmem:[%s356 + $0x83] sm:$0xff]
        %v2667 = vld [vmem:[%s356 + $0x8b] sm:$0xff]
        %v2668 = vld [vmem:[%s356 + $0x93] sm:$0xff]
        %v2669 = vld [vmem:[%s356 + $0x9b] sm:$0xff]
        %v2670 = vld [vmem:[%s356 + $0xa3] sm:$0xff]
        %v2671 = vld [vmem:[%s356 + $0xab] sm:$0xff]
        %v2672 = vld [vmem:[%s356 + $0xb3] sm:$0xff]
        %v2673 = vld [vmem:[%s356 + $0xbb] sm:$0xff]
        %v2674 = vld [vmem:[%s356 + $0xc3] sm:$0xff]
        %v2675 = vld [vmem:[%s356 + $0xcb] sm:$0xff]
        %v2676 = vld [vmem:[%s356 + $0xd3] sm:$0xff]
        %v2677 = vld [vmem:[%s356 + $0xdb] sm:$0xff]
        %v2678 = vld [vmem:[%s356 + $0xe3] sm:$0xff]
        %v2679 = vld [vmem:[%s356 + $0xeb] sm:$0xff]
        %v2680 = vld [vmem:[%s356 + $0xf3] sm:$0xff]
        %v2681 = vld [vmem:[%s356 + $0xfb] sm:$0xff]
        %v2682 = vld [vmem:[%s356 + $0x103] sm:$0xff]
        %v2683 = vld [vmem:[%s356 + $0x10b] sm:$0xff]
        %v2684 = vld [vmem:[%s356 + $0x113] sm:$0xff]
        %v2685 = vld [vmem:[%s356 + $0x11b] sm:$0xff]
        %v2686 = vld [vmem:[%s356 + $0x123] sm:$0xff]
        %v2687 = vld [vmem:[%s356 + $0x12b] sm:$0xff]
        %v2688 = vld [vmem:[%s356 + $0x133] sm:$0xff]
        %v2689 = vld [vmem:[%s356 + $0x13b] sm:$0xff]
        %v2690 = vld [vmem:[%s356 + $0x143] sm:$0xff]
        %v2691 = vld [vmem:[%s356 + $0x14b] sm:$0xff]
        %v2692 = vld [vmem:[%s356 + $0x153] sm:$0xff]
        %v2693 = vld [vmem:[%s356 + $0x15b] sm:$0xff]
        %v2694 = vld [vmem:[%s356 + $0x163] sm:$0xff]
        %v2695 = vld [vmem:[%s356 + $0x16b] sm:$0xf]
        %v2696 = vpack.c.bf16 %v2656, %v2655
        %v2697 = vpack.c.bf16 %v2658, %v2657
        %v2698 = vpack.c.bf16 %v2660, %v2659
        %v2699 = vpack.c.bf16 %v2662, %v2661
        %v2700 = vpack.c.bf16 %v2664, %v2663
        %v2701 = vpack.c.bf16 %v2666, %v2665
        %v2702 = vpack.c.bf16 %v2668, %v2667
        %v2703 = vpack.c.bf16 %v2670, %v2669
        %v2704 = vpack.c.bf16 %v2672, %v2671
        %v2705 = vpack.c.bf16 %v2674, %v2673
        %v2706 = vpack.c.bf16 %v2676, %v2675
        %v2707 = vpack.c.bf16 %v2678, %v2677
        %v2708 = vpack.c.bf16 %v2680, %v2679
        %v2709 = vpack.c.bf16 %v2682, %v2681
        %v2710 = vpack.c.bf16 %v2684, %v2683
        %v2711 = vpack.c.bf16 %v2686, %v2685
        %v2712 = vpack.c.bf16 %v2688, %v2687
        %v2713 = vpack.c.bf16 %v2690, %v2689
        %v2714 = vpack.c.bf16 %v2692, %v2691
        %v2715 = vpack.c.bf16 %v2694, %v2693
        %v2716 = vpack.c.bf16 %v2695, %v2695
        %s2717 = scalar_lea.vmem %s2, 512
        %v2718 = vld [vmem:[%s2717] sm:$0xf]
        %v2719 = vld [vmem:[%s2717 + $0x4] sm:$0xf]
        %v2720 = vld [vmem:[%s2717 + $0x8] sm:$0xf]
        %v2721 = vld [vmem:[%s2717 + $0xc] sm:$0xf]
        %v2722 = vld [vmem:[%s2717 + $0x10] sm:$0xf]
        %v2723 = vld [vmem:[%s2717 + $0x14] sm:$0xf]
        %v2724 = vld [vmem:[%s2717 + $0x18] sm:$0xf]
        %v2725 = vld [vmem:[%s2717 + $0x1c] sm:$0xf]
        %v2726 = vld [vmem:[%s2717 + $0x20] sm:$0xf]
        %v2727 = vld [vmem:[%s2717 + $0x24] sm:$0xf]
        %v2728 = vld [vmem:[%s2717 + $0x28] sm:$0xf]
        %v2729 = vld [vmem:[%s2717 + $0x2c] sm:$0xf]
        %v2730 = vld [vmem:[%s2717 + $0x30] sm:$0xf]
        %v2731 = vld [vmem:[%s2717 + $0x34] sm:$0xf]
        %v2732 = vld [vmem:[%s2717 + $0x38] sm:$0xf]
        %v2733 = vld [vmem:[%s2717 + $0x3c] sm:$0xf]
        %v2750 = vunpack.c.l.b16 %v2718
        %v2751 = vunpack.c.l.b16 %v2719
        %v2752 = vunpack.c.l.b16 %v2720
        %v2753 = vunpack.c.l.b16 %v2721
        %v2754 = vunpack.c.l.b16 %v2722
        %v2755 = vunpack.c.l.b16 %v2723
        %v2756 = vunpack.c.l.b16 %v2724
        %v2757 = vunpack.c.l.b16 %v2725
        %v2758 = vunpack.c.l.b16 %v2726
        %v2759 = vunpack.c.l.b16 %v2727
        %v2760 = vunpack.c.l.b16 %v2728
        %v2761 = vunpack.c.l.b16 %v2729
        %v2762 = vunpack.c.l.b16 %v2730
        %v2763 = vunpack.c.l.b16 %v2731
        %v2764 = vunpack.c.l.b16 %v2732
        %v2765 = vunpack.c.l.b16 %v2733
        %v2766 = vpack.c.b16 %v2751, %v2750
        %v2767 = vpack.c.b16 %v2753, %v2752
        %v2768 = vpack.c.b16 %v2755, %v2754
        %v2769 = vpack.c.b16 %v2757, %v2756
        %v2770 = vpack.c.b16 %v2759, %v2758
        %v2771 = vpack.c.b16 %v2761, %v2760
        %v2772 = vpack.c.b16 %v2763, %v2762
        %v2773 = vpack.c.b16 %v2765, %v2764
        %2782 = vmatpush.bf16.msra.mxu0 %v2773
        %2783 = vmatpush.bf16.msra.mxu0 %v2772
        %2784 = vmatpush.bf16.msra.mxu0 %v2771
        %2785 = vmatpush.bf16.msra.mxu0 %v2770
        %2786 = vmatpush.bf16.msra.mxu0 %v2769
        %2787 = vmatpush.bf16.msra.mxu0 %v2768
        %2788 = vmatpush.bf16.msra.mxu0 %v2767
        %2789 = vmatpush.bf16.msra.mxu0 %v2766
        %2790 = vmatmul.bf16.gmra.mxu0 %v2696
        %v2791 = vpop.f32.mrf.mxu0
        %v2792 = vadd.f32 0.0, %v2791
        %v2793 = vpop.f32.mrf.mxu0
        %v2794 = vadd.f32 0.0, %v2793
        %2795 = vmatmul.bf16.gmra.mxu0 %v2697
        %v2796 = vpop.f32.mrf.mxu0
        %v2797 = vadd.f32 0.0, %v2796
        %v2798 = vpop.f32.mrf.mxu0
        %v2799 = vadd.f32 0.0, %v2798
        %2800 = vmatmul.bf16.gmra.mxu0 %v2698
        %v2801 = vpop.f32.mrf.mxu0
        %v2802 = vadd.f32 0.0, %v2801
        %v2803 = vpop.f32.mrf.mxu0
        %v2804 = vadd.f32 0.0, %v2803
        %2805 = vmatmul.bf16.gmra.mxu0 %v2699
        %v2806 = vpop.f32.mrf.mxu0
        %v2807 = vadd.f32 0.0, %v2806
        %v2808 = vpop.f32.mrf.mxu0
        %v2809 = vadd.f32 0.0, %v2808
        %2810 = vmatmul.bf16.gmra.mxu0 %v2700
        %v2811 = vpop.f32.mrf.mxu0
        %v2812 = vadd.f32 0.0, %v2811
        %v2813 = vpop.f32.mrf.mxu0
        %v2814 = vadd.f32 0.0, %v2813
        %2815 = vmatmul.bf16.gmra.mxu0 %v2701
        %v2816 = vpop.f32.mrf.mxu0
        %v2817 = vadd.f32 0.0, %v2816
        %v2818 = vpop.f32.mrf.mxu0
        %v2819 = vadd.f32 0.0, %v2818
        %2820 = vmatmul.bf16.gmra.mxu0 %v2702
        %v2821 = vpop.f32.mrf.mxu0
        %v2822 = vadd.f32 0.0, %v2821
        %v2823 = vpop.f32.mrf.mxu0
        %v2824 = vadd.f32 0.0, %v2823
        %2825 = vmatmul.bf16.gmra.mxu0 %v2703
        %v2826 = vpop.f32.mrf.mxu0
        %v2827 = vadd.f32 0.0, %v2826
        %v2828 = vpop.f32.mrf.mxu0
        %v2829 = vadd.f32 0.0, %v2828
        %2830 = vmatmul.bf16.gmra.mxu0 %v2704
        %v2831 = vpop.f32.mrf.mxu0
        %v2832 = vadd.f32 0.0, %v2831
        %v2833 = vpop.f32.mrf.mxu0
        %v2834 = vadd.f32 0.0, %v2833
        %2835 = vmatmul.bf16.gmra.mxu0 %v2705
        %v2836 = vpop.f32.mrf.mxu0
        %v2837 = vadd.f32 0.0, %v2836
        %v2838 = vpop.f32.mrf.mxu0
        %v2839 = vadd.f32 0.0, %v2838
        %2840 = vmatmul.bf16.gmra.mxu0 %v2706
        %v2841 = vpop.f32.mrf.mxu0
        %v2842 = vadd.f32 0.0, %v2841
        %v2843 = vpop.f32.mrf.mxu0
        %v2844 = vadd.f32 0.0, %v2843
        %2845 = vmatmul.bf16.gmra.mxu0 %v2707
        %v2846 = vpop.f32.mrf.mxu0
        %v2847 = vadd.f32 0.0, %v2846
        %v2848 = vpop.f32.mrf.mxu0
        %v2849 = vadd.f32 0.0, %v2848
        %2850 = vmatmul.bf16.gmra.mxu0 %v2708
        %v2851 = vpop.f32.mrf.mxu0
        %v2852 = vadd.f32 0.0, %v2851
        %v2853 = vpop.f32.mrf.mxu0
        %v2854 = vadd.f32 0.0, %v2853
        %2855 = vmatmul.bf16.gmra.mxu0 %v2709
        %v2856 = vpop.f32.mrf.mxu0
        %v2857 = vadd.f32 0.0, %v2856
        %v2858 = vpop.f32.mrf.mxu0
        %v2859 = vadd.f32 0.0, %v2858
        %2860 = vmatmul.bf16.gmra.mxu0 %v2710
        %v2861 = vpop.f32.mrf.mxu0
        %v2862 = vadd.f32 0.0, %v2861
        %v2863 = vpop.f32.mrf.mxu0
        %v2864 = vadd.f32 0.0, %v2863
        %2865 = vmatmul.bf16.gmra.mxu0 %v2711
        %v2866 = vpop.f32.mrf.mxu0
        %v2867 = vadd.f32 0.0, %v2866
        %v2868 = vpop.f32.mrf.mxu0
        %v2869 = vadd.f32 0.0, %v2868
        %2870 = vmatmul.bf16.gmra.mxu0 %v2712
        %v2871 = vpop.f32.mrf.mxu0
        %v2872 = vadd.f32 0.0, %v2871
        %v2873 = vpop.f32.mrf.mxu0
        %v2874 = vadd.f32 0.0, %v2873
        %2875 = vmatmul.bf16.gmra.mxu0 %v2713
        %v2876 = vpop.f32.mrf.mxu0
        %v2877 = vadd.f32 0.0, %v2876
        %v2878 = vpop.f32.mrf.mxu0
        %v2879 = vadd.f32 0.0, %v2878
        %2880 = vmatmul.bf16.gmra.mxu0 %v2714
        %v2881 = vpop.f32.mrf.mxu0
        %v2882 = vadd.f32 0.0, %v2881
        %v2883 = vpop.f32.mrf.mxu0
        %v2884 = vadd.f32 0.0, %v2883
        %2885 = vmatmul.bf16.gmra.mxu0 %v2715
        %v2886 = vpop.f32.mrf.mxu0
        %v2887 = vadd.f32 0.0, %v2886
        %v2888 = vpop.f32.mrf.mxu0
        %v2889 = vadd.f32 0.0, %v2888
        %2890 = vmatmul.bf16.gmra.mxu0 %v2716
        %v2891 = vpop.f32.mrf.mxu0
        %v2892 = vadd.f32 0.0, %v2891
        %v2893 = vpop.f32.mrf.mxu0
        %2894 = vdwg.mxu0
        %v2895 = vadd.f32 %v2614, %v2792
        %v2896 = vadd.f32 %v2615, %v2794
        %v2897 = vadd.f32 %v2616, %v2797
        %v2898 = vadd.f32 %v2617, %v2799
        %v2899 = vadd.f32 %v2618, %v2802
        %v2900 = vadd.f32 %v2619, %v2804
        %v2901 = vadd.f32 %v2620, %v2807
        %v2902 = vadd.f32 %v2621, %v2809
        %v2903 = vadd.f32 %v2622, %v2812
        %v2904 = vadd.f32 %v2623, %v2814
        %v2905 = vadd.f32 %v2624, %v2817
        %v2906 = vadd.f32 %v2625, %v2819
        %v2907 = vadd.f32 %v2626, %v2822
        %v2908 = vadd.f32 %v2627, %v2824
        %v2909 = vadd.f32 %v2628, %v2827
        %v2910 = vadd.f32 %v2629, %v2829
        %v2911 = vadd.f32 %v2630, %v2832
        %v2912 = vadd.f32 %v2631, %v2834
        %v2913 = vadd.f32 %v2632, %v2837
        %v2914 = vadd.f32 %v2633, %v2839
        %v2915 = vadd.f32 %v2634, %v2842
        %v2916 = vadd.f32 %v2635, %v2844
        %v2917 = vadd.f32 %v2636, %v2847
        %v2918 = vadd.f32 %v2637, %v2849
        %v2919 = vadd.f32 %v2638, %v2852
        %v2920 = vadd.f32 %v2639, %v2854
        %v2921 = vadd.f32 %v2640, %v2857
        %v2922 = vadd.f32 %v2641, %v2859
        %v2923 = vadd.f32 %v2642, %v2862
        %v2924 = vadd.f32 %v2643, %v2864
        %v2925 = vadd.f32 %v2644, %v2867
        %v2926 = vadd.f32 %v2645, %v2869
        %v2927 = vadd.f32 %v2646, %v2872
        %v2928 = vadd.f32 %v2647, %v2874
        %v2929 = vadd.f32 %v2648, %v2877
        %v2930 = vadd.f32 %v2649, %v2879
        %v2931 = vadd.f32 %v2650, %v2882
        %v2932 = vadd.f32 %v2651, %v2884
        %v2933 = vadd.f32 %v2652, %v2887
        %v2934 = vadd.f32 %v2653, %v2889
        %v2935 = vadd.f32 %v2654, %v2892
        %v2936 = vld [vmem:[%s3] sm:$0x1]
        %v2938 = vperm.slane %v2936, 0
        %v2940 = vadd.f32 %v2895, %v2938
        %v2941 = vadd.f32 %v2896, %v2938
        %v2942 = vadd.f32 %v2897, %v2938
        %v2943 = vadd.f32 %v2898, %v2938
        %v2944 = vadd.f32 %v2899, %v2938
        %v2945 = vadd.f32 %v2900, %v2938
        %v2946 = vadd.f32 %v2901, %v2938
        %v2947 = vadd.f32 %v2902, %v2938
        %v2948 = vadd.f32 %v2903, %v2938
        %v2949 = vadd.f32 %v2904, %v2938
        %v2950 = vadd.f32 %v2905, %v2938
        %v2951 = vadd.f32 %v2906, %v2938
        %v2952 = vadd.f32 %v2907, %v2938
        %v2953 = vadd.f32 %v2908, %v2938
        %v2954 = vadd.f32 %v2909, %v2938
        %v2955 = vadd.f32 %v2910, %v2938
        %v2956 = vadd.f32 %v2911, %v2938
        %v2957 = vadd.f32 %v2912, %v2938
        %v2958 = vadd.f32 %v2913, %v2938
        %v2959 = vadd.f32 %v2914, %v2938
        %v2960 = vadd.f32 %v2915, %v2938
        %v2961 = vadd.f32 %v2916, %v2938
        %v2962 = vadd.f32 %v2917, %v2938
        %v2963 = vadd.f32 %v2918, %v2938
        %v2964 = vadd.f32 %v2919, %v2938
        %v2965 = vadd.f32 %v2920, %v2938
        %v2966 = vadd.f32 %v2921, %v2938
        %v2967 = vadd.f32 %v2922, %v2938
        %v2968 = vadd.f32 %v2923, %v2938
        %v2969 = vadd.f32 %v2924, %v2938
        %v2970 = vadd.f32 %v2925, %v2938
        %v2971 = vadd.f32 %v2926, %v2938
        %v2972 = vadd.f32 %v2927, %v2938
        %v2973 = vadd.f32 %v2928, %v2938
        %v2974 = vadd.f32 %v2929, %v2938
        %v2975 = vadd.f32 %v2930, %v2938
        %v2976 = vadd.f32 %v2931, %v2938
        %v2977 = vadd.f32 %v2932, %v2938
        %v2978 = vadd.f32 %v2933, %v2938
        %v2979 = vadd.f32 %v2934, %v2938
        %v2980 = vadd.f32 %v2935, %v2938
        %v2981 = vmax.f32 %v2940, 0.0
        %v2982 = vmax.f32 %v2941, 0.0
        %v2983 = vmax.f32 %v2942, 0.0
        %v2984 = vmax.f32 %v2943, 0.0
        %v2985 = vmax.f32 %v2944, 0.0
        %v2986 = vmax.f32 %v2945, 0.0
        %v2987 = vmax.f32 %v2946, 0.0
        %v2988 = vmax.f32 %v2947, 0.0
        %v2989 = vmax.f32 %v2948, 0.0
        %v2990 = vmax.f32 %v2949, 0.0
        %v2991 = vmax.f32 %v2950, 0.0
        %v2992 = vmax.f32 %v2951, 0.0
        %v2993 = vmax.f32 %v2952, 0.0
        %v2994 = vmax.f32 %v2953, 0.0
        %v2995 = vmax.f32 %v2954, 0.0
        %v2996 = vmax.f32 %v2955, 0.0
        %v2997 = vmax.f32 %v2956, 0.0
        %v2998 = vmax.f32 %v2957, 0.0
        %v2999 = vmax.f32 %v2958, 0.0
        %v3000 = vmax.f32 %v2959, 0.0
        %v3001 = vmax.f32 %v2960, 0.0
        %v3002 = vmax.f32 %v2961, 0.0
        %v3003 = vmax.f32 %v2962, 0.0
        %v3004 = vmax.f32 %v2963, 0.0
        %v3005 = vmax.f32 %v2964, 0.0
        %v3006 = vmax.f32 %v2965, 0.0
        %v3007 = vmax.f32 %v2966, 0.0
        %v3008 = vmax.f32 %v2967, 0.0
        %v3009 = vmax.f32 %v2968, 0.0
        %v3010 = vmax.f32 %v2969, 0.0
        %v3011 = vmax.f32 %v2970, 0.0
        %v3012 = vmax.f32 %v2971, 0.0
        %v3013 = vmax.f32 %v2972, 0.0
        %v3014 = vmax.f32 %v2973, 0.0
        %v3015 = vmax.f32 %v2974, 0.0
        %v3016 = vmax.f32 %v2975, 0.0
        %v3017 = vmax.f32 %v2976, 0.0
        %v3018 = vmax.f32 %v2977, 0.0
        %v3019 = vmax.f32 %v2978, 0.0
        %v3020 = vmax.f32 %v2979, 0.0
        %v3021 = vmax.f32 %v2980, 0.0
        %v3022 = vmul.f32 %v2981, %v357
        %v3023 = vmul.f32 %v2982, %v358
        %v3024 = vmul.f32 %v2983, %v359
        %v3025 = vmul.f32 %v2984, %v360
        %v3026 = vmul.f32 %v2985, %v361
        %v3027 = vmul.f32 %v2986, %v362
        %v3028 = vmul.f32 %v2987, %v363
        %v3029 = vmul.f32 %v2988, %v364
        %v3030 = vmul.f32 %v2989, %v365
        %v3031 = vmul.f32 %v2990, %v366
        %v3032 = vmul.f32 %v2991, %v367
        %v3033 = vmul.f32 %v2992, %v368
        %v3034 = vmul.f32 %v2993, %v369
        %v3035 = vmul.f32 %v2994, %v370
        %v3036 = vmul.f32 %v2995, %v371
        %v3037 = vmul.f32 %v2996, %v372
        %v3038 = vmul.f32 %v2997, %v373
        %v3039 = vmul.f32 %v2998, %v374
        %v3040 = vmul.f32 %v2999, %v375
        %v3041 = vmul.f32 %v3000, %v376
        %v3042 = vmul.f32 %v3001, %v377
        %v3043 = vmul.f32 %v3002, %v378
        %v3044 = vmul.f32 %v3003, %v379
        %v3045 = vmul.f32 %v3004, %v380
        %v3046 = vmul.f32 %v3005, %v381
        %v3047 = vmul.f32 %v3006, %v382
        %v3048 = vmul.f32 %v3007, %v383
        %v3049 = vmul.f32 %v3008, %v384
        %v3050 = vmul.f32 %v3009, %v385
        %v3051 = vmul.f32 %v3010, %v386
        %v3052 = vmul.f32 %v3011, %v387
        %v3053 = vmul.f32 %v3012, %v388
        %v3054 = vmul.f32 %v3013, %v389
        %v3055 = vmul.f32 %v3014, %v390
        %v3056 = vmul.f32 %v3015, %v391
        %v3057 = vmul.f32 %v3016, %v392
        %v3058 = vmul.f32 %v3017, %v393
        %v3059 = vmul.f32 %v3018, %v394
        %v3060 = vmul.f32 %v3019, %v395
        %v3061 = vmul.f32 %v3020, %v396
        %v3062 = vmul.f32 %v3021, %v397
        %3063 = vst [vmem:[#allocation2 + $0x18] sm:$0xff] %v3022
        %3064 = vst [vmem:[#allocation2 + $0x20] sm:$0xff] %v3023
        %3065 = vst [vmem:[#allocation2 + $0x28] sm:$0xff] %v3024
        %3066 = vst [vmem:[#allocation2 + $0x30] sm:$0xff] %v3025
        %3067 = vst [vmem:[#allocation2 + $0x38] sm:$0xff] %v3026
        %3068 = vst [vmem:[#allocation2 + $0x40] sm:$0xff] %v3027
        %3069 = vst [vmem:[#allocation2 + $0x48] sm:$0xff] %v3028
        %3070 = vst [vmem:[#allocation2 + $0x50] sm:$0xff] %v3029
        %3071 = vst [vmem:[#allocation2 + $0x58] sm:$0xff] %v3030
        %3072 = vst [vmem:[#allocation2 + $0x60] sm:$0xff] %v3031
        %3073 = vst [vmem:[#allocation2 + $0x68] sm:$0xff] %v3032
        %3074 = vst [vmem:[#allocation2 + $0x70] sm:$0xff] %v3033
        %3075 = vst [vmem:[#allocation2 + $0x78] sm:$0xff] %v3034
        %3076 = vst [vmem:[#allocation2 + $0x80] sm:$0xff] %v3035
        %3077 = vst [vmem:[#allocation2 + $0x88] sm:$0xff] %v3036
        %3078 = vst [vmem:[#allocation2 + $0x90] sm:$0xff] %v3037
        %3079 = vst [vmem:[#allocation2 + $0x98] sm:$0xff] %v3038
        %3080 = vst [vmem:[#allocation2 + $0xa0] sm:$0xff] %v3039
        %3081 = vst [vmem:[#allocation2 + $0xa8] sm:$0xff] %v3040
        %3082 = vst [vmem:[#allocation2 + $0xb0] sm:$0xff] %v3041
        %3083 = vst [vmem:[#allocation2 + $0xb8] sm:$0xff] %v3042
        %3084 = vst [vmem:[#allocation2 + $0xc0] sm:$0xff] %v3043
        %3085 = vst [vmem:[#allocation2 + $0xc8] sm:$0xff] %v3044
        %3086 = vst [vmem:[#allocation2 + $0xd0] sm:$0xff] %v3045
        %3087 = vst [vmem:[#allocation2 + $0xd8] sm:$0xff] %v3046
        %3088 = vst [vmem:[#allocation2 + $0xe0] sm:$0xff] %v3047
        %3089 = vst [vmem:[#allocation2 + $0xe8] sm:$0xff] %v3048
        %3090 = vst [vmem:[#allocation2 + $0xf0] sm:$0xff] %v3049
        %3091 = vst [vmem:[#allocation2 + $0xf8] sm:$0xff] %v3050
        %3092 = vst [vmem:[#allocation2 + $0x100] sm:$0xff] %v3051
        %3093 = vst [vmem:[#allocation2 + $0x108] sm:$0xff] %v3052
        %3094 = vst [vmem:[#allocation2 + $0x110] sm:$0xff] %v3053
        %3095 = vst [vmem:[#allocation2 + $0x118] sm:$0xff] %v3054
        %3096 = vst [vmem:[#allocation2 + $0x120] sm:$0xff] %v3055
        %3097 = vst [vmem:[#allocation2 + $0x128] sm:$0xff] %v3056
        %3098 = vst [vmem:[#allocation2 + $0x130] sm:$0xff] %v3057
        %3099 = vst [vmem:[#allocation2 + $0x138] sm:$0xff] %v3058
        %3100 = vst [vmem:[#allocation2 + $0x140] sm:$0xff] %v3059
        %3101 = vst [vmem:[#allocation2 + $0x148] sm:$0xff] %v3060
        %3102 = vst [vmem:[#allocation2 + $0x150] sm:$0xff] %v3061
        %3103 = vst [vmem:[#allocation2 + $0x158] sm:$0xf] %v3062
        %v3104 = vld [vmem:[#allocation2 + $0x5] sm:$0xff]
        %v3105 = vld [vmem:[#allocation2 + $0xd] sm:$0xff]
        %v3106 = vld [vmem:[#allocation2 + $0x15] sm:$0xff]
        %v3107 = vld [vmem:[#allocation2 + $0x1d] sm:$0xff]
        %v3108 = vld [vmem:[#allocation2 + $0x25] sm:$0xff]
        %v3109 = vld [vmem:[#allocation2 + $0x2d] sm:$0xff]
        %v3110 = vld [vmem:[#allocation2 + $0x35] sm:$0xff]
        %v3111 = vld [vmem:[#allocation2 + $0x3d] sm:$0xff]
        %v3112 = vld [vmem:[#allocation2 + $0x45] sm:$0xff]
        %v3113 = vld [vmem:[#allocation2 + $0x4d] sm:$0xff]
        %v3114 = vld [vmem:[#allocation2 + $0x55] sm:$0xff]
        %v3115 = vld [vmem:[#allocation2 + $0x5d] sm:$0xff]
        %v3116 = vld [vmem:[#allocation2 + $0x65] sm:$0xff]
        %v3117 = vld [vmem:[#allocation2 + $0x6d] sm:$0xff]
        %v3118 = vld [vmem:[#allocation2 + $0x75] sm:$0xff]
        %v3119 = vld [vmem:[#allocation2 + $0x7d] sm:$0xff]
        %v3120 = vld [vmem:[#allocation2 + $0x85] sm:$0xff]
        %v3121 = vld [vmem:[#allocation2 + $0x8d] sm:$0xff]
        %v3122 = vld [vmem:[#allocation2 + $0x95] sm:$0xff]
        %v3123 = vld [vmem:[#allocation2 + $0x9d] sm:$0xff]
        %v3124 = vld [vmem:[#allocation2 + $0xa5] sm:$0xff]
        %v3125 = vld [vmem:[#allocation2 + $0xad] sm:$0xff]
        %v3126 = vld [vmem:[#allocation2 + $0xb5] sm:$0xff]
        %v3127 = vld [vmem:[#allocation2 + $0xbd] sm:$0xff]
        %v3128 = vld [vmem:[#allocation2 + $0xc5] sm:$0xff]
        %v3129 = vld [vmem:[#allocation2 + $0xcd] sm:$0xff]
        %v3130 = vld [vmem:[#allocation2 + $0xd5] sm:$0xff]
        %v3131 = vld [vmem:[#allocation2 + $0xdd] sm:$0xff]
        %v3132 = vld [vmem:[#allocation2 + $0xe5] sm:$0xff]
        %v3133 = vld [vmem:[#allocation2 + $0xed] sm:$0xff]
        %v3134 = vld [vmem:[#allocation2 + $0xf5] sm:$0xff]
        %v3135 = vld [vmem:[#allocation2 + $0xfd] sm:$0xff]
        %v3136 = vld [vmem:[#allocation2 + $0x105] sm:$0xff]
        %v3137 = vld [vmem:[#allocation2 + $0x10d] sm:$0xff]
        %v3138 = vld [vmem:[#allocation2 + $0x115] sm:$0xff]
        %v3139 = vld [vmem:[#allocation2 + $0x11d] sm:$0xff]
        %v3140 = vld [vmem:[#allocation2 + $0x125] sm:$0xff]
        %v3141 = vld [vmem:[#allocation2 + $0x12d] sm:$0xff]
        %v3142 = vld [vmem:[#allocation2 + $0x135] sm:$0xff]
        %v3143 = vld [vmem:[#allocation2 + $0x13d] sm:$0xff]
        %v3144 = vld [vmem:[#allocation2 + $0x145] sm:$0xf]
        %v3145 = vpack.c.bf16 %v3105, %v3104
        %v3146 = vpack.c.bf16 %v3107, %v3106
        %v3147 = vpack.c.bf16 %v3109, %v3108
        %v3148 = vpack.c.bf16 %v3111, %v3110
        %v3149 = vpack.c.bf16 %v3113, %v3112
        %v3150 = vpack.c.bf16 %v3115, %v3114
        %v3151 = vpack.c.bf16 %v3117, %v3116
        %v3152 = vpack.c.bf16 %v3119, %v3118
        %v3153 = vpack.c.bf16 %v3121, %v3120
        %v3154 = vpack.c.bf16 %v3123, %v3122
        %v3155 = vpack.c.bf16 %v3125, %v3124
        %v3156 = vpack.c.bf16 %v3127, %v3126
        %v3157 = vpack.c.bf16 %v3129, %v3128
        %v3158 = vpack.c.bf16 %v3131, %v3130
        %v3159 = vpack.c.bf16 %v3133, %v3132
        %v3160 = vpack.c.bf16 %v3135, %v3134
        %v3161 = vpack.c.bf16 %v3137, %v3136
        %v3162 = vpack.c.bf16 %v3139, %v3138
        %v3163 = vpack.c.bf16 %v3141, %v3140
        %v3164 = vpack.c.bf16 %v3143, %v3142
        %v3165 = vpack.c.bf16 %v3144, %v3144
        %v3166 = vld [vmem:[%s4] sm:$0xf]
        %v3167 = vld [vmem:[%s4 + $0x4] sm:$0xf]
        %v3168 = vld [vmem:[%s4 + $0x8] sm:$0xf]
        %v3169 = vld [vmem:[%s4 + $0xc] sm:$0xf]
        %v3170 = vld [vmem:[%s4 + $0x10] sm:$0xf]
        %v3171 = vld [vmem:[%s4 + $0x14] sm:$0xf]
        %v3172 = vld [vmem:[%s4 + $0x18] sm:$0xf]
        %v3173 = vld [vmem:[%s4 + $0x1c] sm:$0xf]
        %v3174 = vld [vmem:[%s4 + $0x20] sm:$0xf]
        %v3175 = vld [vmem:[%s4 + $0x24] sm:$0xf]
        %v3176 = vld [vmem:[%s4 + $0x28] sm:$0xf]
        %v3177 = vld [vmem:[%s4 + $0x2c] sm:$0xf]
        %v3178 = vld [vmem:[%s4 + $0x30] sm:$0xf]
        %v3179 = vld [vmem:[%s4 + $0x34] sm:$0xf]
        %v3180 = vld [vmem:[%s4 + $0x38] sm:$0xf]
        %v3181 = vld [vmem:[%s4 + $0x3c] sm:$0xf]
        %v3182 = vld [vmem:[#allocation2 + $0x6] sm:$0xff]
        %v3183 = vld [vmem:[#allocation2 + $0xe] sm:$0xff]
        %v3184 = vld [vmem:[#allocation2 + $0x16] sm:$0xff]
        %v3185 = vld [vmem:[#allocation2 + $0x1e] sm:$0xff]
        %v3186 = vld [vmem:[#allocation2 + $0x26] sm:$0xff]
        %v3187 = vld [vmem:[#allocation2 + $0x2e] sm:$0xff]
        %v3188 = vld [vmem:[#allocation2 + $0x36] sm:$0xff]
        %v3189 = vld [vmem:[#allocation2 + $0x3e] sm:$0xff]
        %v3190 = vld [vmem:[#allocation2 + $0x46] sm:$0xff]
        %v3191 = vld [vmem:[#allocation2 + $0x4e] sm:$0xff]
        %v3192 = vld [vmem:[#allocation2 + $0x56] sm:$0xff]
        %v3193 = vld [vmem:[#allocation2 + $0x5e] sm:$0xff]
        %v3194 = vld [vmem:[#allocation2 + $0x66] sm:$0xff]
        %v3195 = vld [vmem:[#allocation2 + $0x6e] sm:$0xff]
        %v3196 = vld [vmem:[#allocation2 + $0x76] sm:$0xff]
        %v3197 = vld [vmem:[#allocation2 + $0x7e] sm:$0xff]
        %v3198 = vld [vmem:[#allocation2 + $0x86] sm:$0xff]
        %v3199 = vld [vmem:[#allocation2 + $0x8e] sm:$0xff]
        %v3200 = vld [vmem:[#allocation2 + $0x96] sm:$0xff]
        %v3201 = vld [vmem:[#allocation2 + $0x9e] sm:$0xff]
        %v3202 = vld [vmem:[#allocation2 + $0xa6] sm:$0xff]
        %v3203 = vld [vmem:[#allocation2 + $0xae] sm:$0xff]
        %v3204 = vld [vmem:[#allocation2 + $0xb6] sm:$0xff]
        %v3205 = vld [vmem:[#allocation2 + $0xbe] sm:$0xff]
        %v3206 = vld [vmem:[#allocation2 + $0xc6] sm:$0xff]
        %v3207 = vld [vmem:[#allocation2 + $0xce] sm:$0xff]
        %v3208 = vld [vmem:[#allocation2 + $0xd6] sm:$0xff]
        %v3209 = vld [vmem:[#allocation2 + $0xde] sm:$0xff]
        %v3210 = vld [vmem:[#allocation2 + $0xe6] sm:$0xff]
        %v3211 = vld [vmem:[#allocation2 + $0xee] sm:$0xff]
        %v3212 = vld [vmem:[#allocation2 + $0xf6] sm:$0xff]
        %v3213 = vld [vmem:[#allocation2 + $0xfe] sm:$0xff]
        %v3214 = vld [vmem:[#allocation2 + $0x106] sm:$0xff]
        %v3215 = vld [vmem:[#allocation2 + $0x10e] sm:$0xff]
        %v3216 = vld [vmem:[#allocation2 + $0x116] sm:$0xff]
        %v3217 = vld [vmem:[#allocation2 + $0x11e] sm:$0xff]
        %v3218 = vld [vmem:[#allocation2 + $0x126] sm:$0xff]
        %v3219 = vld [vmem:[#allocation2 + $0x12e] sm:$0xff]
        %v3220 = vld [vmem:[#allocation2 + $0x136] sm:$0xff]
        %v3221 = vld [vmem:[#allocation2 + $0x13e] sm:$0xff]
        %v3222 = vld [vmem:[#allocation2 + $0x146] sm:$0xf]
        %v3223 = vpack.c.bf16 %v3183, %v3182
        %v3224 = vpack.c.bf16 %v3185, %v3184
        %v3225 = vpack.c.bf16 %v3187, %v3186
        %v3226 = vpack.c.bf16 %v3189, %v3188
        %v3227 = vpack.c.bf16 %v3191, %v3190
        %v3228 = vpack.c.bf16 %v3193, %v3192
        %v3229 = vpack.c.bf16 %v3195, %v3194
        %v3230 = vpack.c.bf16 %v3197, %v3196
        %v3231 = vpack.c.bf16 %v3199, %v3198
        %v3232 = vpack.c.bf16 %v3201, %v3200
        %v3233 = vpack.c.bf16 %v3203, %v3202
        %v3234 = vpack.c.bf16 %v3205, %v3204
        %v3235 = vpack.c.bf16 %v3207, %v3206
        %v3236 = vpack.c.bf16 %v3209, %v3208
        %v3237 = vpack.c.bf16 %v3211, %v3210
        %v3238 = vpack.c.bf16 %v3213, %v3212
        %v3239 = vpack.c.bf16 %v3215, %v3214
        %v3240 = vpack.c.bf16 %v3217, %v3216
        %v3241 = vpack.c.bf16 %v3219, %v3218
        %v3242 = vpack.c.bf16 %v3221, %v3220
        %v3243 = vpack.c.bf16 %v3222, %v3222
        %s3244 = scalar_lea.vmem %s4, 64
        %v3245 = vld [vmem:[%s3244] sm:$0xf]
        %v3246 = vld [vmem:[%s3244 + $0x4] sm:$0xf]
        %v3247 = vld [vmem:[%s3244 + $0x8] sm:$0xf]
        %v3248 = vld [vmem:[%s3244 + $0xc] sm:$0xf]
        %v3249 = vld [vmem:[%s3244 + $0x10] sm:$0xf]
        %v3250 = vld [vmem:[%s3244 + $0x14] sm:$0xf]
        %v3251 = vld [vmem:[%s3244 + $0x18] sm:$0xf]
        %v3252 = vld [vmem:[%s3244 + $0x1c] sm:$0xf]
        %v3253 = vld [vmem:[%s3244 + $0x20] sm:$0xf]
        %v3254 = vld [vmem:[%s3244 + $0x24] sm:$0xf]
        %v3255 = vld [vmem:[%s3244 + $0x28] sm:$0xf]
        %v3256 = vld [vmem:[%s3244 + $0x2c] sm:$0xf]
        %v3257 = vld [vmem:[%s3244 + $0x30] sm:$0xf]
        %v3258 = vld [vmem:[%s3244 + $0x34] sm:$0xf]
        %v3259 = vld [vmem:[%s3244 + $0x38] sm:$0xf]
        %v3260 = vld [vmem:[%s3244 + $0x3c] sm:$0xf]
        %v3277 = vunpack.c.l.b16 %v3245
        %v3278 = vunpack.c.l.b16 %v3246
        %v3279 = vunpack.c.l.b16 %v3247
        %v3280 = vunpack.c.l.b16 %v3248
        %v3281 = vunpack.c.l.b16 %v3249
        %v3282 = vunpack.c.l.b16 %v3250
        %v3283 = vunpack.c.l.b16 %v3251
        %v3284 = vunpack.c.l.b16 %v3252
        %v3285 = vunpack.c.l.b16 %v3253
        %v3286 = vunpack.c.l.b16 %v3254
        %v3287 = vunpack.c.l.b16 %v3255
        %v3288 = vunpack.c.l.b16 %v3256
        %v3289 = vunpack.c.l.b16 %v3257
        %v3290 = vunpack.c.l.b16 %v3258
        %v3291 = vunpack.c.l.b16 %v3259
        %v3292 = vunpack.c.l.b16 %v3260
        %v3293 = vpack.c.b16 %v3278, %v3277
        %v3294 = vpack.c.b16 %v3280, %v3279
        %v3295 = vpack.c.b16 %v3282, %v3281
        %v3296 = vpack.c.b16 %v3284, %v3283
        %v3297 = vpack.c.b16 %v3286, %v3285
        %v3298 = vpack.c.b16 %v3288, %v3287
        %v3299 = vpack.c.b16 %v3290, %v3289
        %v3300 = vpack.c.b16 %v3292, %v3291
        %3309 = vmatpush.bf16.msra.mxu0 %v3300
        %3310 = vmatpush.bf16.msra.mxu0 %v3299
        %3311 = vmatpush.bf16.msra.mxu0 %v3298
        %3312 = vmatpush.bf16.msra.mxu0 %v3297
        %3313 = vmatpush.bf16.msra.mxu0 %v3296
        %3314 = vmatpush.bf16.msra.mxu0 %v3295
        %3315 = vmatpush.bf16.msra.mxu0 %v3294
        %3316 = vmatpush.bf16.msra.mxu0 %v3293
        %3317 = vmatmul.bf16.gmra.mxu0 %v3223
        %v3318 = vpop.f32.mrf.mxu0
        %v3319 = vadd.f32 0.0, %v3318
        %v3320 = vpop.f32.mrf.mxu0
        %v3321 = vadd.f32 0.0, %v3320
        %3322 = vmatmul.bf16.gmra.mxu0 %v3224
        %v3323 = vpop.f32.mrf.mxu0
        %v3324 = vadd.f32 0.0, %v3323
        %v3325 = vpop.f32.mrf.mxu0
        %v3326 = vadd.f32 0.0, %v3325
        %3327 = vmatmul.bf16.gmra.mxu0 %v3225
        %v3328 = vpop.f32.mrf.mxu0
        %v3329 = vadd.f32 0.0, %v3328
        %v3330 = vpop.f32.mrf.mxu0
        %v3331 = vadd.f32 0.0, %v3330
        %3332 = vmatmul.bf16.gmra.mxu0 %v3226
        %v3333 = vpop.f32.mrf.mxu0
        %v3334 = vadd.f32 0.0, %v3333
        %v3335 = vpop.f32.mrf.mxu0
        %v3336 = vadd.f32 0.0, %v3335
        %3337 = vmatmul.bf16.gmra.mxu0 %v3227
        %v3338 = vpop.f32.mrf.mxu0
        %v3339 = vadd.f32 0.0, %v3338
        %v3340 = vpop.f32.mrf.mxu0
        %v3341 = vadd.f32 0.0, %v3340
        %3342 = vmatmul.bf16.gmra.mxu0 %v3228
        %v3343 = vpop.f32.mrf.mxu0
        %v3344 = vadd.f32 0.0, %v3343
        %v3345 = vpop.f32.mrf.mxu0
        %v3346 = vadd.f32 0.0, %v3345
        %3347 = vmatmul.bf16.gmra.mxu0 %v3229
        %v3348 = vpop.f32.mrf.mxu0
        %v3349 = vadd.f32 0.0, %v3348
        %v3350 = vpop.f32.mrf.mxu0
        %v3351 = vadd.f32 0.0, %v3350
        %3352 = vmatmul.bf16.gmra.mxu0 %v3230
        %v3353 = vpop.f32.mrf.mxu0
        %v3354 = vadd.f32 0.0, %v3353
        %v3355 = vpop.f32.mrf.mxu0
        %v3356 = vadd.f32 0.0, %v3355
        %3357 = vmatmul.bf16.gmra.mxu0 %v3231
        %v3358 = vpop.f32.mrf.mxu0
        %v3359 = vadd.f32 0.0, %v3358
        %v3360 = vpop.f32.mrf.mxu0
        %v3361 = vadd.f32 0.0, %v3360
        %3362 = vmatmul.bf16.gmra.mxu0 %v3232
        %v3363 = vpop.f32.mrf.mxu0
        %v3364 = vadd.f32 0.0, %v3363
        %v3365 = vpop.f32.mrf.mxu0
        %v3366 = vadd.f32 0.0, %v3365
        %3367 = vmatmul.bf16.gmra.mxu0 %v3233
        %v3368 = vpop.f32.mrf.mxu0
        %v3369 = vadd.f32 0.0, %v3368
        %v3370 = vpop.f32.mrf.mxu0
        %v3371 = vadd.f32 0.0, %v3370
        %3372 = vmatmul.bf16.gmra.mxu0 %v3234
        %v3373 = vpop.f32.mrf.mxu0
        %v3374 = vadd.f32 0.0, %v3373
        %v3375 = vpop.f32.mrf.mxu0
        %v3376 = vadd.f32 0.0, %v3375
        %3377 = vmatmul.bf16.gmra.mxu0 %v3235
        %v3378 = vpop.f32.mrf.mxu0
        %v3379 = vadd.f32 0.0, %v3378
        %v3380 = vpop.f32.mrf.mxu0
        %v3381 = vadd.f32 0.0, %v3380
        %3382 = vmatmul.bf16.gmra.mxu0 %v3236
        %v3383 = vpop.f32.mrf.mxu0
        %v3384 = vadd.f32 0.0, %v3383
        %v3385 = vpop.f32.mrf.mxu0
        %v3386 = vadd.f32 0.0, %v3385
        %3387 = vmatmul.bf16.gmra.mxu0 %v3237
        %v3388 = vpop.f32.mrf.mxu0
        %v3389 = vadd.f32 0.0, %v3388
        %v3390 = vpop.f32.mrf.mxu0
        %v3391 = vadd.f32 0.0, %v3390
        %3392 = vmatmul.bf16.gmra.mxu0 %v3238
        %v3393 = vpop.f32.mrf.mxu0
        %v3394 = vadd.f32 0.0, %v3393
        %v3395 = vpop.f32.mrf.mxu0
        %v3396 = vadd.f32 0.0, %v3395
        %3397 = vmatmul.bf16.gmra.mxu0 %v3239
        %v3398 = vpop.f32.mrf.mxu0
        %v3399 = vadd.f32 0.0, %v3398
        %v3400 = vpop.f32.mrf.mxu0
        %v3401 = vadd.f32 0.0, %v3400
        %3402 = vmatmul.bf16.gmra.mxu0 %v3240
        %v3403 = vpop.f32.mrf.mxu0
        %v3404 = vadd.f32 0.0, %v3403
        %v3405 = vpop.f32.mrf.mxu0
        %v3406 = vadd.f32 0.0, %v3405
        %3407 = vmatmul.bf16.gmra.mxu0 %v3241
        %v3408 = vpop.f32.mrf.mxu0
        %v3409 = vadd.f32 0.0, %v3408
        %v3410 = vpop.f32.mrf.mxu0
        %v3411 = vadd.f32 0.0, %v3410
        %3412 = vmatmul.bf16.gmra.mxu0 %v3242
        %v3413 = vpop.f32.mrf.mxu0
        %v3414 = vadd.f32 0.0, %v3413
        %v3415 = vpop.f32.mrf.mxu0
        %v3416 = vadd.f32 0.0, %v3415
        %3417 = vmatmul.bf16.gmra.mxu0 %v3243
        %v3418 = vpop.f32.mrf.mxu0
        %v3419 = vadd.f32 0.0, %v3418
        %v3420 = vpop.f32.mrf.mxu0
        %3421 = vdwg.mxu0
        %v3438 = vunpack.c.l.b16 %v3166
        %v3439 = vunpack.c.l.b16 %v3167
        %v3440 = vunpack.c.l.b16 %v3168
        %v3441 = vunpack.c.l.b16 %v3169
        %v3442 = vunpack.c.l.b16 %v3170
        %v3443 = vunpack.c.l.b16 %v3171
        %v3444 = vunpack.c.l.b16 %v3172
        %v3445 = vunpack.c.l.b16 %v3173
        %v3446 = vunpack.c.l.b16 %v3174
        %v3447 = vunpack.c.l.b16 %v3175
        %v3448 = vunpack.c.l.b16 %v3176
        %v3449 = vunpack.c.l.b16 %v3177
        %v3450 = vunpack.c.l.b16 %v3178
        %v3451 = vunpack.c.l.b16 %v3179
        %v3452 = vunpack.c.l.b16 %v3180
        %v3453 = vunpack.c.l.b16 %v3181
        %v3454 = vpack.c.b16 %v3439, %v3438
        %v3455 = vpack.c.b16 %v3441, %v3440
        %v3456 = vpack.c.b16 %v3443, %v3442
        %v3457 = vpack.c.b16 %v3445, %v3444
        %v3458 = vpack.c.b16 %v3447, %v3446
        %v3459 = vpack.c.b16 %v3449, %v3448
        %v3460 = vpack.c.b16 %v3451, %v3450
        %v3461 = vpack.c.b16 %v3453, %v3452
        %3470 = vmatpush.bf16.msra.mxu0 %v3461
        %3471 = vmatpush.bf16.msra.mxu0 %v3460
        %3472 = vmatpush.bf16.msra.mxu0 %v3459
        %3473 = vmatpush.bf16.msra.mxu0 %v3458
        %3474 = vmatpush.bf16.msra.mxu0 %v3457
        %3475 = vmatpush.bf16.msra.mxu0 %v3456
        %3476 = vmatpush.bf16.msra.mxu0 %v3455
        %3477 = vmatpush.bf16.msra.mxu0 %v3454
        %3478 = vmatmul.bf16.gmra.mxu0 %v3145
        %v3479 = vpop.f32.mrf.mxu0
        %v3480 = vadd.f32 %v3319, %v3479
        %v3481 = vpop.f32.mrf.mxu0
        %v3482 = vadd.f32 %v3321, %v3481
        %3483 = vmatmul.bf16.gmra.mxu0 %v3146
        %v3484 = vpop.f32.mrf.mxu0
        %v3485 = vadd.f32 %v3324, %v3484
        %v3486 = vpop.f32.mrf.mxu0
        %v3487 = vadd.f32 %v3326, %v3486
        %3488 = vmatmul.bf16.gmra.mxu0 %v3147
        %v3489 = vpop.f32.mrf.mxu0
        %v3490 = vadd.f32 %v3329, %v3489
        %v3491 = vpop.f32.mrf.mxu0
        %v3492 = vadd.f32 %v3331, %v3491
        %3493 = vmatmul.bf16.gmra.mxu0 %v3148
        %v3494 = vpop.f32.mrf.mxu0
        %v3495 = vadd.f32 %v3334, %v3494
        %v3496 = vpop.f32.mrf.mxu0
        %v3497 = vadd.f32 %v3336, %v3496
        %3498 = vmatmul.bf16.gmra.mxu0 %v3149
        %v3499 = vpop.f32.mrf.mxu0
        %v3500 = vadd.f32 %v3339, %v3499
        %v3501 = vpop.f32.mrf.mxu0
        %v3502 = vadd.f32 %v3341, %v3501
        %3503 = vmatmul.bf16.gmra.mxu0 %v3150
        %v3504 = vpop.f32.mrf.mxu0
        %v3505 = vadd.f32 %v3344, %v3504
        %v3506 = vpop.f32.mrf.mxu0
        %v3507 = vadd.f32 %v3346, %v3506
        %3508 = vmatmul.bf16.gmra.mxu0 %v3151
        %v3509 = vpop.f32.mrf.mxu0
        %v3510 = vadd.f32 %v3349, %v3509
        %v3511 = vpop.f32.mrf.mxu0
        %v3512 = vadd.f32 %v3351, %v3511
        %3513 = vmatmul.bf16.gmra.mxu0 %v3152
        %v3514 = vpop.f32.mrf.mxu0
        %v3515 = vadd.f32 %v3354, %v3514
        %v3516 = vpop.f32.mrf.mxu0
        %v3517 = vadd.f32 %v3356, %v3516
        %3518 = vmatmul.bf16.gmra.mxu0 %v3153
        %v3519 = vpop.f32.mrf.mxu0
        %v3520 = vadd.f32 %v3359, %v3519
        %v3521 = vpop.f32.mrf.mxu0
        %v3522 = vadd.f32 %v3361, %v3521
        %3523 = vmatmul.bf16.gmra.mxu0 %v3154
        %v3524 = vpop.f32.mrf.mxu0
        %v3525 = vadd.f32 %v3364, %v3524
        %v3526 = vpop.f32.mrf.mxu0
        %v3527 = vadd.f32 %v3366, %v3526
        %3528 = vmatmul.bf16.gmra.mxu0 %v3155
        %v3529 = vpop.f32.mrf.mxu0
        %v3530 = vadd.f32 %v3369, %v3529
        %v3531 = vpop.f32.mrf.mxu0
        %v3532 = vadd.f32 %v3371, %v3531
        %3533 = vmatmul.bf16.gmra.mxu0 %v3156
        %v3534 = vpop.f32.mrf.mxu0
        %v3535 = vadd.f32 %v3374, %v3534
        %v3536 = vpop.f32.mrf.mxu0
        %v3537 = vadd.f32 %v3376, %v3536
        %3538 = vmatmul.bf16.gmra.mxu0 %v3157
        %v3539 = vpop.f32.mrf.mxu0
        %v3540 = vadd.f32 %v3379, %v3539
        %v3541 = vpop.f32.mrf.mxu0
        %v3542 = vadd.f32 %v3381, %v3541
        %3543 = vmatmul.bf16.gmra.mxu0 %v3158
        %v3544 = vpop.f32.mrf.mxu0
        %v3545 = vadd.f32 %v3384, %v3544
        %v3546 = vpop.f32.mrf.mxu0
        %v3547 = vadd.f32 %v3386, %v3546
        %3548 = vmatmul.bf16.gmra.mxu0 %v3159
        %v3549 = vpop.f32.mrf.mxu0
        %v3550 = vadd.f32 %v3389, %v3549
        %v3551 = vpop.f32.mrf.mxu0
        %v3552 = vadd.f32 %v3391, %v3551
        %3553 = vmatmul.bf16.gmra.mxu0 %v3160
        %v3554 = vpop.f32.mrf.mxu0
        %v3555 = vadd.f32 %v3394, %v3554
        %v3556 = vpop.f32.mrf.mxu0
        %v3557 = vadd.f32 %v3396, %v3556
        %3558 = vmatmul.bf16.gmra.mxu0 %v3161
        %v3559 = vpop.f32.mrf.mxu0
        %v3560 = vadd.f32 %v3399, %v3559
        %v3561 = vpop.f32.mrf.mxu0
        %v3562 = vadd.f32 %v3401, %v3561
        %3563 = vmatmul.bf16.gmra.mxu0 %v3162
        %v3564 = vpop.f32.mrf.mxu0
        %v3565 = vadd.f32 %v3404, %v3564
        %v3566 = vpop.f32.mrf.mxu0
        %v3567 = vadd.f32 %v3406, %v3566
        %3568 = vmatmul.bf16.gmra.mxu0 %v3163
        %v3569 = vpop.f32.mrf.mxu0
        %v3570 = vadd.f32 %v3409, %v3569
        %v3571 = vpop.f32.mrf.mxu0
        %v3572 = vadd.f32 %v3411, %v3571
        %3573 = vmatmul.bf16.gmra.mxu0 %v3164
        %v3574 = vpop.f32.mrf.mxu0
        %v3575 = vadd.f32 %v3414, %v3574
        %v3576 = vpop.f32.mrf.mxu0
        %v3577 = vadd.f32 %v3416, %v3576
        %3578 = vmatmul.bf16.gmra.mxu0 %v3165
        %v3579 = vpop.f32.mrf.mxu0
        %v3580 = vadd.f32 %v3419, %v3579
        %v3581 = vpop.f32.mrf.mxu0
        %3582 = vdwg.mxu0
        %v3583 = vld [vmem:[#allocation2 + $0x7] sm:$0xff]
        %v3584 = vld [vmem:[#allocation2 + $0xf] sm:$0xff]
        %v3585 = vld [vmem:[#allocation2 + $0x17] sm:$0xff]
        %v3586 = vld [vmem:[#allocation2 + $0x1f] sm:$0xff]
        %v3587 = vld [vmem:[#allocation2 + $0x27] sm:$0xff]
        %v3588 = vld [vmem:[#allocation2 + $0x2f] sm:$0xff]
        %v3589 = vld [vmem:[#allocation2 + $0x37] sm:$0xff]
        %v3590 = vld [vmem:[#allocation2 + $0x3f] sm:$0xff]
        %v3591 = vld [vmem:[#allocation2 + $0x47] sm:$0xff]
        %v3592 = vld [vmem:[#allocation2 + $0x4f] sm:$0xff]
        %v3593 = vld [vmem:[#allocation2 + $0x57] sm:$0xff]
        %v3594 = vld [vmem:[#allocation2 + $0x5f] sm:$0xff]
        %v3595 = vld [vmem:[#allocation2 + $0x67] sm:$0xff]
        %v3596 = vld [vmem:[#allocation2 + $0x6f] sm:$0xff]
        %v3597 = vld [vmem:[#allocation2 + $0x77] sm:$0xff]
        %v3598 = vld [vmem:[#allocation2 + $0x7f] sm:$0xff]
        %v3599 = vld [vmem:[#allocation2 + $0x87] sm:$0xff]
        %v3600 = vld [vmem:[#allocation2 + $0x8f] sm:$0xff]
        %v3601 = vld [vmem:[#allocation2 + $0x97] sm:$0xff]
        %v3602 = vld [vmem:[#allocation2 + $0x9f] sm:$0xff]
        %v3603 = vld [vmem:[#allocation2 + $0xa7] sm:$0xff]
        %v3604 = vld [vmem:[#allocation2 + $0xaf] sm:$0xff]
        %v3605 = vld [vmem:[#allocation2 + $0xb7] sm:$0xff]
        %v3606 = vld [vmem:[#allocation2 + $0xbf] sm:$0xff]
        %v3607 = vld [vmem:[#allocation2 + $0xc7] sm:$0xff]
        %v3608 = vld [vmem:[#allocation2 + $0xcf] sm:$0xff]
        %v3609 = vld [vmem:[#allocation2 + $0xd7] sm:$0xff]
        %v3610 = vld [vmem:[#allocation2 + $0xdf] sm:$0xff]
        %v3611 = vld [vmem:[#allocation2 + $0xe7] sm:$0xff]
        %v3612 = vld [vmem:[#allocation2 + $0xef] sm:$0xff]
        %v3613 = vld [vmem:[#allocation2 + $0xf7] sm:$0xff]
        %v3614 = vld [vmem:[#allocation2 + $0xff] sm:$0xff]
        %v3615 = vld [vmem:[#allocation2 + $0x107] sm:$0xff]
        %v3616 = vld [vmem:[#allocation2 + $0x10f] sm:$0xff]
        %v3617 = vld [vmem:[#allocation2 + $0x117] sm:$0xff]
        %v3618 = vld [vmem:[#allocation2 + $0x11f] sm:$0xff]
        %v3619 = vld [vmem:[#allocation2 + $0x127] sm:$0xff]
        %v3620 = vld [vmem:[#allocation2 + $0x12f] sm:$0xff]
        %v3621 = vld [vmem:[#allocation2 + $0x137] sm:$0xff]
        %v3622 = vld [vmem:[#allocation2 + $0x13f] sm:$0xff]
        %v3623 = vld [vmem:[#allocation2 + $0x147] sm:$0xf]
        %v3624 = vpack.c.bf16 %v3584, %v3583
        %v3625 = vpack.c.bf16 %v3586, %v3585
        %v3626 = vpack.c.bf16 %v3588, %v3587
        %v3627 = vpack.c.bf16 %v3590, %v3589
        %v3628 = vpack.c.bf16 %v3592, %v3591
        %v3629 = vpack.c.bf16 %v3594, %v3593
        %v3630 = vpack.c.bf16 %v3596, %v3595
        %v3631 = vpack.c.bf16 %v3598, %v3597
        %v3632 = vpack.c.bf16 %v3600, %v3599
        %v3633 = vpack.c.bf16 %v3602, %v3601
        %v3634 = vpack.c.bf16 %v3604, %v3603
        %v3635 = vpack.c.bf16 %v3606, %v3605
        %v3636 = vpack.c.bf16 %v3608, %v3607
        %v3637 = vpack.c.bf16 %v3610, %v3609
        %v3638 = vpack.c.bf16 %v3612, %v3611
        %v3639 = vpack.c.bf16 %v3614, %v3613
        %v3640 = vpack.c.bf16 %v3616, %v3615
        %v3641 = vpack.c.bf16 %v3618, %v3617
        %v3642 = vpack.c.bf16 %v3620, %v3619
        %v3643 = vpack.c.bf16 %v3622, %v3621
        %v3644 = vpack.c.bf16 %v3623, %v3623
        %s3645 = scalar_lea.vmem %s4, 128
        %v3646 = vld [vmem:[%s3645] sm:$0xf]
        %v3647 = vld [vmem:[%s3645 + $0x4] sm:$0xf]
        %v3648 = vld [vmem:[%s3645 + $0x8] sm:$0xf]
        %v3649 = vld [vmem:[%s3645 + $0xc] sm:$0xf]
        %v3650 = vld [vmem:[%s3645 + $0x10] sm:$0xf]
        %v3651 = vld [vmem:[%s3645 + $0x14] sm:$0xf]
        %v3652 = vld [vmem:[%s3645 + $0x18] sm:$0xf]
        %v3653 = vld [vmem:[%s3645 + $0x1c] sm:$0xf]
        %v3654 = vld [vmem:[%s3645 + $0x20] sm:$0xf]
        %v3655 = vld [vmem:[%s3645 + $0x24] sm:$0xf]
        %v3656 = vld [vmem:[%s3645 + $0x28] sm:$0xf]
        %v3657 = vld [vmem:[%s3645 + $0x2c] sm:$0xf]
        %v3658 = vld [vmem:[%s3645 + $0x30] sm:$0xf]
        %v3659 = vld [vmem:[%s3645 + $0x34] sm:$0xf]
        %v3660 = vld [vmem:[%s3645 + $0x38] sm:$0xf]
        %v3661 = vld [vmem:[%s3645 + $0x3c] sm:$0xf]
        %v3678 = vunpack.c.l.b16 %v3646
        %v3679 = vunpack.c.l.b16 %v3647
        %v3680 = vunpack.c.l.b16 %v3648
        %v3681 = vunpack.c.l.b16 %v3649
        %v3682 = vunpack.c.l.b16 %v3650
        %v3683 = vunpack.c.l.b16 %v3651
        %v3684 = vunpack.c.l.b16 %v3652
        %v3685 = vunpack.c.l.b16 %v3653
        %v3686 = vunpack.c.l.b16 %v3654
        %v3687 = vunpack.c.l.b16 %v3655
        %v3688 = vunpack.c.l.b16 %v3656
        %v3689 = vunpack.c.l.b16 %v3657
        %v3690 = vunpack.c.l.b16 %v3658
        %v3691 = vunpack.c.l.b16 %v3659
        %v3692 = vunpack.c.l.b16 %v3660
        %v3693 = vunpack.c.l.b16 %v3661
        %v3694 = vpack.c.b16 %v3679, %v3678
        %v3695 = vpack.c.b16 %v3681, %v3680
        %v3696 = vpack.c.b16 %v3683, %v3682
        %v3697 = vpack.c.b16 %v3685, %v3684
        %v3698 = vpack.c.b16 %v3687, %v3686
        %v3699 = vpack.c.b16 %v3689, %v3688
        %v3700 = vpack.c.b16 %v3691, %v3690
        %v3701 = vpack.c.b16 %v3693, %v3692
        %3710 = vmatpush.bf16.msra.mxu0 %v3701
        %3711 = vmatpush.bf16.msra.mxu0 %v3700
        %3712 = vmatpush.bf16.msra.mxu0 %v3699
        %3713 = vmatpush.bf16.msra.mxu0 %v3698
        %3714 = vmatpush.bf16.msra.mxu0 %v3697
        %3715 = vmatpush.bf16.msra.mxu0 %v3696
        %3716 = vmatpush.bf16.msra.mxu0 %v3695
        %3717 = vmatpush.bf16.msra.mxu0 %v3694
        %3718 = vmatmul.bf16.gmra.mxu0 %v3624
        %v3719 = vpop.f32.mrf.mxu0
        %v3720 = vadd.f32 0.0, %v3719
        %v3721 = vpop.f32.mrf.mxu0
        %v3722 = vadd.f32 0.0, %v3721
        %3723 = vmatmul.bf16.gmra.mxu0 %v3625
        %v3724 = vpop.f32.mrf.mxu0
        %v3725 = vadd.f32 0.0, %v3724
        %v3726 = vpop.f32.mrf.mxu0
        %v3727 = vadd.f32 0.0, %v3726
        %3728 = vmatmul.bf16.gmra.mxu0 %v3626
        %v3729 = vpop.f32.mrf.mxu0
        %v3730 = vadd.f32 0.0, %v3729
        %v3731 = vpop.f32.mrf.mxu0
        %v3732 = vadd.f32 0.0, %v3731
        %3733 = vmatmul.bf16.gmra.mxu0 %v3627
        %v3734 = vpop.f32.mrf.mxu0
        %v3735 = vadd.f32 0.0, %v3734
        %v3736 = vpop.f32.mrf.mxu0
        %v3737 = vadd.f32 0.0, %v3736
        %3738 = vmatmul.bf16.gmra.mxu0 %v3628
        %v3739 = vpop.f32.mrf.mxu0
        %v3740 = vadd.f32 0.0, %v3739
        %v3741 = vpop.f32.mrf.mxu0
        %v3742 = vadd.f32 0.0, %v3741
        %3743 = vmatmul.bf16.gmra.mxu0 %v3629
        %v3744 = vpop.f32.mrf.mxu0
        %v3745 = vadd.f32 0.0, %v3744
        %v3746 = vpop.f32.mrf.mxu0
        %v3747 = vadd.f32 0.0, %v3746
        %3748 = vmatmul.bf16.gmra.mxu0 %v3630
        %v3749 = vpop.f32.mrf.mxu0
        %v3750 = vadd.f32 0.0, %v3749
        %v3751 = vpop.f32.mrf.mxu0
        %v3752 = vadd.f32 0.0, %v3751
        %3753 = vmatmul.bf16.gmra.mxu0 %v3631
        %v3754 = vpop.f32.mrf.mxu0
        %v3755 = vadd.f32 0.0, %v3754
        %v3756 = vpop.f32.mrf.mxu0
        %v3757 = vadd.f32 0.0, %v3756
        %3758 = vmatmul.bf16.gmra.mxu0 %v3632
        %v3759 = vpop.f32.mrf.mxu0
        %v3760 = vadd.f32 0.0, %v3759
        %v3761 = vpop.f32.mrf.mxu0
        %v3762 = vadd.f32 0.0, %v3761
        %3763 = vmatmul.bf16.gmra.mxu0 %v3633
        %v3764 = vpop.f32.mrf.mxu0
        %v3765 = vadd.f32 0.0, %v3764
        %v3766 = vpop.f32.mrf.mxu0
        %v3767 = vadd.f32 0.0, %v3766
        %3768 = vmatmul.bf16.gmra.mxu0 %v3634
        %v3769 = vpop.f32.mrf.mxu0
        %v3770 = vadd.f32 0.0, %v3769
        %v3771 = vpop.f32.mrf.mxu0
        %v3772 = vadd.f32 0.0, %v3771
        %3773 = vmatmul.bf16.gmra.mxu0 %v3635
        %v3774 = vpop.f32.mrf.mxu0
        %v3775 = vadd.f32 0.0, %v3774
        %v3776 = vpop.f32.mrf.mxu0
        %v3777 = vadd.f32 0.0, %v3776
        %3778 = vmatmul.bf16.gmra.mxu0 %v3636
        %v3779 = vpop.f32.mrf.mxu0
        %v3780 = vadd.f32 0.0, %v3779
        %v3781 = vpop.f32.mrf.mxu0
        %v3782 = vadd.f32 0.0, %v3781
        %3783 = vmatmul.bf16.gmra.mxu0 %v3637
        %v3784 = vpop.f32.mrf.mxu0
        %v3785 = vadd.f32 0.0, %v3784
        %v3786 = vpop.f32.mrf.mxu0
        %v3787 = vadd.f32 0.0, %v3786
        %3788 = vmatmul.bf16.gmra.mxu0 %v3638
        %v3789 = vpop.f32.mrf.mxu0
        %v3790 = vadd.f32 0.0, %v3789
        %v3791 = vpop.f32.mrf.mxu0
        %v3792 = vadd.f32 0.0, %v3791
        %3793 = vmatmul.bf16.gmra.mxu0 %v3639
        %v3794 = vpop.f32.mrf.mxu0
        %v3795 = vadd.f32 0.0, %v3794
        %v3796 = vpop.f32.mrf.mxu0
        %v3797 = vadd.f32 0.0, %v3796
        %3798 = vmatmul.bf16.gmra.mxu0 %v3640
        %v3799 = vpop.f32.mrf.mxu0
        %v3800 = vadd.f32 0.0, %v3799
        %v3801 = vpop.f32.mrf.mxu0
        %v3802 = vadd.f32 0.0, %v3801
        %3803 = vmatmul.bf16.gmra.mxu0 %v3641
        %v3804 = vpop.f32.mrf.mxu0
        %v3805 = vadd.f32 0.0, %v3804
        %v3806 = vpop.f32.mrf.mxu0
        %v3807 = vadd.f32 0.0, %v3806
        %3808 = vmatmul.bf16.gmra.mxu0 %v3642
        %v3809 = vpop.f32.mrf.mxu0
        %v3810 = vadd.f32 0.0, %v3809
        %v3811 = vpop.f32.mrf.mxu0
        %v3812 = vadd.f32 0.0, %v3811
        %3813 = vmatmul.bf16.gmra.mxu0 %v3643
        %v3814 = vpop.f32.mrf.mxu0
        %v3815 = vadd.f32 0.0, %v3814
        %v3816 = vpop.f32.mrf.mxu0
        %v3817 = vadd.f32 0.0, %v3816
        %3818 = vmatmul.bf16.gmra.mxu0 %v3644
        %v3819 = vpop.f32.mrf.mxu0
        %v3820 = vadd.f32 0.0, %v3819
        %v3821 = vpop.f32.mrf.mxu0
        %3822 = vdwg.mxu0
        %v3823 = vadd.f32 %v3480, %v3720
        %v3824 = vadd.f32 %v3482, %v3722
        %v3825 = vadd.f32 %v3485, %v3725
        %v3826 = vadd.f32 %v3487, %v3727
        %v3827 = vadd.f32 %v3490, %v3730
        %v3828 = vadd.f32 %v3492, %v3732
        %v3829 = vadd.f32 %v3495, %v3735
        %v3830 = vadd.f32 %v3497, %v3737
        %v3831 = vadd.f32 %v3500, %v3740
        %v3832 = vadd.f32 %v3502, %v3742
        %v3833 = vadd.f32 %v3505, %v3745
        %v3834 = vadd.f32 %v3507, %v3747
        %v3835 = vadd.f32 %v3510, %v3750
        %v3836 = vadd.f32 %v3512, %v3752
        %v3837 = vadd.f32 %v3515, %v3755
        %v3838 = vadd.f32 %v3517, %v3757
        %v3839 = vadd.f32 %v3520, %v3760
        %v3840 = vadd.f32 %v3522, %v3762
        %v3841 = vadd.f32 %v3525, %v3765
        %v3842 = vadd.f32 %v3527, %v3767
        %v3843 = vadd.f32 %v3530, %v3770
        %v3844 = vadd.f32 %v3532, %v3772
        %v3845 = vadd.f32 %v3535, %v3775
        %v3846 = vadd.f32 %v3537, %v3777
        %v3847 = vadd.f32 %v3540, %v3780
        %v3848 = vadd.f32 %v3542, %v3782
        %v3849 = vadd.f32 %v3545, %v3785
        %v3850 = vadd.f32 %v3547, %v3787
        %v3851 = vadd.f32 %v3550, %v3790
        %v3852 = vadd.f32 %v3552, %v3792
        %v3853 = vadd.f32 %v3555, %v3795
        %v3854 = vadd.f32 %v3557, %v3797
        %v3855 = vadd.f32 %v3560, %v3800
        %v3856 = vadd.f32 %v3562, %v3802
        %v3857 = vadd.f32 %v3565, %v3805
        %v3858 = vadd.f32 %v3567, %v3807
        %v3859 = vadd.f32 %v3570, %v3810
        %v3860 = vadd.f32 %v3572, %v3812
        %v3861 = vadd.f32 %v3575, %v3815
        %v3862 = vadd.f32 %v3577, %v3817
        %v3863 = vadd.f32 %v3580, %v3820
        %v3864 = vld [vmem:[#allocation2 + $0x17] sm:$0xff]
        %v3865 = vld [vmem:[#allocation2 + $0x1f] sm:$0xff]
        %v3866 = vld [vmem:[#allocation2 + $0x27] sm:$0xff]
        %v3867 = vld [vmem:[#allocation2 + $0x2f] sm:$0xff]
        %v3868 = vld [vmem:[#allocation2 + $0x37] sm:$0xff]
        %v3869 = vld [vmem:[#allocation2 + $0x3f] sm:$0xff]
        %v3870 = vld [vmem:[#allocation2 + $0x47] sm:$0xff]
        %v3871 = vld [vmem:[#allocation2 + $0x4f] sm:$0xff]
        %v3872 = vld [vmem:[#allocation2 + $0x57] sm:$0xff]
        %v3873 = vld [vmem:[#allocation2 + $0x5f] sm:$0xff]
        %v3874 = vld [vmem:[#allocation2 + $0x67] sm:$0xff]
        %v3875 = vld [vmem:[#allocation2 + $0x6f] sm:$0xff]
        %v3876 = vld [vmem:[#allocation2 + $0x77] sm:$0xff]
        %v3877 = vld [vmem:[#allocation2 + $0x7f] sm:$0xff]
        %v3878 = vld [vmem:[#allocation2 + $0x87] sm:$0xff]
        %v3879 = vld [vmem:[#allocation2 + $0x8f] sm:$0xff]
        %v3880 = vld [vmem:[#allocation2 + $0x97] sm:$0xff]
        %v3881 = vld [vmem:[#allocation2 + $0x9f] sm:$0xff]
        %v3882 = vld [vmem:[#allocation2 + $0xa7] sm:$0xff]
        %v3883 = vld [vmem:[#allocation2 + $0xaf] sm:$0xff]
        %v3884 = vld [vmem:[#allocation2 + $0xb7] sm:$0xff]
        %v3885 = vld [vmem:[#allocation2 + $0xbf] sm:$0xff]
        %v3886 = vld [vmem:[#allocation2 + $0xc7] sm:$0xff]
        %v3887 = vld [vmem:[#allocation2 + $0xcf] sm:$0xff]
        %v3888 = vld [vmem:[#allocation2 + $0xd7] sm:$0xff]
        %v3889 = vld [vmem:[#allocation2 + $0xdf] sm:$0xff]
        %v3890 = vld [vmem:[#allocation2 + $0xe7] sm:$0xff]
        %v3891 = vld [vmem:[#allocation2 + $0xef] sm:$0xff]
        %v3892 = vld [vmem:[#allocation2 + $0xf7] sm:$0xff]
        %v3893 = vld [vmem:[#allocation2 + $0xff] sm:$0xff]
        %v3894 = vld [vmem:[#allocation2 + $0x107] sm:$0xff]
        %v3895 = vld [vmem:[#allocation2 + $0x10f] sm:$0xff]
        %v3896 = vld [vmem:[#allocation2 + $0x117] sm:$0xff]
        %v3897 = vld [vmem:[#allocation2 + $0x11f] sm:$0xff]
        %v3898 = vld [vmem:[#allocation2 + $0x127] sm:$0xff]
        %v3899 = vld [vmem:[#allocation2 + $0x12f] sm:$0xff]
        %v3900 = vld [vmem:[#allocation2 + $0x137] sm:$0xff]
        %v3901 = vld [vmem:[#allocation2 + $0x13f] sm:$0xff]
        %v3902 = vld [vmem:[#allocation2 + $0x147] sm:$0xff]
        %v3903 = vld [vmem:[#allocation2 + $0x14f] sm:$0xff]
        %v3904 = vld [vmem:[#allocation2 + $0x157] sm:$0xf]
        %v3905 = vpack.c.bf16 %v3865, %v3864
        %v3906 = vpack.c.bf16 %v3867, %v3866
        %v3907 = vpack.c.bf16 %v3869, %v3868
        %v3908 = vpack.c.bf16 %v3871, %v3870
        %v3909 = vpack.c.bf16 %v3873, %v3872
        %v3910 = vpack.c.bf16 %v3875, %v3874
        %v3911 = vpack.c.bf16 %v3877, %v3876
        %v3912 = vpack.c.bf16 %v3879, %v3878
        %v3913 = vpack.c.bf16 %v3881, %v3880
        %v3914 = vpack.c.bf16 %v3883, %v3882
        %v3915 = vpack.c.bf16 %v3885, %v3884
        %v3916 = vpack.c.bf16 %v3887, %v3886
        %v3917 = vpack.c.bf16 %v3889, %v3888
        %v3918 = vpack.c.bf16 %v3891, %v3890
        %v3919 = vpack.c.bf16 %v3893, %v3892
        %v3920 = vpack.c.bf16 %v3895, %v3894
        %v3921 = vpack.c.bf16 %v3897, %v3896
        %v3922 = vpack.c.bf16 %v3899, %v3898
        %v3923 = vpack.c.bf16 %v3901, %v3900
        %v3924 = vpack.c.bf16 %v3903, %v3902
        %v3925 = vpack.c.bf16 %v3904, %v3904
        %s3926 = scalar_lea.vmem %s4, 192
        %v3927 = vld [vmem:[%s3926] sm:$0xf]
        %v3928 = vld [vmem:[%s3926 + $0x4] sm:$0xf]
        %v3929 = vld [vmem:[%s3926 + $0x8] sm:$0xf]
        %v3930 = vld [vmem:[%s3926 + $0xc] sm:$0xf]
        %v3931 = vld [vmem:[%s3926 + $0x10] sm:$0xf]
        %v3932 = vld [vmem:[%s3926 + $0x14] sm:$0xf]
        %v3933 = vld [vmem:[%s3926 + $0x18] sm:$0xf]
        %v3934 = vld [vmem:[%s3926 + $0x1c] sm:$0xf]
        %v3935 = vld [vmem:[%s3926 + $0x20] sm:$0xf]
        %v3936 = vld [vmem:[%s3926 + $0x24] sm:$0xf]
        %v3937 = vld [vmem:[%s3926 + $0x28] sm:$0xf]
        %v3938 = vld [vmem:[%s3926 + $0x2c] sm:$0xf]
        %v3939 = vld [vmem:[%s3926 + $0x30] sm:$0xf]
        %v3940 = vld [vmem:[%s3926 + $0x34] sm:$0xf]
        %v3941 = vld [vmem:[%s3926 + $0x38] sm:$0xf]
        %v3942 = vld [vmem:[%s3926 + $0x3c] sm:$0xf]
        %v3959 = vunpack.c.l.b16 %v3927
        %v3960 = vunpack.c.l.b16 %v3928
        %v3961 = vunpack.c.l.b16 %v3929
        %v3962 = vunpack.c.l.b16 %v3930
        %v3963 = vunpack.c.l.b16 %v3931
        %v3964 = vunpack.c.l.b16 %v3932
        %v3965 = vunpack.c.l.b16 %v3933
        %v3966 = vunpack.c.l.b16 %v3934
        %v3967 = vunpack.c.l.b16 %v3935
        %v3968 = vunpack.c.l.b16 %v3936
        %v3969 = vunpack.c.l.b16 %v3937
        %v3970 = vunpack.c.l.b16 %v3938
        %v3971 = vunpack.c.l.b16 %v3939
        %v3972 = vunpack.c.l.b16 %v3940
        %v3973 = vunpack.c.l.b16 %v3941
        %v3974 = vunpack.c.l.b16 %v3942
        %v3975 = vpack.c.b16 %v3960, %v3959
        %v3976 = vpack.c.b16 %v3962, %v3961
        %v3977 = vpack.c.b16 %v3964, %v3963
        %v3978 = vpack.c.b16 %v3966, %v3965
        %v3979 = vpack.c.b16 %v3968, %v3967
        %v3980 = vpack.c.b16 %v3970, %v3969
        %v3981 = vpack.c.b16 %v3972, %v3971
        %v3982 = vpack.c.b16 %v3974, %v3973
        %3991 = vmatpush.bf16.msra.mxu0 %v3982
        %3992 = vmatpush.bf16.msra.mxu0 %v3981
        %3993 = vmatpush.bf16.msra.mxu0 %v3980
        %3994 = vmatpush.bf16.msra.mxu0 %v3979
        %3995 = vmatpush.bf16.msra.mxu0 %v3978
        %3996 = vmatpush.bf16.msra.mxu0 %v3977
        %3997 = vmatpush.bf16.msra.mxu0 %v3976
        %3998 = vmatpush.bf16.msra.mxu0 %v3975
        %3999 = vmatmul.bf16.gmra.mxu0 %v3905
        %v4000 = vpop.f32.mrf.mxu0
        %v4001 = vadd.f32 0.0, %v4000
        %v4002 = vpop.f32.mrf.mxu0
        %v4003 = vadd.f32 0.0, %v4002
        %4004 = vmatmul.bf16.gmra.mxu0 %v3906
        %v4005 = vpop.f32.mrf.mxu0
        %v4006 = vadd.f32 0.0, %v4005
        %v4007 = vpop.f32.mrf.mxu0
        %v4008 = vadd.f32 0.0, %v4007
        %4009 = vmatmul.bf16.gmra.mxu0 %v3907
        %v4010 = vpop.f32.mrf.mxu0
        %v4011 = vadd.f32 0.0, %v4010
        %v4012 = vpop.f32.mrf.mxu0
        %v4013 = vadd.f32 0.0, %v4012
        %4014 = vmatmul.bf16.gmra.mxu0 %v3908
        %v4015 = vpop.f32.mrf.mxu0
        %v4016 = vadd.f32 0.0, %v4015
        %v4017 = vpop.f32.mrf.mxu0
        %v4018 = vadd.f32 0.0, %v4017
        %4019 = vmatmul.bf16.gmra.mxu0 %v3909
        %v4020 = vpop.f32.mrf.mxu0
        %v4021 = vadd.f32 0.0, %v4020
        %v4022 = vpop.f32.mrf.mxu0
        %v4023 = vadd.f32 0.0, %v4022
        %4024 = vmatmul.bf16.gmra.mxu0 %v3910
        %v4025 = vpop.f32.mrf.mxu0
        %v4026 = vadd.f32 0.0, %v4025
        %v4027 = vpop.f32.mrf.mxu0
        %v4028 = vadd.f32 0.0, %v4027
        %4029 = vmatmul.bf16.gmra.mxu0 %v3911
        %v4030 = vpop.f32.mrf.mxu0
        %v4031 = vadd.f32 0.0, %v4030
        %v4032 = vpop.f32.mrf.mxu0
        %v4033 = vadd.f32 0.0, %v4032
        %4034 = vmatmul.bf16.gmra.mxu0 %v3912
        %v4035 = vpop.f32.mrf.mxu0
        %v4036 = vadd.f32 0.0, %v4035
        %v4037 = vpop.f32.mrf.mxu0
        %v4038 = vadd.f32 0.0, %v4037
        %4039 = vmatmul.bf16.gmra.mxu0 %v3913
        %v4040 = vpop.f32.mrf.mxu0
        %v4041 = vadd.f32 0.0, %v4040
        %v4042 = vpop.f32.mrf.mxu0
        %v4043 = vadd.f32 0.0, %v4042
        %4044 = vmatmul.bf16.gmra.mxu0 %v3914
        %v4045 = vpop.f32.mrf.mxu0
        %v4046 = vadd.f32 0.0, %v4045
        %v4047 = vpop.f32.mrf.mxu0
        %v4048 = vadd.f32 0.0, %v4047
        %4049 = vmatmul.bf16.gmra.mxu0 %v3915
        %v4050 = vpop.f32.mrf.mxu0
        %v4051 = vadd.f32 0.0, %v4050
        %v4052 = vpop.f32.mrf.mxu0
        %v4053 = vadd.f32 0.0, %v4052
        %4054 = vmatmul.bf16.gmra.mxu0 %v3916
        %v4055 = vpop.f32.mrf.mxu0
        %v4056 = vadd.f32 0.0, %v4055
        %v4057 = vpop.f32.mrf.mxu0
        %v4058 = vadd.f32 0.0, %v4057
        %4059 = vmatmul.bf16.gmra.mxu0 %v3917
        %v4060 = vpop.f32.mrf.mxu0
        %v4061 = vadd.f32 0.0, %v4060
        %v4062 = vpop.f32.mrf.mxu0
        %v4063 = vadd.f32 0.0, %v4062
        %4064 = vmatmul.bf16.gmra.mxu0 %v3918
        %v4065 = vpop.f32.mrf.mxu0
        %v4066 = vadd.f32 0.0, %v4065
        %v4067 = vpop.f32.mrf.mxu0
        %v4068 = vadd.f32 0.0, %v4067
        %4069 = vmatmul.bf16.gmra.mxu0 %v3919
        %v4070 = vpop.f32.mrf.mxu0
        %v4071 = vadd.f32 0.0, %v4070
        %v4072 = vpop.f32.mrf.mxu0
        %v4073 = vadd.f32 0.0, %v4072
        %4074 = vmatmul.bf16.gmra.mxu0 %v3920
        %v4075 = vpop.f32.mrf.mxu0
        %v4076 = vadd.f32 0.0, %v4075
        %v4077 = vpop.f32.mrf.mxu0
        %v4078 = vadd.f32 0.0, %v4077
        %4079 = vmatmul.bf16.gmra.mxu0 %v3921
        %v4080 = vpop.f32.mrf.mxu0
        %v4081 = vadd.f32 0.0, %v4080
        %v4082 = vpop.f32.mrf.mxu0
        %v4083 = vadd.f32 0.0, %v4082
        %4084 = vmatmul.bf16.gmra.mxu0 %v3922
        %v4085 = vpop.f32.mrf.mxu0
        %v4086 = vadd.f32 0.0, %v4085
        %v4087 = vpop.f32.mrf.mxu0
        %v4088 = vadd.f32 0.0, %v4087
        %4089 = vmatmul.bf16.gmra.mxu0 %v3923
        %v4090 = vpop.f32.mrf.mxu0
        %v4091 = vadd.f32 0.0, %v4090
        %v4092 = vpop.f32.mrf.mxu0
        %v4093 = vadd.f32 0.0, %v4092
        %4094 = vmatmul.bf16.gmra.mxu0 %v3924
        %v4095 = vpop.f32.mrf.mxu0
        %v4096 = vadd.f32 0.0, %v4095
        %v4097 = vpop.f32.mrf.mxu0
        %v4098 = vadd.f32 0.0, %v4097
        %4099 = vmatmul.bf16.gmra.mxu0 %v3925
        %v4100 = vpop.f32.mrf.mxu0
        %v4101 = vadd.f32 0.0, %v4100
        %v4102 = vpop.f32.mrf.mxu0
        %4103 = vdwg.mxu0
        %v4104 = vadd.f32 %v3823, %v4001
        %v4105 = vadd.f32 %v3824, %v4003
        %v4106 = vadd.f32 %v3825, %v4006
        %v4107 = vadd.f32 %v3826, %v4008
        %v4108 = vadd.f32 %v3827, %v4011
        %v4109 = vadd.f32 %v3828, %v4013
        %v4110 = vadd.f32 %v3829, %v4016
        %v4111 = vadd.f32 %v3830, %v4018
        %v4112 = vadd.f32 %v3831, %v4021
        %v4113 = vadd.f32 %v3832, %v4023
        %v4114 = vadd.f32 %v3833, %v4026
        %v4115 = vadd.f32 %v3834, %v4028
        %v4116 = vadd.f32 %v3835, %v4031
        %v4117 = vadd.f32 %v3836, %v4033
        %v4118 = vadd.f32 %v3837, %v4036
        %v4119 = vadd.f32 %v3838, %v4038
        %v4120 = vadd.f32 %v3839, %v4041
        %v4121 = vadd.f32 %v3840, %v4043
        %v4122 = vadd.f32 %v3841, %v4046
        %v4123 = vadd.f32 %v3842, %v4048
        %v4124 = vadd.f32 %v3843, %v4051
        %v4125 = vadd.f32 %v3844, %v4053
        %v4126 = vadd.f32 %v3845, %v4056
        %v4127 = vadd.f32 %v3846, %v4058
        %v4128 = vadd.f32 %v3847, %v4061
        %v4129 = vadd.f32 %v3848, %v4063
        %v4130 = vadd.f32 %v3849, %v4066
        %v4131 = vadd.f32 %v3850, %v4068
        %v4132 = vadd.f32 %v3851, %v4071
        %v4133 = vadd.f32 %v3852, %v4073
        %v4134 = vadd.f32 %v3853, %v4076
        %v4135 = vadd.f32 %v3854, %v4078
        %v4136 = vadd.f32 %v3855, %v4081
        %v4137 = vadd.f32 %v3856, %v4083
        %v4138 = vadd.f32 %v3857, %v4086
        %v4139 = vadd.f32 %v3858, %v4088
        %v4140 = vadd.f32 %v3859, %v4091
        %v4141 = vadd.f32 %v3860, %v4093
        %v4142 = vadd.f32 %v3861, %v4096
        %v4143 = vadd.f32 %v3862, %v4098
        %v4144 = vadd.f32 %v3863, %v4101
        %v4145 = vld [vmem:[#allocation2 + $0x18] sm:$0xff]
        %v4146 = vld [vmem:[#allocation2 + $0x20] sm:$0xff]
        %v4147 = vld [vmem:[#allocation2 + $0x28] sm:$0xff]
        %v4148 = vld [vmem:[#allocation2 + $0x30] sm:$0xff]
        %v4149 = vld [vmem:[#allocation2 + $0x38] sm:$0xff]
        %v4150 = vld [vmem:[#allocation2 + $0x40] sm:$0xff]
        %v4151 = vld [vmem:[#allocation2 + $0x48] sm:$0xff]
        %v4152 = vld [vmem:[#allocation2 + $0x50] sm:$0xff]
        %v4153 = vld [vmem:[#allocation2 + $0x58] sm:$0xff]
        %v4154 = vld [vmem:[#allocation2 + $0x60] sm:$0xff]
        %v4155 = vld [vmem:[#allocation2 + $0x68] sm:$0xff]
        %v4156 = vld [vmem:[#allocation2 + $0x70] sm:$0xff]
        %v4157 = vld [vmem:[#allocation2 + $0x78] sm:$0xff]
        %v4158 = vld [vmem:[#allocation2 + $0x80] sm:$0xff]
        %v4159 = vld [vmem:[#allocation2 + $0x88] sm:$0xff]
        %v4160 = vld [vmem:[#allocation2 + $0x90] sm:$0xff]
        %v4161 = vld [vmem:[#allocation2 + $0x98] sm:$0xff]
        %v4162 = vld [vmem:[#allocation2 + $0xa0] sm:$0xff]
        %v4163 = vld [vmem:[#allocation2 + $0xa8] sm:$0xff]
        %v4164 = vld [vmem:[#allocation2 + $0xb0] sm:$0xff]
        %v4165 = vld [vmem:[#allocation2 + $0xb8] sm:$0xff]
        %v4166 = vld [vmem:[#allocation2 + $0xc0] sm:$0xff]
        %v4167 = vld [vmem:[#allocation2 + $0xc8] sm:$0xff]
        %v4168 = vld [vmem:[#allocation2 + $0xd0] sm:$0xff]
        %v4169 = vld [vmem:[#allocation2 + $0xd8] sm:$0xff]
        %v4170 = vld [vmem:[#allocation2 + $0xe0] sm:$0xff]
        %v4171 = vld [vmem:[#allocation2 + $0xe8] sm:$0xff]
        %v4172 = vld [vmem:[#allocation2 + $0xf0] sm:$0xff]
        %v4173 = vld [vmem:[#allocation2 + $0xf8] sm:$0xff]
        %v4174 = vld [vmem:[#allocation2 + $0x100] sm:$0xff]
        %v4175 = vld [vmem:[#allocation2 + $0x108] sm:$0xff]
        %v4176 = vld [vmem:[#allocation2 + $0x110] sm:$0xff]
        %v4177 = vld [vmem:[#allocation2 + $0x118] sm:$0xff]
        %v4178 = vld [vmem:[#allocation2 + $0x120] sm:$0xff]
        %v4179 = vld [vmem:[#allocation2 + $0x128] sm:$0xff]
        %v4180 = vld [vmem:[#allocation2 + $0x130] sm:$0xff]
        %v4181 = vld [vmem:[#allocation2 + $0x138] sm:$0xff]
        %v4182 = vld [vmem:[#allocation2 + $0x140] sm:$0xff]
        %v4183 = vld [vmem:[#allocation2 + $0x148] sm:$0xff]
        %v4184 = vld [vmem:[#allocation2 + $0x150] sm:$0xff]
        %v4185 = vld [vmem:[#allocation2 + $0x158] sm:$0xf]
        %v4186 = vpack.c.bf16 %v4146, %v4145
        %v4187 = vpack.c.bf16 %v4148, %v4147
        %v4188 = vpack.c.bf16 %v4150, %v4149
        %v4189 = vpack.c.bf16 %v4152, %v4151
        %v4190 = vpack.c.bf16 %v4154, %v4153
        %v4191 = vpack.c.bf16 %v4156, %v4155
        %v4192 = vpack.c.bf16 %v4158, %v4157
        %v4193 = vpack.c.bf16 %v4160, %v4159
        %v4194 = vpack.c.bf16 %v4162, %v4161
        %v4195 = vpack.c.bf16 %v4164, %v4163
        %v4196 = vpack.c.bf16 %v4166, %v4165
        %v4197 = vpack.c.bf16 %v4168, %v4167
        %v4198 = vpack.c.bf16 %v4170, %v4169
        %v4199 = vpack.c.bf16 %v4172, %v4171
        %v4200 = vpack.c.bf16 %v4174, %v4173
        %v4201 = vpack.c.bf16 %v4176, %v4175
        %v4202 = vpack.c.bf16 %v4178, %v4177
        %v4203 = vpack.c.bf16 %v4180, %v4179
        %v4204 = vpack.c.bf16 %v4182, %v4181
        %v4205 = vpack.c.bf16 %v4184, %v4183
        %v4206 = vpack.c.bf16 %v4185, %v4185
        %s4207 = scalar_lea.vmem %s4, 256
        %v4208 = vld [vmem:[%s4207] sm:$0xf]
        %v4209 = vld [vmem:[%s4207 + $0x4] sm:$0xf]
        %v4210 = vld [vmem:[%s4207 + $0x8] sm:$0xf]
        %v4211 = vld [vmem:[%s4207 + $0xc] sm:$0xf]
        %v4212 = vld [vmem:[%s4207 + $0x10] sm:$0xf]
        %v4213 = vld [vmem:[%s4207 + $0x14] sm:$0xf]
        %v4214 = vld [vmem:[%s4207 + $0x18] sm:$0xf]
        %v4215 = vld [vmem:[%s4207 + $0x1c] sm:$0xf]
        %v4216 = vld [vmem:[%s4207 + $0x20] sm:$0xf]
        %v4217 = vld [vmem:[%s4207 + $0x24] sm:$0xf]
        %v4218 = vld [vmem:[%s4207 + $0x28] sm:$0xf]
        %v4219 = vld [vmem:[%s4207 + $0x2c] sm:$0xf]
        %v4220 = vld [vmem:[%s4207 + $0x30] sm:$0xf]
        %v4221 = vld [vmem:[%s4207 + $0x34] sm:$0xf]
        %v4222 = vld [vmem:[%s4207 + $0x38] sm:$0xf]
        %v4223 = vld [vmem:[%s4207 + $0x3c] sm:$0xf]
        %v4240 = vunpack.c.l.b16 %v4208
        %v4241 = vunpack.c.l.b16 %v4209
        %v4242 = vunpack.c.l.b16 %v4210
        %v4243 = vunpack.c.l.b16 %v4211
        %v4244 = vunpack.c.l.b16 %v4212
        %v4245 = vunpack.c.l.b16 %v4213
        %v4246 = vunpack.c.l.b16 %v4214
        %v4247 = vunpack.c.l.b16 %v4215
        %v4248 = vunpack.c.l.b16 %v4216
        %v4249 = vunpack.c.l.b16 %v4217
        %v4250 = vunpack.c.l.b16 %v4218
        %v4251 = vunpack.c.l.b16 %v4219
        %v4252 = vunpack.c.l.b16 %v4220
        %v4253 = vunpack.c.l.b16 %v4221
        %v4254 = vunpack.c.l.b16 %v4222
        %v4255 = vunpack.c.l.b16 %v4223
        %v4256 = vpack.c.b16 %v4241, %v4240
        %v4257 = vpack.c.b16 %v4243, %v4242
        %v4258 = vpack.c.b16 %v4245, %v4244
        %v4259 = vpack.c.b16 %v4247, %v4246
        %v4260 = vpack.c.b16 %v4249, %v4248
        %v4261 = vpack.c.b16 %v4251, %v4250
        %v4262 = vpack.c.b16 %v4253, %v4252
        %v4263 = vpack.c.b16 %v4255, %v4254
        %4272 = vmatpush.bf16.msra.mxu0 %v4263
        %4273 = vmatpush.bf16.msra.mxu0 %v4262
        %4274 = vmatpush.bf16.msra.mxu0 %v4261
        %4275 = vmatpush.bf16.msra.mxu0 %v4260
        %4276 = vmatpush.bf16.msra.mxu0 %v4259
        %4277 = vmatpush.bf16.msra.mxu0 %v4258
        %4278 = vmatpush.bf16.msra.mxu0 %v4257
        %4279 = vmatpush.bf16.msra.mxu0 %v4256
        %4280 = vmatmul.bf16.gmra.mxu0 %v4186
        %v4281 = vpop.f32.mrf.mxu0
        %v4282 = vadd.f32 0.0, %v4281
        %v4283 = vpop.f32.mrf.mxu0
        %v4284 = vadd.f32 0.0, %v4283
        %4285 = vmatmul.bf16.gmra.mxu0 %v4187
        %v4286 = vpop.f32.mrf.mxu0
        %v4287 = vadd.f32 0.0, %v4286
        %v4288 = vpop.f32.mrf.mxu0
        %v4289 = vadd.f32 0.0, %v4288
        %4290 = vmatmul.bf16.gmra.mxu0 %v4188
        %v4291 = vpop.f32.mrf.mxu0
        %v4292 = vadd.f32 0.0, %v4291
        %v4293 = vpop.f32.mrf.mxu0
        %v4294 = vadd.f32 0.0, %v4293
        %4295 = vmatmul.bf16.gmra.mxu0 %v4189
        %v4296 = vpop.f32.mrf.mxu0
        %v4297 = vadd.f32 0.0, %v4296
        %v4298 = vpop.f32.mrf.mxu0
        %v4299 = vadd.f32 0.0, %v4298
        %4300 = vmatmul.bf16.gmra.mxu0 %v4190
        %v4301 = vpop.f32.mrf.mxu0
        %v4302 = vadd.f32 0.0, %v4301
        %v4303 = vpop.f32.mrf.mxu0
        %v4304 = vadd.f32 0.0, %v4303
        %4305 = vmatmul.bf16.gmra.mxu0 %v4191
        %v4306 = vpop.f32.mrf.mxu0
        %v4307 = vadd.f32 0.0, %v4306
        %v4308 = vpop.f32.mrf.mxu0
        %v4309 = vadd.f32 0.0, %v4308
        %4310 = vmatmul.bf16.gmra.mxu0 %v4192
        %v4311 = vpop.f32.mrf.mxu0
        %v4312 = vadd.f32 0.0, %v4311
        %v4313 = vpop.f32.mrf.mxu0
        %v4314 = vadd.f32 0.0, %v4313
        %4315 = vmatmul.bf16.gmra.mxu0 %v4193
        %v4316 = vpop.f32.mrf.mxu0
        %v4317 = vadd.f32 0.0, %v4316
        %v4318 = vpop.f32.mrf.mxu0
        %v4319 = vadd.f32 0.0, %v4318
        %4320 = vmatmul.bf16.gmra.mxu0 %v4194
        %v4321 = vpop.f32.mrf.mxu0
        %v4322 = vadd.f32 0.0, %v4321
        %v4323 = vpop.f32.mrf.mxu0
        %v4324 = vadd.f32 0.0, %v4323
        %4325 = vmatmul.bf16.gmra.mxu0 %v4195
        %v4326 = vpop.f32.mrf.mxu0
        %v4327 = vadd.f32 0.0, %v4326
        %v4328 = vpop.f32.mrf.mxu0
        %v4329 = vadd.f32 0.0, %v4328
        %4330 = vmatmul.bf16.gmra.mxu0 %v4196
        %v4331 = vpop.f32.mrf.mxu0
        %v4332 = vadd.f32 0.0, %v4331
        %v4333 = vpop.f32.mrf.mxu0
        %v4334 = vadd.f32 0.0, %v4333
        %4335 = vmatmul.bf16.gmra.mxu0 %v4197
        %v4336 = vpop.f32.mrf.mxu0
        %v4337 = vadd.f32 0.0, %v4336
        %v4338 = vpop.f32.mrf.mxu0
        %v4339 = vadd.f32 0.0, %v4338
        %4340 = vmatmul.bf16.gmra.mxu0 %v4198
        %v4341 = vpop.f32.mrf.mxu0
        %v4342 = vadd.f32 0.0, %v4341
        %v4343 = vpop.f32.mrf.mxu0
        %v4344 = vadd.f32 0.0, %v4343
        %4345 = vmatmul.bf16.gmra.mxu0 %v4199
        %v4346 = vpop.f32.mrf.mxu0
        %v4347 = vadd.f32 0.0, %v4346
        %v4348 = vpop.f32.mrf.mxu0
        %v4349 = vadd.f32 0.0, %v4348
        %4350 = vmatmul.bf16.gmra.mxu0 %v4200
        %v4351 = vpop.f32.mrf.mxu0
        %v4352 = vadd.f32 0.0, %v4351
        %v4353 = vpop.f32.mrf.mxu0
        %v4354 = vadd.f32 0.0, %v4353
        %4355 = vmatmul.bf16.gmra.mxu0 %v4201
        %v4356 = vpop.f32.mrf.mxu0
        %v4357 = vadd.f32 0.0, %v4356
        %v4358 = vpop.f32.mrf.mxu0
        %v4359 = vadd.f32 0.0, %v4358
        %4360 = vmatmul.bf16.gmra.mxu0 %v4202
        %v4361 = vpop.f32.mrf.mxu0
        %v4362 = vadd.f32 0.0, %v4361
        %v4363 = vpop.f32.mrf.mxu0
        %v4364 = vadd.f32 0.0, %v4363
        %4365 = vmatmul.bf16.gmra.mxu0 %v4203
        %v4366 = vpop.f32.mrf.mxu0
        %v4367 = vadd.f32 0.0, %v4366
        %v4368 = vpop.f32.mrf.mxu0
        %v4369 = vadd.f32 0.0, %v4368
        %4370 = vmatmul.bf16.gmra.mxu0 %v4204
        %v4371 = vpop.f32.mrf.mxu0
        %v4372 = vadd.f32 0.0, %v4371
        %v4373 = vpop.f32.mrf.mxu0
        %v4374 = vadd.f32 0.0, %v4373
        %4375 = vmatmul.bf16.gmra.mxu0 %v4205
        %v4376 = vpop.f32.mrf.mxu0
        %v4377 = vadd.f32 0.0, %v4376
        %v4378 = vpop.f32.mrf.mxu0
        %v4379 = vadd.f32 0.0, %v4378
        %4380 = vmatmul.bf16.gmra.mxu0 %v4206
        %v4381 = vpop.f32.mrf.mxu0
        %v4382 = vadd.f32 0.0, %v4381
        %v4383 = vpop.f32.mrf.mxu0
        %4384 = vdwg.mxu0
        %v4385 = vadd.f32 %v4104, %v4282
        %v4386 = vadd.f32 %v4105, %v4284
        %v4387 = vadd.f32 %v4106, %v4287
        %v4388 = vadd.f32 %v4107, %v4289
        %v4389 = vadd.f32 %v4108, %v4292
        %v4390 = vadd.f32 %v4109, %v4294
        %v4391 = vadd.f32 %v4110, %v4297
        %v4392 = vadd.f32 %v4111, %v4299
        %v4393 = vadd.f32 %v4112, %v4302
        %v4394 = vadd.f32 %v4113, %v4304
        %v4395 = vadd.f32 %v4114, %v4307
        %v4396 = vadd.f32 %v4115, %v4309
        %v4397 = vadd.f32 %v4116, %v4312
        %v4398 = vadd.f32 %v4117, %v4314
        %v4399 = vadd.f32 %v4118, %v4317
        %v4400 = vadd.f32 %v4119, %v4319
        %v4401 = vadd.f32 %v4120, %v4322
        %v4402 = vadd.f32 %v4121, %v4324
        %v4403 = vadd.f32 %v4122, %v4327
        %v4404 = vadd.f32 %v4123, %v4329
        %v4405 = vadd.f32 %v4124, %v4332
        %v4406 = vadd.f32 %v4125, %v4334
        %v4407 = vadd.f32 %v4126, %v4337
        %v4408 = vadd.f32 %v4127, %v4339
        %v4409 = vadd.f32 %v4128, %v4342
        %v4410 = vadd.f32 %v4129, %v4344
        %v4411 = vadd.f32 %v4130, %v4347
        %v4412 = vadd.f32 %v4131, %v4349
        %v4413 = vadd.f32 %v4132, %v4352
        %v4414 = vadd.f32 %v4133, %v4354
        %v4415 = vadd.f32 %v4134, %v4357
        %v4416 = vadd.f32 %v4135, %v4359
        %v4417 = vadd.f32 %v4136, %v4362
        %v4418 = vadd.f32 %v4137, %v4364
        %v4419 = vadd.f32 %v4138, %v4367
        %v4420 = vadd.f32 %v4139, %v4369
        %v4421 = vadd.f32 %v4140, %v4372
        %v4422 = vadd.f32 %v4141, %v4374
        %v4423 = vadd.f32 %v4142, %v4377
        %v4424 = vadd.f32 %v4143, %v4379
        %v4425 = vadd.f32 %v4144, %v4382
        %v4426 = vld [vmem:[#allocation2 + $0x19] sm:$0xff]
        %v4427 = vld [vmem:[#allocation2 + $0x21] sm:$0xff]
        %v4428 = vld [vmem:[#allocation2 + $0x29] sm:$0xff]
        %v4429 = vld [vmem:[#allocation2 + $0x31] sm:$0xff]
        %v4430 = vld [vmem:[#allocation2 + $0x39] sm:$0xff]
        %v4431 = vld [vmem:[#allocation2 + $0x41] sm:$0xff]
        %v4432 = vld [vmem:[#allocation2 + $0x49] sm:$0xff]
        %v4433 = vld [vmem:[#allocation2 + $0x51] sm:$0xff]
        %v4434 = vld [vmem:[#allocation2 + $0x59] sm:$0xff]
        %v4435 = vld [vmem:[#allocation2 + $0x61] sm:$0xff]
        %v4436 = vld [vmem:[#allocation2 + $0x69] sm:$0xff]
        %v4437 = vld [vmem:[#allocation2 + $0x71] sm:$0xff]
        %v4438 = vld [vmem:[#allocation2 + $0x79] sm:$0xff]
        %v4439 = vld [vmem:[#allocation2 + $0x81] sm:$0xff]
        %v4440 = vld [vmem:[#allocation2 + $0x89] sm:$0xff]
        %v4441 = vld [vmem:[#allocation2 + $0x91] sm:$0xff]
        %v4442 = vld [vmem:[#allocation2 + $0x99] sm:$0xff]
        %v4443 = vld [vmem:[#allocation2 + $0xa1] sm:$0xff]
        %v4444 = vld [vmem:[#allocation2 + $0xa9] sm:$0xff]
        %v4445 = vld [vmem:[#allocation2 + $0xb1] sm:$0xff]
        %v4446 = vld [vmem:[#allocation2 + $0xb9] sm:$0xff]
        %v4447 = vld [vmem:[#allocation2 + $0xc1] sm:$0xff]
        %v4448 = vld [vmem:[#allocation2 + $0xc9] sm:$0xff]
        %v4449 = vld [vmem:[#allocation2 + $0xd1] sm:$0xff]
        %v4450 = vld [vmem:[#allocation2 + $0xd9] sm:$0xff]
        %v4451 = vld [vmem:[#allocation2 + $0xe1] sm:$0xff]
        %v4452 = vld [vmem:[#allocation2 + $0xe9] sm:$0xff]
        %v4453 = vld [vmem:[#allocation2 + $0xf1] sm:$0xff]
        %v4454 = vld [vmem:[#allocation2 + $0xf9] sm:$0xff]
        %v4455 = vld [vmem:[#allocation2 + $0x101] sm:$0xff]
        %v4456 = vld [vmem:[#allocation2 + $0x109] sm:$0xff]
        %v4457 = vld [vmem:[#allocation2 + $0x111] sm:$0xff]
        %v4458 = vld [vmem:[#allocation2 + $0x119] sm:$0xff]
        %v4459 = vld [vmem:[#allocation2 + $0x121] sm:$0xff]
        %v4460 = vld [vmem:[#allocation2 + $0x129] sm:$0xff]
        %v4461 = vld [vmem:[#allocation2 + $0x131] sm:$0xff]
        %v4462 = vld [vmem:[#allocation2 + $0x139] sm:$0xff]
        %v4463 = vld [vmem:[#allocation2 + $0x141] sm:$0xff]
        %v4464 = vld [vmem:[#allocation2 + $0x149] sm:$0xff]
        %v4465 = vld [vmem:[#allocation2 + $0x151] sm:$0xff]
        %v4466 = vld [vmem:[#allocation2 + $0x159] sm:$0xf]
        %v4467 = vpack.c.bf16 %v4427, %v4426
        %v4468 = vpack.c.bf16 %v4429, %v4428
        %v4469 = vpack.c.bf16 %v4431, %v4430
        %v4470 = vpack.c.bf16 %v4433, %v4432
        %v4471 = vpack.c.bf16 %v4435, %v4434
        %v4472 = vpack.c.bf16 %v4437, %v4436
        %v4473 = vpack.c.bf16 %v4439, %v4438
        %v4474 = vpack.c.bf16 %v4441, %v4440
        %v4475 = vpack.c.bf16 %v4443, %v4442
        %v4476 = vpack.c.bf16 %v4445, %v4444
        %v4477 = vpack.c.bf16 %v4447, %v4446
        %v4478 = vpack.c.bf16 %v4449, %v4448
        %v4479 = vpack.c.bf16 %v4451, %v4450
        %v4480 = vpack.c.bf16 %v4453, %v4452
        %v4481 = vpack.c.bf16 %v4455, %v4454
        %v4482 = vpack.c.bf16 %v4457, %v4456
        %v4483 = vpack.c.bf16 %v4459, %v4458
        %v4484 = vpack.c.bf16 %v4461, %v4460
        %v4485 = vpack.c.bf16 %v4463, %v4462
        %v4486 = vpack.c.bf16 %v4465, %v4464
        %v4487 = vpack.c.bf16 %v4466, %v4466
        %s4488 = scalar_lea.vmem %s4, 320
        %v4489 = vld [vmem:[%s4488] sm:$0xf]
        %v4490 = vld [vmem:[%s4488 + $0x4] sm:$0xf]
        %v4491 = vld [vmem:[%s4488 + $0x8] sm:$0xf]
        %v4492 = vld [vmem:[%s4488 + $0xc] sm:$0xf]
        %v4493 = vld [vmem:[%s4488 + $0x10] sm:$0xf]
        %v4494 = vld [vmem:[%s4488 + $0x14] sm:$0xf]
        %v4495 = vld [vmem:[%s4488 + $0x18] sm:$0xf]
        %v4496 = vld [vmem:[%s4488 + $0x1c] sm:$0xf]
        %v4497 = vld [vmem:[%s4488 + $0x20] sm:$0xf]
        %v4498 = vld [vmem:[%s4488 + $0x24] sm:$0xf]
        %v4499 = vld [vmem:[%s4488 + $0x28] sm:$0xf]
        %v4500 = vld [vmem:[%s4488 + $0x2c] sm:$0xf]
        %v4501 = vld [vmem:[%s4488 + $0x30] sm:$0xf]
        %v4502 = vld [vmem:[%s4488 + $0x34] sm:$0xf]
        %v4503 = vld [vmem:[%s4488 + $0x38] sm:$0xf]
        %v4504 = vld [vmem:[%s4488 + $0x3c] sm:$0xf]
        %v4521 = vunpack.c.l.b16 %v4489
        %v4522 = vunpack.c.l.b16 %v4490
        %v4523 = vunpack.c.l.b16 %v4491
        %v4524 = vunpack.c.l.b16 %v4492
        %v4525 = vunpack.c.l.b16 %v4493
        %v4526 = vunpack.c.l.b16 %v4494
        %v4527 = vunpack.c.l.b16 %v4495
        %v4528 = vunpack.c.l.b16 %v4496
        %v4529 = vunpack.c.l.b16 %v4497
        %v4530 = vunpack.c.l.b16 %v4498
        %v4531 = vunpack.c.l.b16 %v4499
        %v4532 = vunpack.c.l.b16 %v4500
        %v4533 = vunpack.c.l.b16 %v4501
        %v4534 = vunpack.c.l.b16 %v4502
        %v4535 = vunpack.c.l.b16 %v4503
        %v4536 = vunpack.c.l.b16 %v4504
        %v4537 = vpack.c.b16 %v4522, %v4521
        %v4538 = vpack.c.b16 %v4524, %v4523
        %v4539 = vpack.c.b16 %v4526, %v4525
        %v4540 = vpack.c.b16 %v4528, %v4527
        %v4541 = vpack.c.b16 %v4530, %v4529
        %v4542 = vpack.c.b16 %v4532, %v4531
        %v4543 = vpack.c.b16 %v4534, %v4533
        %v4544 = vpack.c.b16 %v4536, %v4535
        %4553 = vmatpush.bf16.msra.mxu0 %v4544
        %4554 = vmatpush.bf16.msra.mxu0 %v4543
        %4555 = vmatpush.bf16.msra.mxu0 %v4542
        %4556 = vmatpush.bf16.msra.mxu0 %v4541
        %4557 = vmatpush.bf16.msra.mxu0 %v4540
        %4558 = vmatpush.bf16.msra.mxu0 %v4539
        %4559 = vmatpush.bf16.msra.mxu0 %v4538
        %4560 = vmatpush.bf16.msra.mxu0 %v4537
        %4561 = vmatmul.bf16.gmra.mxu0 %v4467
        %v4562 = vpop.f32.mrf.mxu0
        %v4563 = vadd.f32 0.0, %v4562
        %v4564 = vpop.f32.mrf.mxu0
        %v4565 = vadd.f32 0.0, %v4564
        %4566 = vmatmul.bf16.gmra.mxu0 %v4468
        %v4567 = vpop.f32.mrf.mxu0
        %v4568 = vadd.f32 0.0, %v4567
        %v4569 = vpop.f32.mrf.mxu0
        %v4570 = vadd.f32 0.0, %v4569
        %4571 = vmatmul.bf16.gmra.mxu0 %v4469
        %v4572 = vpop.f32.mrf.mxu0
        %v4573 = vadd.f32 0.0, %v4572
        %v4574 = vpop.f32.mrf.mxu0
        %v4575 = vadd.f32 0.0, %v4574
        %4576 = vmatmul.bf16.gmra.mxu0 %v4470
        %v4577 = vpop.f32.mrf.mxu0
        %v4578 = vadd.f32 0.0, %v4577
        %v4579 = vpop.f32.mrf.mxu0
        %v4580 = vadd.f32 0.0, %v4579
        %4581 = vmatmul.bf16.gmra.mxu0 %v4471
        %v4582 = vpop.f32.mrf.mxu0
        %v4583 = vadd.f32 0.0, %v4582
        %v4584 = vpop.f32.mrf.mxu0
        %v4585 = vadd.f32 0.0, %v4584
        %4586 = vmatmul.bf16.gmra.mxu0 %v4472
        %v4587 = vpop.f32.mrf.mxu0
        %v4588 = vadd.f32 0.0, %v4587
        %v4589 = vpop.f32.mrf.mxu0
        %v4590 = vadd.f32 0.0, %v4589
        %4591 = vmatmul.bf16.gmra.mxu0 %v4473
        %v4592 = vpop.f32.mrf.mxu0
        %v4593 = vadd.f32 0.0, %v4592
        %v4594 = vpop.f32.mrf.mxu0
        %v4595 = vadd.f32 0.0, %v4594
        %4596 = vmatmul.bf16.gmra.mxu0 %v4474
        %v4597 = vpop.f32.mrf.mxu0
        %v4598 = vadd.f32 0.0, %v4597
        %v4599 = vpop.f32.mrf.mxu0
        %v4600 = vadd.f32 0.0, %v4599
        %4601 = vmatmul.bf16.gmra.mxu0 %v4475
        %v4602 = vpop.f32.mrf.mxu0
        %v4603 = vadd.f32 0.0, %v4602
        %v4604 = vpop.f32.mrf.mxu0
        %v4605 = vadd.f32 0.0, %v4604
        %4606 = vmatmul.bf16.gmra.mxu0 %v4476
        %v4607 = vpop.f32.mrf.mxu0
        %v4608 = vadd.f32 0.0, %v4607
        %v4609 = vpop.f32.mrf.mxu0
        %v4610 = vadd.f32 0.0, %v4609
        %4611 = vmatmul.bf16.gmra.mxu0 %v4477
        %v4612 = vpop.f32.mrf.mxu0
        %v4613 = vadd.f32 0.0, %v4612
        %v4614 = vpop.f32.mrf.mxu0
        %v4615 = vadd.f32 0.0, %v4614
        %4616 = vmatmul.bf16.gmra.mxu0 %v4478
        %v4617 = vpop.f32.mrf.mxu0
        %v4618 = vadd.f32 0.0, %v4617
        %v4619 = vpop.f32.mrf.mxu0
        %v4620 = vadd.f32 0.0, %v4619
        %4621 = vmatmul.bf16.gmra.mxu0 %v4479
        %v4622 = vpop.f32.mrf.mxu0
        %v4623 = vadd.f32 0.0, %v4622
        %v4624 = vpop.f32.mrf.mxu0
        %v4625 = vadd.f32 0.0, %v4624
        %4626 = vmatmul.bf16.gmra.mxu0 %v4480
        %v4627 = vpop.f32.mrf.mxu0
        %v4628 = vadd.f32 0.0, %v4627
        %v4629 = vpop.f32.mrf.mxu0
        %v4630 = vadd.f32 0.0, %v4629
        %4631 = vmatmul.bf16.gmra.mxu0 %v4481
        %v4632 = vpop.f32.mrf.mxu0
        %v4633 = vadd.f32 0.0, %v4632
        %v4634 = vpop.f32.mrf.mxu0
        %v4635 = vadd.f32 0.0, %v4634
        %4636 = vmatmul.bf16.gmra.mxu0 %v4482
        %v4637 = vpop.f32.mrf.mxu0
        %v4638 = vadd.f32 0.0, %v4637
        %v4639 = vpop.f32.mrf.mxu0
        %v4640 = vadd.f32 0.0, %v4639
        %4641 = vmatmul.bf16.gmra.mxu0 %v4483
        %v4642 = vpop.f32.mrf.mxu0
        %v4643 = vadd.f32 0.0, %v4642
        %v4644 = vpop.f32.mrf.mxu0
        %v4645 = vadd.f32 0.0, %v4644
        %4646 = vmatmul.bf16.gmra.mxu0 %v4484
        %v4647 = vpop.f32.mrf.mxu0
        %v4648 = vadd.f32 0.0, %v4647
        %v4649 = vpop.f32.mrf.mxu0
        %v4650 = vadd.f32 0.0, %v4649
        %4651 = vmatmul.bf16.gmra.mxu0 %v4485
        %v4652 = vpop.f32.mrf.mxu0
        %v4653 = vadd.f32 0.0, %v4652
        %v4654 = vpop.f32.mrf.mxu0
        %v4655 = vadd.f32 0.0, %v4654
        %4656 = vmatmul.bf16.gmra.mxu0 %v4486
        %v4657 = vpop.f32.mrf.mxu0
        %v4658 = vadd.f32 0.0, %v4657
        %v4659 = vpop.f32.mrf.mxu0
        %v4660 = vadd.f32 0.0, %v4659
        %4661 = vmatmul.bf16.gmra.mxu0 %v4487
        %v4662 = vpop.f32.mrf.mxu0
        %v4663 = vadd.f32 0.0, %v4662
        %v4664 = vpop.f32.mrf.mxu0
        %4665 = vdwg.mxu0
        %v4666 = vadd.f32 %v4385, %v4563
        %v4667 = vadd.f32 %v4386, %v4565
        %v4668 = vadd.f32 %v4387, %v4568
        %v4669 = vadd.f32 %v4388, %v4570
        %v4670 = vadd.f32 %v4389, %v4573
        %v4671 = vadd.f32 %v4390, %v4575
        %v4672 = vadd.f32 %v4391, %v4578
        %v4673 = vadd.f32 %v4392, %v4580
        %v4674 = vadd.f32 %v4393, %v4583
        %v4675 = vadd.f32 %v4394, %v4585
        %v4676 = vadd.f32 %v4395, %v4588
        %v4677 = vadd.f32 %v4396, %v4590
        %v4678 = vadd.f32 %v4397, %v4593
        %v4679 = vadd.f32 %v4398, %v4595
        %v4680 = vadd.f32 %v4399, %v4598
        %v4681 = vadd.f32 %v4400, %v4600
        %v4682 = vadd.f32 %v4401, %v4603
        %v4683 = vadd.f32 %v4402, %v4605
        %v4684 = vadd.f32 %v4403, %v4608
        %v4685 = vadd.f32 %v4404, %v4610
        %v4686 = vadd.f32 %v4405, %v4613
        %v4687 = vadd.f32 %v4406, %v4615
        %v4688 = vadd.f32 %v4407, %v4618
        %v4689 = vadd.f32 %v4408, %v4620
        %v4690 = vadd.f32 %v4409, %v4623
        %v4691 = vadd.f32 %v4410, %v4625
        %v4692 = vadd.f32 %v4411, %v4628
        %v4693 = vadd.f32 %v4412, %v4630
        %v4694 = vadd.f32 %v4413, %v4633
        %v4695 = vadd.f32 %v4414, %v4635
        %v4696 = vadd.f32 %v4415, %v4638
        %v4697 = vadd.f32 %v4416, %v4640
        %v4698 = vadd.f32 %v4417, %v4643
        %v4699 = vadd.f32 %v4418, %v4645
        %v4700 = vadd.f32 %v4419, %v4648
        %v4701 = vadd.f32 %v4420, %v4650
        %v4702 = vadd.f32 %v4421, %v4653
        %v4703 = vadd.f32 %v4422, %v4655
        %v4704 = vadd.f32 %v4423, %v4658
        %v4705 = vadd.f32 %v4424, %v4660
        %v4706 = vadd.f32 %v4425, %v4663
        %v4707 = vld [vmem:[#allocation2 + $0x29] sm:$0xff]
        %v4708 = vld [vmem:[#allocation2 + $0x31] sm:$0xff]
        %v4709 = vld [vmem:[#allocation2 + $0x39] sm:$0xff]
        %v4710 = vld [vmem:[#allocation2 + $0x41] sm:$0xff]
        %v4711 = vld [vmem:[#allocation2 + $0x49] sm:$0xff]
        %v4712 = vld [vmem:[#allocation2 + $0x51] sm:$0xff]
        %v4713 = vld [vmem:[#allocation2 + $0x59] sm:$0xff]
        %v4714 = vld [vmem:[#allocation2 + $0x61] sm:$0xff]
        %v4715 = vld [vmem:[#allocation2 + $0x69] sm:$0xff]
        %v4716 = vld [vmem:[#allocation2 + $0x71] sm:$0xff]
        %v4717 = vld [vmem:[#allocation2 + $0x79] sm:$0xff]
        %v4718 = vld [vmem:[#allocation2 + $0x81] sm:$0xff]
        %v4719 = vld [vmem:[#allocation2 + $0x89] sm:$0xff]
        %v4720 = vld [vmem:[#allocation2 + $0x91] sm:$0xff]
        %v4721 = vld [vmem:[#allocation2 + $0x99] sm:$0xff]
        %v4722 = vld [vmem:[#allocation2 + $0xa1] sm:$0xff]
        %v4723 = vld [vmem:[#allocation2 + $0xa9] sm:$0xff]
        %v4724 = vld [vmem:[#allocation2 + $0xb1] sm:$0xff]
        %v4725 = vld [vmem:[#allocation2 + $0xb9] sm:$0xff]
        %v4726 = vld [vmem:[#allocation2 + $0xc1] sm:$0xff]
        %v4727 = vld [vmem:[#allocation2 + $0xc9] sm:$0xff]
        %v4728 = vld [vmem:[#allocation2 + $0xd1] sm:$0xff]
        %v4729 = vld [vmem:[#allocation2 + $0xd9] sm:$0xff]
        %v4730 = vld [vmem:[#allocation2 + $0xe1] sm:$0xff]
        %v4731 = vld [vmem:[#allocation2 + $0xe9] sm:$0xff]
        %v4732 = vld [vmem:[#allocation2 + $0xf1] sm:$0xff]
        %v4733 = vld [vmem:[#allocation2 + $0xf9] sm:$0xff]
        %v4734 = vld [vmem:[#allocation2 + $0x101] sm:$0xff]
        %v4735 = vld [vmem:[#allocation2 + $0x109] sm:$0xff]
        %v4736 = vld [vmem:[#allocation2 + $0x111] sm:$0xff]
        %v4737 = vld [vmem:[#allocation2 + $0x119] sm:$0xff]
        %v4738 = vld [vmem:[#allocation2 + $0x121] sm:$0xff]
        %v4739 = vld [vmem:[#allocation2 + $0x129] sm:$0xff]
        %v4740 = vld [vmem:[#allocation2 + $0x131] sm:$0xff]
        %v4741 = vld [vmem:[#allocation2 + $0x139] sm:$0xff]
        %v4742 = vld [vmem:[#allocation2 + $0x141] sm:$0xff]
        %v4743 = vld [vmem:[#allocation2 + $0x149] sm:$0xff]
        %v4744 = vld [vmem:[#allocation2 + $0x151] sm:$0xff]
        %v4745 = vld [vmem:[#allocation2 + $0x159] sm:$0xff]
        %v4746 = vld [vmem:[#allocation2 + $0x161] sm:$0xff]
        %v4747 = vld [vmem:[#allocation2 + $0x169] sm:$0xf]
        %v4748 = vpack.c.bf16 %v4708, %v4707
        %v4749 = vpack.c.bf16 %v4710, %v4709
        %v4750 = vpack.c.bf16 %v4712, %v4711
        %v4751 = vpack.c.bf16 %v4714, %v4713
        %v4752 = vpack.c.bf16 %v4716, %v4715
        %v4753 = vpack.c.bf16 %v4718, %v4717
        %v4754 = vpack.c.bf16 %v4720, %v4719
        %v4755 = vpack.c.bf16 %v4722, %v4721
        %v4756 = vpack.c.bf16 %v4724, %v4723
        %v4757 = vpack.c.bf16 %v4726, %v4725
        %v4758 = vpack.c.bf16 %v4728, %v4727
        %v4759 = vpack.c.bf16 %v4730, %v4729
        %v4760 = vpack.c.bf16 %v4732, %v4731
        %v4761 = vpack.c.bf16 %v4734, %v4733
        %v4762 = vpack.c.bf16 %v4736, %v4735
        %v4763 = vpack.c.bf16 %v4738, %v4737
        %v4764 = vpack.c.bf16 %v4740, %v4739
        %v4765 = vpack.c.bf16 %v4742, %v4741
        %v4766 = vpack.c.bf16 %v4744, %v4743
        %v4767 = vpack.c.bf16 %v4746, %v4745
        %v4768 = vpack.c.bf16 %v4747, %v4747
        %s4769 = scalar_lea.vmem %s4, 384
        %v4770 = vld [vmem:[%s4769] sm:$0xf]
        %v4771 = vld [vmem:[%s4769 + $0x4] sm:$0xf]
        %v4772 = vld [vmem:[%s4769 + $0x8] sm:$0xf]
        %v4773 = vld [vmem:[%s4769 + $0xc] sm:$0xf]
        %v4774 = vld [vmem:[%s4769 + $0x10] sm:$0xf]
        %v4775 = vld [vmem:[%s4769 + $0x14] sm:$0xf]
        %v4776 = vld [vmem:[%s4769 + $0x18] sm:$0xf]
        %v4777 = vld [vmem:[%s4769 + $0x1c] sm:$0xf]
        %v4778 = vld [vmem:[%s4769 + $0x20] sm:$0xf]
        %v4779 = vld [vmem:[%s4769 + $0x24] sm:$0xf]
        %v4780 = vld [vmem:[%s4769 + $0x28] sm:$0xf]
        %v4781 = vld [vmem:[%s4769 + $0x2c] sm:$0xf]
        %v4782 = vld [vmem:[%s4769 + $0x30] sm:$0xf]
        %v4783 = vld [vmem:[%s4769 + $0x34] sm:$0xf]
        %v4784 = vld [vmem:[%s4769 + $0x38] sm:$0xf]
        %v4785 = vld [vmem:[%s4769 + $0x3c] sm:$0xf]
        %v4802 = vunpack.c.l.b16 %v4770
        %v4803 = vunpack.c.l.b16 %v4771
        %v4804 = vunpack.c.l.b16 %v4772
        %v4805 = vunpack.c.l.b16 %v4773
        %v4806 = vunpack.c.l.b16 %v4774
        %v4807 = vunpack.c.l.b16 %v4775
        %v4808 = vunpack.c.l.b16 %v4776
        %v4809 = vunpack.c.l.b16 %v4777
        %v4810 = vunpack.c.l.b16 %v4778
        %v4811 = vunpack.c.l.b16 %v4779
        %v4812 = vunpack.c.l.b16 %v4780
        %v4813 = vunpack.c.l.b16 %v4781
        %v4814 = vunpack.c.l.b16 %v4782
        %v4815 = vunpack.c.l.b16 %v4783
        %v4816 = vunpack.c.l.b16 %v4784
        %v4817 = vunpack.c.l.b16 %v4785
        %v4818 = vpack.c.b16 %v4803, %v4802
        %v4819 = vpack.c.b16 %v4805, %v4804
        %v4820 = vpack.c.b16 %v4807, %v4806
        %v4821 = vpack.c.b16 %v4809, %v4808
        %v4822 = vpack.c.b16 %v4811, %v4810
        %v4823 = vpack.c.b16 %v4813, %v4812
        %v4824 = vpack.c.b16 %v4815, %v4814
        %v4825 = vpack.c.b16 %v4817, %v4816
        %4834 = vmatpush.bf16.msra.mxu0 %v4825
        %4835 = vmatpush.bf16.msra.mxu0 %v4824
        %4836 = vmatpush.bf16.msra.mxu0 %v4823
        %4837 = vmatpush.bf16.msra.mxu0 %v4822
        %4838 = vmatpush.bf16.msra.mxu0 %v4821
        %4839 = vmatpush.bf16.msra.mxu0 %v4820
        %4840 = vmatpush.bf16.msra.mxu0 %v4819
        %4841 = vmatpush.bf16.msra.mxu0 %v4818
        %4842 = vmatmul.bf16.gmra.mxu0 %v4748
        %v4843 = vpop.f32.mrf.mxu0
        %v4844 = vadd.f32 0.0, %v4843
        %v4845 = vpop.f32.mrf.mxu0
        %v4846 = vadd.f32 0.0, %v4845
        %4847 = vmatmul.bf16.gmra.mxu0 %v4749
        %v4848 = vpop.f32.mrf.mxu0
        %v4849 = vadd.f32 0.0, %v4848
        %v4850 = vpop.f32.mrf.mxu0
        %v4851 = vadd.f32 0.0, %v4850
        %4852 = vmatmul.bf16.gmra.mxu0 %v4750
        %v4853 = vpop.f32.mrf.mxu0
        %v4854 = vadd.f32 0.0, %v4853
        %v4855 = vpop.f32.mrf.mxu0
        %v4856 = vadd.f32 0.0, %v4855
        %4857 = vmatmul.bf16.gmra.mxu0 %v4751
        %v4858 = vpop.f32.mrf.mxu0
        %v4859 = vadd.f32 0.0, %v4858
        %v4860 = vpop.f32.mrf.mxu0
        %v4861 = vadd.f32 0.0, %v4860
        %4862 = vmatmul.bf16.gmra.mxu0 %v4752
        %v4863 = vpop.f32.mrf.mxu0
        %v4864 = vadd.f32 0.0, %v4863
        %v4865 = vpop.f32.mrf.mxu0
        %v4866 = vadd.f32 0.0, %v4865
        %4867 = vmatmul.bf16.gmra.mxu0 %v4753
        %v4868 = vpop.f32.mrf.mxu0
        %v4869 = vadd.f32 0.0, %v4868
        %v4870 = vpop.f32.mrf.mxu0
        %v4871 = vadd.f32 0.0, %v4870
        %4872 = vmatmul.bf16.gmra.mxu0 %v4754
        %v4873 = vpop.f32.mrf.mxu0
        %v4874 = vadd.f32 0.0, %v4873
        %v4875 = vpop.f32.mrf.mxu0
        %v4876 = vadd.f32 0.0, %v4875
        %4877 = vmatmul.bf16.gmra.mxu0 %v4755
        %v4878 = vpop.f32.mrf.mxu0
        %v4879 = vadd.f32 0.0, %v4878
        %v4880 = vpop.f32.mrf.mxu0
        %v4881 = vadd.f32 0.0, %v4880
        %4882 = vmatmul.bf16.gmra.mxu0 %v4756
        %v4883 = vpop.f32.mrf.mxu0
        %v4884 = vadd.f32 0.0, %v4883
        %v4885 = vpop.f32.mrf.mxu0
        %v4886 = vadd.f32 0.0, %v4885
        %4887 = vmatmul.bf16.gmra.mxu0 %v4757
        %v4888 = vpop.f32.mrf.mxu0
        %v4889 = vadd.f32 0.0, %v4888
        %v4890 = vpop.f32.mrf.mxu0
        %v4891 = vadd.f32 0.0, %v4890
        %4892 = vmatmul.bf16.gmra.mxu0 %v4758
        %v4893 = vpop.f32.mrf.mxu0
        %v4894 = vadd.f32 0.0, %v4893
        %v4895 = vpop.f32.mrf.mxu0
        %v4896 = vadd.f32 0.0, %v4895
        %4897 = vmatmul.bf16.gmra.mxu0 %v4759
        %v4898 = vpop.f32.mrf.mxu0
        %v4899 = vadd.f32 0.0, %v4898
        %v4900 = vpop.f32.mrf.mxu0
        %v4901 = vadd.f32 0.0, %v4900
        %4902 = vmatmul.bf16.gmra.mxu0 %v4760
        %v4903 = vpop.f32.mrf.mxu0
        %v4904 = vadd.f32 0.0, %v4903
        %v4905 = vpop.f32.mrf.mxu0
        %v4906 = vadd.f32 0.0, %v4905
        %4907 = vmatmul.bf16.gmra.mxu0 %v4761
        %v4908 = vpop.f32.mrf.mxu0
        %v4909 = vadd.f32 0.0, %v4908
        %v4910 = vpop.f32.mrf.mxu0
        %v4911 = vadd.f32 0.0, %v4910
        %4912 = vmatmul.bf16.gmra.mxu0 %v4762
        %v4913 = vpop.f32.mrf.mxu0
        %v4914 = vadd.f32 0.0, %v4913
        %v4915 = vpop.f32.mrf.mxu0
        %v4916 = vadd.f32 0.0, %v4915
        %4917 = vmatmul.bf16.gmra.mxu0 %v4763
        %v4918 = vpop.f32.mrf.mxu0
        %v4919 = vadd.f32 0.0, %v4918
        %v4920 = vpop.f32.mrf.mxu0
        %v4921 = vadd.f32 0.0, %v4920
        %4922 = vmatmul.bf16.gmra.mxu0 %v4764
        %v4923 = vpop.f32.mrf.mxu0
        %v4924 = vadd.f32 0.0, %v4923
        %v4925 = vpop.f32.mrf.mxu0
        %v4926 = vadd.f32 0.0, %v4925
        %4927 = vmatmul.bf16.gmra.mxu0 %v4765
        %v4928 = vpop.f32.mrf.mxu0
        %v4929 = vadd.f32 0.0, %v4928
        %v4930 = vpop.f32.mrf.mxu0
        %v4931 = vadd.f32 0.0, %v4930
        %4932 = vmatmul.bf16.gmra.mxu0 %v4766
        %v4933 = vpop.f32.mrf.mxu0
        %v4934 = vadd.f32 0.0, %v4933
        %v4935 = vpop.f32.mrf.mxu0
        %v4936 = vadd.f32 0.0, %v4935
        %4937 = vmatmul.bf16.gmra.mxu0 %v4767
        %v4938 = vpop.f32.mrf.mxu0
        %v4939 = vadd.f32 0.0, %v4938
        %v4940 = vpop.f32.mrf.mxu0
        %v4941 = vadd.f32 0.0, %v4940
        %4942 = vmatmul.bf16.gmra.mxu0 %v4768
        %v4943 = vpop.f32.mrf.mxu0
        %v4944 = vadd.f32 0.0, %v4943
        %v4945 = vpop.f32.mrf.mxu0
        %4946 = vdwg.mxu0
        %v4947 = vadd.f32 %v4666, %v4844
        %v4948 = vadd.f32 %v4667, %v4846
        %v4949 = vadd.f32 %v4668, %v4849
        %v4950 = vadd.f32 %v4669, %v4851
        %v4951 = vadd.f32 %v4670, %v4854
        %v4952 = vadd.f32 %v4671, %v4856
        %v4953 = vadd.f32 %v4672, %v4859
        %v4954 = vadd.f32 %v4673, %v4861
        %v4955 = vadd.f32 %v4674, %v4864
        %v4956 = vadd.f32 %v4675, %v4866
        %v4957 = vadd.f32 %v4676, %v4869
        %v4958 = vadd.f32 %v4677, %v4871
        %v4959 = vadd.f32 %v4678, %v4874
        %v4960 = vadd.f32 %v4679, %v4876
        %v4961 = vadd.f32 %v4680, %v4879
        %v4962 = vadd.f32 %v4681, %v4881
        %v4963 = vadd.f32 %v4682, %v4884
        %v4964 = vadd.f32 %v4683, %v4886
        %v4965 = vadd.f32 %v4684, %v4889
        %v4966 = vadd.f32 %v4685, %v4891
        %v4967 = vadd.f32 %v4686, %v4894
        %v4968 = vadd.f32 %v4687, %v4896
        %v4969 = vadd.f32 %v4688, %v4899
        %v4970 = vadd.f32 %v4689, %v4901
        %v4971 = vadd.f32 %v4690, %v4904
        %v4972 = vadd.f32 %v4691, %v4906
        %v4973 = vadd.f32 %v4692, %v4909
        %v4974 = vadd.f32 %v4693, %v4911
        %v4975 = vadd.f32 %v4694, %v4914
        %v4976 = vadd.f32 %v4695, %v4916
        %v4977 = vadd.f32 %v4696, %v4919
        %v4978 = vadd.f32 %v4697, %v4921
        %v4979 = vadd.f32 %v4698, %v4924
        %v4980 = vadd.f32 %v4699, %v4926
        %v4981 = vadd.f32 %v4700, %v4929
        %v4982 = vadd.f32 %v4701, %v4931
        %v4983 = vadd.f32 %v4702, %v4934
        %v4984 = vadd.f32 %v4703, %v4936
        %v4985 = vadd.f32 %v4704, %v4939
        %v4986 = vadd.f32 %v4705, %v4941
        %v4987 = vadd.f32 %v4706, %v4944
        %v4988 = vld [vmem:[#allocation2 + $0x2a] sm:$0xff]
        %v4989 = vld [vmem:[#allocation2 + $0x32] sm:$0xff]
        %v4990 = vld [vmem:[#allocation2 + $0x3a] sm:$0xff]
        %v4991 = vld [vmem:[#allocation2 + $0x42] sm:$0xff]
        %v4992 = vld [vmem:[#allocation2 + $0x4a] sm:$0xff]
        %v4993 = vld [vmem:[#allocation2 + $0x52] sm:$0xff]
        %v4994 = vld [vmem:[#allocation2 + $0x5a] sm:$0xff]
        %v4995 = vld [vmem:[#allocation2 + $0x62] sm:$0xff]
        %v4996 = vld [vmem:[#allocation2 + $0x6a] sm:$0xff]
        %v4997 = vld [vmem:[#allocation2 + $0x72] sm:$0xff]
        %v4998 = vld [vmem:[#allocation2 + $0x7a] sm:$0xff]
        %v4999 = vld [vmem:[#allocation2 + $0x82] sm:$0xff]
        %v5000 = vld [vmem:[#allocation2 + $0x8a] sm:$0xff]
        %v5001 = vld [vmem:[#allocation2 + $0x92] sm:$0xff]
        %v5002 = vld [vmem:[#allocation2 + $0x9a] sm:$0xff]
        %v5003 = vld [vmem:[#allocation2 + $0xa2] sm:$0xff]
        %v5004 = vld [vmem:[#allocation2 + $0xaa] sm:$0xff]
        %v5005 = vld [vmem:[#allocation2 + $0xb2] sm:$0xff]
        %v5006 = vld [vmem:[#allocation2 + $0xba] sm:$0xff]
        %v5007 = vld [vmem:[#allocation2 + $0xc2] sm:$0xff]
        %v5008 = vld [vmem:[#allocation2 + $0xca] sm:$0xff]
        %v5009 = vld [vmem:[#allocation2 + $0xd2] sm:$0xff]
        %v5010 = vld [vmem:[#allocation2 + $0xda] sm:$0xff]
        %v5011 = vld [vmem:[#allocation2 + $0xe2] sm:$0xff]
        %v5012 = vld [vmem:[#allocation2 + $0xea] sm:$0xff]
        %v5013 = vld [vmem:[#allocation2 + $0xf2] sm:$0xff]
        %v5014 = vld [vmem:[#allocation2 + $0xfa] sm:$0xff]
        %v5015 = vld [vmem:[#allocation2 + $0x102] sm:$0xff]
        %v5016 = vld [vmem:[#allocation2 + $0x10a] sm:$0xff]
        %v5017 = vld [vmem:[#allocation2 + $0x112] sm:$0xff]
        %v5018 = vld [vmem:[#allocation2 + $0x11a] sm:$0xff]
        %v5019 = vld [vmem:[#allocation2 + $0x122] sm:$0xff]
        %v5020 = vld [vmem:[#allocation2 + $0x12a] sm:$0xff]
        %v5021 = vld [vmem:[#allocation2 + $0x132] sm:$0xff]
        %v5022 = vld [vmem:[#allocation2 + $0x13a] sm:$0xff]
        %v5023 = vld [vmem:[#allocation2 + $0x142] sm:$0xff]
        %v5024 = vld [vmem:[#allocation2 + $0x14a] sm:$0xff]
        %v5025 = vld [vmem:[#allocation2 + $0x152] sm:$0xff]
        %v5026 = vld [vmem:[#allocation2 + $0x15a] sm:$0xff]
        %v5027 = vld [vmem:[#allocation2 + $0x162] sm:$0xff]
        %v5028 = vld [vmem:[#allocation2 + $0x16a] sm:$0xf]
        %v5029 = vpack.c.bf16 %v4989, %v4988
        %v5030 = vpack.c.bf16 %v4991, %v4990
        %v5031 = vpack.c.bf16 %v4993, %v4992
        %v5032 = vpack.c.bf16 %v4995, %v4994
        %v5033 = vpack.c.bf16 %v4997, %v4996
        %v5034 = vpack.c.bf16 %v4999, %v4998
        %v5035 = vpack.c.bf16 %v5001, %v5000
        %v5036 = vpack.c.bf16 %v5003, %v5002
        %v5037 = vpack.c.bf16 %v5005, %v5004
        %v5038 = vpack.c.bf16 %v5007, %v5006
        %v5039 = vpack.c.bf16 %v5009, %v5008
        %v5040 = vpack.c.bf16 %v5011, %v5010
        %v5041 = vpack.c.bf16 %v5013, %v5012
        %v5042 = vpack.c.bf16 %v5015, %v5014
        %v5043 = vpack.c.bf16 %v5017, %v5016
        %v5044 = vpack.c.bf16 %v5019, %v5018
        %v5045 = vpack.c.bf16 %v5021, %v5020
        %v5046 = vpack.c.bf16 %v5023, %v5022
        %v5047 = vpack.c.bf16 %v5025, %v5024
        %v5048 = vpack.c.bf16 %v5027, %v5026
        %v5049 = vpack.c.bf16 %v5028, %v5028
        %s5050 = scalar_lea.vmem %s4, 448
        %v5051 = vld [vmem:[%s5050] sm:$0xf]
        %v5052 = vld [vmem:[%s5050 + $0x4] sm:$0xf]
        %v5053 = vld [vmem:[%s5050 + $0x8] sm:$0xf]
        %v5054 = vld [vmem:[%s5050 + $0xc] sm:$0xf]
        %v5055 = vld [vmem:[%s5050 + $0x10] sm:$0xf]
        %v5056 = vld [vmem:[%s5050 + $0x14] sm:$0xf]
        %v5057 = vld [vmem:[%s5050 + $0x18] sm:$0xf]
        %v5058 = vld [vmem:[%s5050 + $0x1c] sm:$0xf]
        %v5059 = vld [vmem:[%s5050 + $0x20] sm:$0xf]
        %v5060 = vld [vmem:[%s5050 + $0x24] sm:$0xf]
        %v5061 = vld [vmem:[%s5050 + $0x28] sm:$0xf]
        %v5062 = vld [vmem:[%s5050 + $0x2c] sm:$0xf]
        %v5063 = vld [vmem:[%s5050 + $0x30] sm:$0xf]
        %v5064 = vld [vmem:[%s5050 + $0x34] sm:$0xf]
        %v5065 = vld [vmem:[%s5050 + $0x38] sm:$0xf]
        %v5066 = vld [vmem:[%s5050 + $0x3c] sm:$0xf]
        %v5083 = vunpack.c.l.b16 %v5051
        %v5084 = vunpack.c.l.b16 %v5052
        %v5085 = vunpack.c.l.b16 %v5053
        %v5086 = vunpack.c.l.b16 %v5054
        %v5087 = vunpack.c.l.b16 %v5055
        %v5088 = vunpack.c.l.b16 %v5056
        %v5089 = vunpack.c.l.b16 %v5057
        %v5090 = vunpack.c.l.b16 %v5058
        %v5091 = vunpack.c.l.b16 %v5059
        %v5092 = vunpack.c.l.b16 %v5060
        %v5093 = vunpack.c.l.b16 %v5061
        %v5094 = vunpack.c.l.b16 %v5062
        %v5095 = vunpack.c.l.b16 %v5063
        %v5096 = vunpack.c.l.b16 %v5064
        %v5097 = vunpack.c.l.b16 %v5065
        %v5098 = vunpack.c.l.b16 %v5066
        %v5099 = vpack.c.b16 %v5084, %v5083
        %v5100 = vpack.c.b16 %v5086, %v5085
        %v5101 = vpack.c.b16 %v5088, %v5087
        %v5102 = vpack.c.b16 %v5090, %v5089
        %v5103 = vpack.c.b16 %v5092, %v5091
        %v5104 = vpack.c.b16 %v5094, %v5093
        %v5105 = vpack.c.b16 %v5096, %v5095
        %v5106 = vpack.c.b16 %v5098, %v5097
        %5115 = vmatpush.bf16.msra.mxu0 %v5106
        %5116 = vmatpush.bf16.msra.mxu0 %v5105
        %5117 = vmatpush.bf16.msra.mxu0 %v5104
        %5118 = vmatpush.bf16.msra.mxu0 %v5103
        %5119 = vmatpush.bf16.msra.mxu0 %v5102
        %5120 = vmatpush.bf16.msra.mxu0 %v5101
        %5121 = vmatpush.bf16.msra.mxu0 %v5100
        %5122 = vmatpush.bf16.msra.mxu0 %v5099
        %5123 = vmatmul.bf16.gmra.mxu0 %v5029
        %v5124 = vpop.f32.mrf.mxu0
        %v5125 = vadd.f32 0.0, %v5124
        %v5126 = vpop.f32.mrf.mxu0
        %v5127 = vadd.f32 0.0, %v5126
        %5128 = vmatmul.bf16.gmra.mxu0 %v5030
        %v5129 = vpop.f32.mrf.mxu0
        %v5130 = vadd.f32 0.0, %v5129
        %v5131 = vpop.f32.mrf.mxu0
        %v5132 = vadd.f32 0.0, %v5131
        %5133 = vmatmul.bf16.gmra.mxu0 %v5031
        %v5134 = vpop.f32.mrf.mxu0
        %v5135 = vadd.f32 0.0, %v5134
        %v5136 = vpop.f32.mrf.mxu0
        %v5137 = vadd.f32 0.0, %v5136
        %5138 = vmatmul.bf16.gmra.mxu0 %v5032
        %v5139 = vpop.f32.mrf.mxu0
        %v5140 = vadd.f32 0.0, %v5139
        %v5141 = vpop.f32.mrf.mxu0
        %v5142 = vadd.f32 0.0, %v5141
        %5143 = vmatmul.bf16.gmra.mxu0 %v5033
        %v5144 = vpop.f32.mrf.mxu0
        %v5145 = vadd.f32 0.0, %v5144
        %v5146 = vpop.f32.mrf.mxu0
        %v5147 = vadd.f32 0.0, %v5146
        %5148 = vmatmul.bf16.gmra.mxu0 %v5034
        %v5149 = vpop.f32.mrf.mxu0
        %v5150 = vadd.f32 0.0, %v5149
        %v5151 = vpop.f32.mrf.mxu0
        %v5152 = vadd.f32 0.0, %v5151
        %5153 = vmatmul.bf16.gmra.mxu0 %v5035
        %v5154 = vpop.f32.mrf.mxu0
        %v5155 = vadd.f32 0.0, %v5154
        %v5156 = vpop.f32.mrf.mxu0
        %v5157 = vadd.f32 0.0, %v5156
        %5158 = vmatmul.bf16.gmra.mxu0 %v5036
        %v5159 = vpop.f32.mrf.mxu0
        %v5160 = vadd.f32 0.0, %v5159
        %v5161 = vpop.f32.mrf.mxu0
        %v5162 = vadd.f32 0.0, %v5161
        %5163 = vmatmul.bf16.gmra.mxu0 %v5037
        %v5164 = vpop.f32.mrf.mxu0
        %v5165 = vadd.f32 0.0, %v5164
        %v5166 = vpop.f32.mrf.mxu0
        %v5167 = vadd.f32 0.0, %v5166
        %5168 = vmatmul.bf16.gmra.mxu0 %v5038
        %v5169 = vpop.f32.mrf.mxu0
        %v5170 = vadd.f32 0.0, %v5169
        %v5171 = vpop.f32.mrf.mxu0
        %v5172 = vadd.f32 0.0, %v5171
        %5173 = vmatmul.bf16.gmra.mxu0 %v5039
        %v5174 = vpop.f32.mrf.mxu0
        %v5175 = vadd.f32 0.0, %v5174
        %v5176 = vpop.f32.mrf.mxu0
        %v5177 = vadd.f32 0.0, %v5176
        %5178 = vmatmul.bf16.gmra.mxu0 %v5040
        %v5179 = vpop.f32.mrf.mxu0
        %v5180 = vadd.f32 0.0, %v5179
        %v5181 = vpop.f32.mrf.mxu0
        %v5182 = vadd.f32 0.0, %v5181
        %5183 = vmatmul.bf16.gmra.mxu0 %v5041
        %v5184 = vpop.f32.mrf.mxu0
        %v5185 = vadd.f32 0.0, %v5184
        %v5186 = vpop.f32.mrf.mxu0
        %v5187 = vadd.f32 0.0, %v5186
        %5188 = vmatmul.bf16.gmra.mxu0 %v5042
        %v5189 = vpop.f32.mrf.mxu0
        %v5190 = vadd.f32 0.0, %v5189
        %v5191 = vpop.f32.mrf.mxu0
        %v5192 = vadd.f32 0.0, %v5191
        %5193 = vmatmul.bf16.gmra.mxu0 %v5043
        %v5194 = vpop.f32.mrf.mxu0
        %v5195 = vadd.f32 0.0, %v5194
        %v5196 = vpop.f32.mrf.mxu0
        %v5197 = vadd.f32 0.0, %v5196
        %5198 = vmatmul.bf16.gmra.mxu0 %v5044
        %v5199 = vpop.f32.mrf.mxu0
        %v5200 = vadd.f32 0.0, %v5199
        %v5201 = vpop.f32.mrf.mxu0
        %v5202 = vadd.f32 0.0, %v5201
        %5203 = vmatmul.bf16.gmra.mxu0 %v5045
        %v5204 = vpop.f32.mrf.mxu0
        %v5205 = vadd.f32 0.0, %v5204
        %v5206 = vpop.f32.mrf.mxu0
        %v5207 = vadd.f32 0.0, %v5206
        %5208 = vmatmul.bf16.gmra.mxu0 %v5046
        %v5209 = vpop.f32.mrf.mxu0
        %v5210 = vadd.f32 0.0, %v5209
        %v5211 = vpop.f32.mrf.mxu0
        %v5212 = vadd.f32 0.0, %v5211
        %5213 = vmatmul.bf16.gmra.mxu0 %v5047
        %v5214 = vpop.f32.mrf.mxu0
        %v5215 = vadd.f32 0.0, %v5214
        %v5216 = vpop.f32.mrf.mxu0
        %v5217 = vadd.f32 0.0, %v5216
        %5218 = vmatmul.bf16.gmra.mxu0 %v5048
        %v5219 = vpop.f32.mrf.mxu0
        %v5220 = vadd.f32 0.0, %v5219
        %v5221 = vpop.f32.mrf.mxu0
        %v5222 = vadd.f32 0.0, %v5221
        %5223 = vmatmul.bf16.gmra.mxu0 %v5049
        %v5224 = vpop.f32.mrf.mxu0
        %v5225 = vadd.f32 0.0, %v5224
        %v5226 = vpop.f32.mrf.mxu0
        %5227 = vdwg.mxu0
        %v5228 = vadd.f32 %v4947, %v5125
        %v5229 = vadd.f32 %v4948, %v5127
        %v5230 = vadd.f32 %v4949, %v5130
        %v5231 = vadd.f32 %v4950, %v5132
        %v5232 = vadd.f32 %v4951, %v5135
        %v5233 = vadd.f32 %v4952, %v5137
        %v5234 = vadd.f32 %v4953, %v5140
        %v5235 = vadd.f32 %v4954, %v5142
        %v5236 = vadd.f32 %v4955, %v5145
        %v5237 = vadd.f32 %v4956, %v5147
        %v5238 = vadd.f32 %v4957, %v5150
        %v5239 = vadd.f32 %v4958, %v5152
        %v5240 = vadd.f32 %v4959, %v5155
        %v5241 = vadd.f32 %v4960, %v5157
        %v5242 = vadd.f32 %v4961, %v5160
        %v5243 = vadd.f32 %v4962, %v5162
        %v5244 = vadd.f32 %v4963, %v5165
        %v5245 = vadd.f32 %v4964, %v5167
        %v5246 = vadd.f32 %v4965, %v5170
        %v5247 = vadd.f32 %v4966, %v5172
        %v5248 = vadd.f32 %v4967, %v5175
        %v5249 = vadd.f32 %v4968, %v5177
        %v5250 = vadd.f32 %v4969, %v5180
        %v5251 = vadd.f32 %v4970, %v5182
        %v5252 = vadd.f32 %v4971, %v5185
        %v5253 = vadd.f32 %v4972, %v5187
        %v5254 = vadd.f32 %v4973, %v5190
        %v5255 = vadd.f32 %v4974, %v5192
        %v5256 = vadd.f32 %v4975, %v5195
        %v5257 = vadd.f32 %v4976, %v5197
        %v5258 = vadd.f32 %v4977, %v5200
        %v5259 = vadd.f32 %v4978, %v5202
        %v5260 = vadd.f32 %v4979, %v5205
        %v5261 = vadd.f32 %v4980, %v5207
        %v5262 = vadd.f32 %v4981, %v5210
        %v5263 = vadd.f32 %v4982, %v5212
        %v5264 = vadd.f32 %v4983, %v5215
        %v5265 = vadd.f32 %v4984, %v5217
        %v5266 = vadd.f32 %v4985, %v5220
        %v5267 = vadd.f32 %v4986, %v5222
        %v5268 = vadd.f32 %v4987, %v5225
        %v5269 = vld [vmem:[#allocation2 + $0x2b] sm:$0xff]
        %v5270 = vld [vmem:[#allocation2 + $0x33] sm:$0xff]
        %v5271 = vld [vmem:[#allocation2 + $0x3b] sm:$0xff]
        %v5272 = vld [vmem:[#allocation2 + $0x43] sm:$0xff]
        %v5273 = vld [vmem:[#allocation2 + $0x4b] sm:$0xff]
        %v5274 = vld [vmem:[#allocation2 + $0x53] sm:$0xff]
        %v5275 = vld [vmem:[#allocation2 + $0x5b] sm:$0xff]
        %v5276 = vld [vmem:[#allocation2 + $0x63] sm:$0xff]
        %v5277 = vld [vmem:[#allocation2 + $0x6b] sm:$0xff]
        %v5278 = vld [vmem:[#allocation2 + $0x73] sm:$0xff]
        %v5279 = vld [vmem:[#allocation2 + $0x7b] sm:$0xff]
        %v5280 = vld [vmem:[#allocation2 + $0x83] sm:$0xff]
        %v5281 = vld [vmem:[#allocation2 + $0x8b] sm:$0xff]
        %v5282 = vld [vmem:[#allocation2 + $0x93] sm:$0xff]
        %v5283 = vld [vmem:[#allocation2 + $0x9b] sm:$0xff]
        %v5284 = vld [vmem:[#allocation2 + $0xa3] sm:$0xff]
        %v5285 = vld [vmem:[#allocation2 + $0xab] sm:$0xff]
        %v5286 = vld [vmem:[#allocation2 + $0xb3] sm:$0xff]
        %v5287 = vld [vmem:[#allocation2 + $0xbb] sm:$0xff]
        %v5288 = vld [vmem:[#allocation2 + $0xc3] sm:$0xff]
        %v5289 = vld [vmem:[#allocation2 + $0xcb] sm:$0xff]
        %v5290 = vld [vmem:[#allocation2 + $0xd3] sm:$0xff]
        %v5291 = vld [vmem:[#allocation2 + $0xdb] sm:$0xff]
        %v5292 = vld [vmem:[#allocation2 + $0xe3] sm:$0xff]
        %v5293 = vld [vmem:[#allocation2 + $0xeb] sm:$0xff]
        %v5294 = vld [vmem:[#allocation2 + $0xf3] sm:$0xff]
        %v5295 = vld [vmem:[#allocation2 + $0xfb] sm:$0xff]
        %v5296 = vld [vmem:[#allocation2 + $0x103] sm:$0xff]
        %v5297 = vld [vmem:[#allocation2 + $0x10b] sm:$0xff]
        %v5298 = vld [vmem:[#allocation2 + $0x113] sm:$0xff]
        %v5299 = vld [vmem:[#allocation2 + $0x11b] sm:$0xff]
        %v5300 = vld [vmem:[#allocation2 + $0x123] sm:$0xff]
        %v5301 = vld [vmem:[#allocation2 + $0x12b] sm:$0xff]
        %v5302 = vld [vmem:[#allocation2 + $0x133] sm:$0xff]
        %v5303 = vld [vmem:[#allocation2 + $0x13b] sm:$0xff]
        %v5304 = vld [vmem:[#allocation2 + $0x143] sm:$0xff]
        %v5305 = vld [vmem:[#allocation2 + $0x14b] sm:$0xff]
        %v5306 = vld [vmem:[#allocation2 + $0x153] sm:$0xff]
        %v5307 = vld [vmem:[#allocation2 + $0x15b] sm:$0xff]
        %v5308 = vld [vmem:[#allocation2 + $0x163] sm:$0xff]
        %v5309 = vld [vmem:[#allocation2 + $0x16b] sm:$0xf]
        %v5310 = vpack.c.bf16 %v5270, %v5269
        %v5311 = vpack.c.bf16 %v5272, %v5271
        %v5312 = vpack.c.bf16 %v5274, %v5273
        %v5313 = vpack.c.bf16 %v5276, %v5275
        %v5314 = vpack.c.bf16 %v5278, %v5277
        %v5315 = vpack.c.bf16 %v5280, %v5279
        %v5316 = vpack.c.bf16 %v5282, %v5281
        %v5317 = vpack.c.bf16 %v5284, %v5283
        %v5318 = vpack.c.bf16 %v5286, %v5285
        %v5319 = vpack.c.bf16 %v5288, %v5287
        %v5320 = vpack.c.bf16 %v5290, %v5289
        %v5321 = vpack.c.bf16 %v5292, %v5291
        %v5322 = vpack.c.bf16 %v5294, %v5293
        %v5323 = vpack.c.bf16 %v5296, %v5295
        %v5324 = vpack.c.bf16 %v5298, %v5297
        %v5325 = vpack.c.bf16 %v5300, %v5299
        %v5326 = vpack.c.bf16 %v5302, %v5301
        %v5327 = vpack.c.bf16 %v5304, %v5303
        %v5328 = vpack.c.bf16 %v5306, %v5305
        %v5329 = vpack.c.bf16 %v5308, %v5307
        %v5330 = vpack.c.bf16 %v5309, %v5309
        %s5331 = scalar_lea.vmem %s4, 512
        %v5332 = vld [vmem:[%s5331] sm:$0xf]
        %v5333 = vld [vmem:[%s5331 + $0x4] sm:$0xf]
        %v5334 = vld [vmem:[%s5331 + $0x8] sm:$0xf]
        %v5335 = vld [vmem:[%s5331 + $0xc] sm:$0xf]
        %v5336 = vld [vmem:[%s5331 + $0x10] sm:$0xf]
        %v5337 = vld [vmem:[%s5331 + $0x14] sm:$0xf]
        %v5338 = vld [vmem:[%s5331 + $0x18] sm:$0xf]
        %v5339 = vld [vmem:[%s5331 + $0x1c] sm:$0xf]
        %v5340 = vld [vmem:[%s5331 + $0x20] sm:$0xf]
        %v5341 = vld [vmem:[%s5331 + $0x24] sm:$0xf]
        %v5342 = vld [vmem:[%s5331 + $0x28] sm:$0xf]
        %v5343 = vld [vmem:[%s5331 + $0x2c] sm:$0xf]
        %v5344 = vld [vmem:[%s5331 + $0x30] sm:$0xf]
        %v5345 = vld [vmem:[%s5331 + $0x34] sm:$0xf]
        %v5346 = vld [vmem:[%s5331 + $0x38] sm:$0xf]
        %v5347 = vld [vmem:[%s5331 + $0x3c] sm:$0xf]
        %v5364 = vunpack.c.l.b16 %v5332
        %v5365 = vunpack.c.l.b16 %v5333
        %v5366 = vunpack.c.l.b16 %v5334
        %v5367 = vunpack.c.l.b16 %v5335
        %v5368 = vunpack.c.l.b16 %v5336
        %v5369 = vunpack.c.l.b16 %v5337
        %v5370 = vunpack.c.l.b16 %v5338
        %v5371 = vunpack.c.l.b16 %v5339
        %v5372 = vunpack.c.l.b16 %v5340
        %v5373 = vunpack.c.l.b16 %v5341
        %v5374 = vunpack.c.l.b16 %v5342
        %v5375 = vunpack.c.l.b16 %v5343
        %v5376 = vunpack.c.l.b16 %v5344
        %v5377 = vunpack.c.l.b16 %v5345
        %v5378 = vunpack.c.l.b16 %v5346
        %v5379 = vunpack.c.l.b16 %v5347
        %v5380 = vpack.c.b16 %v5365, %v5364
        %v5381 = vpack.c.b16 %v5367, %v5366
        %v5382 = vpack.c.b16 %v5369, %v5368
        %v5383 = vpack.c.b16 %v5371, %v5370
        %v5384 = vpack.c.b16 %v5373, %v5372
        %v5385 = vpack.c.b16 %v5375, %v5374
        %v5386 = vpack.c.b16 %v5377, %v5376
        %v5387 = vpack.c.b16 %v5379, %v5378
        %5396 = vmatpush.bf16.msra.mxu0 %v5387
        %5397 = vmatpush.bf16.msra.mxu0 %v5386
        %5398 = vmatpush.bf16.msra.mxu0 %v5385
        %5399 = vmatpush.bf16.msra.mxu0 %v5384
        %5400 = vmatpush.bf16.msra.mxu0 %v5383
        %5401 = vmatpush.bf16.msra.mxu0 %v5382
        %5402 = vmatpush.bf16.msra.mxu0 %v5381
        %5403 = vmatpush.bf16.msra.mxu0 %v5380
        %5404 = vmatmul.bf16.gmra.mxu0 %v5310
        %v5405 = vpop.f32.mrf.mxu0
        %v5406 = vadd.f32 0.0, %v5405
        %v5407 = vpop.f32.mrf.mxu0
        %v5408 = vadd.f32 0.0, %v5407
        %5409 = vmatmul.bf16.gmra.mxu0 %v5311
        %v5410 = vpop.f32.mrf.mxu0
        %v5411 = vadd.f32 0.0, %v5410
        %v5412 = vpop.f32.mrf.mxu0
        %v5413 = vadd.f32 0.0, %v5412
        %5414 = vmatmul.bf16.gmra.mxu0 %v5312
        %v5415 = vpop.f32.mrf.mxu0
        %v5416 = vadd.f32 0.0, %v5415
        %v5417 = vpop.f32.mrf.mxu0
        %v5418 = vadd.f32 0.0, %v5417
        %5419 = vmatmul.bf16.gmra.mxu0 %v5313
        %v5420 = vpop.f32.mrf.mxu0
        %v5421 = vadd.f32 0.0, %v5420
        %v5422 = vpop.f32.mrf.mxu0
        %v5423 = vadd.f32 0.0, %v5422
        %5424 = vmatmul.bf16.gmra.mxu0 %v5314
        %v5425 = vpop.f32.mrf.mxu0
        %v5426 = vadd.f32 0.0, %v5425
        %v5427 = vpop.f32.mrf.mxu0
        %v5428 = vadd.f32 0.0, %v5427
        %5429 = vmatmul.bf16.gmra.mxu0 %v5315
        %v5430 = vpop.f32.mrf.mxu0
        %v5431 = vadd.f32 0.0, %v5430
        %v5432 = vpop.f32.mrf.mxu0
        %v5433 = vadd.f32 0.0, %v5432
        %5434 = vmatmul.bf16.gmra.mxu0 %v5316
        %v5435 = vpop.f32.mrf.mxu0
        %v5436 = vadd.f32 0.0, %v5435
        %v5437 = vpop.f32.mrf.mxu0
        %v5438 = vadd.f32 0.0, %v5437
        %5439 = vmatmul.bf16.gmra.mxu0 %v5317
        %v5440 = vpop.f32.mrf.mxu0
        %v5441 = vadd.f32 0.0, %v5440
        %v5442 = vpop.f32.mrf.mxu0
        %v5443 = vadd.f32 0.0, %v5442
        %5444 = vmatmul.bf16.gmra.mxu0 %v5318
        %v5445 = vpop.f32.mrf.mxu0
        %v5446 = vadd.f32 0.0, %v5445
        %v5447 = vpop.f32.mrf.mxu0
        %v5448 = vadd.f32 0.0, %v5447
        %5449 = vmatmul.bf16.gmra.mxu0 %v5319
        %v5450 = vpop.f32.mrf.mxu0
        %v5451 = vadd.f32 0.0, %v5450
        %v5452 = vpop.f32.mrf.mxu0
        %v5453 = vadd.f32 0.0, %v5452
        %5454 = vmatmul.bf16.gmra.mxu0 %v5320
        %v5455 = vpop.f32.mrf.mxu0
        %v5456 = vadd.f32 0.0, %v5455
        %v5457 = vpop.f32.mrf.mxu0
        %v5458 = vadd.f32 0.0, %v5457
        %5459 = vmatmul.bf16.gmra.mxu0 %v5321
        %v5460 = vpop.f32.mrf.mxu0
        %v5461 = vadd.f32 0.0, %v5460
        %v5462 = vpop.f32.mrf.mxu0
        %v5463 = vadd.f32 0.0, %v5462
        %5464 = vmatmul.bf16.gmra.mxu0 %v5322
        %v5465 = vpop.f32.mrf.mxu0
        %v5466 = vadd.f32 0.0, %v5465
        %v5467 = vpop.f32.mrf.mxu0
        %v5468 = vadd.f32 0.0, %v5467
        %5469 = vmatmul.bf16.gmra.mxu0 %v5323
        %v5470 = vpop.f32.mrf.mxu0
        %v5471 = vadd.f32 0.0, %v5470
        %v5472 = vpop.f32.mrf.mxu0
        %v5473 = vadd.f32 0.0, %v5472
        %5474 = vmatmul.bf16.gmra.mxu0 %v5324
        %v5475 = vpop.f32.mrf.mxu0
        %v5476 = vadd.f32 0.0, %v5475
        %v5477 = vpop.f32.mrf.mxu0
        %v5478 = vadd.f32 0.0, %v5477
        %5479 = vmatmul.bf16.gmra.mxu0 %v5325
        %v5480 = vpop.f32.mrf.mxu0
        %v5481 = vadd.f32 0.0, %v5480
        %v5482 = vpop.f32.mrf.mxu0
        %v5483 = vadd.f32 0.0, %v5482
        %5484 = vmatmul.bf16.gmra.mxu0 %v5326
        %v5485 = vpop.f32.mrf.mxu0
        %v5486 = vadd.f32 0.0, %v5485
        %v5487 = vpop.f32.mrf.mxu0
        %v5488 = vadd.f32 0.0, %v5487
        %5489 = vmatmul.bf16.gmra.mxu0 %v5327
        %v5490 = vpop.f32.mrf.mxu0
        %v5491 = vadd.f32 0.0, %v5490
        %v5492 = vpop.f32.mrf.mxu0
        %v5493 = vadd.f32 0.0, %v5492
        %5494 = vmatmul.bf16.gmra.mxu0 %v5328
        %v5495 = vpop.f32.mrf.mxu0
        %v5496 = vadd.f32 0.0, %v5495
        %v5497 = vpop.f32.mrf.mxu0
        %v5498 = vadd.f32 0.0, %v5497
        %5499 = vmatmul.bf16.gmra.mxu0 %v5329
        %v5500 = vpop.f32.mrf.mxu0
        %v5501 = vadd.f32 0.0, %v5500
        %v5502 = vpop.f32.mrf.mxu0
        %v5503 = vadd.f32 0.0, %v5502
        %5504 = vmatmul.bf16.gmra.mxu0 %v5330
        %v5505 = vpop.f32.mrf.mxu0
        %v5506 = vadd.f32 0.0, %v5505
        %v5507 = vpop.f32.mrf.mxu0
        %5508 = vdwg.mxu0
        %v5509 = vadd.f32 %v5228, %v5406
        %v5510 = vadd.f32 %v5229, %v5408
        %v5511 = vadd.f32 %v5230, %v5411
        %v5512 = vadd.f32 %v5231, %v5413
        %v5513 = vadd.f32 %v5232, %v5416
        %v5514 = vadd.f32 %v5233, %v5418
        %v5515 = vadd.f32 %v5234, %v5421
        %v5516 = vadd.f32 %v5235, %v5423
        %v5517 = vadd.f32 %v5236, %v5426
        %v5518 = vadd.f32 %v5237, %v5428
        %v5519 = vadd.f32 %v5238, %v5431
        %v5520 = vadd.f32 %v5239, %v5433
        %v5521 = vadd.f32 %v5240, %v5436
        %v5522 = vadd.f32 %v5241, %v5438
        %v5523 = vadd.f32 %v5242, %v5441
        %v5524 = vadd.f32 %v5243, %v5443
        %v5525 = vadd.f32 %v5244, %v5446
        %v5526 = vadd.f32 %v5245, %v5448
        %v5527 = vadd.f32 %v5246, %v5451
        %v5528 = vadd.f32 %v5247, %v5453
        %v5529 = vadd.f32 %v5248, %v5456
        %v5530 = vadd.f32 %v5249, %v5458
        %v5531 = vadd.f32 %v5250, %v5461
        %v5532 = vadd.f32 %v5251, %v5463
        %v5533 = vadd.f32 %v5252, %v5466
        %v5534 = vadd.f32 %v5253, %v5468
        %v5535 = vadd.f32 %v5254, %v5471
        %v5536 = vadd.f32 %v5255, %v5473
        %v5537 = vadd.f32 %v5256, %v5476
        %v5538 = vadd.f32 %v5257, %v5478
        %v5539 = vadd.f32 %v5258, %v5481
        %v5540 = vadd.f32 %v5259, %v5483
        %v5541 = vadd.f32 %v5260, %v5486
        %v5542 = vadd.f32 %v5261, %v5488
        %v5543 = vadd.f32 %v5262, %v5491
        %v5544 = vadd.f32 %v5263, %v5493
        %v5545 = vadd.f32 %v5264, %v5496
        %v5546 = vadd.f32 %v5265, %v5498
        %v5547 = vadd.f32 %v5266, %v5501
        %v5548 = vadd.f32 %v5267, %v5503
        %v5549 = vadd.f32 %v5268, %v5506
        %v5550 = vld [vmem:[%s5] sm:$0x1]
        %v5552 = vperm.slane %v5550, 0
        %v5554 = vadd.f32 %v5509, %v5552
        %v5555 = vadd.f32 %v5510, %v5552
        %v5556 = vadd.f32 %v5511, %v5552
        %v5557 = vadd.f32 %v5512, %v5552
        %v5558 = vadd.f32 %v5513, %v5552
        %v5559 = vadd.f32 %v5514, %v5552
        %v5560 = vadd.f32 %v5515, %v5552
        %v5561 = vadd.f32 %v5516, %v5552
        %v5562 = vadd.f32 %v5517, %v5552
        %v5563 = vadd.f32 %v5518, %v5552
        %v5564 = vadd.f32 %v5519, %v5552
        %v5565 = vadd.f32 %v5520, %v5552
        %v5566 = vadd.f32 %v5521, %v5552
        %v5567 = vadd.f32 %v5522, %v5552
        %v5568 = vadd.f32 %v5523, %v5552
        %v5569 = vadd.f32 %v5524, %v5552
        %v5570 = vadd.f32 %v5525, %v5552
        %v5571 = vadd.f32 %v5526, %v5552
        %v5572 = vadd.f32 %v5527, %v5552
        %v5573 = vadd.f32 %v5528, %v5552
        %v5574 = vadd.f32 %v5529, %v5552
        %v5575 = vadd.f32 %v5530, %v5552
        %v5576 = vadd.f32 %v5531, %v5552
        %v5577 = vadd.f32 %v5532, %v5552
        %v5578 = vadd.f32 %v5533, %v5552
        %v5579 = vadd.f32 %v5534, %v5552
        %v5580 = vadd.f32 %v5535, %v5552
        %v5581 = vadd.f32 %v5536, %v5552
        %v5582 = vadd.f32 %v5537, %v5552
        %v5583 = vadd.f32 %v5538, %v5552
        %v5584 = vadd.f32 %v5539, %v5552
        %v5585 = vadd.f32 %v5540, %v5552
        %v5586 = vadd.f32 %v5541, %v5552
        %v5587 = vadd.f32 %v5542, %v5552
        %v5588 = vadd.f32 %v5543, %v5552
        %v5589 = vadd.f32 %v5544, %v5552
        %v5590 = vadd.f32 %v5545, %v5552
        %v5591 = vadd.f32 %v5546, %v5552
        %v5592 = vadd.f32 %v5547, %v5552
        %v5593 = vadd.f32 %v5548, %v5552
        %v5594 = vadd.f32 %v5549, %v5552
        %v5595 = vmax.f32 %v5554, 0.0
        %v5596 = vmax.f32 %v5555, 0.0
        %v5597 = vmax.f32 %v5556, 0.0
        %v5598 = vmax.f32 %v5557, 0.0
        %v5599 = vmax.f32 %v5558, 0.0
        %v5600 = vmax.f32 %v5559, 0.0
        %v5601 = vmax.f32 %v5560, 0.0
        %v5602 = vmax.f32 %v5561, 0.0
        %v5603 = vmax.f32 %v5562, 0.0
        %v5604 = vmax.f32 %v5563, 0.0
        %v5605 = vmax.f32 %v5564, 0.0
        %v5606 = vmax.f32 %v5565, 0.0
        %v5607 = vmax.f32 %v5566, 0.0
        %v5608 = vmax.f32 %v5567, 0.0
        %v5609 = vmax.f32 %v5568, 0.0
        %v5610 = vmax.f32 %v5569, 0.0
        %v5611 = vmax.f32 %v5570, 0.0
        %v5612 = vmax.f32 %v5571, 0.0
        %v5613 = vmax.f32 %v5572, 0.0
        %v5614 = vmax.f32 %v5573, 0.0
        %v5615 = vmax.f32 %v5574, 0.0
        %v5616 = vmax.f32 %v5575, 0.0
        %v5617 = vmax.f32 %v5576, 0.0
        %v5618 = vmax.f32 %v5577, 0.0
        %v5619 = vmax.f32 %v5578, 0.0
        %v5620 = vmax.f32 %v5579, 0.0
        %v5621 = vmax.f32 %v5580, 0.0
        %v5622 = vmax.f32 %v5581, 0.0
        %v5623 = vmax.f32 %v5582, 0.0
        %v5624 = vmax.f32 %v5583, 0.0
        %v5625 = vmax.f32 %v5584, 0.0
        %v5626 = vmax.f32 %v5585, 0.0
        %v5627 = vmax.f32 %v5586, 0.0
        %v5628 = vmax.f32 %v5587, 0.0
        %v5629 = vmax.f32 %v5588, 0.0
        %v5630 = vmax.f32 %v5589, 0.0
        %v5631 = vmax.f32 %v5590, 0.0
        %v5632 = vmax.f32 %v5591, 0.0
        %v5633 = vmax.f32 %v5592, 0.0
        %v5634 = vmax.f32 %v5593, 0.0
        %v5635 = vmax.f32 %v5594, 0.0
        %v5636 = vmul.f32 %v5595, %v357
        %v5637 = vmul.f32 %v5596, %v358
        %v5638 = vmul.f32 %v5597, %v359
        %v5639 = vmul.f32 %v5598, %v360
        %v5640 = vmul.f32 %v5599, %v361
        %v5641 = vmul.f32 %v5600, %v362
        %v5642 = vmul.f32 %v5601, %v363
        %v5643 = vmul.f32 %v5602, %v364
        %v5644 = vmul.f32 %v5603, %v365
        %v5645 = vmul.f32 %v5604, %v366
        %v5646 = vmul.f32 %v5605, %v367
        %v5647 = vmul.f32 %v5606, %v368
        %v5648 = vmul.f32 %v5607, %v369
        %v5649 = vmul.f32 %v5608, %v370
        %v5650 = vmul.f32 %v5609, %v371
        %v5651 = vmul.f32 %v5610, %v372
        %v5652 = vmul.f32 %v5611, %v373
        %v5653 = vmul.f32 %v5612, %v374
        %v5654 = vmul.f32 %v5613, %v375
        %v5655 = vmul.f32 %v5614, %v376
        %v5656 = vmul.f32 %v5615, %v377
        %v5657 = vmul.f32 %v5616, %v378
        %v5658 = vmul.f32 %v5617, %v379
        %v5659 = vmul.f32 %v5618, %v380
        %v5660 = vmul.f32 %v5619, %v381
        %v5661 = vmul.f32 %v5620, %v382
        %v5662 = vmul.f32 %v5621, %v383
        %v5663 = vmul.f32 %v5622, %v384
        %v5664 = vmul.f32 %v5623, %v385
        %v5665 = vmul.f32 %v5624, %v386
        %v5666 = vmul.f32 %v5625, %v387
        %v5667 = vmul.f32 %v5626, %v388
        %v5668 = vmul.f32 %v5627, %v389
        %v5669 = vmul.f32 %v5628, %v390
        %v5670 = vmul.f32 %v5629, %v391
        %v5671 = vmul.f32 %v5630, %v392
        %v5672 = vmul.f32 %v5631, %v393
        %v5673 = vmul.f32 %v5632, %v394
        %v5674 = vmul.f32 %v5633, %v395
        %v5675 = vmul.f32 %v5634, %v396
        %v5676 = vmul.f32 %v5635, %v397
        %5677 = vst [vmem:[#allocation3 + $0x18] sm:$0xff] %v5636
        %5678 = vst [vmem:[#allocation3 + $0x20] sm:$0xff] %v5637
        %5679 = vst [vmem:[#allocation3 + $0x28] sm:$0xff] %v5638
        %5680 = vst [vmem:[#allocation3 + $0x30] sm:$0xff] %v5639
        %5681 = vst [vmem:[#allocation3 + $0x38] sm:$0xff] %v5640
        %5682 = vst [vmem:[#allocation3 + $0x40] sm:$0xff] %v5641
        %5683 = vst [vmem:[#allocation3 + $0x48] sm:$0xff] %v5642
        %5684 = vst [vmem:[#allocation3 + $0x50] sm:$0xff] %v5643
        %5685 = vst [vmem:[#allocation3 + $0x58] sm:$0xff] %v5644
        %5686 = vst [vmem:[#allocation3 + $0x60] sm:$0xff] %v5645
        %5687 = vst [vmem:[#allocation3 + $0x68] sm:$0xff] %v5646
        %5688 = vst [vmem:[#allocation3 + $0x70] sm:$0xff] %v5647
        %5689 = vst [vmem:[#allocation3 + $0x78] sm:$0xff] %v5648
        %5690 = vst [vmem:[#allocation3 + $0x80] sm:$0xff] %v5649
        %5691 = vst [vmem:[#allocation3 + $0x88] sm:$0xff] %v5650
        %5692 = vst [vmem:[#allocation3 + $0x90] sm:$0xff] %v5651
        %5693 = vst [vmem:[#allocation3 + $0x98] sm:$0xff] %v5652
        %5694 = vst [vmem:[#allocation3 + $0xa0] sm:$0xff] %v5653
        %5695 = vst [vmem:[#allocation3 + $0xa8] sm:$0xff] %v5654
        %5696 = vst [vmem:[#allocation3 + $0xb0] sm:$0xff] %v5655
        %5697 = vst [vmem:[#allocation3 + $0xb8] sm:$0xff] %v5656
        %5698 = vst [vmem:[#allocation3 + $0xc0] sm:$0xff] %v5657
        %5699 = vst [vmem:[#allocation3 + $0xc8] sm:$0xff] %v5658
        %5700 = vst [vmem:[#allocation3 + $0xd0] sm:$0xff] %v5659
        %5701 = vst [vmem:[#allocation3 + $0xd8] sm:$0xff] %v5660
        %5702 = vst [vmem:[#allocation3 + $0xe0] sm:$0xff] %v5661
        %5703 = vst [vmem:[#allocation3 + $0xe8] sm:$0xff] %v5662
        %5704 = vst [vmem:[#allocation3 + $0xf0] sm:$0xff] %v5663
        %5705 = vst [vmem:[#allocation3 + $0xf8] sm:$0xff] %v5664
        %5706 = vst [vmem:[#allocation3 + $0x100] sm:$0xff] %v5665
        %5707 = vst [vmem:[#allocation3 + $0x108] sm:$0xff] %v5666
        %5708 = vst [vmem:[#allocation3 + $0x110] sm:$0xff] %v5667
        %5709 = vst [vmem:[#allocation3 + $0x118] sm:$0xff] %v5668
        %5710 = vst [vmem:[#allocation3 + $0x120] sm:$0xff] %v5669
        %5711 = vst [vmem:[#allocation3 + $0x128] sm:$0xff] %v5670
        %5712 = vst [vmem:[#allocation3 + $0x130] sm:$0xff] %v5671
        %5713 = vst [vmem:[#allocation3 + $0x138] sm:$0xff] %v5672
        %5714 = vst [vmem:[#allocation3 + $0x140] sm:$0xff] %v5673
        %5715 = vst [vmem:[#allocation3 + $0x148] sm:$0xff] %v5674
        %5716 = vst [vmem:[#allocation3 + $0x150] sm:$0xff] %v5675
        %5717 = vst [vmem:[#allocation3 + $0x158] sm:$0xf] %v5676
        %v5718 = vld [vmem:[#allocation2 + $0x18] sm:$0xff]
        %v5719 = vld [vmem:[#allocation2 + $0x20] sm:$0xff]
        %v5720 = vld [vmem:[#allocation2 + $0x28] sm:$0xff]
        %v5721 = vld [vmem:[#allocation2 + $0x30] sm:$0xff]
        %v5722 = vld [vmem:[#allocation2 + $0x38] sm:$0xff]
        %v5723 = vld [vmem:[#allocation2 + $0x40] sm:$0xff]
        %v5724 = vld [vmem:[#allocation2 + $0x48] sm:$0xff]
        %v5725 = vld [vmem:[#allocation2 + $0x50] sm:$0xff]
        %v5726 = vld [vmem:[#allocation2 + $0x58] sm:$0xff]
        %v5727 = vld [vmem:[#allocation2 + $0x60] sm:$0xff]
        %v5728 = vld [vmem:[#allocation2 + $0x68] sm:$0xff]
        %v5729 = vld [vmem:[#allocation2 + $0x70] sm:$0xff]
        %v5730 = vld [vmem:[#allocation2 + $0x78] sm:$0xff]
        %v5731 = vld [vmem:[#allocation2 + $0x80] sm:$0xff]
        %v5732 = vld [vmem:[#allocation2 + $0x88] sm:$0xff]
        %v5733 = vld [vmem:[#allocation2 + $0x90] sm:$0xff]
        %v5734 = vld [vmem:[#allocation2 + $0x98] sm:$0xff]
        %v5735 = vld [vmem:[#allocation2 + $0xa0] sm:$0xff]
        %v5736 = vld [vmem:[#allocation2 + $0xa8] sm:$0xff]
        %v5737 = vld [vmem:[#allocation2 + $0xb0] sm:$0xff]
        %v5738 = vld [vmem:[#allocation2 + $0xb8] sm:$0xff]
        %v5739 = vld [vmem:[#allocation2 + $0xc0] sm:$0xff]
        %v5740 = vld [vmem:[#allocation2 + $0xc8] sm:$0xff]
        %v5741 = vld [vmem:[#allocation2 + $0xd0] sm:$0xff]
        %v5742 = vld [vmem:[#allocation2 + $0xd8] sm:$0xff]
        %v5743 = vld [vmem:[#allocation2 + $0xe0] sm:$0xff]
        %v5744 = vld [vmem:[#allocation2 + $0xe8] sm:$0xff]
        %v5745 = vld [vmem:[#allocation2 + $0xf0] sm:$0xff]
        %v5746 = vld [vmem:[#allocation2 + $0xf8] sm:$0xff]
        %v5747 = vld [vmem:[#allocation2 + $0x100] sm:$0xff]
        %v5748 = vld [vmem:[#allocation2 + $0x108] sm:$0xff]
        %v5749 = vld [vmem:[#allocation2 + $0x110] sm:$0xff]
        %v5750 = vld [vmem:[#allocation2 + $0x118] sm:$0xff]
        %v5751 = vld [vmem:[#allocation2 + $0x120] sm:$0xff]
        %v5752 = vld [vmem:[#allocation2 + $0x128] sm:$0xff]
        %v5753 = vld [vmem:[#allocation2 + $0x130] sm:$0xff]
        %v5754 = vld [vmem:[#allocation2 + $0x138] sm:$0xff]
        %v5755 = vld [vmem:[#allocation2 + $0x140] sm:$0xff]
        %v5756 = vld [vmem:[#allocation2 + $0x148] sm:$0xff]
        %v5757 = vld [vmem:[#allocation2 + $0x150] sm:$0xff]
        %v5758 = vld [vmem:[#allocation2 + $0x158] sm:$0xf]
        %v5759 = vld [vmem:[#allocation3 + $0x5] sm:$0xff]
        %v5760 = vld [vmem:[#allocation3 + $0xd] sm:$0xff]
        %v5761 = vld [vmem:[#allocation3 + $0x15] sm:$0xff]
        %v5762 = vld [vmem:[#allocation3 + $0x1d] sm:$0xff]
        %v5763 = vld [vmem:[#allocation3 + $0x25] sm:$0xff]
        %v5764 = vld [vmem:[#allocation3 + $0x2d] sm:$0xff]
        %v5765 = vld [vmem:[#allocation3 + $0x35] sm:$0xff]
        %v5766 = vld [vmem:[#allocation3 + $0x3d] sm:$0xff]
        %v5767 = vld [vmem:[#allocation3 + $0x45] sm:$0xff]
        %v5768 = vld [vmem:[#allocation3 + $0x4d] sm:$0xff]
        %v5769 = vld [vmem:[#allocation3 + $0x55] sm:$0xff]
        %v5770 = vld [vmem:[#allocation3 + $0x5d] sm:$0xff]
        %v5771 = vld [vmem:[#allocation3 + $0x65] sm:$0xff]
        %v5772 = vld [vmem:[#allocation3 + $0x6d] sm:$0xff]
        %v5773 = vld [vmem:[#allocation3 + $0x75] sm:$0xff]
        %v5774 = vld [vmem:[#allocation3 + $0x7d] sm:$0xff]
        %v5775 = vld [vmem:[#allocation3 + $0x85] sm:$0xff]
        %v5776 = vld [vmem:[#allocation3 + $0x8d] sm:$0xff]
        %v5777 = vld [vmem:[#allocation3 + $0x95] sm:$0xff]
        %v5778 = vld [vmem:[#allocation3 + $0x9d] sm:$0xff]
        %v5779 = vld [vmem:[#allocation3 + $0xa5] sm:$0xff]
        %v5780 = vld [vmem:[#allocation3 + $0xad] sm:$0xff]
        %v5781 = vld [vmem:[#allocation3 + $0xb5] sm:$0xff]
        %v5782 = vld [vmem:[#allocation3 + $0xbd] sm:$0xff]
        %v5783 = vld [vmem:[#allocation3 + $0xc5] sm:$0xff]
        %v5784 = vld [vmem:[#allocation3 + $0xcd] sm:$0xff]
        %v5785 = vld [vmem:[#allocation3 + $0xd5] sm:$0xff]
        %v5786 = vld [vmem:[#allocation3 + $0xdd] sm:$0xff]
        %v5787 = vld [vmem:[#allocation3 + $0xe5] sm:$0xff]
        %v5788 = vld [vmem:[#allocation3 + $0xed] sm:$0xff]
        %v5789 = vld [vmem:[#allocation3 + $0xf5] sm:$0xff]
        %v5790 = vld [vmem:[#allocation3 + $0xfd] sm:$0xff]
        %v5791 = vld [vmem:[#allocation3 + $0x105] sm:$0xff]
        %v5792 = vld [vmem:[#allocation3 + $0x10d] sm:$0xff]
        %v5793 = vld [vmem:[#allocation3 + $0x115] sm:$0xff]
        %v5794 = vld [vmem:[#allocation3 + $0x11d] sm:$0xff]
        %v5795 = vld [vmem:[#allocation3 + $0x125] sm:$0xff]
        %v5796 = vld [vmem:[#allocation3 + $0x12d] sm:$0xff]
        %v5797 = vld [vmem:[#allocation3 + $0x135] sm:$0xff]
        %v5798 = vld [vmem:[#allocation3 + $0x13d] sm:$0xff]
        %v5799 = vld [vmem:[#allocation3 + $0x145] sm:$0xf]
        %v5800 = vpack.c.bf16 %v5760, %v5759
        %v5801 = vpack.c.bf16 %v5762, %v5761
        %v5802 = vpack.c.bf16 %v5764, %v5763
        %v5803 = vpack.c.bf16 %v5766, %v5765
        %v5804 = vpack.c.bf16 %v5768, %v5767
        %v5805 = vpack.c.bf16 %v5770, %v5769
        %v5806 = vpack.c.bf16 %v5772, %v5771
        %v5807 = vpack.c.bf16 %v5774, %v5773
        %v5808 = vpack.c.bf16 %v5776, %v5775
        %v5809 = vpack.c.bf16 %v5778, %v5777
        %v5810 = vpack.c.bf16 %v5780, %v5779
        %v5811 = vpack.c.bf16 %v5782, %v5781
        %v5812 = vpack.c.bf16 %v5784, %v5783
        %v5813 = vpack.c.bf16 %v5786, %v5785
        %v5814 = vpack.c.bf16 %v5788, %v5787
        %v5815 = vpack.c.bf16 %v5790, %v5789
        %v5816 = vpack.c.bf16 %v5792, %v5791
        %v5817 = vpack.c.bf16 %v5794, %v5793
        %v5818 = vpack.c.bf16 %v5796, %v5795
        %v5819 = vpack.c.bf16 %v5798, %v5797
        %v5820 = vpack.c.bf16 %v5799, %v5799
        %v5821 = vld [vmem:[%s6] sm:$0xf]
        %v5822 = vld [vmem:[%s6 + $0x4] sm:$0xf]
        %v5823 = vld [vmem:[%s6 + $0x8] sm:$0xf]
        %v5824 = vld [vmem:[%s6 + $0xc] sm:$0xf]
        %v5825 = vld [vmem:[%s6 + $0x10] sm:$0xf]
        %v5826 = vld [vmem:[%s6 + $0x14] sm:$0xf]
        %v5827 = vld [vmem:[%s6 + $0x18] sm:$0xf]
        %v5828 = vld [vmem:[%s6 + $0x1c] sm:$0xf]
        %v5829 = vld [vmem:[%s6 + $0x20] sm:$0xf]
        %v5830 = vld [vmem:[%s6 + $0x24] sm:$0xf]
        %v5831 = vld [vmem:[%s6 + $0x28] sm:$0xf]
        %v5832 = vld [vmem:[%s6 + $0x2c] sm:$0xf]
        %v5833 = vld [vmem:[%s6 + $0x30] sm:$0xf]
        %v5834 = vld [vmem:[%s6 + $0x34] sm:$0xf]
        %v5835 = vld [vmem:[%s6 + $0x38] sm:$0xf]
        %v5836 = vld [vmem:[%s6 + $0x3c] sm:$0xf]
        %v5837 = vld [vmem:[#allocation3 + $0x6] sm:$0xff]
        %v5838 = vld [vmem:[#allocation3 + $0xe] sm:$0xff]
        %v5839 = vld [vmem:[#allocation3 + $0x16] sm:$0xff]
        %v5840 = vld [vmem:[#allocation3 + $0x1e] sm:$0xff]
        %v5841 = vld [vmem:[#allocation3 + $0x26] sm:$0xff]
        %v5842 = vld [vmem:[#allocation3 + $0x2e] sm:$0xff]
        %v5843 = vld [vmem:[#allocation3 + $0x36] sm:$0xff]
        %v5844 = vld [vmem:[#allocation3 + $0x3e] sm:$0xff]
        %v5845 = vld [vmem:[#allocation3 + $0x46] sm:$0xff]
        %v5846 = vld [vmem:[#allocation3 + $0x4e] sm:$0xff]
        %v5847 = vld [vmem:[#allocation3 + $0x56] sm:$0xff]
        %v5848 = vld [vmem:[#allocation3 + $0x5e] sm:$0xff]
        %v5849 = vld [vmem:[#allocation3 + $0x66] sm:$0xff]
        %v5850 = vld [vmem:[#allocation3 + $0x6e] sm:$0xff]
        %v5851 = vld [vmem:[#allocation3 + $0x76] sm:$0xff]
        %v5852 = vld [vmem:[#allocation3 + $0x7e] sm:$0xff]
        %v5853 = vld [vmem:[#allocation3 + $0x86] sm:$0xff]
        %v5854 = vld [vmem:[#allocation3 + $0x8e] sm:$0xff]
        %v5855 = vld [vmem:[#allocation3 + $0x96] sm:$0xff]
        %v5856 = vld [vmem:[#allocation3 + $0x9e] sm:$0xff]
        %v5857 = vld [vmem:[#allocation3 + $0xa6] sm:$0xff]
        %v5858 = vld [vmem:[#allocation3 + $0xae] sm:$0xff]
        %v5859 = vld [vmem:[#allocation3 + $0xb6] sm:$0xff]
        %v5860 = vld [vmem:[#allocation3 + $0xbe] sm:$0xff]
        %v5861 = vld [vmem:[#allocation3 + $0xc6] sm:$0xff]
        %v5862 = vld [vmem:[#allocation3 + $0xce] sm:$0xff]
        %v5863 = vld [vmem:[#allocation3 + $0xd6] sm:$0xff]
        %v5864 = vld [vmem:[#allocation3 + $0xde] sm:$0xff]
        %v5865 = vld [vmem:[#allocation3 + $0xe6] sm:$0xff]
        %v5866 = vld [vmem:[#allocation3 + $0xee] sm:$0xff]
        %v5867 = vld [vmem:[#allocation3 + $0xf6] sm:$0xff]
        %v5868 = vld [vmem:[#allocation3 + $0xfe] sm:$0xff]
        %v5869 = vld [vmem:[#allocation3 + $0x106] sm:$0xff]
        %v5870 = vld [vmem:[#allocation3 + $0x10e] sm:$0xff]
        %v5871 = vld [vmem:[#allocation3 + $0x116] sm:$0xff]
        %v5872 = vld [vmem:[#allocation3 + $0x11e] sm:$0xff]
        %v5873 = vld [vmem:[#allocation3 + $0x126] sm:$0xff]
        %v5874 = vld [vmem:[#allocation3 + $0x12e] sm:$0xff]
        %v5875 = vld [vmem:[#allocation3 + $0x136] sm:$0xff]
        %v5876 = vld [vmem:[#allocation3 + $0x13e] sm:$0xff]
        %v5877 = vld [vmem:[#allocation3 + $0x146] sm:$0xf]
        %v5878 = vpack.c.bf16 %v5838, %v5837
        %v5879 = vpack.c.bf16 %v5840, %v5839
        %v5880 = vpack.c.bf16 %v5842, %v5841
        %v5881 = vpack.c.bf16 %v5844, %v5843
        %v5882 = vpack.c.bf16 %v5846, %v5845
        %v5883 = vpack.c.bf16 %v5848, %v5847
        %v5884 = vpack.c.bf16 %v5850, %v5849
        %v5885 = vpack.c.bf16 %v5852, %v5851
        %v5886 = vpack.c.bf16 %v5854, %v5853
        %v5887 = vpack.c.bf16 %v5856, %v5855
        %v5888 = vpack.c.bf16 %v5858, %v5857
        %v5889 = vpack.c.bf16 %v5860, %v5859
        %v5890 = vpack.c.bf16 %v5862, %v5861
        %v5891 = vpack.c.bf16 %v5864, %v5863
        %v5892 = vpack.c.bf16 %v5866, %v5865
        %v5893 = vpack.c.bf16 %v5868, %v5867
        %v5894 = vpack.c.bf16 %v5870, %v5869
        %v5895 = vpack.c.bf16 %v5872, %v5871
        %v5896 = vpack.c.bf16 %v5874, %v5873
        %v5897 = vpack.c.bf16 %v5876, %v5875
        %v5898 = vpack.c.bf16 %v5877, %v5877
        %s5899 = scalar_lea.vmem %s6, 64
        %v5900 = vld [vmem:[%s5899] sm:$0xf]
        %v5901 = vld [vmem:[%s5899 + $0x4] sm:$0xf]
        %v5902 = vld [vmem:[%s5899 + $0x8] sm:$0xf]
        %v5903 = vld [vmem:[%s5899 + $0xc] sm:$0xf]
        %v5904 = vld [vmem:[%s5899 + $0x10] sm:$0xf]
        %v5905 = vld [vmem:[%s5899 + $0x14] sm:$0xf]
        %v5906 = vld [vmem:[%s5899 + $0x18] sm:$0xf]
        %v5907 = vld [vmem:[%s5899 + $0x1c] sm:$0xf]
        %v5908 = vld [vmem:[%s5899 + $0x20] sm:$0xf]
        %v5909 = vld [vmem:[%s5899 + $0x24] sm:$0xf]
        %v5910 = vld [vmem:[%s5899 + $0x28] sm:$0xf]
        %v5911 = vld [vmem:[%s5899 + $0x2c] sm:$0xf]
        %v5912 = vld [vmem:[%s5899 + $0x30] sm:$0xf]
        %v5913 = vld [vmem:[%s5899 + $0x34] sm:$0xf]
        %v5914 = vld [vmem:[%s5899 + $0x38] sm:$0xf]
        %v5915 = vld [vmem:[%s5899 + $0x3c] sm:$0xf]
        %v5932 = vunpack.c.l.b16 %v5900
        %v5933 = vunpack.c.l.b16 %v5901
        %v5934 = vunpack.c.l.b16 %v5902
        %v5935 = vunpack.c.l.b16 %v5903
        %v5936 = vunpack.c.l.b16 %v5904
        %v5937 = vunpack.c.l.b16 %v5905
        %v5938 = vunpack.c.l.b16 %v5906
        %v5939 = vunpack.c.l.b16 %v5907
        %v5940 = vunpack.c.l.b16 %v5908
        %v5941 = vunpack.c.l.b16 %v5909
        %v5942 = vunpack.c.l.b16 %v5910
        %v5943 = vunpack.c.l.b16 %v5911
        %v5944 = vunpack.c.l.b16 %v5912
        %v5945 = vunpack.c.l.b16 %v5913
        %v5946 = vunpack.c.l.b16 %v5914
        %v5947 = vunpack.c.l.b16 %v5915
        %v5948 = vpack.c.b16 %v5933, %v5932
        %v5949 = vpack.c.b16 %v5935, %v5934
        %v5950 = vpack.c.b16 %v5937, %v5936
        %v5951 = vpack.c.b16 %v5939, %v5938
        %v5952 = vpack.c.b16 %v5941, %v5940
        %v5953 = vpack.c.b16 %v5943, %v5942
        %v5954 = vpack.c.b16 %v5945, %v5944
        %v5955 = vpack.c.b16 %v5947, %v5946
        %5964 = vmatpush.bf16.msra.mxu0 %v5955
        %5965 = vmatpush.bf16.msra.mxu0 %v5954
        %5966 = vmatpush.bf16.msra.mxu0 %v5953
        %5967 = vmatpush.bf16.msra.mxu0 %v5952
        %5968 = vmatpush.bf16.msra.mxu0 %v5951
        %5969 = vmatpush.bf16.msra.mxu0 %v5950
        %5970 = vmatpush.bf16.msra.mxu0 %v5949
        %5971 = vmatpush.bf16.msra.mxu0 %v5948
        %5972 = vmatmul.bf16.gmra.mxu0 %v5878
        %v5973 = vpop.f32.mrf.mxu0
        %v5974 = vadd.f32 0.0, %v5973
        %v5975 = vpop.f32.mrf.mxu0
        %v5976 = vadd.f32 0.0, %v5975
        %5977 = vmatmul.bf16.gmra.mxu0 %v5879
        %v5978 = vpop.f32.mrf.mxu0
        %v5979 = vadd.f32 0.0, %v5978
        %v5980 = vpop.f32.mrf.mxu0
        %v5981 = vadd.f32 0.0, %v5980
        %5982 = vmatmul.bf16.gmra.mxu0 %v5880
        %v5983 = vpop.f32.mrf.mxu0
        %v5984 = vadd.f32 0.0, %v5983
        %v5985 = vpop.f32.mrf.mxu0
        %v5986 = vadd.f32 0.0, %v5985
        %5987 = vmatmul.bf16.gmra.mxu0 %v5881
        %v5988 = vpop.f32.mrf.mxu0
        %v5989 = vadd.f32 0.0, %v5988
        %v5990 = vpop.f32.mrf.mxu0
        %v5991 = vadd.f32 0.0, %v5990
        %5992 = vmatmul.bf16.gmra.mxu0 %v5882
        %v5993 = vpop.f32.mrf.mxu0
        %v5994 = vadd.f32 0.0, %v5993
        %v5995 = vpop.f32.mrf.mxu0
        %v5996 = vadd.f32 0.0, %v5995
        %5997 = vmatmul.bf16.gmra.mxu0 %v5883
        %v5998 = vpop.f32.mrf.mxu0
        %v5999 = vadd.f32 0.0, %v5998
        %v6000 = vpop.f32.mrf.mxu0
        %v6001 = vadd.f32 0.0, %v6000
        %6002 = vmatmul.bf16.gmra.mxu0 %v5884
        %v6003 = vpop.f32.mrf.mxu0
        %v6004 = vadd.f32 0.0, %v6003
        %v6005 = vpop.f32.mrf.mxu0
        %v6006 = vadd.f32 0.0, %v6005
        %6007 = vmatmul.bf16.gmra.mxu0 %v5885
        %v6008 = vpop.f32.mrf.mxu0
        %v6009 = vadd.f32 0.0, %v6008
        %v6010 = vpop.f32.mrf.mxu0
        %v6011 = vadd.f32 0.0, %v6010
        %6012 = vmatmul.bf16.gmra.mxu0 %v5886
        %v6013 = vpop.f32.mrf.mxu0
        %v6014 = vadd.f32 0.0, %v6013
        %v6015 = vpop.f32.mrf.mxu0
        %v6016 = vadd.f32 0.0, %v6015
        %6017 = vmatmul.bf16.gmra.mxu0 %v5887
        %v6018 = vpop.f32.mrf.mxu0
        %v6019 = vadd.f32 0.0, %v6018
        %v6020 = vpop.f32.mrf.mxu0
        %v6021 = vadd.f32 0.0, %v6020
        %6022 = vmatmul.bf16.gmra.mxu0 %v5888
        %v6023 = vpop.f32.mrf.mxu0
        %v6024 = vadd.f32 0.0, %v6023
        %v6025 = vpop.f32.mrf.mxu0
        %v6026 = vadd.f32 0.0, %v6025
        %6027 = vmatmul.bf16.gmra.mxu0 %v5889
        %v6028 = vpop.f32.mrf.mxu0
        %v6029 = vadd.f32 0.0, %v6028
        %v6030 = vpop.f32.mrf.mxu0
        %v6031 = vadd.f32 0.0, %v6030
        %6032 = vmatmul.bf16.gmra.mxu0 %v5890
        %v6033 = vpop.f32.mrf.mxu0
        %v6034 = vadd.f32 0.0, %v6033
        %v6035 = vpop.f32.mrf.mxu0
        %v6036 = vadd.f32 0.0, %v6035
        %6037 = vmatmul.bf16.gmra.mxu0 %v5891
        %v6038 = vpop.f32.mrf.mxu0
        %v6039 = vadd.f32 0.0, %v6038
        %v6040 = vpop.f32.mrf.mxu0
        %v6041 = vadd.f32 0.0, %v6040
        %6042 = vmatmul.bf16.gmra.mxu0 %v5892
        %v6043 = vpop.f32.mrf.mxu0
        %v6044 = vadd.f32 0.0, %v6043
        %v6045 = vpop.f32.mrf.mxu0
        %v6046 = vadd.f32 0.0, %v6045
        %6047 = vmatmul.bf16.gmra.mxu0 %v5893
        %v6048 = vpop.f32.mrf.mxu0
        %v6049 = vadd.f32 0.0, %v6048
        %v6050 = vpop.f32.mrf.mxu0
        %v6051 = vadd.f32 0.0, %v6050
        %6052 = vmatmul.bf16.gmra.mxu0 %v5894
        %v6053 = vpop.f32.mrf.mxu0
        %v6054 = vadd.f32 0.0, %v6053
        %v6055 = vpop.f32.mrf.mxu0
        %v6056 = vadd.f32 0.0, %v6055
        %6057 = vmatmul.bf16.gmra.mxu0 %v5895
        %v6058 = vpop.f32.mrf.mxu0
        %v6059 = vadd.f32 0.0, %v6058
        %v6060 = vpop.f32.mrf.mxu0
        %v6061 = vadd.f32 0.0, %v6060
        %6062 = vmatmul.bf16.gmra.mxu0 %v5896
        %v6063 = vpop.f32.mrf.mxu0
        %v6064 = vadd.f32 0.0, %v6063
        %v6065 = vpop.f32.mrf.mxu0
        %v6066 = vadd.f32 0.0, %v6065
        %6067 = vmatmul.bf16.gmra.mxu0 %v5897
        %v6068 = vpop.f32.mrf.mxu0
        %v6069 = vadd.f32 0.0, %v6068
        %v6070 = vpop.f32.mrf.mxu0
        %v6071 = vadd.f32 0.0, %v6070
        %6072 = vmatmul.bf16.gmra.mxu0 %v5898
        %v6073 = vpop.f32.mrf.mxu0
        %v6074 = vadd.f32 0.0, %v6073
        %v6075 = vpop.f32.mrf.mxu0
        %6076 = vdwg.mxu0
        %v6093 = vunpack.c.l.b16 %v5821
        %v6094 = vunpack.c.l.b16 %v5822
        %v6095 = vunpack.c.l.b16 %v5823
        %v6096 = vunpack.c.l.b16 %v5824
        %v6097 = vunpack.c.l.b16 %v5825
        %v6098 = vunpack.c.l.b16 %v5826
        %v6099 = vunpack.c.l.b16 %v5827
        %v6100 = vunpack.c.l.b16 %v5828
        %v6101 = vunpack.c.l.b16 %v5829
        %v6102 = vunpack.c.l.b16 %v5830
        %v6103 = vunpack.c.l.b16 %v5831
        %v6104 = vunpack.c.l.b16 %v5832
        %v6105 = vunpack.c.l.b16 %v5833
        %v6106 = vunpack.c.l.b16 %v5834
        %v6107 = vunpack.c.l.b16 %v5835
        %v6108 = vunpack.c.l.b16 %v5836
        %v6109 = vpack.c.b16 %v6094, %v6093
        %v6110 = vpack.c.b16 %v6096, %v6095
        %v6111 = vpack.c.b16 %v6098, %v6097
        %v6112 = vpack.c.b16 %v6100, %v6099
        %v6113 = vpack.c.b16 %v6102, %v6101
        %v6114 = vpack.c.b16 %v6104, %v6103
        %v6115 = vpack.c.b16 %v6106, %v6105
        %v6116 = vpack.c.b16 %v6108, %v6107
        %6125 = vmatpush.bf16.msra.mxu0 %v6116
        %6126 = vmatpush.bf16.msra.mxu0 %v6115
        %6127 = vmatpush.bf16.msra.mxu0 %v6114
        %6128 = vmatpush.bf16.msra.mxu0 %v6113
        %6129 = vmatpush.bf16.msra.mxu0 %v6112
        %6130 = vmatpush.bf16.msra.mxu0 %v6111
        %6131 = vmatpush.bf16.msra.mxu0 %v6110
        %6132 = vmatpush.bf16.msra.mxu0 %v6109
        %6133 = vmatmul.bf16.gmra.mxu0 %v5800
        %v6134 = vpop.f32.mrf.mxu0
        %v6135 = vadd.f32 %v5974, %v6134
        %v6136 = vpop.f32.mrf.mxu0
        %v6137 = vadd.f32 %v5976, %v6136
        %6138 = vmatmul.bf16.gmra.mxu0 %v5801
        %v6139 = vpop.f32.mrf.mxu0
        %v6140 = vadd.f32 %v5979, %v6139
        %v6141 = vpop.f32.mrf.mxu0
        %v6142 = vadd.f32 %v5981, %v6141
        %6143 = vmatmul.bf16.gmra.mxu0 %v5802
        %v6144 = vpop.f32.mrf.mxu0
        %v6145 = vadd.f32 %v5984, %v6144
        %v6146 = vpop.f32.mrf.mxu0
        %v6147 = vadd.f32 %v5986, %v6146
        %6148 = vmatmul.bf16.gmra.mxu0 %v5803
        %v6149 = vpop.f32.mrf.mxu0
        %v6150 = vadd.f32 %v5989, %v6149
        %v6151 = vpop.f32.mrf.mxu0
        %v6152 = vadd.f32 %v5991, %v6151
        %6153 = vmatmul.bf16.gmra.mxu0 %v5804
        %v6154 = vpop.f32.mrf.mxu0
        %v6155 = vadd.f32 %v5994, %v6154
        %v6156 = vpop.f32.mrf.mxu0
        %v6157 = vadd.f32 %v5996, %v6156
        %6158 = vmatmul.bf16.gmra.mxu0 %v5805
        %v6159 = vpop.f32.mrf.mxu0
        %v6160 = vadd.f32 %v5999, %v6159
        %v6161 = vpop.f32.mrf.mxu0
        %v6162 = vadd.f32 %v6001, %v6161
        %6163 = vmatmul.bf16.gmra.mxu0 %v5806
        %v6164 = vpop.f32.mrf.mxu0
        %v6165 = vadd.f32 %v6004, %v6164
        %v6166 = vpop.f32.mrf.mxu0
        %v6167 = vadd.f32 %v6006, %v6166
        %6168 = vmatmul.bf16.gmra.mxu0 %v5807
        %v6169 = vpop.f32.mrf.mxu0
        %v6170 = vadd.f32 %v6009, %v6169
        %v6171 = vpop.f32.mrf.mxu0
        %v6172 = vadd.f32 %v6011, %v6171
        %6173 = vmatmul.bf16.gmra.mxu0 %v5808
        %v6174 = vpop.f32.mrf.mxu0
        %v6175 = vadd.f32 %v6014, %v6174
        %v6176 = vpop.f32.mrf.mxu0
        %v6177 = vadd.f32 %v6016, %v6176
        %6178 = vmatmul.bf16.gmra.mxu0 %v5809
        %v6179 = vpop.f32.mrf.mxu0
        %v6180 = vadd.f32 %v6019, %v6179
        %v6181 = vpop.f32.mrf.mxu0
        %v6182 = vadd.f32 %v6021, %v6181
        %6183 = vmatmul.bf16.gmra.mxu0 %v5810
        %v6184 = vpop.f32.mrf.mxu0
        %v6185 = vadd.f32 %v6024, %v6184
        %v6186 = vpop.f32.mrf.mxu0
        %v6187 = vadd.f32 %v6026, %v6186
        %6188 = vmatmul.bf16.gmra.mxu0 %v5811
        %v6189 = vpop.f32.mrf.mxu0
        %v6190 = vadd.f32 %v6029, %v6189
        %v6191 = vpop.f32.mrf.mxu0
        %v6192 = vadd.f32 %v6031, %v6191
        %6193 = vmatmul.bf16.gmra.mxu0 %v5812
        %v6194 = vpop.f32.mrf.mxu0
        %v6195 = vadd.f32 %v6034, %v6194
        %v6196 = vpop.f32.mrf.mxu0
        %v6197 = vadd.f32 %v6036, %v6196
        %6198 = vmatmul.bf16.gmra.mxu0 %v5813
        %v6199 = vpop.f32.mrf.mxu0
        %v6200 = vadd.f32 %v6039, %v6199
        %v6201 = vpop.f32.mrf.mxu0
        %v6202 = vadd.f32 %v6041, %v6201
        %6203 = vmatmul.bf16.gmra.mxu0 %v5814
        %v6204 = vpop.f32.mrf.mxu0
        %v6205 = vadd.f32 %v6044, %v6204
        %v6206 = vpop.f32.mrf.mxu0
        %v6207 = vadd.f32 %v6046, %v6206
        %6208 = vmatmul.bf16.gmra.mxu0 %v5815
        %v6209 = vpop.f32.mrf.mxu0
        %v6210 = vadd.f32 %v6049, %v6209
        %v6211 = vpop.f32.mrf.mxu0
        %v6212 = vadd.f32 %v6051, %v6211
        %6213 = vmatmul.bf16.gmra.mxu0 %v5816
        %v6214 = vpop.f32.mrf.mxu0
        %v6215 = vadd.f32 %v6054, %v6214
        %v6216 = vpop.f32.mrf.mxu0
        %v6217 = vadd.f32 %v6056, %v6216
        %6218 = vmatmul.bf16.gmra.mxu0 %v5817
        %v6219 = vpop.f32.mrf.mxu0
        %v6220 = vadd.f32 %v6059, %v6219
        %v6221 = vpop.f32.mrf.mxu0
        %v6222 = vadd.f32 %v6061, %v6221
        %6223 = vmatmul.bf16.gmra.mxu0 %v5818
        %v6224 = vpop.f32.mrf.mxu0
        %v6225 = vadd.f32 %v6064, %v6224
        %v6226 = vpop.f32.mrf.mxu0
        %v6227 = vadd.f32 %v6066, %v6226
        %6228 = vmatmul.bf16.gmra.mxu0 %v5819
        %v6229 = vpop.f32.mrf.mxu0
        %v6230 = vadd.f32 %v6069, %v6229
        %v6231 = vpop.f32.mrf.mxu0
        %v6232 = vadd.f32 %v6071, %v6231
        %6233 = vmatmul.bf16.gmra.mxu0 %v5820
        %v6234 = vpop.f32.mrf.mxu0
        %v6235 = vadd.f32 %v6074, %v6234
        %v6236 = vpop.f32.mrf.mxu0
        %6237 = vdwg.mxu0
        %v6238 = vld [vmem:[#allocation3 + $0x7] sm:$0xff]
        %v6239 = vld [vmem:[#allocation3 + $0xf] sm:$0xff]
        %v6240 = vld [vmem:[#allocation3 + $0x17] sm:$0xff]
        %v6241 = vld [vmem:[#allocation3 + $0x1f] sm:$0xff]
        %v6242 = vld [vmem:[#allocation3 + $0x27] sm:$0xff]
        %v6243 = vld [vmem:[#allocation3 + $0x2f] sm:$0xff]
        %v6244 = vld [vmem:[#allocation3 + $0x37] sm:$0xff]
        %v6245 = vld [vmem:[#allocation3 + $0x3f] sm:$0xff]
        %v6246 = vld [vmem:[#allocation3 + $0x47] sm:$0xff]
        %v6247 = vld [vmem:[#allocation3 + $0x4f] sm:$0xff]
        %v6248 = vld [vmem:[#allocation3 + $0x57] sm:$0xff]
        %v6249 = vld [vmem:[#allocation3 + $0x5f] sm:$0xff]
        %v6250 = vld [vmem:[#allocation3 + $0x67] sm:$0xff]
        %v6251 = vld [vmem:[#allocation3 + $0x6f] sm:$0xff]
        %v6252 = vld [vmem:[#allocation3 + $0x77] sm:$0xff]
        %v6253 = vld [vmem:[#allocation3 + $0x7f] sm:$0xff]
        %v6254 = vld [vmem:[#allocation3 + $0x87] sm:$0xff]
        %v6255 = vld [vmem:[#allocation3 + $0x8f] sm:$0xff]
        %v6256 = vld [vmem:[#allocation3 + $0x97] sm:$0xff]
        %v6257 = vld [vmem:[#allocation3 + $0x9f] sm:$0xff]
        %v6258 = vld [vmem:[#allocation3 + $0xa7] sm:$0xff]
        %v6259 = vld [vmem:[#allocation3 + $0xaf] sm:$0xff]
        %v6260 = vld [vmem:[#allocation3 + $0xb7] sm:$0xff]
        %v6261 = vld [vmem:[#allocation3 + $0xbf] sm:$0xff]
        %v6262 = vld [vmem:[#allocation3 + $0xc7] sm:$0xff]
        %v6263 = vld [vmem:[#allocation3 + $0xcf] sm:$0xff]
        %v6264 = vld [vmem:[#allocation3 + $0xd7] sm:$0xff]
        %v6265 = vld [vmem:[#allocation3 + $0xdf] sm:$0xff]
        %v6266 = vld [vmem:[#allocation3 + $0xe7] sm:$0xff]
        %v6267 = vld [vmem:[#allocation3 + $0xef] sm:$0xff]
        %v6268 = vld [vmem:[#allocation3 + $0xf7] sm:$0xff]
        %v6269 = vld [vmem:[#allocation3 + $0xff] sm:$0xff]
        %v6270 = vld [vmem:[#allocation3 + $0x107] sm:$0xff]
        %v6271 = vld [vmem:[#allocation3 + $0x10f] sm:$0xff]
        %v6272 = vld [vmem:[#allocation3 + $0x117] sm:$0xff]
        %v6273 = vld [vmem:[#allocation3 + $0x11f] sm:$0xff]
        %v6274 = vld [vmem:[#allocation3 + $0x127] sm:$0xff]
        %v6275 = vld [vmem:[#allocation3 + $0x12f] sm:$0xff]
        %v6276 = vld [vmem:[#allocation3 + $0x137] sm:$0xff]
        %v6277 = vld [vmem:[#allocation3 + $0x13f] sm:$0xff]
        %v6278 = vld [vmem:[#allocation3 + $0x147] sm:$0xf]
        %v6279 = vpack.c.bf16 %v6239, %v6238
        %v6280 = vpack.c.bf16 %v6241, %v6240
        %v6281 = vpack.c.bf16 %v6243, %v6242
        %v6282 = vpack.c.bf16 %v6245, %v6244
        %v6283 = vpack.c.bf16 %v6247, %v6246
        %v6284 = vpack.c.bf16 %v6249, %v6248
        %v6285 = vpack.c.bf16 %v6251, %v6250
        %v6286 = vpack.c.bf16 %v6253, %v6252
        %v6287 = vpack.c.bf16 %v6255, %v6254
        %v6288 = vpack.c.bf16 %v6257, %v6256
        %v6289 = vpack.c.bf16 %v6259, %v6258
        %v6290 = vpack.c.bf16 %v6261, %v6260
        %v6291 = vpack.c.bf16 %v6263, %v6262
        %v6292 = vpack.c.bf16 %v6265, %v6264
        %v6293 = vpack.c.bf16 %v6267, %v6266
        %v6294 = vpack.c.bf16 %v6269, %v6268
        %v6295 = vpack.c.bf16 %v6271, %v6270
        %v6296 = vpack.c.bf16 %v6273, %v6272
        %v6297 = vpack.c.bf16 %v6275, %v6274
        %v6298 = vpack.c.bf16 %v6277, %v6276
        %v6299 = vpack.c.bf16 %v6278, %v6278
        %s6300 = scalar_lea.vmem %s6, 128
        %v6301 = vld [vmem:[%s6300] sm:$0xf]
        %v6302 = vld [vmem:[%s6300 + $0x4] sm:$0xf]
        %v6303 = vld [vmem:[%s6300 + $0x8] sm:$0xf]
        %v6304 = vld [vmem:[%s6300 + $0xc] sm:$0xf]
        %v6305 = vld [vmem:[%s6300 + $0x10] sm:$0xf]
        %v6306 = vld [vmem:[%s6300 + $0x14] sm:$0xf]
        %v6307 = vld [vmem:[%s6300 + $0x18] sm:$0xf]
        %v6308 = vld [vmem:[%s6300 + $0x1c] sm:$0xf]
        %v6309 = vld [vmem:[%s6300 + $0x20] sm:$0xf]
        %v6310 = vld [vmem:[%s6300 + $0x24] sm:$0xf]
        %v6311 = vld [vmem:[%s6300 + $0x28] sm:$0xf]
        %v6312 = vld [vmem:[%s6300 + $0x2c] sm:$0xf]
        %v6313 = vld [vmem:[%s6300 + $0x30] sm:$0xf]
        %v6314 = vld [vmem:[%s6300 + $0x34] sm:$0xf]
        %v6315 = vld [vmem:[%s6300 + $0x38] sm:$0xf]
        %v6316 = vld [vmem:[%s6300 + $0x3c] sm:$0xf]
        %v6333 = vunpack.c.l.b16 %v6301
        %v6334 = vunpack.c.l.b16 %v6302
        %v6335 = vunpack.c.l.b16 %v6303
        %v6336 = vunpack.c.l.b16 %v6304
        %v6337 = vunpack.c.l.b16 %v6305
        %v6338 = vunpack.c.l.b16 %v6306
        %v6339 = vunpack.c.l.b16 %v6307
        %v6340 = vunpack.c.l.b16 %v6308
        %v6341 = vunpack.c.l.b16 %v6309
        %v6342 = vunpack.c.l.b16 %v6310
        %v6343 = vunpack.c.l.b16 %v6311
        %v6344 = vunpack.c.l.b16 %v6312
        %v6345 = vunpack.c.l.b16 %v6313
        %v6346 = vunpack.c.l.b16 %v6314
        %v6347 = vunpack.c.l.b16 %v6315
        %v6348 = vunpack.c.l.b16 %v6316
        %v6349 = vpack.c.b16 %v6334, %v6333
        %v6350 = vpack.c.b16 %v6336, %v6335
        %v6351 = vpack.c.b16 %v6338, %v6337
        %v6352 = vpack.c.b16 %v6340, %v6339
        %v6353 = vpack.c.b16 %v6342, %v6341
        %v6354 = vpack.c.b16 %v6344, %v6343
        %v6355 = vpack.c.b16 %v6346, %v6345
        %v6356 = vpack.c.b16 %v6348, %v6347
        %6365 = vmatpush.bf16.msra.mxu0 %v6356
        %6366 = vmatpush.bf16.msra.mxu0 %v6355
        %6367 = vmatpush.bf16.msra.mxu0 %v6354
        %6368 = vmatpush.bf16.msra.mxu0 %v6353
        %6369 = vmatpush.bf16.msra.mxu0 %v6352
        %6370 = vmatpush.bf16.msra.mxu0 %v6351
        %6371 = vmatpush.bf16.msra.mxu0 %v6350
        %6372 = vmatpush.bf16.msra.mxu0 %v6349
        %6373 = vmatmul.bf16.gmra.mxu0 %v6279
        %v6374 = vpop.f32.mrf.mxu0
        %v6375 = vadd.f32 0.0, %v6374
        %v6376 = vpop.f32.mrf.mxu0
        %v6377 = vadd.f32 0.0, %v6376
        %6378 = vmatmul.bf16.gmra.mxu0 %v6280
        %v6379 = vpop.f32.mrf.mxu0
        %v6380 = vadd.f32 0.0, %v6379
        %v6381 = vpop.f32.mrf.mxu0
        %v6382 = vadd.f32 0.0, %v6381
        %6383 = vmatmul.bf16.gmra.mxu0 %v6281
        %v6384 = vpop.f32.mrf.mxu0
        %v6385 = vadd.f32 0.0, %v6384
        %v6386 = vpop.f32.mrf.mxu0
        %v6387 = vadd.f32 0.0, %v6386
        %6388 = vmatmul.bf16.gmra.mxu0 %v6282
        %v6389 = vpop.f32.mrf.mxu0
        %v6390 = vadd.f32 0.0, %v6389
        %v6391 = vpop.f32.mrf.mxu0
        %v6392 = vadd.f32 0.0, %v6391
        %6393 = vmatmul.bf16.gmra.mxu0 %v6283
        %v6394 = vpop.f32.mrf.mxu0
        %v6395 = vadd.f32 0.0, %v6394
        %v6396 = vpop.f32.mrf.mxu0
        %v6397 = vadd.f32 0.0, %v6396
        %6398 = vmatmul.bf16.gmra.mxu0 %v6284
        %v6399 = vpop.f32.mrf.mxu0
        %v6400 = vadd.f32 0.0, %v6399
        %v6401 = vpop.f32.mrf.mxu0
        %v6402 = vadd.f32 0.0, %v6401
        %6403 = vmatmul.bf16.gmra.mxu0 %v6285
        %v6404 = vpop.f32.mrf.mxu0
        %v6405 = vadd.f32 0.0, %v6404
        %v6406 = vpop.f32.mrf.mxu0
        %v6407 = vadd.f32 0.0, %v6406
        %6408 = vmatmul.bf16.gmra.mxu0 %v6286
        %v6409 = vpop.f32.mrf.mxu0
        %v6410 = vadd.f32 0.0, %v6409
        %v6411 = vpop.f32.mrf.mxu0
        %v6412 = vadd.f32 0.0, %v6411
        %6413 = vmatmul.bf16.gmra.mxu0 %v6287
        %v6414 = vpop.f32.mrf.mxu0
        %v6415 = vadd.f32 0.0, %v6414
        %v6416 = vpop.f32.mrf.mxu0
        %v6417 = vadd.f32 0.0, %v6416
        %6418 = vmatmul.bf16.gmra.mxu0 %v6288
        %v6419 = vpop.f32.mrf.mxu0
        %v6420 = vadd.f32 0.0, %v6419
        %v6421 = vpop.f32.mrf.mxu0
        %v6422 = vadd.f32 0.0, %v6421
        %6423 = vmatmul.bf16.gmra.mxu0 %v6289
        %v6424 = vpop.f32.mrf.mxu0
        %v6425 = vadd.f32 0.0, %v6424
        %v6426 = vpop.f32.mrf.mxu0
        %v6427 = vadd.f32 0.0, %v6426
        %6428 = vmatmul.bf16.gmra.mxu0 %v6290
        %v6429 = vpop.f32.mrf.mxu0
        %v6430 = vadd.f32 0.0, %v6429
        %v6431 = vpop.f32.mrf.mxu0
        %v6432 = vadd.f32 0.0, %v6431
        %6433 = vmatmul.bf16.gmra.mxu0 %v6291
        %v6434 = vpop.f32.mrf.mxu0
        %v6435 = vadd.f32 0.0, %v6434
        %v6436 = vpop.f32.mrf.mxu0
        %v6437 = vadd.f32 0.0, %v6436
        %6438 = vmatmul.bf16.gmra.mxu0 %v6292
        %v6439 = vpop.f32.mrf.mxu0
        %v6440 = vadd.f32 0.0, %v6439
        %v6441 = vpop.f32.mrf.mxu0
        %v6442 = vadd.f32 0.0, %v6441
        %6443 = vmatmul.bf16.gmra.mxu0 %v6293
        %v6444 = vpop.f32.mrf.mxu0
        %v6445 = vadd.f32 0.0, %v6444
        %v6446 = vpop.f32.mrf.mxu0
        %v6447 = vadd.f32 0.0, %v6446
        %6448 = vmatmul.bf16.gmra.mxu0 %v6294
        %v6449 = vpop.f32.mrf.mxu0
        %v6450 = vadd.f32 0.0, %v6449
        %v6451 = vpop.f32.mrf.mxu0
        %v6452 = vadd.f32 0.0, %v6451
        %6453 = vmatmul.bf16.gmra.mxu0 %v6295
        %v6454 = vpop.f32.mrf.mxu0
        %v6455 = vadd.f32 0.0, %v6454
        %v6456 = vpop.f32.mrf.mxu0
        %v6457 = vadd.f32 0.0, %v6456
        %6458 = vmatmul.bf16.gmra.mxu0 %v6296
        %v6459 = vpop.f32.mrf.mxu0
        %v6460 = vadd.f32 0.0, %v6459
        %v6461 = vpop.f32.mrf.mxu0
        %v6462 = vadd.f32 0.0, %v6461
        %6463 = vmatmul.bf16.gmra.mxu0 %v6297
        %v6464 = vpop.f32.mrf.mxu0
        %v6465 = vadd.f32 0.0, %v6464
        %v6466 = vpop.f32.mrf.mxu0
        %v6467 = vadd.f32 0.0, %v6466
        %6468 = vmatmul.bf16.gmra.mxu0 %v6298
        %v6469 = vpop.f32.mrf.mxu0
        %v6470 = vadd.f32 0.0, %v6469
        %v6471 = vpop.f32.mrf.mxu0
        %v6472 = vadd.f32 0.0, %v6471
        %6473 = vmatmul.bf16.gmra.mxu0 %v6299
        %v6474 = vpop.f32.mrf.mxu0
        %v6475 = vadd.f32 0.0, %v6474
        %v6476 = vpop.f32.mrf.mxu0
        %6477 = vdwg.mxu0
        %v6478 = vadd.f32 %v6135, %v6375
        %v6479 = vadd.f32 %v6137, %v6377
        %v6480 = vadd.f32 %v6140, %v6380
        %v6481 = vadd.f32 %v6142, %v6382
        %v6482 = vadd.f32 %v6145, %v6385
        %v6483 = vadd.f32 %v6147, %v6387
        %v6484 = vadd.f32 %v6150, %v6390
        %v6485 = vadd.f32 %v6152, %v6392
        %v6486 = vadd.f32 %v6155, %v6395
        %v6487 = vadd.f32 %v6157, %v6397
        %v6488 = vadd.f32 %v6160, %v6400
        %v6489 = vadd.f32 %v6162, %v6402
        %v6490 = vadd.f32 %v6165, %v6405
        %v6491 = vadd.f32 %v6167, %v6407
        %v6492 = vadd.f32 %v6170, %v6410
        %v6493 = vadd.f32 %v6172, %v6412
        %v6494 = vadd.f32 %v6175, %v6415
        %v6495 = vadd.f32 %v6177, %v6417
        %v6496 = vadd.f32 %v6180, %v6420
        %v6497 = vadd.f32 %v6182, %v6422
        %v6498 = vadd.f32 %v6185, %v6425
        %v6499 = vadd.f32 %v6187, %v6427
        %v6500 = vadd.f32 %v6190, %v6430
        %v6501 = vadd.f32 %v6192, %v6432
        %v6502 = vadd.f32 %v6195, %v6435
        %v6503 = vadd.f32 %v6197, %v6437
        %v6504 = vadd.f32 %v6200, %v6440
        %v6505 = vadd.f32 %v6202, %v6442
        %v6506 = vadd.f32 %v6205, %v6445
        %v6507 = vadd.f32 %v6207, %v6447
        %v6508 = vadd.f32 %v6210, %v6450
        %v6509 = vadd.f32 %v6212, %v6452
        %v6510 = vadd.f32 %v6215, %v6455
        %v6511 = vadd.f32 %v6217, %v6457
        %v6512 = vadd.f32 %v6220, %v6460
        %v6513 = vadd.f32 %v6222, %v6462
        %v6514 = vadd.f32 %v6225, %v6465
        %v6515 = vadd.f32 %v6227, %v6467
        %v6516 = vadd.f32 %v6230, %v6470
        %v6517 = vadd.f32 %v6232, %v6472
        %v6518 = vadd.f32 %v6235, %v6475
        %v6519 = vld [vmem:[#allocation3 + $0x17] sm:$0xff]
        %v6520 = vld [vmem:[#allocation3 + $0x1f] sm:$0xff]
        %v6521 = vld [vmem:[#allocation3 + $0x27] sm:$0xff]
        %v6522 = vld [vmem:[#allocation3 + $0x2f] sm:$0xff]
        %v6523 = vld [vmem:[#allocation3 + $0x37] sm:$0xff]
        %v6524 = vld [vmem:[#allocation3 + $0x3f] sm:$0xff]
        %v6525 = vld [vmem:[#allocation3 + $0x47] sm:$0xff]
        %v6526 = vld [vmem:[#allocation3 + $0x4f] sm:$0xff]
        %v6527 = vld [vmem:[#allocation3 + $0x57] sm:$0xff]
        %v6528 = vld [vmem:[#allocation3 + $0x5f] sm:$0xff]
        %v6529 = vld [vmem:[#allocation3 + $0x67] sm:$0xff]
        %v6530 = vld [vmem:[#allocation3 + $0x6f] sm:$0xff]
        %v6531 = vld [vmem:[#allocation3 + $0x77] sm:$0xff]
        %v6532 = vld [vmem:[#allocation3 + $0x7f] sm:$0xff]
        %v6533 = vld [vmem:[#allocation3 + $0x87] sm:$0xff]
        %v6534 = vld [vmem:[#allocation3 + $0x8f] sm:$0xff]
        %v6535 = vld [vmem:[#allocation3 + $0x97] sm:$0xff]
        %v6536 = vld [vmem:[#allocation3 + $0x9f] sm:$0xff]
        %v6537 = vld [vmem:[#allocation3 + $0xa7] sm:$0xff]
        %v6538 = vld [vmem:[#allocation3 + $0xaf] sm:$0xff]
        %v6539 = vld [vmem:[#allocation3 + $0xb7] sm:$0xff]
        %v6540 = vld [vmem:[#allocation3 + $0xbf] sm:$0xff]
        %v6541 = vld [vmem:[#allocation3 + $0xc7] sm:$0xff]
        %v6542 = vld [vmem:[#allocation3 + $0xcf] sm:$0xff]
        %v6543 = vld [vmem:[#allocation3 + $0xd7] sm:$0xff]
        %v6544 = vld [vmem:[#allocation3 + $0xdf] sm:$0xff]
        %v6545 = vld [vmem:[#allocation3 + $0xe7] sm:$0xff]
        %v6546 = vld [vmem:[#allocation3 + $0xef] sm:$0xff]
        %v6547 = vld [vmem:[#allocation3 + $0xf7] sm:$0xff]
        %v6548 = vld [vmem:[#allocation3 + $0xff] sm:$0xff]
        %v6549 = vld [vmem:[#allocation3 + $0x107] sm:$0xff]
        %v6550 = vld [vmem:[#allocation3 + $0x10f] sm:$0xff]
        %v6551 = vld [vmem:[#allocation3 + $0x117] sm:$0xff]
        %v6552 = vld [vmem:[#allocation3 + $0x11f] sm:$0xff]
        %v6553 = vld [vmem:[#allocation3 + $0x127] sm:$0xff]
        %v6554 = vld [vmem:[#allocation3 + $0x12f] sm:$0xff]
        %v6555 = vld [vmem:[#allocation3 + $0x137] sm:$0xff]
        %v6556 = vld [vmem:[#allocation3 + $0x13f] sm:$0xff]
        %v6557 = vld [vmem:[#allocation3 + $0x147] sm:$0xff]
        %v6558 = vld [vmem:[#allocation3 + $0x14f] sm:$0xff]
        %v6559 = vld [vmem:[#allocation3 + $0x157] sm:$0xf]
        %v6560 = vpack.c.bf16 %v6520, %v6519
        %v6561 = vpack.c.bf16 %v6522, %v6521
        %v6562 = vpack.c.bf16 %v6524, %v6523
        %v6563 = vpack.c.bf16 %v6526, %v6525
        %v6564 = vpack.c.bf16 %v6528, %v6527
        %v6565 = vpack.c.bf16 %v6530, %v6529
        %v6566 = vpack.c.bf16 %v6532, %v6531
        %v6567 = vpack.c.bf16 %v6534, %v6533
        %v6568 = vpack.c.bf16 %v6536, %v6535
        %v6569 = vpack.c.bf16 %v6538, %v6537
        %v6570 = vpack.c.bf16 %v6540, %v6539
        %v6571 = vpack.c.bf16 %v6542, %v6541
        %v6572 = vpack.c.bf16 %v6544, %v6543
        %v6573 = vpack.c.bf16 %v6546, %v6545
        %v6574 = vpack.c.bf16 %v6548, %v6547
        %v6575 = vpack.c.bf16 %v6550, %v6549
        %v6576 = vpack.c.bf16 %v6552, %v6551
        %v6577 = vpack.c.bf16 %v6554, %v6553
        %v6578 = vpack.c.bf16 %v6556, %v6555
        %v6579 = vpack.c.bf16 %v6558, %v6557
        %v6580 = vpack.c.bf16 %v6559, %v6559
        %s6581 = scalar_lea.vmem %s6, 192
        %v6582 = vld [vmem:[%s6581] sm:$0xf]
        %v6583 = vld [vmem:[%s6581 + $0x4] sm:$0xf]
        %v6584 = vld [vmem:[%s6581 + $0x8] sm:$0xf]
        %v6585 = vld [vmem:[%s6581 + $0xc] sm:$0xf]
        %v6586 = vld [vmem:[%s6581 + $0x10] sm:$0xf]
        %v6587 = vld [vmem:[%s6581 + $0x14] sm:$0xf]
        %v6588 = vld [vmem:[%s6581 + $0x18] sm:$0xf]
        %v6589 = vld [vmem:[%s6581 + $0x1c] sm:$0xf]
        %v6590 = vld [vmem:[%s6581 + $0x20] sm:$0xf]
        %v6591 = vld [vmem:[%s6581 + $0x24] sm:$0xf]
        %v6592 = vld [vmem:[%s6581 + $0x28] sm:$0xf]
        %v6593 = vld [vmem:[%s6581 + $0x2c] sm:$0xf]
        %v6594 = vld [vmem:[%s6581 + $0x30] sm:$0xf]
        %v6595 = vld [vmem:[%s6581 + $0x34] sm:$0xf]
        %v6596 = vld [vmem:[%s6581 + $0x38] sm:$0xf]
        %v6597 = vld [vmem:[%s6581 + $0x3c] sm:$0xf]
        %v6614 = vunpack.c.l.b16 %v6582
        %v6615 = vunpack.c.l.b16 %v6583
        %v6616 = vunpack.c.l.b16 %v6584
        %v6617 = vunpack.c.l.b16 %v6585
        %v6618 = vunpack.c.l.b16 %v6586
        %v6619 = vunpack.c.l.b16 %v6587
        %v6620 = vunpack.c.l.b16 %v6588
        %v6621 = vunpack.c.l.b16 %v6589
        %v6622 = vunpack.c.l.b16 %v6590
        %v6623 = vunpack.c.l.b16 %v6591
        %v6624 = vunpack.c.l.b16 %v6592
        %v6625 = vunpack.c.l.b16 %v6593
        %v6626 = vunpack.c.l.b16 %v6594
        %v6627 = vunpack.c.l.b16 %v6595
        %v6628 = vunpack.c.l.b16 %v6596
        %v6629 = vunpack.c.l.b16 %v6597
        %v6630 = vpack.c.b16 %v6615, %v6614
        %v6631 = vpack.c.b16 %v6617, %v6616
        %v6632 = vpack.c.b16 %v6619, %v6618
        %v6633 = vpack.c.b16 %v6621, %v6620
        %v6634 = vpack.c.b16 %v6623, %v6622
        %v6635 = vpack.c.b16 %v6625, %v6624
        %v6636 = vpack.c.b16 %v6627, %v6626
        %v6637 = vpack.c.b16 %v6629, %v6628
        %6646 = vmatpush.bf16.msra.mxu0 %v6637
        %6647 = vmatpush.bf16.msra.mxu0 %v6636
        %6648 = vmatpush.bf16.msra.mxu0 %v6635
        %6649 = vmatpush.bf16.msra.mxu0 %v6634
        %6650 = vmatpush.bf16.msra.mxu0 %v6633
        %6651 = vmatpush.bf16.msra.mxu0 %v6632
        %6652 = vmatpush.bf16.msra.mxu0 %v6631
        %6653 = vmatpush.bf16.msra.mxu0 %v6630
        %6654 = vmatmul.bf16.gmra.mxu0 %v6560
        %v6655 = vpop.f32.mrf.mxu0
        %v6656 = vadd.f32 0.0, %v6655
        %v6657 = vpop.f32.mrf.mxu0
        %v6658 = vadd.f32 0.0, %v6657
        %6659 = vmatmul.bf16.gmra.mxu0 %v6561
        %v6660 = vpop.f32.mrf.mxu0
        %v6661 = vadd.f32 0.0, %v6660
        %v6662 = vpop.f32.mrf.mxu0
        %v6663 = vadd.f32 0.0, %v6662
        %6664 = vmatmul.bf16.gmra.mxu0 %v6562
        %v6665 = vpop.f32.mrf.mxu0
        %v6666 = vadd.f32 0.0, %v6665
        %v6667 = vpop.f32.mrf.mxu0
        %v6668 = vadd.f32 0.0, %v6667
        %6669 = vmatmul.bf16.gmra.mxu0 %v6563
        %v6670 = vpop.f32.mrf.mxu0
        %v6671 = vadd.f32 0.0, %v6670
        %v6672 = vpop.f32.mrf.mxu0
        %v6673 = vadd.f32 0.0, %v6672
        %6674 = vmatmul.bf16.gmra.mxu0 %v6564
        %v6675 = vpop.f32.mrf.mxu0
        %v6676 = vadd.f32 0.0, %v6675
        %v6677 = vpop.f32.mrf.mxu0
        %v6678 = vadd.f32 0.0, %v6677
        %6679 = vmatmul.bf16.gmra.mxu0 %v6565
        %v6680 = vpop.f32.mrf.mxu0
        %v6681 = vadd.f32 0.0, %v6680
        %v6682 = vpop.f32.mrf.mxu0
        %v6683 = vadd.f32 0.0, %v6682
        %6684 = vmatmul.bf16.gmra.mxu0 %v6566
        %v6685 = vpop.f32.mrf.mxu0
        %v6686 = vadd.f32 0.0, %v6685
        %v6687 = vpop.f32.mrf.mxu0
        %v6688 = vadd.f32 0.0, %v6687
        %6689 = vmatmul.bf16.gmra.mxu0 %v6567
        %v6690 = vpop.f32.mrf.mxu0
        %v6691 = vadd.f32 0.0, %v6690
        %v6692 = vpop.f32.mrf.mxu0
        %v6693 = vadd.f32 0.0, %v6692
        %6694 = vmatmul.bf16.gmra.mxu0 %v6568
        %v6695 = vpop.f32.mrf.mxu0
        %v6696 = vadd.f32 0.0, %v6695
        %v6697 = vpop.f32.mrf.mxu0
        %v6698 = vadd.f32 0.0, %v6697
        %6699 = vmatmul.bf16.gmra.mxu0 %v6569
        %v6700 = vpop.f32.mrf.mxu0
        %v6701 = vadd.f32 0.0, %v6700
        %v6702 = vpop.f32.mrf.mxu0
        %v6703 = vadd.f32 0.0, %v6702
        %6704 = vmatmul.bf16.gmra.mxu0 %v6570
        %v6705 = vpop.f32.mrf.mxu0
        %v6706 = vadd.f32 0.0, %v6705
        %v6707 = vpop.f32.mrf.mxu0
        %v6708 = vadd.f32 0.0, %v6707
        %6709 = vmatmul.bf16.gmra.mxu0 %v6571
        %v6710 = vpop.f32.mrf.mxu0
        %v6711 = vadd.f32 0.0, %v6710
        %v6712 = vpop.f32.mrf.mxu0
        %v6713 = vadd.f32 0.0, %v6712
        %6714 = vmatmul.bf16.gmra.mxu0 %v6572
        %v6715 = vpop.f32.mrf.mxu0
        %v6716 = vadd.f32 0.0, %v6715
        %v6717 = vpop.f32.mrf.mxu0
        %v6718 = vadd.f32 0.0, %v6717
        %6719 = vmatmul.bf16.gmra.mxu0 %v6573
        %v6720 = vpop.f32.mrf.mxu0
        %v6721 = vadd.f32 0.0, %v6720
        %v6722 = vpop.f32.mrf.mxu0
        %v6723 = vadd.f32 0.0, %v6722
        %6724 = vmatmul.bf16.gmra.mxu0 %v6574
        %v6725 = vpop.f32.mrf.mxu0
        %v6726 = vadd.f32 0.0, %v6725
        %v6727 = vpop.f32.mrf.mxu0
        %v6728 = vadd.f32 0.0, %v6727
        %6729 = vmatmul.bf16.gmra.mxu0 %v6575
        %v6730 = vpop.f32.mrf.mxu0
        %v6731 = vadd.f32 0.0, %v6730
        %v6732 = vpop.f32.mrf.mxu0
        %v6733 = vadd.f32 0.0, %v6732
        %6734 = vmatmul.bf16.gmra.mxu0 %v6576
        %v6735 = vpop.f32.mrf.mxu0
        %v6736 = vadd.f32 0.0, %v6735
        %v6737 = vpop.f32.mrf.mxu0
        %v6738 = vadd.f32 0.0, %v6737
        %6739 = vmatmul.bf16.gmra.mxu0 %v6577
        %v6740 = vpop.f32.mrf.mxu0
        %v6741 = vadd.f32 0.0, %v6740
        %v6742 = vpop.f32.mrf.mxu0
        %v6743 = vadd.f32 0.0, %v6742
        %6744 = vmatmul.bf16.gmra.mxu0 %v6578
        %v6745 = vpop.f32.mrf.mxu0
        %v6746 = vadd.f32 0.0, %v6745
        %v6747 = vpop.f32.mrf.mxu0
        %v6748 = vadd.f32 0.0, %v6747
        %6749 = vmatmul.bf16.gmra.mxu0 %v6579
        %v6750 = vpop.f32.mrf.mxu0
        %v6751 = vadd.f32 0.0, %v6750
        %v6752 = vpop.f32.mrf.mxu0
        %v6753 = vadd.f32 0.0, %v6752
        %6754 = vmatmul.bf16.gmra.mxu0 %v6580
        %v6755 = vpop.f32.mrf.mxu0
        %v6756 = vadd.f32 0.0, %v6755
        %v6757 = vpop.f32.mrf.mxu0
        %6758 = vdwg.mxu0
        %v6759 = vadd.f32 %v6478, %v6656
        %v6760 = vadd.f32 %v6479, %v6658
        %v6761 = vadd.f32 %v6480, %v6661
        %v6762 = vadd.f32 %v6481, %v6663
        %v6763 = vadd.f32 %v6482, %v6666
        %v6764 = vadd.f32 %v6483, %v6668
        %v6765 = vadd.f32 %v6484, %v6671
        %v6766 = vadd.f32 %v6485, %v6673
        %v6767 = vadd.f32 %v6486, %v6676
        %v6768 = vadd.f32 %v6487, %v6678
        %v6769 = vadd.f32 %v6488, %v6681
        %v6770 = vadd.f32 %v6489, %v6683
        %v6771 = vadd.f32 %v6490, %v6686
        %v6772 = vadd.f32 %v6491, %v6688
        %v6773 = vadd.f32 %v6492, %v6691
        %v6774 = vadd.f32 %v6493, %v6693
        %v6775 = vadd.f32 %v6494, %v6696
        %v6776 = vadd.f32 %v6495, %v6698
        %v6777 = vadd.f32 %v6496, %v6701
        %v6778 = vadd.f32 %v6497, %v6703
        %v6779 = vadd.f32 %v6498, %v6706
        %v6780 = vadd.f32 %v6499, %v6708
        %v6781 = vadd.f32 %v6500, %v6711
        %v6782 = vadd.f32 %v6501, %v6713
        %v6783 = vadd.f32 %v6502, %v6716
        %v6784 = vadd.f32 %v6503, %v6718
        %v6785 = vadd.f32 %v6504, %v6721
        %v6786 = vadd.f32 %v6505, %v6723
        %v6787 = vadd.f32 %v6506, %v6726
        %v6788 = vadd.f32 %v6507, %v6728
        %v6789 = vadd.f32 %v6508, %v6731
        %v6790 = vadd.f32 %v6509, %v6733
        %v6791 = vadd.f32 %v6510, %v6736
        %v6792 = vadd.f32 %v6511, %v6738
        %v6793 = vadd.f32 %v6512, %v6741
        %v6794 = vadd.f32 %v6513, %v6743
        %v6795 = vadd.f32 %v6514, %v6746
        %v6796 = vadd.f32 %v6515, %v6748
        %v6797 = vadd.f32 %v6516, %v6751
        %v6798 = vadd.f32 %v6517, %v6753
        %v6799 = vadd.f32 %v6518, %v6756
        %v6800 = vld [vmem:[#allocation3 + $0x18] sm:$0xff]
        %v6801 = vld [vmem:[#allocation3 + $0x20] sm:$0xff]
        %v6802 = vld [vmem:[#allocation3 + $0x28] sm:$0xff]
        %v6803 = vld [vmem:[#allocation3 + $0x30] sm:$0xff]
        %v6804 = vld [vmem:[#allocation3 + $0x38] sm:$0xff]
        %v6805 = vld [vmem:[#allocation3 + $0x40] sm:$0xff]
        %v6806 = vld [vmem:[#allocation3 + $0x48] sm:$0xff]
        %v6807 = vld [vmem:[#allocation3 + $0x50] sm:$0xff]
        %v6808 = vld [vmem:[#allocation3 + $0x58] sm:$0xff]
        %v6809 = vld [vmem:[#allocation3 + $0x60] sm:$0xff]
        %v6810 = vld [vmem:[#allocation3 + $0x68] sm:$0xff]
        %v6811 = vld [vmem:[#allocation3 + $0x70] sm:$0xff]
        %v6812 = vld [vmem:[#allocation3 + $0x78] sm:$0xff]
        %v6813 = vld [vmem:[#allocation3 + $0x80] sm:$0xff]
        %v6814 = vld [vmem:[#allocation3 + $0x88] sm:$0xff]
        %v6815 = vld [vmem:[#allocation3 + $0x90] sm:$0xff]
        %v6816 = vld [vmem:[#allocation3 + $0x98] sm:$0xff]
        %v6817 = vld [vmem:[#allocation3 + $0xa0] sm:$0xff]
        %v6818 = vld [vmem:[#allocation3 + $0xa8] sm:$0xff]
        %v6819 = vld [vmem:[#allocation3 + $0xb0] sm:$0xff]
        %v6820 = vld [vmem:[#allocation3 + $0xb8] sm:$0xff]
        %v6821 = vld [vmem:[#allocation3 + $0xc0] sm:$0xff]
        %v6822 = vld [vmem:[#allocation3 + $0xc8] sm:$0xff]
        %v6823 = vld [vmem:[#allocation3 + $0xd0] sm:$0xff]
        %v6824 = vld [vmem:[#allocation3 + $0xd8] sm:$0xff]
        %v6825 = vld [vmem:[#allocation3 + $0xe0] sm:$0xff]
        %v6826 = vld [vmem:[#allocation3 + $0xe8] sm:$0xff]
        %v6827 = vld [vmem:[#allocation3 + $0xf0] sm:$0xff]
        %v6828 = vld [vmem:[#allocation3 + $0xf8] sm:$0xff]
        %v6829 = vld [vmem:[#allocation3 + $0x100] sm:$0xff]
        %v6830 = vld [vmem:[#allocation3 + $0x108] sm:$0xff]
        %v6831 = vld [vmem:[#allocation3 + $0x110] sm:$0xff]
        %v6832 = vld [vmem:[#allocation3 + $0x118] sm:$0xff]
        %v6833 = vld [vmem:[#allocation3 + $0x120] sm:$0xff]
        %v6834 = vld [vmem:[#allocation3 + $0x128] sm:$0xff]
        %v6835 = vld [vmem:[#allocation3 + $0x130] sm:$0xff]
        %v6836 = vld [vmem:[#allocation3 + $0x138] sm:$0xff]
        %v6837 = vld [vmem:[#allocation3 + $0x140] sm:$0xff]
        %v6838 = vld [vmem:[#allocation3 + $0x148] sm:$0xff]
        %v6839 = vld [vmem:[#allocation3 + $0x150] sm:$0xff]
        %v6840 = vld [vmem:[#allocation3 + $0x158] sm:$0xf]
        %v6841 = vpack.c.bf16 %v6801, %v6800
        %v6842 = vpack.c.bf16 %v6803, %v6802
        %v6843 = vpack.c.bf16 %v6805, %v6804
        %v6844 = vpack.c.bf16 %v6807, %v6806
        %v6845 = vpack.c.bf16 %v6809, %v6808
        %v6846 = vpack.c.bf16 %v6811, %v6810
        %v6847 = vpack.c.bf16 %v6813, %v6812
        %v6848 = vpack.c.bf16 %v6815, %v6814
        %v6849 = vpack.c.bf16 %v6817, %v6816
        %v6850 = vpack.c.bf16 %v6819, %v6818
        %v6851 = vpack.c.bf16 %v6821, %v6820
        %v6852 = vpack.c.bf16 %v6823, %v6822
        %v6853 = vpack.c.bf16 %v6825, %v6824
        %v6854 = vpack.c.bf16 %v6827, %v6826
        %v6855 = vpack.c.bf16 %v6829, %v6828
        %v6856 = vpack.c.bf16 %v6831, %v6830
        %v6857 = vpack.c.bf16 %v6833, %v6832
        %v6858 = vpack.c.bf16 %v6835, %v6834
        %v6859 = vpack.c.bf16 %v6837, %v6836
        %v6860 = vpack.c.bf16 %v6839, %v6838
        %v6861 = vpack.c.bf16 %v6840, %v6840
        %s6862 = scalar_lea.vmem %s6, 256
        %v6863 = vld [vmem:[%s6862] sm:$0xf]
        %v6864 = vld [vmem:[%s6862 + $0x4] sm:$0xf]
        %v6865 = vld [vmem:[%s6862 + $0x8] sm:$0xf]
        %v6866 = vld [vmem:[%s6862 + $0xc] sm:$0xf]
        %v6867 = vld [vmem:[%s6862 + $0x10] sm:$0xf]
        %v6868 = vld [vmem:[%s6862 + $0x14] sm:$0xf]
        %v6869 = vld [vmem:[%s6862 + $0x18] sm:$0xf]
        %v6870 = vld [vmem:[%s6862 + $0x1c] sm:$0xf]
        %v6871 = vld [vmem:[%s6862 + $0x20] sm:$0xf]
        %v6872 = vld [vmem:[%s6862 + $0x24] sm:$0xf]
        %v6873 = vld [vmem:[%s6862 + $0x28] sm:$0xf]
        %v6874 = vld [vmem:[%s6862 + $0x2c] sm:$0xf]
        %v6875 = vld [vmem:[%s6862 + $0x30] sm:$0xf]
        %v6876 = vld [vmem:[%s6862 + $0x34] sm:$0xf]
        %v6877 = vld [vmem:[%s6862 + $0x38] sm:$0xf]
        %v6878 = vld [vmem:[%s6862 + $0x3c] sm:$0xf]
        %v6895 = vunpack.c.l.b16 %v6863
        %v6896 = vunpack.c.l.b16 %v6864
        %v6897 = vunpack.c.l.b16 %v6865
        %v6898 = vunpack.c.l.b16 %v6866
        %v6899 = vunpack.c.l.b16 %v6867
        %v6900 = vunpack.c.l.b16 %v6868
        %v6901 = vunpack.c.l.b16 %v6869
        %v6902 = vunpack.c.l.b16 %v6870
        %v6903 = vunpack.c.l.b16 %v6871
        %v6904 = vunpack.c.l.b16 %v6872
        %v6905 = vunpack.c.l.b16 %v6873
        %v6906 = vunpack.c.l.b16 %v6874
        %v6907 = vunpack.c.l.b16 %v6875
        %v6908 = vunpack.c.l.b16 %v6876
        %v6909 = vunpack.c.l.b16 %v6877
        %v6910 = vunpack.c.l.b16 %v6878
        %v6911 = vpack.c.b16 %v6896, %v6895
        %v6912 = vpack.c.b16 %v6898, %v6897
        %v6913 = vpack.c.b16 %v6900, %v6899
        %v6914 = vpack.c.b16 %v6902, %v6901
        %v6915 = vpack.c.b16 %v6904, %v6903
        %v6916 = vpack.c.b16 %v6906, %v6905
        %v6917 = vpack.c.b16 %v6908, %v6907
        %v6918 = vpack.c.b16 %v6910, %v6909
        %6927 = vmatpush.bf16.msra.mxu0 %v6918
        %6928 = vmatpush.bf16.msra.mxu0 %v6917
        %6929 = vmatpush.bf16.msra.mxu0 %v6916
        %6930 = vmatpush.bf16.msra.mxu0 %v6915
        %6931 = vmatpush.bf16.msra.mxu0 %v6914
        %6932 = vmatpush.bf16.msra.mxu0 %v6913
        %6933 = vmatpush.bf16.msra.mxu0 %v6912
        %6934 = vmatpush.bf16.msra.mxu0 %v6911
        %6935 = vmatmul.bf16.gmra.mxu0 %v6841
        %v6936 = vpop.f32.mrf.mxu0
        %v6937 = vadd.f32 0.0, %v6936
        %v6938 = vpop.f32.mrf.mxu0
        %v6939 = vadd.f32 0.0, %v6938
        %6940 = vmatmul.bf16.gmra.mxu0 %v6842
        %v6941 = vpop.f32.mrf.mxu0
        %v6942 = vadd.f32 0.0, %v6941
        %v6943 = vpop.f32.mrf.mxu0
        %v6944 = vadd.f32 0.0, %v6943
        %6945 = vmatmul.bf16.gmra.mxu0 %v6843
        %v6946 = vpop.f32.mrf.mxu0
        %v6947 = vadd.f32 0.0, %v6946
        %v6948 = vpop.f32.mrf.mxu0
        %v6949 = vadd.f32 0.0, %v6948
        %6950 = vmatmul.bf16.gmra.mxu0 %v6844
        %v6951 = vpop.f32.mrf.mxu0
        %v6952 = vadd.f32 0.0, %v6951
        %v6953 = vpop.f32.mrf.mxu0
        %v6954 = vadd.f32 0.0, %v6953
        %6955 = vmatmul.bf16.gmra.mxu0 %v6845
        %v6956 = vpop.f32.mrf.mxu0
        %v6957 = vadd.f32 0.0, %v6956
        %v6958 = vpop.f32.mrf.mxu0
        %v6959 = vadd.f32 0.0, %v6958
        %6960 = vmatmul.bf16.gmra.mxu0 %v6846
        %v6961 = vpop.f32.mrf.mxu0
        %v6962 = vadd.f32 0.0, %v6961
        %v6963 = vpop.f32.mrf.mxu0
        %v6964 = vadd.f32 0.0, %v6963
        %6965 = vmatmul.bf16.gmra.mxu0 %v6847
        %v6966 = vpop.f32.mrf.mxu0
        %v6967 = vadd.f32 0.0, %v6966
        %v6968 = vpop.f32.mrf.mxu0
        %v6969 = vadd.f32 0.0, %v6968
        %6970 = vmatmul.bf16.gmra.mxu0 %v6848
        %v6971 = vpop.f32.mrf.mxu0
        %v6972 = vadd.f32 0.0, %v6971
        %v6973 = vpop.f32.mrf.mxu0
        %v6974 = vadd.f32 0.0, %v6973
        %6975 = vmatmul.bf16.gmra.mxu0 %v6849
        %v6976 = vpop.f32.mrf.mxu0
        %v6977 = vadd.f32 0.0, %v6976
        %v6978 = vpop.f32.mrf.mxu0
        %v6979 = vadd.f32 0.0, %v6978
        %6980 = vmatmul.bf16.gmra.mxu0 %v6850
        %v6981 = vpop.f32.mrf.mxu0
        %v6982 = vadd.f32 0.0, %v6981
        %v6983 = vpop.f32.mrf.mxu0
        %v6984 = vadd.f32 0.0, %v6983
        %6985 = vmatmul.bf16.gmra.mxu0 %v6851
        %v6986 = vpop.f32.mrf.mxu0
        %v6987 = vadd.f32 0.0, %v6986
        %v6988 = vpop.f32.mrf.mxu0
        %v6989 = vadd.f32 0.0, %v6988
        %6990 = vmatmul.bf16.gmra.mxu0 %v6852
        %v6991 = vpop.f32.mrf.mxu0
        %v6992 = vadd.f32 0.0, %v6991
        %v6993 = vpop.f32.mrf.mxu0
        %v6994 = vadd.f32 0.0, %v6993
        %6995 = vmatmul.bf16.gmra.mxu0 %v6853
        %v6996 = vpop.f32.mrf.mxu0
        %v6997 = vadd.f32 0.0, %v6996
        %v6998 = vpop.f32.mrf.mxu0
        %v6999 = vadd.f32 0.0, %v6998
        %7000 = vmatmul.bf16.gmra.mxu0 %v6854
        %v7001 = vpop.f32.mrf.mxu0
        %v7002 = vadd.f32 0.0, %v7001
        %v7003 = vpop.f32.mrf.mxu0
        %v7004 = vadd.f32 0.0, %v7003
        %7005 = vmatmul.bf16.gmra.mxu0 %v6855
        %v7006 = vpop.f32.mrf.mxu0
        %v7007 = vadd.f32 0.0, %v7006
        %v7008 = vpop.f32.mrf.mxu0
        %v7009 = vadd.f32 0.0, %v7008
        %7010 = vmatmul.bf16.gmra.mxu0 %v6856
        %v7011 = vpop.f32.mrf.mxu0
        %v7012 = vadd.f32 0.0, %v7011
        %v7013 = vpop.f32.mrf.mxu0
        %v7014 = vadd.f32 0.0, %v7013
        %7015 = vmatmul.bf16.gmra.mxu0 %v6857
        %v7016 = vpop.f32.mrf.mxu0
        %v7017 = vadd.f32 0.0, %v7016
        %v7018 = vpop.f32.mrf.mxu0
        %v7019 = vadd.f32 0.0, %v7018
        %7020 = vmatmul.bf16.gmra.mxu0 %v6858
        %v7021 = vpop.f32.mrf.mxu0
        %v7022 = vadd.f32 0.0, %v7021
        %v7023 = vpop.f32.mrf.mxu0
        %v7024 = vadd.f32 0.0, %v7023
        %7025 = vmatmul.bf16.gmra.mxu0 %v6859
        %v7026 = vpop.f32.mrf.mxu0
        %v7027 = vadd.f32 0.0, %v7026
        %v7028 = vpop.f32.mrf.mxu0
        %v7029 = vadd.f32 0.0, %v7028
        %7030 = vmatmul.bf16.gmra.mxu0 %v6860
        %v7031 = vpop.f32.mrf.mxu0
        %v7032 = vadd.f32 0.0, %v7031
        %v7033 = vpop.f32.mrf.mxu0
        %v7034 = vadd.f32 0.0, %v7033
        %7035 = vmatmul.bf16.gmra.mxu0 %v6861
        %v7036 = vpop.f32.mrf.mxu0
        %v7037 = vadd.f32 0.0, %v7036
        %v7038 = vpop.f32.mrf.mxu0
        %7039 = vdwg.mxu0
        %v7040 = vadd.f32 %v6759, %v6937
        %v7041 = vadd.f32 %v6760, %v6939
        %v7042 = vadd.f32 %v6761, %v6942
        %v7043 = vadd.f32 %v6762, %v6944
        %v7044 = vadd.f32 %v6763, %v6947
        %v7045 = vadd.f32 %v6764, %v6949
        %v7046 = vadd.f32 %v6765, %v6952
        %v7047 = vadd.f32 %v6766, %v6954
        %v7048 = vadd.f32 %v6767, %v6957
        %v7049 = vadd.f32 %v6768, %v6959
        %v7050 = vadd.f32 %v6769, %v6962
        %v7051 = vadd.f32 %v6770, %v6964
        %v7052 = vadd.f32 %v6771, %v6967
        %v7053 = vadd.f32 %v6772, %v6969
        %v7054 = vadd.f32 %v6773, %v6972
        %v7055 = vadd.f32 %v6774, %v6974
        %v7056 = vadd.f32 %v6775, %v6977
        %v7057 = vadd.f32 %v6776, %v6979
        %v7058 = vadd.f32 %v6777, %v6982
        %v7059 = vadd.f32 %v6778, %v6984
        %v7060 = vadd.f32 %v6779, %v6987
        %v7061 = vadd.f32 %v6780, %v6989
        %v7062 = vadd.f32 %v6781, %v6992
        %v7063 = vadd.f32 %v6782, %v6994
        %v7064 = vadd.f32 %v6783, %v6997
        %v7065 = vadd.f32 %v6784, %v6999
        %v7066 = vadd.f32 %v6785, %v7002
        %v7067 = vadd.f32 %v6786, %v7004
        %v7068 = vadd.f32 %v6787, %v7007
        %v7069 = vadd.f32 %v6788, %v7009
        %v7070 = vadd.f32 %v6789, %v7012
        %v7071 = vadd.f32 %v6790, %v7014
        %v7072 = vadd.f32 %v6791, %v7017
        %v7073 = vadd.f32 %v6792, %v7019
        %v7074 = vadd.f32 %v6793, %v7022
        %v7075 = vadd.f32 %v6794, %v7024
        %v7076 = vadd.f32 %v6795, %v7027
        %v7077 = vadd.f32 %v6796, %v7029
        %v7078 = vadd.f32 %v6797, %v7032
        %v7079 = vadd.f32 %v6798, %v7034
        %v7080 = vadd.f32 %v6799, %v7037
        %v7081 = vld [vmem:[#allocation3 + $0x19] sm:$0xff]
        %v7082 = vld [vmem:[#allocation3 + $0x21] sm:$0xff]
        %v7083 = vld [vmem:[#allocation3 + $0x29] sm:$0xff]
        %v7084 = vld [vmem:[#allocation3 + $0x31] sm:$0xff]
        %v7085 = vld [vmem:[#allocation3 + $0x39] sm:$0xff]
        %v7086 = vld [vmem:[#allocation3 + $0x41] sm:$0xff]
        %v7087 = vld [vmem:[#allocation3 + $0x49] sm:$0xff]
        %v7088 = vld [vmem:[#allocation3 + $0x51] sm:$0xff]
        %v7089 = vld [vmem:[#allocation3 + $0x59] sm:$0xff]
        %v7090 = vld [vmem:[#allocation3 + $0x61] sm:$0xff]
        %v7091 = vld [vmem:[#allocation3 + $0x69] sm:$0xff]
        %v7092 = vld [vmem:[#allocation3 + $0x71] sm:$0xff]
        %v7093 = vld [vmem:[#allocation3 + $0x79] sm:$0xff]
        %v7094 = vld [vmem:[#allocation3 + $0x81] sm:$0xff]
        %v7095 = vld [vmem:[#allocation3 + $0x89] sm:$0xff]
        %v7096 = vld [vmem:[#allocation3 + $0x91] sm:$0xff]
        %v7097 = vld [vmem:[#allocation3 + $0x99] sm:$0xff]
        %v7098 = vld [vmem:[#allocation3 + $0xa1] sm:$0xff]
        %v7099 = vld [vmem:[#allocation3 + $0xa9] sm:$0xff]
        %v7100 = vld [vmem:[#allocation3 + $0xb1] sm:$0xff]
        %v7101 = vld [vmem:[#allocation3 + $0xb9] sm:$0xff]
        %v7102 = vld [vmem:[#allocation3 + $0xc1] sm:$0xff]
        %v7103 = vld [vmem:[#allocation3 + $0xc9] sm:$0xff]
        %v7104 = vld [vmem:[#allocation3 + $0xd1] sm:$0xff]
        %v7105 = vld [vmem:[#allocation3 + $0xd9] sm:$0xff]
        %v7106 = vld [vmem:[#allocation3 + $0xe1] sm:$0xff]
        %v7107 = vld [vmem:[#allocation3 + $0xe9] sm:$0xff]
        %v7108 = vld [vmem:[#allocation3 + $0xf1] sm:$0xff]
        %v7109 = vld [vmem:[#allocation3 + $0xf9] sm:$0xff]
        %v7110 = vld [vmem:[#allocation3 + $0x101] sm:$0xff]
        %v7111 = vld [vmem:[#allocation3 + $0x109] sm:$0xff]
        %v7112 = vld [vmem:[#allocation3 + $0x111] sm:$0xff]
        %v7113 = vld [vmem:[#allocation3 + $0x119] sm:$0xff]
        %v7114 = vld [vmem:[#allocation3 + $0x121] sm:$0xff]
        %v7115 = vld [vmem:[#allocation3 + $0x129] sm:$0xff]
        %v7116 = vld [vmem:[#allocation3 + $0x131] sm:$0xff]
        %v7117 = vld [vmem:[#allocation3 + $0x139] sm:$0xff]
        %v7118 = vld [vmem:[#allocation3 + $0x141] sm:$0xff]
        %v7119 = vld [vmem:[#allocation3 + $0x149] sm:$0xff]
        %v7120 = vld [vmem:[#allocation3 + $0x151] sm:$0xff]
        %v7121 = vld [vmem:[#allocation3 + $0x159] sm:$0xf]
        %v7122 = vpack.c.bf16 %v7082, %v7081
        %v7123 = vpack.c.bf16 %v7084, %v7083
        %v7124 = vpack.c.bf16 %v7086, %v7085
        %v7125 = vpack.c.bf16 %v7088, %v7087
        %v7126 = vpack.c.bf16 %v7090, %v7089
        %v7127 = vpack.c.bf16 %v7092, %v7091
        %v7128 = vpack.c.bf16 %v7094, %v7093
        %v7129 = vpack.c.bf16 %v7096, %v7095
        %v7130 = vpack.c.bf16 %v7098, %v7097
        %v7131 = vpack.c.bf16 %v7100, %v7099
        %v7132 = vpack.c.bf16 %v7102, %v7101
        %v7133 = vpack.c.bf16 %v7104, %v7103
        %v7134 = vpack.c.bf16 %v7106, %v7105
        %v7135 = vpack.c.bf16 %v7108, %v7107
        %v7136 = vpack.c.bf16 %v7110, %v7109
        %v7137 = vpack.c.bf16 %v7112, %v7111
        %v7138 = vpack.c.bf16 %v7114, %v7113
        %v7139 = vpack.c.bf16 %v7116, %v7115
        %v7140 = vpack.c.bf16 %v7118, %v7117
        %v7141 = vpack.c.bf16 %v7120, %v7119
        %v7142 = vpack.c.bf16 %v7121, %v7121
        %s7143 = scalar_lea.vmem %s6, 320
        %v7144 = vld [vmem:[%s7143] sm:$0xf]
        %v7145 = vld [vmem:[%s7143 + $0x4] sm:$0xf]
        %v7146 = vld [vmem:[%s7143 + $0x8] sm:$0xf]
        %v7147 = vld [vmem:[%s7143 + $0xc] sm:$0xf]
        %v7148 = vld [vmem:[%s7143 + $0x10] sm:$0xf]
        %v7149 = vld [vmem:[%s7143 + $0x14] sm:$0xf]
        %v7150 = vld [vmem:[%s7143 + $0x18] sm:$0xf]
        %v7151 = vld [vmem:[%s7143 + $0x1c] sm:$0xf]
        %v7152 = vld [vmem:[%s7143 + $0x20] sm:$0xf]
        %v7153 = vld [vmem:[%s7143 + $0x24] sm:$0xf]
        %v7154 = vld [vmem:[%s7143 + $0x28] sm:$0xf]
        %v7155 = vld [vmem:[%s7143 + $0x2c] sm:$0xf]
        %v7156 = vld [vmem:[%s7143 + $0x30] sm:$0xf]
        %v7157 = vld [vmem:[%s7143 + $0x34] sm:$0xf]
        %v7158 = vld [vmem:[%s7143 + $0x38] sm:$0xf]
        %v7159 = vld [vmem:[%s7143 + $0x3c] sm:$0xf]
        %v7176 = vunpack.c.l.b16 %v7144
        %v7177 = vunpack.c.l.b16 %v7145
        %v7178 = vunpack.c.l.b16 %v7146
        %v7179 = vunpack.c.l.b16 %v7147
        %v7180 = vunpack.c.l.b16 %v7148
        %v7181 = vunpack.c.l.b16 %v7149
        %v7182 = vunpack.c.l.b16 %v7150
        %v7183 = vunpack.c.l.b16 %v7151
        %v7184 = vunpack.c.l.b16 %v7152
        %v7185 = vunpack.c.l.b16 %v7153
        %v7186 = vunpack.c.l.b16 %v7154
        %v7187 = vunpack.c.l.b16 %v7155
        %v7188 = vunpack.c.l.b16 %v7156
        %v7189 = vunpack.c.l.b16 %v7157
        %v7190 = vunpack.c.l.b16 %v7158
        %v7191 = vunpack.c.l.b16 %v7159
        %v7192 = vpack.c.b16 %v7177, %v7176
        %v7193 = vpack.c.b16 %v7179, %v7178
        %v7194 = vpack.c.b16 %v7181, %v7180
        %v7195 = vpack.c.b16 %v7183, %v7182
        %v7196 = vpack.c.b16 %v7185, %v7184
        %v7197 = vpack.c.b16 %v7187, %v7186
        %v7198 = vpack.c.b16 %v7189, %v7188
        %v7199 = vpack.c.b16 %v7191, %v7190
        %7208 = vmatpush.bf16.msra.mxu0 %v7199
        %7209 = vmatpush.bf16.msra.mxu0 %v7198
        %7210 = vmatpush.bf16.msra.mxu0 %v7197
        %7211 = vmatpush.bf16.msra.mxu0 %v7196
        %7212 = vmatpush.bf16.msra.mxu0 %v7195
        %7213 = vmatpush.bf16.msra.mxu0 %v7194
        %7214 = vmatpush.bf16.msra.mxu0 %v7193
        %7215 = vmatpush.bf16.msra.mxu0 %v7192
        %7216 = vmatmul.bf16.gmra.mxu0 %v7122
        %v7217 = vpop.f32.mrf.mxu0
        %v7218 = vadd.f32 0.0, %v7217
        %v7219 = vpop.f32.mrf.mxu0
        %v7220 = vadd.f32 0.0, %v7219
        %7221 = vmatmul.bf16.gmra.mxu0 %v7123
        %v7222 = vpop.f32.mrf.mxu0
        %v7223 = vadd.f32 0.0, %v7222
        %v7224 = vpop.f32.mrf.mxu0
        %v7225 = vadd.f32 0.0, %v7224
        %7226 = vmatmul.bf16.gmra.mxu0 %v7124
        %v7227 = vpop.f32.mrf.mxu0
        %v7228 = vadd.f32 0.0, %v7227
        %v7229 = vpop.f32.mrf.mxu0
        %v7230 = vadd.f32 0.0, %v7229
        %7231 = vmatmul.bf16.gmra.mxu0 %v7125
        %v7232 = vpop.f32.mrf.mxu0
        %v7233 = vadd.f32 0.0, %v7232
        %v7234 = vpop.f32.mrf.mxu0
        %v7235 = vadd.f32 0.0, %v7234
        %7236 = vmatmul.bf16.gmra.mxu0 %v7126
        %v7237 = vpop.f32.mrf.mxu0
        %v7238 = vadd.f32 0.0, %v7237
        %v7239 = vpop.f32.mrf.mxu0
        %v7240 = vadd.f32 0.0, %v7239
        %7241 = vmatmul.bf16.gmra.mxu0 %v7127
        %v7242 = vpop.f32.mrf.mxu0
        %v7243 = vadd.f32 0.0, %v7242
        %v7244 = vpop.f32.mrf.mxu0
        %v7245 = vadd.f32 0.0, %v7244
        %7246 = vmatmul.bf16.gmra.mxu0 %v7128
        %v7247 = vpop.f32.mrf.mxu0
        %v7248 = vadd.f32 0.0, %v7247
        %v7249 = vpop.f32.mrf.mxu0
        %v7250 = vadd.f32 0.0, %v7249
        %7251 = vmatmul.bf16.gmra.mxu0 %v7129
        %v7252 = vpop.f32.mrf.mxu0
        %v7253 = vadd.f32 0.0, %v7252
        %v7254 = vpop.f32.mrf.mxu0
        %v7255 = vadd.f32 0.0, %v7254
        %7256 = vmatmul.bf16.gmra.mxu0 %v7130
        %v7257 = vpop.f32.mrf.mxu0
        %v7258 = vadd.f32 0.0, %v7257
        %v7259 = vpop.f32.mrf.mxu0
        %v7260 = vadd.f32 0.0, %v7259
        %7261 = vmatmul.bf16.gmra.mxu0 %v7131
        %v7262 = vpop.f32.mrf.mxu0
        %v7263 = vadd.f32 0.0, %v7262
        %v7264 = vpop.f32.mrf.mxu0
        %v7265 = vadd.f32 0.0, %v7264
        %7266 = vmatmul.bf16.gmra.mxu0 %v7132
        %v7267 = vpop.f32.mrf.mxu0
        %v7268 = vadd.f32 0.0, %v7267
        %v7269 = vpop.f32.mrf.mxu0
        %v7270 = vadd.f32 0.0, %v7269
        %7271 = vmatmul.bf16.gmra.mxu0 %v7133
        %v7272 = vpop.f32.mrf.mxu0
        %v7273 = vadd.f32 0.0, %v7272
        %v7274 = vpop.f32.mrf.mxu0
        %v7275 = vadd.f32 0.0, %v7274
        %7276 = vmatmul.bf16.gmra.mxu0 %v7134
        %v7277 = vpop.f32.mrf.mxu0
        %v7278 = vadd.f32 0.0, %v7277
        %v7279 = vpop.f32.mrf.mxu0
        %v7280 = vadd.f32 0.0, %v7279
        %7281 = vmatmul.bf16.gmra.mxu0 %v7135
        %v7282 = vpop.f32.mrf.mxu0
        %v7283 = vadd.f32 0.0, %v7282
        %v7284 = vpop.f32.mrf.mxu0
        %v7285 = vadd.f32 0.0, %v7284
        %7286 = vmatmul.bf16.gmra.mxu0 %v7136
        %v7287 = vpop.f32.mrf.mxu0
        %v7288 = vadd.f32 0.0, %v7287
        %v7289 = vpop.f32.mrf.mxu0
        %v7290 = vadd.f32 0.0, %v7289
        %7291 = vmatmul.bf16.gmra.mxu0 %v7137
        %v7292 = vpop.f32.mrf.mxu0
        %v7293 = vadd.f32 0.0, %v7292
        %v7294 = vpop.f32.mrf.mxu0
        %v7295 = vadd.f32 0.0, %v7294
        %7296 = vmatmul.bf16.gmra.mxu0 %v7138
        %v7297 = vpop.f32.mrf.mxu0
        %v7298 = vadd.f32 0.0, %v7297
        %v7299 = vpop.f32.mrf.mxu0
        %v7300 = vadd.f32 0.0, %v7299
        %7301 = vmatmul.bf16.gmra.mxu0 %v7139
        %v7302 = vpop.f32.mrf.mxu0
        %v7303 = vadd.f32 0.0, %v7302
        %v7304 = vpop.f32.mrf.mxu0
        %v7305 = vadd.f32 0.0, %v7304
        %7306 = vmatmul.bf16.gmra.mxu0 %v7140
        %v7307 = vpop.f32.mrf.mxu0
        %v7308 = vadd.f32 0.0, %v7307
        %v7309 = vpop.f32.mrf.mxu0
        %v7310 = vadd.f32 0.0, %v7309
        %7311 = vmatmul.bf16.gmra.mxu0 %v7141
        %v7312 = vpop.f32.mrf.mxu0
        %v7313 = vadd.f32 0.0, %v7312
        %v7314 = vpop.f32.mrf.mxu0
        %v7315 = vadd.f32 0.0, %v7314
        %7316 = vmatmul.bf16.gmra.mxu0 %v7142
        %v7317 = vpop.f32.mrf.mxu0
        %v7318 = vadd.f32 0.0, %v7317
        %v7319 = vpop.f32.mrf.mxu0
        %7320 = vdwg.mxu0
        %v7321 = vadd.f32 %v7040, %v7218
        %v7322 = vadd.f32 %v7041, %v7220
        %v7323 = vadd.f32 %v7042, %v7223
        %v7324 = vadd.f32 %v7043, %v7225
        %v7325 = vadd.f32 %v7044, %v7228
        %v7326 = vadd.f32 %v7045, %v7230
        %v7327 = vadd.f32 %v7046, %v7233
        %v7328 = vadd.f32 %v7047, %v7235
        %v7329 = vadd.f32 %v7048, %v7238
        %v7330 = vadd.f32 %v7049, %v7240
        %v7331 = vadd.f32 %v7050, %v7243
        %v7332 = vadd.f32 %v7051, %v7245
        %v7333 = vadd.f32 %v7052, %v7248
        %v7334 = vadd.f32 %v7053, %v7250
        %v7335 = vadd.f32 %v7054, %v7253
        %v7336 = vadd.f32 %v7055, %v7255
        %v7337 = vadd.f32 %v7056, %v7258
        %v7338 = vadd.f32 %v7057, %v7260
        %v7339 = vadd.f32 %v7058, %v7263
        %v7340 = vadd.f32 %v7059, %v7265
        %v7341 = vadd.f32 %v7060, %v7268
        %v7342 = vadd.f32 %v7061, %v7270
        %v7343 = vadd.f32 %v7062, %v7273
        %v7344 = vadd.f32 %v7063, %v7275
        %v7345 = vadd.f32 %v7064, %v7278
        %v7346 = vadd.f32 %v7065, %v7280
        %v7347 = vadd.f32 %v7066, %v7283
        %v7348 = vadd.f32 %v7067, %v7285
        %v7349 = vadd.f32 %v7068, %v7288
        %v7350 = vadd.f32 %v7069, %v7290
        %v7351 = vadd.f32 %v7070, %v7293
        %v7352 = vadd.f32 %v7071, %v7295
        %v7353 = vadd.f32 %v7072, %v7298
        %v7354 = vadd.f32 %v7073, %v7300
        %v7355 = vadd.f32 %v7074, %v7303
        %v7356 = vadd.f32 %v7075, %v7305
        %v7357 = vadd.f32 %v7076, %v7308
        %v7358 = vadd.f32 %v7077, %v7310
        %v7359 = vadd.f32 %v7078, %v7313
        %v7360 = vadd.f32 %v7079, %v7315
        %v7361 = vadd.f32 %v7080, %v7318
        %v7362 = vld [vmem:[#allocation3 + $0x29] sm:$0xff]
        %v7363 = vld [vmem:[#allocation3 + $0x31] sm:$0xff]
        %v7364 = vld [vmem:[#allocation3 + $0x39] sm:$0xff]
        %v7365 = vld [vmem:[#allocation3 + $0x41] sm:$0xff]
        %v7366 = vld [vmem:[#allocation3 + $0x49] sm:$0xff]
        %v7367 = vld [vmem:[#allocation3 + $0x51] sm:$0xff]
        %v7368 = vld [vmem:[#allocation3 + $0x59] sm:$0xff]
        %v7369 = vld [vmem:[#allocation3 + $0x61] sm:$0xff]
        %v7370 = vld [vmem:[#allocation3 + $0x69] sm:$0xff]
        %v7371 = vld [vmem:[#allocation3 + $0x71] sm:$0xff]
        %v7372 = vld [vmem:[#allocation3 + $0x79] sm:$0xff]
        %v7373 = vld [vmem:[#allocation3 + $0x81] sm:$0xff]
        %v7374 = vld [vmem:[#allocation3 + $0x89] sm:$0xff]
        %v7375 = vld [vmem:[#allocation3 + $0x91] sm:$0xff]
        %v7376 = vld [vmem:[#allocation3 + $0x99] sm:$0xff]
        %v7377 = vld [vmem:[#allocation3 + $0xa1] sm:$0xff]
        %v7378 = vld [vmem:[#allocation3 + $0xa9] sm:$0xff]
        %v7379 = vld [vmem:[#allocation3 + $0xb1] sm:$0xff]
        %v7380 = vld [vmem:[#allocation3 + $0xb9] sm:$0xff]
        %v7381 = vld [vmem:[#allocation3 + $0xc1] sm:$0xff]
        %v7382 = vld [vmem:[#allocation3 + $0xc9] sm:$0xff]
        %v7383 = vld [vmem:[#allocation3 + $0xd1] sm:$0xff]
        %v7384 = vld [vmem:[#allocation3 + $0xd9] sm:$0xff]
        %v7385 = vld [vmem:[#allocation3 + $0xe1] sm:$0xff]
        %v7386 = vld [vmem:[#allocation3 + $0xe9] sm:$0xff]
        %v7387 = vld [vmem:[#allocation3 + $0xf1] sm:$0xff]
        %v7388 = vld [vmem:[#allocation3 + $0xf9] sm:$0xff]
        %v7389 = vld [vmem:[#allocation3 + $0x101] sm:$0xff]
        %v7390 = vld [vmem:[#allocation3 + $0x109] sm:$0xff]
        %v7391 = vld [vmem:[#allocation3 + $0x111] sm:$0xff]
        %v7392 = vld [vmem:[#allocation3 + $0x119] sm:$0xff]
        %v7393 = vld [vmem:[#allocation3 + $0x121] sm:$0xff]
        %v7394 = vld [vmem:[#allocation3 + $0x129] sm:$0xff]
        %v7395 = vld [vmem:[#allocation3 + $0x131] sm:$0xff]
        %v7396 = vld [vmem:[#allocation3 + $0x139] sm:$0xff]
        %v7397 = vld [vmem:[#allocation3 + $0x141] sm:$0xff]
        %v7398 = vld [vmem:[#allocation3 + $0x149] sm:$0xff]
        %v7399 = vld [vmem:[#allocation3 + $0x151] sm:$0xff]
        %v7400 = vld [vmem:[#allocation3 + $0x159] sm:$0xff]
        %v7401 = vld [vmem:[#allocation3 + $0x161] sm:$0xff]
        %v7402 = vld [vmem:[#allocation3 + $0x169] sm:$0xf]
        %v7403 = vpack.c.bf16 %v7363, %v7362
        %v7404 = vpack.c.bf16 %v7365, %v7364
        %v7405 = vpack.c.bf16 %v7367, %v7366
        %v7406 = vpack.c.bf16 %v7369, %v7368
        %v7407 = vpack.c.bf16 %v7371, %v7370
        %v7408 = vpack.c.bf16 %v7373, %v7372
        %v7409 = vpack.c.bf16 %v7375, %v7374
        %v7410 = vpack.c.bf16 %v7377, %v7376
        %v7411 = vpack.c.bf16 %v7379, %v7378
        %v7412 = vpack.c.bf16 %v7381, %v7380
        %v7413 = vpack.c.bf16 %v7383, %v7382
        %v7414 = vpack.c.bf16 %v7385, %v7384
        %v7415 = vpack.c.bf16 %v7387, %v7386
        %v7416 = vpack.c.bf16 %v7389, %v7388
        %v7417 = vpack.c.bf16 %v7391, %v7390
        %v7418 = vpack.c.bf16 %v7393, %v7392
        %v7419 = vpack.c.bf16 %v7395, %v7394
        %v7420 = vpack.c.bf16 %v7397, %v7396
        %v7421 = vpack.c.bf16 %v7399, %v7398
        %v7422 = vpack.c.bf16 %v7401, %v7400
        %v7423 = vpack.c.bf16 %v7402, %v7402
        %s7424 = scalar_lea.vmem %s6, 384
        %v7425 = vld [vmem:[%s7424] sm:$0xf]
        %v7426 = vld [vmem:[%s7424 + $0x4] sm:$0xf]
        %v7427 = vld [vmem:[%s7424 + $0x8] sm:$0xf]
        %v7428 = vld [vmem:[%s7424 + $0xc] sm:$0xf]
        %v7429 = vld [vmem:[%s7424 + $0x10] sm:$0xf]
        %v7430 = vld [vmem:[%s7424 + $0x14] sm:$0xf]
        %v7431 = vld [vmem:[%s7424 + $0x18] sm:$0xf]
        %v7432 = vld [vmem:[%s7424 + $0x1c] sm:$0xf]
        %v7433 = vld [vmem:[%s7424 + $0x20] sm:$0xf]
        %v7434 = vld [vmem:[%s7424 + $0x24] sm:$0xf]
        %v7435 = vld [vmem:[%s7424 + $0x28] sm:$0xf]
        %v7436 = vld [vmem:[%s7424 + $0x2c] sm:$0xf]
        %v7437 = vld [vmem:[%s7424 + $0x30] sm:$0xf]
        %v7438 = vld [vmem:[%s7424 + $0x34] sm:$0xf]
        %v7439 = vld [vmem:[%s7424 + $0x38] sm:$0xf]
        %v7440 = vld [vmem:[%s7424 + $0x3c] sm:$0xf]
        %v7457 = vunpack.c.l.b16 %v7425
        %v7458 = vunpack.c.l.b16 %v7426
        %v7459 = vunpack.c.l.b16 %v7427
        %v7460 = vunpack.c.l.b16 %v7428
        %v7461 = vunpack.c.l.b16 %v7429
        %v7462 = vunpack.c.l.b16 %v7430
        %v7463 = vunpack.c.l.b16 %v7431
        %v7464 = vunpack.c.l.b16 %v7432
        %v7465 = vunpack.c.l.b16 %v7433
        %v7466 = vunpack.c.l.b16 %v7434
        %v7467 = vunpack.c.l.b16 %v7435
        %v7468 = vunpack.c.l.b16 %v7436
        %v7469 = vunpack.c.l.b16 %v7437
        %v7470 = vunpack.c.l.b16 %v7438
        %v7471 = vunpack.c.l.b16 %v7439
        %v7472 = vunpack.c.l.b16 %v7440
        %v7473 = vpack.c.b16 %v7458, %v7457
        %v7474 = vpack.c.b16 %v7460, %v7459
        %v7475 = vpack.c.b16 %v7462, %v7461
        %v7476 = vpack.c.b16 %v7464, %v7463
        %v7477 = vpack.c.b16 %v7466, %v7465
        %v7478 = vpack.c.b16 %v7468, %v7467
        %v7479 = vpack.c.b16 %v7470, %v7469
        %v7480 = vpack.c.b16 %v7472, %v7471
        %7489 = vmatpush.bf16.msra.mxu0 %v7480
        %7490 = vmatpush.bf16.msra.mxu0 %v7479
        %7491 = vmatpush.bf16.msra.mxu0 %v7478
        %7492 = vmatpush.bf16.msra.mxu0 %v7477
        %7493 = vmatpush.bf16.msra.mxu0 %v7476
        %7494 = vmatpush.bf16.msra.mxu0 %v7475
        %7495 = vmatpush.bf16.msra.mxu0 %v7474
        %7496 = vmatpush.bf16.msra.mxu0 %v7473
        %7497 = vmatmul.bf16.gmra.mxu0 %v7403
        %v7498 = vpop.f32.mrf.mxu0
        %v7499 = vadd.f32 0.0, %v7498
        %v7500 = vpop.f32.mrf.mxu0
        %v7501 = vadd.f32 0.0, %v7500
        %7502 = vmatmul.bf16.gmra.mxu0 %v7404
        %v7503 = vpop.f32.mrf.mxu0
        %v7504 = vadd.f32 0.0, %v7503
        %v7505 = vpop.f32.mrf.mxu0
        %v7506 = vadd.f32 0.0, %v7505
        %7507 = vmatmul.bf16.gmra.mxu0 %v7405
        %v7508 = vpop.f32.mrf.mxu0
        %v7509 = vadd.f32 0.0, %v7508
        %v7510 = vpop.f32.mrf.mxu0
        %v7511 = vadd.f32 0.0, %v7510
        %7512 = vmatmul.bf16.gmra.mxu0 %v7406
        %v7513 = vpop.f32.mrf.mxu0
        %v7514 = vadd.f32 0.0, %v7513
        %v7515 = vpop.f32.mrf.mxu0
        %v7516 = vadd.f32 0.0, %v7515
        %7517 = vmatmul.bf16.gmra.mxu0 %v7407
        %v7518 = vpop.f32.mrf.mxu0
        %v7519 = vadd.f32 0.0, %v7518
        %v7520 = vpop.f32.mrf.mxu0
        %v7521 = vadd.f32 0.0, %v7520
        %7522 = vmatmul.bf16.gmra.mxu0 %v7408
        %v7523 = vpop.f32.mrf.mxu0
        %v7524 = vadd.f32 0.0, %v7523
        %v7525 = vpop.f32.mrf.mxu0
        %v7526 = vadd.f32 0.0, %v7525
        %7527 = vmatmul.bf16.gmra.mxu0 %v7409
        %v7528 = vpop.f32.mrf.mxu0
        %v7529 = vadd.f32 0.0, %v7528
        %v7530 = vpop.f32.mrf.mxu0
        %v7531 = vadd.f32 0.0, %v7530
        %7532 = vmatmul.bf16.gmra.mxu0 %v7410
        %v7533 = vpop.f32.mrf.mxu0
        %v7534 = vadd.f32 0.0, %v7533
        %v7535 = vpop.f32.mrf.mxu0
        %v7536 = vadd.f32 0.0, %v7535
        %7537 = vmatmul.bf16.gmra.mxu0 %v7411
        %v7538 = vpop.f32.mrf.mxu0
        %v7539 = vadd.f32 0.0, %v7538
        %v7540 = vpop.f32.mrf.mxu0
        %v7541 = vadd.f32 0.0, %v7540
        %7542 = vmatmul.bf16.gmra.mxu0 %v7412
        %v7543 = vpop.f32.mrf.mxu0
        %v7544 = vadd.f32 0.0, %v7543
        %v7545 = vpop.f32.mrf.mxu0
        %v7546 = vadd.f32 0.0, %v7545
        %7547 = vmatmul.bf16.gmra.mxu0 %v7413
        %v7548 = vpop.f32.mrf.mxu0
        %v7549 = vadd.f32 0.0, %v7548
        %v7550 = vpop.f32.mrf.mxu0
        %v7551 = vadd.f32 0.0, %v7550
        %7552 = vmatmul.bf16.gmra.mxu0 %v7414
        %v7553 = vpop.f32.mrf.mxu0
        %v7554 = vadd.f32 0.0, %v7553
        %v7555 = vpop.f32.mrf.mxu0
        %v7556 = vadd.f32 0.0, %v7555
        %7557 = vmatmul.bf16.gmra.mxu0 %v7415
        %v7558 = vpop.f32.mrf.mxu0
        %v7559 = vadd.f32 0.0, %v7558
        %v7560 = vpop.f32.mrf.mxu0
        %v7561 = vadd.f32 0.0, %v7560
        %7562 = vmatmul.bf16.gmra.mxu0 %v7416
        %v7563 = vpop.f32.mrf.mxu0
        %v7564 = vadd.f32 0.0, %v7563
        %v7565 = vpop.f32.mrf.mxu0
        %v7566 = vadd.f32 0.0, %v7565
        %7567 = vmatmul.bf16.gmra.mxu0 %v7417
        %v7568 = vpop.f32.mrf.mxu0
        %v7569 = vadd.f32 0.0, %v7568
        %v7570 = vpop.f32.mrf.mxu0
        %v7571 = vadd.f32 0.0, %v7570
        %7572 = vmatmul.bf16.gmra.mxu0 %v7418
        %v7573 = vpop.f32.mrf.mxu0
        %v7574 = vadd.f32 0.0, %v7573
        %v7575 = vpop.f32.mrf.mxu0
        %v7576 = vadd.f32 0.0, %v7575
        %7577 = vmatmul.bf16.gmra.mxu0 %v7419
        %v7578 = vpop.f32.mrf.mxu0
        %v7579 = vadd.f32 0.0, %v7578
        %v7580 = vpop.f32.mrf.mxu0
        %v7581 = vadd.f32 0.0, %v7580
        %7582 = vmatmul.bf16.gmra.mxu0 %v7420
        %v7583 = vpop.f32.mrf.mxu0
        %v7584 = vadd.f32 0.0, %v7583
        %v7585 = vpop.f32.mrf.mxu0
        %v7586 = vadd.f32 0.0, %v7585
        %7587 = vmatmul.bf16.gmra.mxu0 %v7421
        %v7588 = vpop.f32.mrf.mxu0
        %v7589 = vadd.f32 0.0, %v7588
        %v7590 = vpop.f32.mrf.mxu0
        %v7591 = vadd.f32 0.0, %v7590
        %7592 = vmatmul.bf16.gmra.mxu0 %v7422
        %v7593 = vpop.f32.mrf.mxu0
        %v7594 = vadd.f32 0.0, %v7593
        %v7595 = vpop.f32.mrf.mxu0
        %v7596 = vadd.f32 0.0, %v7595
        %7597 = vmatmul.bf16.gmra.mxu0 %v7423
        %v7598 = vpop.f32.mrf.mxu0
        %v7599 = vadd.f32 0.0, %v7598
        %v7600 = vpop.f32.mrf.mxu0
        %7601 = vdwg.mxu0
        %v7602 = vadd.f32 %v7321, %v7499
        %v7603 = vadd.f32 %v7322, %v7501
        %v7604 = vadd.f32 %v7323, %v7504
        %v7605 = vadd.f32 %v7324, %v7506
        %v7606 = vadd.f32 %v7325, %v7509
        %v7607 = vadd.f32 %v7326, %v7511
        %v7608 = vadd.f32 %v7327, %v7514
        %v7609 = vadd.f32 %v7328, %v7516
        %v7610 = vadd.f32 %v7329, %v7519
        %v7611 = vadd.f32 %v7330, %v7521
        %v7612 = vadd.f32 %v7331, %v7524
        %v7613 = vadd.f32 %v7332, %v7526
        %v7614 = vadd.f32 %v7333, %v7529
        %v7615 = vadd.f32 %v7334, %v7531
        %v7616 = vadd.f32 %v7335, %v7534
        %v7617 = vadd.f32 %v7336, %v7536
        %v7618 = vadd.f32 %v7337, %v7539
        %v7619 = vadd.f32 %v7338, %v7541
        %v7620 = vadd.f32 %v7339, %v7544
        %v7621 = vadd.f32 %v7340, %v7546
        %v7622 = vadd.f32 %v7341, %v7549
        %v7623 = vadd.f32 %v7342, %v7551
        %v7624 = vadd.f32 %v7343, %v7554
        %v7625 = vadd.f32 %v7344, %v7556
        %v7626 = vadd.f32 %v7345, %v7559
        %v7627 = vadd.f32 %v7346, %v7561
        %v7628 = vadd.f32 %v7347, %v7564
        %v7629 = vadd.f32 %v7348, %v7566
        %v7630 = vadd.f32 %v7349, %v7569
        %v7631 = vadd.f32 %v7350, %v7571
        %v7632 = vadd.f32 %v7351, %v7574
        %v7633 = vadd.f32 %v7352, %v7576
        %v7634 = vadd.f32 %v7353, %v7579
        %v7635 = vadd.f32 %v7354, %v7581
        %v7636 = vadd.f32 %v7355, %v7584
        %v7637 = vadd.f32 %v7356, %v7586
        %v7638 = vadd.f32 %v7357, %v7589
        %v7639 = vadd.f32 %v7358, %v7591
        %v7640 = vadd.f32 %v7359, %v7594
        %v7641 = vadd.f32 %v7360, %v7596
        %v7642 = vadd.f32 %v7361, %v7599
        %v7643 = vld [vmem:[#allocation3 + $0x2a] sm:$0xff]
        %v7644 = vld [vmem:[#allocation3 + $0x32] sm:$0xff]
        %v7645 = vld [vmem:[#allocation3 + $0x3a] sm:$0xff]
        %v7646 = vld [vmem:[#allocation3 + $0x42] sm:$0xff]
        %v7647 = vld [vmem:[#allocation3 + $0x4a] sm:$0xff]
        %v7648 = vld [vmem:[#allocation3 + $0x52] sm:$0xff]
        %v7649 = vld [vmem:[#allocation3 + $0x5a] sm:$0xff]
        %v7650 = vld [vmem:[#allocation3 + $0x62] sm:$0xff]
        %v7651 = vld [vmem:[#allocation3 + $0x6a] sm:$0xff]
        %v7652 = vld [vmem:[#allocation3 + $0x72] sm:$0xff]
        %v7653 = vld [vmem:[#allocation3 + $0x7a] sm:$0xff]
        %v7654 = vld [vmem:[#allocation3 + $0x82] sm:$0xff]
        %v7655 = vld [vmem:[#allocation3 + $0x8a] sm:$0xff]
        %v7656 = vld [vmem:[#allocation3 + $0x92] sm:$0xff]
        %v7657 = vld [vmem:[#allocation3 + $0x9a] sm:$0xff]
        %v7658 = vld [vmem:[#allocation3 + $0xa2] sm:$0xff]
        %v7659 = vld [vmem:[#allocation3 + $0xaa] sm:$0xff]
        %v7660 = vld [vmem:[#allocation3 + $0xb2] sm:$0xff]
        %v7661 = vld [vmem:[#allocation3 + $0xba] sm:$0xff]
        %v7662 = vld [vmem:[#allocation3 + $0xc2] sm:$0xff]
        %v7663 = vld [vmem:[#allocation3 + $0xca] sm:$0xff]
        %v7664 = vld [vmem:[#allocation3 + $0xd2] sm:$0xff]
        %v7665 = vld [vmem:[#allocation3 + $0xda] sm:$0xff]
        %v7666 = vld [vmem:[#allocation3 + $0xe2] sm:$0xff]
        %v7667 = vld [vmem:[#allocation3 + $0xea] sm:$0xff]
        %v7668 = vld [vmem:[#allocation3 + $0xf2] sm:$0xff]
        %v7669 = vld [vmem:[#allocation3 + $0xfa] sm:$0xff]
        %v7670 = vld [vmem:[#allocation3 + $0x102] sm:$0xff]
        %v7671 = vld [vmem:[#allocation3 + $0x10a] sm:$0xff]
        %v7672 = vld [vmem:[#allocation3 + $0x112] sm:$0xff]
        %v7673 = vld [vmem:[#allocation3 + $0x11a] sm:$0xff]
        %v7674 = vld [vmem:[#allocation3 + $0x122] sm:$0xff]
        %v7675 = vld [vmem:[#allocation3 + $0x12a] sm:$0xff]
        %v7676 = vld [vmem:[#allocation3 + $0x132] sm:$0xff]
        %v7677 = vld [vmem:[#allocation3 + $0x13a] sm:$0xff]
        %v7678 = vld [vmem:[#allocation3 + $0x142] sm:$0xff]
        %v7679 = vld [vmem:[#allocation3 + $0x14a] sm:$0xff]
        %v7680 = vld [vmem:[#allocation3 + $0x152] sm:$0xff]
        %v7681 = vld [vmem:[#allocation3 + $0x15a] sm:$0xff]
        %v7682 = vld [vmem:[#allocation3 + $0x162] sm:$0xff]
        %v7683 = vld [vmem:[#allocation3 + $0x16a] sm:$0xf]
        %v7684 = vpack.c.bf16 %v7644, %v7643
        %v7685 = vpack.c.bf16 %v7646, %v7645
        %v7686 = vpack.c.bf16 %v7648, %v7647
        %v7687 = vpack.c.bf16 %v7650, %v7649
        %v7688 = vpack.c.bf16 %v7652, %v7651
        %v7689 = vpack.c.bf16 %v7654, %v7653
        %v7690 = vpack.c.bf16 %v7656, %v7655
        %v7691 = vpack.c.bf16 %v7658, %v7657
        %v7692 = vpack.c.bf16 %v7660, %v7659
        %v7693 = vpack.c.bf16 %v7662, %v7661
        %v7694 = vpack.c.bf16 %v7664, %v7663
        %v7695 = vpack.c.bf16 %v7666, %v7665
        %v7696 = vpack.c.bf16 %v7668, %v7667
        %v7697 = vpack.c.bf16 %v7670, %v7669
        %v7698 = vpack.c.bf16 %v7672, %v7671
        %v7699 = vpack.c.bf16 %v7674, %v7673
        %v7700 = vpack.c.bf16 %v7676, %v7675
        %v7701 = vpack.c.bf16 %v7678, %v7677
        %v7702 = vpack.c.bf16 %v7680, %v7679
        %v7703 = vpack.c.bf16 %v7682, %v7681
        %v7704 = vpack.c.bf16 %v7683, %v7683
        %s7705 = scalar_lea.vmem %s6, 448
        %v7706 = vld [vmem:[%s7705] sm:$0xf]
        %v7707 = vld [vmem:[%s7705 + $0x4] sm:$0xf]
        %v7708 = vld [vmem:[%s7705 + $0x8] sm:$0xf]
        %v7709 = vld [vmem:[%s7705 + $0xc] sm:$0xf]
        %v7710 = vld [vmem:[%s7705 + $0x10] sm:$0xf]
        %v7711 = vld [vmem:[%s7705 + $0x14] sm:$0xf]
        %v7712 = vld [vmem:[%s7705 + $0x18] sm:$0xf]
        %v7713 = vld [vmem:[%s7705 + $0x1c] sm:$0xf]
        %v7714 = vld [vmem:[%s7705 + $0x20] sm:$0xf]
        %v7715 = vld [vmem:[%s7705 + $0x24] sm:$0xf]
        %v7716 = vld [vmem:[%s7705 + $0x28] sm:$0xf]
        %v7717 = vld [vmem:[%s7705 + $0x2c] sm:$0xf]
        %v7718 = vld [vmem:[%s7705 + $0x30] sm:$0xf]
        %v7719 = vld [vmem:[%s7705 + $0x34] sm:$0xf]
        %v7720 = vld [vmem:[%s7705 + $0x38] sm:$0xf]
        %v7721 = vld [vmem:[%s7705 + $0x3c] sm:$0xf]
        %v7738 = vunpack.c.l.b16 %v7706
        %v7739 = vunpack.c.l.b16 %v7707
        %v7740 = vunpack.c.l.b16 %v7708
        %v7741 = vunpack.c.l.b16 %v7709
        %v7742 = vunpack.c.l.b16 %v7710
        %v7743 = vunpack.c.l.b16 %v7711
        %v7744 = vunpack.c.l.b16 %v7712
        %v7745 = vunpack.c.l.b16 %v7713
        %v7746 = vunpack.c.l.b16 %v7714
        %v7747 = vunpack.c.l.b16 %v7715
        %v7748 = vunpack.c.l.b16 %v7716
        %v7749 = vunpack.c.l.b16 %v7717
        %v7750 = vunpack.c.l.b16 %v7718
        %v7751 = vunpack.c.l.b16 %v7719
        %v7752 = vunpack.c.l.b16 %v7720
        %v7753 = vunpack.c.l.b16 %v7721
        %v7754 = vpack.c.b16 %v7739, %v7738
        %v7755 = vpack.c.b16 %v7741, %v7740
        %v7756 = vpack.c.b16 %v7743, %v7742
        %v7757 = vpack.c.b16 %v7745, %v7744
        %v7758 = vpack.c.b16 %v7747, %v7746
        %v7759 = vpack.c.b16 %v7749, %v7748
        %v7760 = vpack.c.b16 %v7751, %v7750
        %v7761 = vpack.c.b16 %v7753, %v7752
        %7770 = vmatpush.bf16.msra.mxu0 %v7761
        %7771 = vmatpush.bf16.msra.mxu0 %v7760
        %7772 = vmatpush.bf16.msra.mxu0 %v7759
        %7773 = vmatpush.bf16.msra.mxu0 %v7758
        %7774 = vmatpush.bf16.msra.mxu0 %v7757
        %7775 = vmatpush.bf16.msra.mxu0 %v7756
        %7776 = vmatpush.bf16.msra.mxu0 %v7755
        %7777 = vmatpush.bf16.msra.mxu0 %v7754
        %7778 = vmatmul.bf16.gmra.mxu0 %v7684
        %v7779 = vpop.f32.mrf.mxu0
        %v7780 = vadd.f32 0.0, %v7779
        %v7781 = vpop.f32.mrf.mxu0
        %v7782 = vadd.f32 0.0, %v7781
        %7783 = vmatmul.bf16.gmra.mxu0 %v7685
        %v7784 = vpop.f32.mrf.mxu0
        %v7785 = vadd.f32 0.0, %v7784
        %v7786 = vpop.f32.mrf.mxu0
        %v7787 = vadd.f32 0.0, %v7786
        %7788 = vmatmul.bf16.gmra.mxu0 %v7686
        %v7789 = vpop.f32.mrf.mxu0
        %v7790 = vadd.f32 0.0, %v7789
        %v7791 = vpop.f32.mrf.mxu0
        %v7792 = vadd.f32 0.0, %v7791
        %7793 = vmatmul.bf16.gmra.mxu0 %v7687
        %v7794 = vpop.f32.mrf.mxu0
        %v7795 = vadd.f32 0.0, %v7794
        %v7796 = vpop.f32.mrf.mxu0
        %v7797 = vadd.f32 0.0, %v7796
        %7798 = vmatmul.bf16.gmra.mxu0 %v7688
        %v7799 = vpop.f32.mrf.mxu0
        %v7800 = vadd.f32 0.0, %v7799
        %v7801 = vpop.f32.mrf.mxu0
        %v7802 = vadd.f32 0.0, %v7801
        %7803 = vmatmul.bf16.gmra.mxu0 %v7689
        %v7804 = vpop.f32.mrf.mxu0
        %v7805 = vadd.f32 0.0, %v7804
        %v7806 = vpop.f32.mrf.mxu0
        %v7807 = vadd.f32 0.0, %v7806
        %7808 = vmatmul.bf16.gmra.mxu0 %v7690
        %v7809 = vpop.f32.mrf.mxu0
        %v7810 = vadd.f32 0.0, %v7809
        %v7811 = vpop.f32.mrf.mxu0
        %v7812 = vadd.f32 0.0, %v7811
        %7813 = vmatmul.bf16.gmra.mxu0 %v7691
        %v7814 = vpop.f32.mrf.mxu0
        %v7815 = vadd.f32 0.0, %v7814
        %v7816 = vpop.f32.mrf.mxu0
        %v7817 = vadd.f32 0.0, %v7816
        %7818 = vmatmul.bf16.gmra.mxu0 %v7692
        %v7819 = vpop.f32.mrf.mxu0
        %v7820 = vadd.f32 0.0, %v7819
        %v7821 = vpop.f32.mrf.mxu0
        %v7822 = vadd.f32 0.0, %v7821
        %7823 = vmatmul.bf16.gmra.mxu0 %v7693
        %v7824 = vpop.f32.mrf.mxu0
        %v7825 = vadd.f32 0.0, %v7824
        %v7826 = vpop.f32.mrf.mxu0
        %v7827 = vadd.f32 0.0, %v7826
        %7828 = vmatmul.bf16.gmra.mxu0 %v7694
        %v7829 = vpop.f32.mrf.mxu0
        %v7830 = vadd.f32 0.0, %v7829
        %v7831 = vpop.f32.mrf.mxu0
        %v7832 = vadd.f32 0.0, %v7831
        %7833 = vmatmul.bf16.gmra.mxu0 %v7695
        %v7834 = vpop.f32.mrf.mxu0
        %v7835 = vadd.f32 0.0, %v7834
        %v7836 = vpop.f32.mrf.mxu0
        %v7837 = vadd.f32 0.0, %v7836
        %7838 = vmatmul.bf16.gmra.mxu0 %v7696
        %v7839 = vpop.f32.mrf.mxu0
        %v7840 = vadd.f32 0.0, %v7839
        %v7841 = vpop.f32.mrf.mxu0
        %v7842 = vadd.f32 0.0, %v7841
        %7843 = vmatmul.bf16.gmra.mxu0 %v7697
        %v7844 = vpop.f32.mrf.mxu0
        %v7845 = vadd.f32 0.0, %v7844
        %v7846 = vpop.f32.mrf.mxu0
        %v7847 = vadd.f32 0.0, %v7846
        %7848 = vmatmul.bf16.gmra.mxu0 %v7698
        %v7849 = vpop.f32.mrf.mxu0
        %v7850 = vadd.f32 0.0, %v7849
        %v7851 = vpop.f32.mrf.mxu0
        %v7852 = vadd.f32 0.0, %v7851
        %7853 = vmatmul.bf16.gmra.mxu0 %v7699
        %v7854 = vpop.f32.mrf.mxu0
        %v7855 = vadd.f32 0.0, %v7854
        %v7856 = vpop.f32.mrf.mxu0
        %v7857 = vadd.f32 0.0, %v7856
        %7858 = vmatmul.bf16.gmra.mxu0 %v7700
        %v7859 = vpop.f32.mrf.mxu0
        %v7860 = vadd.f32 0.0, %v7859
        %v7861 = vpop.f32.mrf.mxu0
        %v7862 = vadd.f32 0.0, %v7861
        %7863 = vmatmul.bf16.gmra.mxu0 %v7701
        %v7864 = vpop.f32.mrf.mxu0
        %v7865 = vadd.f32 0.0, %v7864
        %v7866 = vpop.f32.mrf.mxu0
        %v7867 = vadd.f32 0.0, %v7866
        %7868 = vmatmul.bf16.gmra.mxu0 %v7702
        %v7869 = vpop.f32.mrf.mxu0
        %v7870 = vadd.f32 0.0, %v7869
        %v7871 = vpop.f32.mrf.mxu0
        %v7872 = vadd.f32 0.0, %v7871
        %7873 = vmatmul.bf16.gmra.mxu0 %v7703
        %v7874 = vpop.f32.mrf.mxu0
        %v7875 = vadd.f32 0.0, %v7874
        %v7876 = vpop.f32.mrf.mxu0
        %v7877 = vadd.f32 0.0, %v7876
        %7878 = vmatmul.bf16.gmra.mxu0 %v7704
        %v7879 = vpop.f32.mrf.mxu0
        %v7880 = vadd.f32 0.0, %v7879
        %v7881 = vpop.f32.mrf.mxu0
        %7882 = vdwg.mxu0
        %v7883 = vadd.f32 %v7602, %v7780
        %v7884 = vadd.f32 %v7603, %v7782
        %v7885 = vadd.f32 %v7604, %v7785
        %v7886 = vadd.f32 %v7605, %v7787
        %v7887 = vadd.f32 %v7606, %v7790
        %v7888 = vadd.f32 %v7607, %v7792
        %v7889 = vadd.f32 %v7608, %v7795
        %v7890 = vadd.f32 %v7609, %v7797
        %v7891 = vadd.f32 %v7610, %v7800
        %v7892 = vadd.f32 %v7611, %v7802
        %v7893 = vadd.f32 %v7612, %v7805
        %v7894 = vadd.f32 %v7613, %v7807
        %v7895 = vadd.f32 %v7614, %v7810
        %v7896 = vadd.f32 %v7615, %v7812
        %v7897 = vadd.f32 %v7616, %v7815
        %v7898 = vadd.f32 %v7617, %v7817
        %v7899 = vadd.f32 %v7618, %v7820
        %v7900 = vadd.f32 %v7619, %v7822
        %v7901 = vadd.f32 %v7620, %v7825
        %v7902 = vadd.f32 %v7621, %v7827
        %v7903 = vadd.f32 %v7622, %v7830
        %v7904 = vadd.f32 %v7623, %v7832
        %v7905 = vadd.f32 %v7624, %v7835
        %v7906 = vadd.f32 %v7625, %v7837
        %v7907 = vadd.f32 %v7626, %v7840
        %v7908 = vadd.f32 %v7627, %v7842
        %v7909 = vadd.f32 %v7628, %v7845
        %v7910 = vadd.f32 %v7629, %v7847
        %v7911 = vadd.f32 %v7630, %v7850
        %v7912 = vadd.f32 %v7631, %v7852
        %v7913 = vadd.f32 %v7632, %v7855
        %v7914 = vadd.f32 %v7633, %v7857
        %v7915 = vadd.f32 %v7634, %v7860
        %v7916 = vadd.f32 %v7635, %v7862
        %v7917 = vadd.f32 %v7636, %v7865
        %v7918 = vadd.f32 %v7637, %v7867
        %v7919 = vadd.f32 %v7638, %v7870
        %v7920 = vadd.f32 %v7639, %v7872
        %v7921 = vadd.f32 %v7640, %v7875
        %v7922 = vadd.f32 %v7641, %v7877
        %v7923 = vadd.f32 %v7642, %v7880
        %v7924 = vld [vmem:[#allocation3 + $0x2b] sm:$0xff]
        %v7925 = vld [vmem:[#allocation3 + $0x33] sm:$0xff]
        %v7926 = vld [vmem:[#allocation3 + $0x3b] sm:$0xff]
        %v7927 = vld [vmem:[#allocation3 + $0x43] sm:$0xff]
        %v7928 = vld [vmem:[#allocation3 + $0x4b] sm:$0xff]
        %v7929 = vld [vmem:[#allocation3 + $0x53] sm:$0xff]
        %v7930 = vld [vmem:[#allocation3 + $0x5b] sm:$0xff]
        %v7931 = vld [vmem:[#allocation3 + $0x63] sm:$0xff]
        %v7932 = vld [vmem:[#allocation3 + $0x6b] sm:$0xff]
        %v7933 = vld [vmem:[#allocation3 + $0x73] sm:$0xff]
        %v7934 = vld [vmem:[#allocation3 + $0x7b] sm:$0xff]
        %v7935 = vld [vmem:[#allocation3 + $0x83] sm:$0xff]
        %v7936 = vld [vmem:[#allocation3 + $0x8b] sm:$0xff]
        %v7937 = vld [vmem:[#allocation3 + $0x93] sm:$0xff]
        %v7938 = vld [vmem:[#allocation3 + $0x9b] sm:$0xff]
        %v7939 = vld [vmem:[#allocation3 + $0xa3] sm:$0xff]
        %v7940 = vld [vmem:[#allocation3 + $0xab] sm:$0xff]
        %v7941 = vld [vmem:[#allocation3 + $0xb3] sm:$0xff]
        %v7942 = vld [vmem:[#allocation3 + $0xbb] sm:$0xff]
        %v7943 = vld [vmem:[#allocation3 + $0xc3] sm:$0xff]
        %v7944 = vld [vmem:[#allocation3 + $0xcb] sm:$0xff]
        %v7945 = vld [vmem:[#allocation3 + $0xd3] sm:$0xff]
        %v7946 = vld [vmem:[#allocation3 + $0xdb] sm:$0xff]
        %v7947 = vld [vmem:[#allocation3 + $0xe3] sm:$0xff]
        %v7948 = vld [vmem:[#allocation3 + $0xeb] sm:$0xff]
        %v7949 = vld [vmem:[#allocation3 + $0xf3] sm:$0xff]
        %v7950 = vld [vmem:[#allocation3 + $0xfb] sm:$0xff]
        %v7951 = vld [vmem:[#allocation3 + $0x103] sm:$0xff]
        %v7952 = vld [vmem:[#allocation3 + $0x10b] sm:$0xff]
        %v7953 = vld [vmem:[#allocation3 + $0x113] sm:$0xff]
        %v7954 = vld [vmem:[#allocation3 + $0x11b] sm:$0xff]
        %v7955 = vld [vmem:[#allocation3 + $0x123] sm:$0xff]
        %v7956 = vld [vmem:[#allocation3 + $0x12b] sm:$0xff]
        %v7957 = vld [vmem:[#allocation3 + $0x133] sm:$0xff]
        %v7958 = vld [vmem:[#allocation3 + $0x13b] sm:$0xff]
        %v7959 = vld [vmem:[#allocation3 + $0x143] sm:$0xff]
        %v7960 = vld [vmem:[#allocation3 + $0x14b] sm:$0xff]
        %v7961 = vld [vmem:[#allocation3 + $0x153] sm:$0xff]
        %v7962 = vld [vmem:[#allocation3 + $0x15b] sm:$0xff]
        %v7963 = vld [vmem:[#allocation3 + $0x163] sm:$0xff]
        %v7964 = vld [vmem:[#allocation3 + $0x16b] sm:$0xf]
        %v7965 = vpack.c.bf16 %v7925, %v7924
        %v7966 = vpack.c.bf16 %v7927, %v7926
        %v7967 = vpack.c.bf16 %v7929, %v7928
        %v7968 = vpack.c.bf16 %v7931, %v7930
        %v7969 = vpack.c.bf16 %v7933, %v7932
        %v7970 = vpack.c.bf16 %v7935, %v7934
        %v7971 = vpack.c.bf16 %v7937, %v7936
        %v7972 = vpack.c.bf16 %v7939, %v7938
        %v7973 = vpack.c.bf16 %v7941, %v7940
        %v7974 = vpack.c.bf16 %v7943, %v7942
        %v7975 = vpack.c.bf16 %v7945, %v7944
        %v7976 = vpack.c.bf16 %v7947, %v7946
        %v7977 = vpack.c.bf16 %v7949, %v7948
        %v7978 = vpack.c.bf16 %v7951, %v7950
        %v7979 = vpack.c.bf16 %v7953, %v7952
        %v7980 = vpack.c.bf16 %v7955, %v7954
        %v7981 = vpack.c.bf16 %v7957, %v7956
        %v7982 = vpack.c.bf16 %v7959, %v7958
        %v7983 = vpack.c.bf16 %v7961, %v7960
        %v7984 = vpack.c.bf16 %v7963, %v7962
        %v7985 = vpack.c.bf16 %v7964, %v7964
        %s7986 = scalar_lea.vmem %s6, 512
        %v7987 = vld [vmem:[%s7986] sm:$0xf]
        %v7988 = vld [vmem:[%s7986 + $0x4] sm:$0xf]
        %v7989 = vld [vmem:[%s7986 + $0x8] sm:$0xf]
        %v7990 = vld [vmem:[%s7986 + $0xc] sm:$0xf]
        %v7991 = vld [vmem:[%s7986 + $0x10] sm:$0xf]
        %v7992 = vld [vmem:[%s7986 + $0x14] sm:$0xf]
        %v7993 = vld [vmem:[%s7986 + $0x18] sm:$0xf]
        %v7994 = vld [vmem:[%s7986 + $0x1c] sm:$0xf]
        %v7995 = vld [vmem:[%s7986 + $0x20] sm:$0xf]
        %v7996 = vld [vmem:[%s7986 + $0x24] sm:$0xf]
        %v7997 = vld [vmem:[%s7986 + $0x28] sm:$0xf]
        %v7998 = vld [vmem:[%s7986 + $0x2c] sm:$0xf]
        %v7999 = vld [vmem:[%s7986 + $0x30] sm:$0xf]
        %v8000 = vld [vmem:[%s7986 + $0x34] sm:$0xf]
        %v8001 = vld [vmem:[%s7986 + $0x38] sm:$0xf]
        %v8002 = vld [vmem:[%s7986 + $0x3c] sm:$0xf]
        %v8019 = vunpack.c.l.b16 %v7987
        %v8020 = vunpack.c.l.b16 %v7988
        %v8021 = vunpack.c.l.b16 %v7989
        %v8022 = vunpack.c.l.b16 %v7990
        %v8023 = vunpack.c.l.b16 %v7991
        %v8024 = vunpack.c.l.b16 %v7992
        %v8025 = vunpack.c.l.b16 %v7993
        %v8026 = vunpack.c.l.b16 %v7994
        %v8027 = vunpack.c.l.b16 %v7995
        %v8028 = vunpack.c.l.b16 %v7996
        %v8029 = vunpack.c.l.b16 %v7997
        %v8030 = vunpack.c.l.b16 %v7998
        %v8031 = vunpack.c.l.b16 %v7999
        %v8032 = vunpack.c.l.b16 %v8000
        %v8033 = vunpack.c.l.b16 %v8001
        %v8034 = vunpack.c.l.b16 %v8002
        %v8035 = vpack.c.b16 %v8020, %v8019
        %v8036 = vpack.c.b16 %v8022, %v8021
        %v8037 = vpack.c.b16 %v8024, %v8023
        %v8038 = vpack.c.b16 %v8026, %v8025
        %v8039 = vpack.c.b16 %v8028, %v8027
        %v8040 = vpack.c.b16 %v8030, %v8029
        %v8041 = vpack.c.b16 %v8032, %v8031
        %v8042 = vpack.c.b16 %v8034, %v8033
        %8051 = vmatpush.bf16.msra.mxu0 %v8042
        %8052 = vmatpush.bf16.msra.mxu0 %v8041
        %8053 = vmatpush.bf16.msra.mxu0 %v8040
        %8054 = vmatpush.bf16.msra.mxu0 %v8039
        %8055 = vmatpush.bf16.msra.mxu0 %v8038
        %8056 = vmatpush.bf16.msra.mxu0 %v8037
        %8057 = vmatpush.bf16.msra.mxu0 %v8036
        %8058 = vmatpush.bf16.msra.mxu0 %v8035
        %8059 = vmatmul.bf16.gmra.mxu0 %v7965
        %v8060 = vpop.f32.mrf.mxu0
        %v8061 = vadd.f32 0.0, %v8060
        %v8062 = vpop.f32.mrf.mxu0
        %v8063 = vadd.f32 0.0, %v8062
        %8064 = vmatmul.bf16.gmra.mxu0 %v7966
        %v8065 = vpop.f32.mrf.mxu0
        %v8066 = vadd.f32 0.0, %v8065
        %v8067 = vpop.f32.mrf.mxu0
        %v8068 = vadd.f32 0.0, %v8067
        %8069 = vmatmul.bf16.gmra.mxu0 %v7967
        %v8070 = vpop.f32.mrf.mxu0
        %v8071 = vadd.f32 0.0, %v8070
        %v8072 = vpop.f32.mrf.mxu0
        %v8073 = vadd.f32 0.0, %v8072
        %8074 = vmatmul.bf16.gmra.mxu0 %v7968
        %v8075 = vpop.f32.mrf.mxu0
        %v8076 = vadd.f32 0.0, %v8075
        %v8077 = vpop.f32.mrf.mxu0
        %v8078 = vadd.f32 0.0, %v8077
        %8079 = vmatmul.bf16.gmra.mxu0 %v7969
        %v8080 = vpop.f32.mrf.mxu0
        %v8081 = vadd.f32 0.0, %v8080
        %v8082 = vpop.f32.mrf.mxu0
        %v8083 = vadd.f32 0.0, %v8082
        %8084 = vmatmul.bf16.gmra.mxu0 %v7970
        %v8085 = vpop.f32.mrf.mxu0
        %v8086 = vadd.f32 0.0, %v8085
        %v8087 = vpop.f32.mrf.mxu0
        %v8088 = vadd.f32 0.0, %v8087
        %8089 = vmatmul.bf16.gmra.mxu0 %v7971
        %v8090 = vpop.f32.mrf.mxu0
        %v8091 = vadd.f32 0.0, %v8090
        %v8092 = vpop.f32.mrf.mxu0
        %v8093 = vadd.f32 0.0, %v8092
        %8094 = vmatmul.bf16.gmra.mxu0 %v7972
        %v8095 = vpop.f32.mrf.mxu0
        %v8096 = vadd.f32 0.0, %v8095
        %v8097 = vpop.f32.mrf.mxu0
        %v8098 = vadd.f32 0.0, %v8097
        %8099 = vmatmul.bf16.gmra.mxu0 %v7973
        %v8100 = vpop.f32.mrf.mxu0
        %v8101 = vadd.f32 0.0, %v8100
        %v8102 = vpop.f32.mrf.mxu0
        %v8103 = vadd.f32 0.0, %v8102
        %8104 = vmatmul.bf16.gmra.mxu0 %v7974
        %v8105 = vpop.f32.mrf.mxu0
        %v8106 = vadd.f32 0.0, %v8105
        %v8107 = vpop.f32.mrf.mxu0
        %v8108 = vadd.f32 0.0, %v8107
        %8109 = vmatmul.bf16.gmra.mxu0 %v7975
        %v8110 = vpop.f32.mrf.mxu0
        %v8111 = vadd.f32 0.0, %v8110
        %v8112 = vpop.f32.mrf.mxu0
        %v8113 = vadd.f32 0.0, %v8112
        %8114 = vmatmul.bf16.gmra.mxu0 %v7976
        %v8115 = vpop.f32.mrf.mxu0
        %v8116 = vadd.f32 0.0, %v8115
        %v8117 = vpop.f32.mrf.mxu0
        %v8118 = vadd.f32 0.0, %v8117
        %8119 = vmatmul.bf16.gmra.mxu0 %v7977
        %v8120 = vpop.f32.mrf.mxu0
        %v8121 = vadd.f32 0.0, %v8120
        %v8122 = vpop.f32.mrf.mxu0
        %v8123 = vadd.f32 0.0, %v8122
        %8124 = vmatmul.bf16.gmra.mxu0 %v7978
        %v8125 = vpop.f32.mrf.mxu0
        %v8126 = vadd.f32 0.0, %v8125
        %v8127 = vpop.f32.mrf.mxu0
        %v8128 = vadd.f32 0.0, %v8127
        %8129 = vmatmul.bf16.gmra.mxu0 %v7979
        %v8130 = vpop.f32.mrf.mxu0
        %v8131 = vadd.f32 0.0, %v8130
        %v8132 = vpop.f32.mrf.mxu0
        %v8133 = vadd.f32 0.0, %v8132
        %8134 = vmatmul.bf16.gmra.mxu0 %v7980
        %v8135 = vpop.f32.mrf.mxu0
        %v8136 = vadd.f32 0.0, %v8135
        %v8137 = vpop.f32.mrf.mxu0
        %v8138 = vadd.f32 0.0, %v8137
        %8139 = vmatmul.bf16.gmra.mxu0 %v7981
        %v8140 = vpop.f32.mrf.mxu0
        %v8141 = vadd.f32 0.0, %v8140
        %v8142 = vpop.f32.mrf.mxu0
        %v8143 = vadd.f32 0.0, %v8142
        %8144 = vmatmul.bf16.gmra.mxu0 %v7982
        %v8145 = vpop.f32.mrf.mxu0
        %v8146 = vadd.f32 0.0, %v8145
        %v8147 = vpop.f32.mrf.mxu0
        %v8148 = vadd.f32 0.0, %v8147
        %8149 = vmatmul.bf16.gmra.mxu0 %v7983
        %v8150 = vpop.f32.mrf.mxu0
        %v8151 = vadd.f32 0.0, %v8150
        %v8152 = vpop.f32.mrf.mxu0
        %v8153 = vadd.f32 0.0, %v8152
        %8154 = vmatmul.bf16.gmra.mxu0 %v7984
        %v8155 = vpop.f32.mrf.mxu0
        %v8156 = vadd.f32 0.0, %v8155
        %v8157 = vpop.f32.mrf.mxu0
        %v8158 = vadd.f32 0.0, %v8157
        %8159 = vmatmul.bf16.gmra.mxu0 %v7985
        %v8160 = vpop.f32.mrf.mxu0
        %v8161 = vadd.f32 0.0, %v8160
        %v8162 = vpop.f32.mrf.mxu0
        %8163 = vdwg.mxu0
        %v8164 = vadd.f32 %v7883, %v8061
        %v8165 = vadd.f32 %v7884, %v8063
        %v8166 = vadd.f32 %v7885, %v8066
        %v8167 = vadd.f32 %v7886, %v8068
        %v8168 = vadd.f32 %v7887, %v8071
        %v8169 = vadd.f32 %v7888, %v8073
        %v8170 = vadd.f32 %v7889, %v8076
        %v8171 = vadd.f32 %v7890, %v8078
        %v8172 = vadd.f32 %v7891, %v8081
        %v8173 = vadd.f32 %v7892, %v8083
        %v8174 = vadd.f32 %v7893, %v8086
        %v8175 = vadd.f32 %v7894, %v8088
        %v8176 = vadd.f32 %v7895, %v8091
        %v8177 = vadd.f32 %v7896, %v8093
        %v8178 = vadd.f32 %v7897, %v8096
        %v8179 = vadd.f32 %v7898, %v8098
        %v8180 = vadd.f32 %v7899, %v8101
        %v8181 = vadd.f32 %v7900, %v8103
        %v8182 = vadd.f32 %v7901, %v8106
        %v8183 = vadd.f32 %v7902, %v8108
        %v8184 = vadd.f32 %v7903, %v8111
        %v8185 = vadd.f32 %v7904, %v8113
        %v8186 = vadd.f32 %v7905, %v8116
        %v8187 = vadd.f32 %v7906, %v8118
        %v8188 = vadd.f32 %v7907, %v8121
        %v8189 = vadd.f32 %v7908, %v8123
        %v8190 = vadd.f32 %v7909, %v8126
        %v8191 = vadd.f32 %v7910, %v8128
        %v8192 = vadd.f32 %v7911, %v8131
        %v8193 = vadd.f32 %v7912, %v8133
        %v8194 = vadd.f32 %v7913, %v8136
        %v8195 = vadd.f32 %v7914, %v8138
        %v8196 = vadd.f32 %v7915, %v8141
        %v8197 = vadd.f32 %v7916, %v8143
        %v8198 = vadd.f32 %v7917, %v8146
        %v8199 = vadd.f32 %v7918, %v8148
        %v8200 = vadd.f32 %v7919, %v8151
        %v8201 = vadd.f32 %v7920, %v8153
        %v8202 = vadd.f32 %v7921, %v8156
        %v8203 = vadd.f32 %v7922, %v8158
        %v8204 = vadd.f32 %v7923, %v8161
        %v8205 = vld [vmem:[%s7] sm:$0x1]
        %v8207 = vperm.slane %v8205, 0
        %v8209 = vadd.f32 %v8164, %v8207
        %v8210 = vadd.f32 %v8165, %v8207
        %v8211 = vadd.f32 %v8166, %v8207
        %v8212 = vadd.f32 %v8167, %v8207
        %v8213 = vadd.f32 %v8168, %v8207
        %v8214 = vadd.f32 %v8169, %v8207
        %v8215 = vadd.f32 %v8170, %v8207
        %v8216 = vadd.f32 %v8171, %v8207
        %v8217 = vadd.f32 %v8172, %v8207
        %v8218 = vadd.f32 %v8173, %v8207
        %v8219 = vadd.f32 %v8174, %v8207
        %v8220 = vadd.f32 %v8175, %v8207
        %v8221 = vadd.f32 %v8176, %v8207
        %v8222 = vadd.f32 %v8177, %v8207
        %v8223 = vadd.f32 %v8178, %v8207
        %v8224 = vadd.f32 %v8179, %v8207
        %v8225 = vadd.f32 %v8180, %v8207
        %v8226 = vadd.f32 %v8181, %v8207
        %v8227 = vadd.f32 %v8182, %v8207
        %v8228 = vadd.f32 %v8183, %v8207
        %v8229 = vadd.f32 %v8184, %v8207
        %v8230 = vadd.f32 %v8185, %v8207
        %v8231 = vadd.f32 %v8186, %v8207
        %v8232 = vadd.f32 %v8187, %v8207
        %v8233 = vadd.f32 %v8188, %v8207
        %v8234 = vadd.f32 %v8189, %v8207
        %v8235 = vadd.f32 %v8190, %v8207
        %v8236 = vadd.f32 %v8191, %v8207
        %v8237 = vadd.f32 %v8192, %v8207
        %v8238 = vadd.f32 %v8193, %v8207
        %v8239 = vadd.f32 %v8194, %v8207
        %v8240 = vadd.f32 %v8195, %v8207
        %v8241 = vadd.f32 %v8196, %v8207
        %v8242 = vadd.f32 %v8197, %v8207
        %v8243 = vadd.f32 %v8198, %v8207
        %v8244 = vadd.f32 %v8199, %v8207
        %v8245 = vadd.f32 %v8200, %v8207
        %v8246 = vadd.f32 %v8201, %v8207
        %v8247 = vadd.f32 %v8202, %v8207
        %v8248 = vadd.f32 %v8203, %v8207
        %v8249 = vadd.f32 %v8204, %v8207
        %v8250 = vadd.f32 %v8209, %v5718
        %v8251 = vadd.f32 %v8210, %v5719
        %v8252 = vadd.f32 %v8211, %v5720
        %v8253 = vadd.f32 %v8212, %v5721
        %v8254 = vadd.f32 %v8213, %v5722
        %v8255 = vadd.f32 %v8214, %v5723
        %v8256 = vadd.f32 %v8215, %v5724
        %v8257 = vadd.f32 %v8216, %v5725
        %v8258 = vadd.f32 %v8217, %v5726
        %v8259 = vadd.f32 %v8218, %v5727
        %v8260 = vadd.f32 %v8219, %v5728
        %v8261 = vadd.f32 %v8220, %v5729
        %v8262 = vadd.f32 %v8221, %v5730
        %v8263 = vadd.f32 %v8222, %v5731
        %v8264 = vadd.f32 %v8223, %v5732
        %v8265 = vadd.f32 %v8224, %v5733
        %v8266 = vadd.f32 %v8225, %v5734
        %v8267 = vadd.f32 %v8226, %v5735
        %v8268 = vadd.f32 %v8227, %v5736
        %v8269 = vadd.f32 %v8228, %v5737
        %v8270 = vadd.f32 %v8229, %v5738
        %v8271 = vadd.f32 %v8230, %v5739
        %v8272 = vadd.f32 %v8231, %v5740
        %v8273 = vadd.f32 %v8232, %v5741
        %v8274 = vadd.f32 %v8233, %v5742
        %v8275 = vadd.f32 %v8234, %v5743
        %v8276 = vadd.f32 %v8235, %v5744
        %v8277 = vadd.f32 %v8236, %v5745
        %v8278 = vadd.f32 %v8237, %v5746
        %v8279 = vadd.f32 %v8238, %v5747
        %v8280 = vadd.f32 %v8239, %v5748
        %v8281 = vadd.f32 %v8240, %v5749
        %v8282 = vadd.f32 %v8241, %v5750
        %v8283 = vadd.f32 %v8242, %v5751
        %v8284 = vadd.f32 %v8243, %v5752
        %v8285 = vadd.f32 %v8244, %v5753
        %v8286 = vadd.f32 %v8245, %v5754
        %v8287 = vadd.f32 %v8246, %v5755
        %v8288 = vadd.f32 %v8247, %v5756
        %v8289 = vadd.f32 %v8248, %v5757
        %v8290 = vadd.f32 %v8249, %v5758
        %v8291 = vmax.f32 %v8250, 0.0
        %v8292 = vmax.f32 %v8251, 0.0
        %v8293 = vmax.f32 %v8252, 0.0
        %v8294 = vmax.f32 %v8253, 0.0
        %v8295 = vmax.f32 %v8254, 0.0
        %v8296 = vmax.f32 %v8255, 0.0
        %v8297 = vmax.f32 %v8256, 0.0
        %v8298 = vmax.f32 %v8257, 0.0
        %v8299 = vmax.f32 %v8258, 0.0
        %v8300 = vmax.f32 %v8259, 0.0
        %v8301 = vmax.f32 %v8260, 0.0
        %v8302 = vmax.f32 %v8261, 0.0
        %v8303 = vmax.f32 %v8262, 0.0
        %v8304 = vmax.f32 %v8263, 0.0
        %v8305 = vmax.f32 %v8264, 0.0
        %v8306 = vmax.f32 %v8265, 0.0
        %v8307 = vmax.f32 %v8266, 0.0
        %v8308 = vmax.f32 %v8267, 0.0
        %v8309 = vmax.f32 %v8268, 0.0
        %v8310 = vmax.f32 %v8269, 0.0
        %v8311 = vmax.f32 %v8270, 0.0
        %v8312 = vmax.f32 %v8271, 0.0
        %v8313 = vmax.f32 %v8272, 0.0
        %v8314 = vmax.f32 %v8273, 0.0
        %v8315 = vmax.f32 %v8274, 0.0
        %v8316 = vmax.f32 %v8275, 0.0
        %v8317 = vmax.f32 %v8276, 0.0
        %v8318 = vmax.f32 %v8277, 0.0
        %v8319 = vmax.f32 %v8278, 0.0
        %v8320 = vmax.f32 %v8279, 0.0
        %v8321 = vmax.f32 %v8280, 0.0
        %v8322 = vmax.f32 %v8281, 0.0
        %v8323 = vmax.f32 %v8282, 0.0
        %v8324 = vmax.f32 %v8283, 0.0
        %v8325 = vmax.f32 %v8284, 0.0
        %v8326 = vmax.f32 %v8285, 0.0
        %v8327 = vmax.f32 %v8286, 0.0
        %v8328 = vmax.f32 %v8287, 0.0
        %v8329 = vmax.f32 %v8288, 0.0
        %v8330 = vmax.f32 %v8289, 0.0
        %v8331 = vmax.f32 %v8290, 0.0
        %v8332 = vmul.f32 %v8291, %v357
        %v8333 = vmul.f32 %v8292, %v358
        %v8334 = vmul.f32 %v8293, %v359
        %v8335 = vmul.f32 %v8294, %v360
        %v8336 = vmul.f32 %v8295, %v361
        %v8337 = vmul.f32 %v8296, %v362
        %v8338 = vmul.f32 %v8297, %v363
        %v8339 = vmul.f32 %v8298, %v364
        %v8340 = vmul.f32 %v8299, %v365
        %v8341 = vmul.f32 %v8300, %v366
        %v8342 = vmul.f32 %v8301, %v367
        %v8343 = vmul.f32 %v8302, %v368
        %v8344 = vmul.f32 %v8303, %v369
        %v8345 = vmul.f32 %v8304, %v370
        %v8346 = vmul.f32 %v8305, %v371
        %v8347 = vmul.f32 %v8306, %v372
        %v8348 = vmul.f32 %v8307, %v373
        %v8349 = vmul.f32 %v8308, %v374
        %v8350 = vmul.f32 %v8309, %v375
        %v8351 = vmul.f32 %v8310, %v376
        %v8352 = vmul.f32 %v8311, %v377
        %v8353 = vmul.f32 %v8312, %v378
        %v8354 = vmul.f32 %v8313, %v379
        %v8355 = vmul.f32 %v8314, %v380
        %v8356 = vmul.f32 %v8315, %v381
        %v8357 = vmul.f32 %v8316, %v382
        %v8358 = vmul.f32 %v8317, %v383
        %v8359 = vmul.f32 %v8318, %v384
        %v8360 = vmul.f32 %v8319, %v385
        %v8361 = vmul.f32 %v8320, %v386
        %v8362 = vmul.f32 %v8321, %v387
        %v8363 = vmul.f32 %v8322, %v388
        %v8364 = vmul.f32 %v8323, %v389
        %v8365 = vmul.f32 %v8324, %v390
        %v8366 = vmul.f32 %v8325, %v391
        %v8367 = vmul.f32 %v8326, %v392
        %v8368 = vmul.f32 %v8327, %v393
        %v8369 = vmul.f32 %v8328, %v394
        %v8370 = vmul.f32 %v8329, %v395
        %v8371 = vmul.f32 %v8330, %v396
        %v8372 = vmul.f32 %v8331, %v397
        %v8373 = vadd.f32 %v8332, %v8333
        %v8374 = vadd.f32 %v8373, %v8334
        %v8375 = vadd.f32 %v8374, %v8335
        %v8376 = vadd.f32 %v8375, %v8336
        %v8377 = vadd.f32 %v8376, %v8337
        %v8378 = vadd.f32 %v8377, %v8338
        %v8379 = vadd.f32 %v8378, %v8339
        %v8380 = vadd.f32 %v8379, %v8340
        %v8381 = vadd.f32 %v8380, %v8341
        %v8382 = vadd.f32 %v8381, %v8342
        %v8383 = vadd.f32 %v8382, %v8343
        %v8384 = vadd.f32 %v8383, %v8344
        %v8385 = vadd.f32 %v8384, %v8345
        %v8386 = vadd.f32 %v8385, %v8346
        %v8387 = vadd.f32 %v8386, %v8347
        %v8388 = vadd.f32 %v8387, %v8348
        %v8389 = vadd.f32 %v8388, %v8349
        %v8390 = vadd.f32 %v8389, %v8350
        %v8391 = vadd.f32 %v8390, %v8351
        %v8392 = vadd.f32 %v8391, %v8352
        %v8393 = vadd.f32 %v8392, %v8353
        %v8394 = vadd.f32 %v8393, %v8354
        %v8395 = vadd.f32 %v8394, %v8355
        %v8396 = vadd.f32 %v8395, %v8356
        %v8397 = vadd.f32 %v8396, %v8357
        %v8398 = vadd.f32 %v8397, %v8358
        %v8399 = vadd.f32 %v8398, %v8359
        %v8400 = vadd.f32 %v8399, %v8360
        %v8401 = vadd.f32 %v8400, %v8361
        %v8402 = vadd.f32 %v8401, %v8362
        %v8403 = vadd.f32 %v8402, %v8363
        %v8404 = vadd.f32 %v8403, %v8364
        %v8405 = vadd.f32 %v8404, %v8365
        %v8406 = vadd.f32 %v8405, %v8366
        %v8407 = vadd.f32 %v8406, %v8367
        %v8408 = vadd.f32 %v8407, %v8368
        %v8409 = vadd.f32 %v8408, %v8369
        %v8410 = vadd.f32 %v8409, %v8370
        %v8411 = vadd.f32 %v8410, %v8371
        %vm8412 = vcmask 1043456
        %v8413 = vsel %vm8412, %v8372, 0.0
        %v8414 = vadd.f32 %v8411, %v8413
        %v8415 = vrot.slane %v8414, 4
        %v8416 = vadd.f32 %v8414, %v8415
        %v8417 = vrot.slane %v8416, 2
        %v8418 = vadd.f32 %v8416, %v8417
        %v8419 = vrot.slane %v8418, 1
        %v8420 = vadd.f32 %v8418, %v8419
        %v8421 = vld [vmem:[%s8] sm:$0xff]
        %v8422 = vld [vmem:[%s8 + $0x8] sm:$0xff]
        %v8423 = vld [vmem:[%s8 + $0x10] sm:$0xff]
        %v8424 = vld [vmem:[%s8 + $0x18] sm:$0xff]
        %v8425 = vld [vmem:[%s8 + $0x20] sm:$0xff]
        %v8426 = vld [vmem:[%s8 + $0x28] sm:$0xff]
        %v8427 = vld [vmem:[%s8 + $0x30] sm:$0xff]
        %v8428 = vld [vmem:[%s8 + $0x38] sm:$0xff]
        %v8429 = vld [vmem:[%s8 + $0x40] sm:$0xff]
        %v8430 = vld [vmem:[%s8 + $0x48] sm:$0xff]
        %v8431 = vld [vmem:[%s8 + $0x50] sm:$0xff]
        %v8432 = vld [vmem:[%s8 + $0x58] sm:$0xff]
        %v8433 = vld [vmem:[%s8 + $0x60] sm:$0xff]
        %v8434 = vld [vmem:[%s8 + $0x68] sm:$0xff]
        %v8435 = vld [vmem:[%s8 + $0x70] sm:$0xff]
        %v8436 = vld [vmem:[%s8 + $0x78] sm:$0xff]
        %v8437 = vld [vmem:[%s9] sm:$0x1]
        %8438 = vmatpush.msra.mxu0 %v8436
        %8439 = vmatpush.msra.mxu0 %v8435
        %8440 = vmatpush.msra.mxu0 %v8434
        %8441 = vmatpush.msra.mxu0 %v8433
        %8442 = vmatpush.msra.mxu0 %v8432
        %8443 = vmatpush.msra.mxu0 %v8431
        %8444 = vmatpush.msra.mxu0 %v8430
        %8445 = vmatpush.msra.mxu0 %v8429
        %8446 = vmatpush.msra.mxu0 %v8428
        %8447 = vmatpush.msra.mxu0 %v8427
        %8448 = vmatpush.msra.mxu0 %v8426
        %8449 = vmatpush.msra.mxu0 %v8425
        %8450 = vmatpush.msra.mxu0 %v8424
        %8451 = vmatpush.msra.mxu0 %v8423
        %8452 = vmatpush.msra.mxu0 %v8422
        %8453 = vmatpush.msra.mxu0 %v8421
        %8454 = vmatmul.f32.gmra.mxu0 %v8420
        %v8455 = vpop.f32.mrf.mxu0
        %v8456 = vadd.f32 %v8437, %v8455
        %8457 = vdwg.mxu0
        %8458 = vst [vmem:[%s351] sm:$0x1] %v8456
        %s8459 = sand.u32 %s247, 1
        %s8460 = scalar_lea.sflag [#allocation5], %s8459
        %s8461 = sand.u32 %s247, 1
        %s8462 = scalar_lea.vmem [#allocation4], %s8461
        // Predicated region
        $region61: #{fwd.1} parent=59 // pred_check
          %p8463 = pneg %p257
        $region62: #{fwd.1} parent=59 // pred_check_branch
          %8465 = sbr.rel (%p8463) target = $region64
        $region63: #{fwd.1} parent=59 // pred_region
          %8467 = vsyncadd %s8460, 0
          %s8468 = scalar_lea.hbm %s10, %s24
          %s8470 = sshll.u32 %s8462, 4
          %s8471 = int_to_ptr.vmem [resolvable:$true] %s8470
          %s8472 = sshll.u32 %s8468, 4
          %s8473 = int_to_ptr.hbm [resolvable:$true] %s8472
          %8475 = dma.vmem_to_hbm [thread:$0]  %s8471, 16, %s8473, %s8460
        $region64: #{fwd.1} parent=59 // pred_fallthru
          _
      $region60: #{fwd.1} parent=5 // pred_fallthru
        _
      %p8476 = scmp.le.s32.totalorder 2, %s19
      // Predicated region
      $region65: #{fwd.1} parent=5 // pred_check
        %p8477 = pneg %p8476
      $region66: #{fwd.1} parent=5 // pred_check_branch
        %8479 = sbr.rel (%p8477) target = $region68
      $region67: #{fwd.1} parent=5 // pred_region
        %s8480 = ssub.s32 %s19, 2
        // Predicated region
        $region69: #{fwd.1} parent=67 // pred_check
          %p8481 = pneg %p263
        $region70: #{fwd.1} parent=67 // pred_check_branch
          %8483 = sbr.rel (%p8481) target = $region72
        $region71: #{fwd.1} parent=67 // pred_region
          %s8484 = sand.u32 %s248, 1
          %s8485 = scalar_lea.sflag [#allocation5], %s8484
          %s8486 = sand.u32 %s248, 1
          %s8487 = scalar_lea.vmem [#allocation4], %s8486
          %8489 = dma.done %s8485, 16
        $region72: #{fwd.1} parent=67 // pred_fallthru
          _
      $region68: #{fwd.1} parent=5 // pred_fallthru
        _
    $region6: #{fwd.1} parent=1 // loop_footer
      %s23 = sadd.s32 1, %s19
    $region7: #{fwd.1} parent=1 // loop_footer_branch
      %18 = sbr.rel target = $region3
    $region8: #{fwd.1} parent=1 // loop_exit
      _
    %8490 = vsyncpa [#allocation5], 1
    %s8491 = scalar_lea.sflag [#allocation5], 1
    %8492 = vsyncpa %s8491, 1

</llo_original>
